<compile_context>
chip_gen: v6e
topology: v6e:2x2x1
jax: 0.10.0
libtpu: 0.0.40
codegen_flags: <defaults>
</compile_context>

<pallas_src>
import jax
import jax.numpy as jnp
from jax import lax
from jax.experimental import pallas as pl
from jax.experimental.pallas import tpu as pltpu


_VMEM = pl.BlockSpec(memory_space=pltpu.MemorySpace.VMEM)
_BN_EPS = 1e-5
_FC_PAD = 128          # lane-dense FC output width; sliced to num_classes outside


# ---------------------------------------------------------------------------
# The single fused kernel
# ---------------------------------------------------------------------------
def _make_fused_kernel(plan):
    """Entire ResNet1d forward in one kernel invocation.

    plan = {"batch": B, "l_stem": L_after_conv1,
            "blocks": ((stride, has_downsample), ...)}
    Ref order: xcol, stem_w, stem_g, stem_b,
               per block: w1,g1,b1, w2,g2,b2, [wd,gd,bd],
               fc_w, fc_b, out.
    Activations are [B*L, C] values (batch folded into matmul M).
    """
    B = plan["batch"]

    def _row_masks(L_in, L_out):
        """Row/col iota + same-batch mask for a [B*L_out, B*L_in] selector."""
        M_out, M_in = B * L_out, B * L_in
        ro = lax.broadcasted_iota(jnp.int32, (M_out, M_in), 0)
        ri = lax.broadcasted_iota(jnp.int32, (M_out, M_in), 1)
        same = None
        for b in range(B):              # comparisons only (no in-kernel int div)
            mb = ((ro >= b * L_out) & (ro < (b + 1) * L_out) &
                  (ri >= b * L_in) & (ri < (b + 1) * L_in))
            same = mb if same is None else (same | mb)
        return ro, ri, same

    def _gather_taps(x, L_in, L_out, stride, pad, ksize):
        """Per-tap input slabs [B*L_out, Cin] (f32) via exact 0/1 selection
        matmuls.  Handles stride, zero padding and batch boundaries in one
        formula, keeping batch folded into M."""
        assert L_in == stride * L_out
        ro, ri, same = _row_masks(L_in, L_out)
        taps = []
        for t in range(ksize):
            sel = same & (ri == stride * ro + (t - pad))
            g = jnp.where(sel, 1.0, 0.0).astype(x.dtype)
            taps.append(jnp.dot(g, x, preferred_element_type=jnp.float32))
        return taps

    def _bn(acc, g_ref, b_ref):
        """BatchNorm (batch stats), single pass, folded into one scale/shift FMA."""
        inv_n = 1.0 / float(acc.shape[0])
        mean = jnp.sum(acc, axis=0, keepdims=True) * inv_n
        var = jnp.sum(acc * acc, axis=0, keepdims=True) * inv_n - mean * mean
        var = jnp.maximum(var, 0.0)     # guard E[y^2]-E[y]^2 cancellation
        scale = g_ref[...] * lax.rsqrt(var + _BN_EPS)
        shift = b_ref[...] - mean * scale
        return acc * scale + shift

    def _conv_bn(taps, w_ref, g_ref, b_ref, residual=None, relu=True):
        """sum_t taps[t] @ w[t]  ->  BN  ->  (+residual)  ->  (ReLU), all f32."""
        acc = None
        for t, tap in enumerate(taps):
            d = jnp.dot(tap.astype(jnp.bfloat16), w_ref[t],
                        preferred_element_type=jnp.float32)
            acc = d if acc is None else acc + d
        y = _bn(acc, g_ref, b_ref)
        if residual is not None:
            y = y + residual
        if relu:
            y = jnp.maximum(y, 0.0)
        return y

    def kernel(*refs):
        *in_refs, out_ref = refs
        it = iter(in_refs)

        # ---- stem: conv1(k=7,s=2,p=3) + bn1 + relu ---------------------------
        # Taps pre-merged into K=7*Cin by the wrapper's im2col of the tiny
        # input: one dense MXU matmul instead of 7 K=4 pushes.
        xcol_ref = next(it)
        w, g, b = next(it), next(it), next(it)
        x = _conv_bn([xcol_ref[...]], w, g, b)                  # [B*32, 64] f32
        L = plan["l_stem"]

        # ---- maxpool(k=3, s=2, p=1) ------------------------------------------
        # Zero rows from the gather stand in for the pad; safe because the
        # input is post-ReLU (>= 0), so a 0 can never beat the true window max.
        t0, t1, t2 = _gather_taps(x.astype(jnp.bfloat16), L, L // 2, 2, 1, 3)
        x = jnp.maximum(jnp.maximum(t0, t1), t2)                # f32
        L //= 2

        # ---- layer1..layer4 (BasicBlock, expansion=1) ------------------------
        for stride, has_ds in plan["blocks"]:
            w1, g1, b1 = next(it), next(it), next(it)
            w2, g2, b2 = next(it), next(it), next(it)
            if has_ds:
                wd, gd, bd = next(it), next(it), next(it)
            L_out = L // stride
            x_bf16 = x.astype(jnp.bfloat16)

            h = _conv_bn(_gather_taps(x_bf16, L, L_out, stride, 1, 3),
                         w1, g1, b1, relu=True)
            if has_ds:      # shortcut: 1x1 stride-s conv + BN (no ReLU)
                res = _conv_bn(_gather_taps(x_bf16, L, L_out, stride, 0, 1),
                               wd, gd, bd, relu=False)
            else:           # identity shortcut
                res = x
            x = _conv_bn(_gather_taps(h.astype(jnp.bfloat16), L_out, L_out, 1, 1, 3),
                         w2, g2, b2, residual=res, relu=True)
            L = L_out

        # ---- adaptive avgpool(1) + flatten + fc (kept in f32) ----------------
        fcw_ref, fcb_ref = next(it), next(it)
        ro = lax.broadcasted_iota(jnp.int32, (B, B * L), 0)
        ri = lax.broadcasted_iota(jnp.int32, (B, B * L), 1)
        sel = None
        for bi in range(B):
            mb = (ro == bi) & (ri >= bi * L) & (ri < (bi + 1) * L)
            sel = mb if sel is None else (sel | mb)
        pool = jnp.where(sel, 1.0 / L, 0.0)                     # [B, B*L] f32
        pooled = jnp.dot(pool, x, preferred_element_type=jnp.float32)   # [B, 512]
        out_ref[...] = (jnp.dot(pooled, fcw_ref[...],
                                preferred_element_type=jnp.float32)
                        + fcb_ref[...])                         # lane-dense [B, 128]

    return kernel


# ---------------------------------------------------------------------------
# Plain-JAX glue: stem im2col (tiny, one-time) + the single pallas_call
# ---------------------------------------------------------------------------
def _stem_im2col(x_nlc, ksize=7, stride=2, pad=3):
    """[B, L, C] -> [B*L_out, ksize*C] bf16, columns ordered (tap, channel)."""
    B, L, C = x_nlc.shape
    l_out = (L + 2 * pad - ksize) // stride + 1
    xp = jnp.pad(x_nlc, ((0, 0), (pad, pad), (0, 0)))
    cols = [xp[:, t:t + stride * (l_out - 1) + 1:stride, :] for t in range(ksize)]
    return jnp.concatenate(cols, axis=-1).reshape(B * l_out, ksize * C), l_out


def resnet1d_forward(params, x_ncl):
    B = x_ncl.shape[0]
    x_nlc = jnp.transpose(x_ncl, (0, 2, 1)).astype(jnp.bfloat16)     # NCL -> NLC
    xcol, l_stem = _stem_im2col(x_nlc)                               # [B*32, 28]

    args = [xcol, params["stem_w"], *params["stem_bn"]]
    blocks_plan = []
    for layer in params["layers"]:
        for blk in layer:
            args += [blk["w1"], *blk["bn1"], blk["w2"], *blk["bn2"]]
            has_ds = blk["downsample"] is not None
            if has_ds:
                wd, bnd = blk["downsample"]
                args += [wd, *bnd]
            blocks_plan.append((blk["stride"], has_ds))
    args += [params["fc_w"], params["fc_b"]]

    plan = {"batch": B, "l_stem": l_stem, "blocks": tuple(blocks_plan)}
    out = pl.pallas_call(
        _make_fused_kernel(plan),
        out_shape=jax.ShapeDtypeStruct((B, params["fc_w"].shape[-1]), jnp.float32),
        in_specs=[_VMEM] * len(args),
        out_specs=_VMEM,
    )(*args)
    return out[:, :params["num_classes"]]


# ---------------------------------------------------------------------------
# Model parameters (same init scheme as the PyTorch module)
# ---------------------------------------------------------------------------
def _conv_w(key, k, cin, cout):
    # kaiming_normal_(mode='fan_out', nonlinearity='relu'): std = sqrt(2/(cout*k))
    std = (2.0 / (cout * k)) ** 0.5
    return (jax.random.normal(key, (k, cin, cout), jnp.float32) * std).astype(jnp.bfloat16)


def _bn_init(c):
    return (jnp.ones((1, c), jnp.float32), jnp.zeros((1, c), jnp.float32))


def init_params(key, num_blocks=(1, 1, 1, 1), num_classes=2, in_channels=4):
    keys = iter(jax.random.split(key, 64))
    stem = _conv_w(next(keys), 7, in_channels, 64)
    params = {
        "stem_w": stem.reshape(1, 7 * in_channels, 64),   # stem taps merged into K
        "stem_bn": _bn_init(64),
        "num_classes": num_classes,
    }
    layers, in_c = [], 64
    for out_c, nb, stride in zip((64, 128, 256, 512), num_blocks, (1, 2, 2, 2)):
        blocks = []
        for bi in range(nb):
            s = stride if bi == 0 else 1
            blk = {
                "stride": s,
                "w1": _conv_w(next(keys), 3, in_c, out_c), "bn1": _bn_init(out_c),
                "w2": _conv_w(next(keys), 3, out_c, out_c), "bn2": _bn_init(out_c),
                "downsample": None,
            }
            if s != 1 or in_c != out_c:
                blk["downsample"] = (_conv_w(next(keys), 1, in_c, out_c),
                                     _bn_init(out_c))
            blocks.append(blk)
            in_c = out_c
        layers.append(blocks)
    params["layers"] = layers

    # nn.Linear default init; FC kept in f32 (review fix), padded lane-dense.
    bound = 512 ** -0.5
    fc_w = jax.random.uniform(next(keys), (512, num_classes), jnp.float32, -bound, bound)
    fc_b = jax.random.uniform(next(keys), (1, num_classes), jnp.float32, -bound, bound)
    params["fc_w"] = jnp.pad(fc_w, ((0, 0), (0, _FC_PAD - num_classes)))
    params["fc_b"] = jnp.pad(fc_b, ((0, 0), (0, _FC_PAD - num_classes)))
    return params


# ---------------------------------------------------------------------------
if __name__ == "__main__":
    key = jax.random.PRNGKey(0)
    pkey, xkey = jax.random.split(key)
    params = init_params(pkey)

    # Small input consistent with Conv1d(4, 64, ...): [batch=2, channels=4, length=64]
    x = jax.random.normal(xkey, (2, 4, 64), jnp.float32)

    fwd = jax.jit(lambda inp: resnet1d_forward(params, inp))
    out = fwd(x)
    jax.block_until_ready(out)

    assert out.shape == (2, 2), out.shape
    assert bool(jnp.all(jnp.isfinite(out)))
    print("KERNEL_OK")
</pallas_src>

<mosaic_0001>
module attributes {stable_mosaic.version = 11 : i64} {
  func.func @kernel(%arg0: memref<64x28xbf16, #tpu.memory_space<vmem>>, %arg1: memref<1x28x64xbf16, #tpu.memory_space<vmem>>, %arg2: memref<1x64xf32, #tpu.memory_space<vmem>>, %arg3: memref<1x64xf32, #tpu.memory_space<vmem>>, %arg4: memref<3x64x64xbf16, #tpu.memory_space<vmem>>, %arg5: memref<1x64xf32, #tpu.memory_space<vmem>>, %arg6: memref<1x64xf32, #tpu.memory_space<vmem>>, %arg7: memref<3x64x64xbf16, #tpu.memory_space<vmem>>, %arg8: memref<1x64xf32, #tpu.memory_space<vmem>>, %arg9: memref<1x64xf32, #tpu.memory_space<vmem>>, %arg10: memref<3x64x128xbf16, #tpu.memory_space<vmem>>, %arg11: memref<1x128xf32, #tpu.memory_space<vmem>>, %arg12: memref<1x128xf32, #tpu.memory_space<vmem>>, %arg13: memref<3x128x128xbf16, #tpu.memory_space<vmem>>, %arg14: memref<1x128xf32, #tpu.memory_space<vmem>>, %arg15: memref<1x128xf32, #tpu.memory_space<vmem>>, %arg16: memref<1x64x128xbf16, #tpu.memory_space<vmem>>, %arg17: memref<1x128xf32, #tpu.memory_space<vmem>>, %arg18: memref<1x128xf32, #tpu.memory_space<vmem>>, %arg19: memref<3x128x256xbf16, #tpu.memory_space<vmem>>, %arg20: memref<1x256xf32, #tpu.memory_space<vmem>>, %arg21: memref<1x256xf32, #tpu.memory_space<vmem>>, %arg22: memref<3x256x256xbf16, #tpu.memory_space<vmem>>, %arg23: memref<1x256xf32, #tpu.memory_space<vmem>>, %arg24: memref<1x256xf32, #tpu.memory_space<vmem>>, %arg25: memref<1x128x256xbf16, #tpu.memory_space<vmem>>, %arg26: memref<1x256xf32, #tpu.memory_space<vmem>>, %arg27: memref<1x256xf32, #tpu.memory_space<vmem>>, %arg28: memref<3x256x512xbf16, #tpu.memory_space<vmem>>, %arg29: memref<1x512xf32, #tpu.memory_space<vmem>>, %arg30: memref<1x512xf32, #tpu.memory_space<vmem>>, %arg31: memref<3x512x512xbf16, #tpu.memory_space<vmem>>, %arg32: memref<1x512xf32, #tpu.memory_space<vmem>>, %arg33: memref<1x512xf32, #tpu.memory_space<vmem>>, %arg34: memref<1x256x512xbf16, #tpu.memory_space<vmem>>, %arg35: memref<1x512xf32, #tpu.memory_space<vmem>>, %arg36: memref<1x512xf32, #tpu.memory_space<vmem>>, %arg37: memref<512x128xf32, #tpu.memory_space<vmem>>, %arg38: memref<1x128xf32, #tpu.memory_space<vmem>>, %arg39: memref<2x128xf32, #tpu.memory_space<vmem>>) attributes {dimension_semantics = [], scalar_prefetch = 0 : i64, scratch_operands = 0 : i64, tpu.core_type = #tpu.core_type<tc>} {
    %c0 = arith.constant 0 : index
    %c0_0 = arith.constant 0 : index
    %0 = vector.load %arg0[%c0, %c0_0] : memref<64x28xbf16, #tpu.memory_space<vmem>>, vector<64x28xbf16>
    %c0_1 = arith.constant 0 : index
    %c0_2 = arith.constant 0 : index
    %c0_3 = arith.constant 0 : index
    %1 = vector.load %arg1[%c0_1, %c0_2, %c0_3] : memref<1x28x64xbf16, #tpu.memory_space<vmem>>, vector<1x28x64xbf16>
    %2 = vector.shape_cast %1 : vector<1x28x64xbf16> to vector<28x64xbf16>
    %cst = arith.constant dense<0.000000e+00> : vector<64x64xf32>
    %3 = tpu.matmul %0, %2, %cst {dimension_numbers = #tpu.dot_dimension_numbers<[1], [0], [0], [1], [0, 0, 1, 1], [], []>} : vector<64x28xbf16>, vector<28x64xbf16>, vector<64x64xf32> -> vector<64x64xf32>
    %cst_4 = arith.constant dense<0.000000e+00> : vector<64xf32>
    %4 = vector.multi_reduction <add>, %3, %cst_4 [0] : vector<64x64xf32> to vector<64xf32>
    %5 = vector.shape_cast %4 : vector<64xf32> to vector<1x64xf32>
    %cst_5 = arith.constant 1.562500e-02 : f32
    %6 = vector.broadcast %cst_5 : f32 to vector<1x64xf32>
    %7 = arith.mulf %5, %6 : vector<1x64xf32>
    %8 = arith.mulf %3, %3 : vector<64x64xf32>
    %cst_6 = arith.constant dense<0.000000e+00> : vector<64xf32>
    %9 = vector.multi_reduction <add>, %8, %cst_6 [0] : vector<64x64xf32> to vector<64xf32>
    %10 = vector.shape_cast %9 : vector<64xf32> to vector<1x64xf32>
    %cst_7 = arith.constant 1.562500e-02 : f32
    %11 = vector.broadcast %cst_7 : f32 to vector<1x64xf32>
    %12 = arith.mulf %10, %11 : vector<1x64xf32>
    %13 = arith.mulf %7, %7 : vector<1x64xf32>
    %14 = arith.subf %12, %13 : vector<1x64xf32>
    %cst_8 = arith.constant 0.000000e+00 : f32
    %15 = vector.broadcast %cst_8 : f32 to vector<1x64xf32>
    %16 = arith.maximumf %14, %15 : vector<1x64xf32>
    %c0_9 = arith.constant 0 : index
    %c0_10 = arith.constant 0 : index
    %17 = vector.load %arg2[%c0_9, %c0_10] : memref<1x64xf32, #tpu.memory_space<vmem>>, vector<1x64xf32>
    %cst_11 = arith.constant 9.99999974E-6 : f32
    %18 = vector.broadcast %cst_11 : f32 to vector<1x64xf32>
    %19 = arith.addf %16, %18 : vector<1x64xf32>
    %20 = math.rsqrt %19 : vector<1x64xf32>
    %21 = arith.mulf %17, %20 : vector<1x64xf32>
    %c0_12 = arith.constant 0 : index
    %c0_13 = arith.constant 0 : index
    %22 = vector.load %arg3[%c0_12, %c0_13] : memref<1x64xf32, #tpu.memory_space<vmem>>, vector<1x64xf32>
    %23 = arith.mulf %7, %21 : vector<1x64xf32>
    %24 = arith.subf %22, %23 : vector<1x64xf32>
    %25 = vector.broadcast %21 : vector<1x64xf32> to vector<64x64xf32>
    %26 = arith.mulf %3, %25 : vector<64x64xf32>
    %27 = vector.broadcast %24 : vector<1x64xf32> to vector<64x64xf32>
    %28 = arith.addf %26, %27 : vector<64x64xf32>
    %cst_14 = arith.constant 0.000000e+00 : f32
    %29 = vector.broadcast %cst_14 : f32 to vector<64x64xf32>
    %30 = arith.maximumf %28, %29 : vector<64x64xf32>
    %31 = arith.truncf %30 : vector<64x64xf32> to vector<64x64xbf16>
    %32 = tpu.iota {dimensions = array<i32: 0>} : vector<32x64xi32>
    %33 = tpu.iota {dimensions = array<i32: 1>} : vector<32x64xi32>
    %c0_i32 = arith.constant 0 : i32
    %34 = vector.broadcast %c0_i32 : i32 to vector<32x64xi32>
    %35 = arith.cmpi sge, %32, %34 : vector<32x64xi32>
    %c16_i32 = arith.constant 16 : i32
    %36 = vector.broadcast %c16_i32 : i32 to vector<32x64xi32>
    %37 = arith.cmpi slt, %32, %36 : vector<32x64xi32>
    %38 = arith.andi %35, %37 : vector<32x64xi1>
    %c0_i32_15 = arith.constant 0 : i32
    %39 = vector.broadcast %c0_i32_15 : i32 to vector<32x64xi32>
    %40 = arith.cmpi sge, %33, %39 : vector<32x64xi32>
    %41 = arith.andi %38, %40 : vector<32x64xi1>
    %c32_i32 = arith.constant 32 : i32
    %42 = vector.broadcast %c32_i32 : i32 to vector<32x64xi32>
    %43 = arith.cmpi slt, %33, %42 : vector<32x64xi32>
    %44 = arith.andi %41, %43 : vector<32x64xi1>
    %c16_i32_16 = arith.constant 16 : i32
    %45 = vector.broadcast %c16_i32_16 : i32 to vector<32x64xi32>
    %46 = arith.cmpi sge, %32, %45 : vector<32x64xi32>
    %c32_i32_17 = arith.constant 32 : i32
    %47 = vector.broadcast %c32_i32_17 : i32 to vector<32x64xi32>
    %48 = arith.cmpi slt, %32, %47 : vector<32x64xi32>
    %49 = arith.andi %46, %48 : vector<32x64xi1>
    %c32_i32_18 = arith.constant 32 : i32
    %50 = vector.broadcast %c32_i32_18 : i32 to vector<32x64xi32>
    %51 = arith.cmpi sge, %33, %50 : vector<32x64xi32>
    %52 = arith.andi %49, %51 : vector<32x64xi1>
    %c64_i32 = arith.constant 64 : i32
    %53 = vector.broadcast %c64_i32 : i32 to vector<32x64xi32>
    %54 = arith.cmpi slt, %33, %53 : vector<32x64xi32>
    %55 = arith.andi %52, %54 : vector<32x64xi1>
    %56 = arith.ori %44, %55 : vector<32x64xi1>
    %c2_i32 = arith.constant 2 : i32
    %57 = vector.broadcast %c2_i32 : i32 to vector<32x64xi32>
    %58 = arith.muli %57, %32 : vector<32x64xi32>
    %c-1_i32 = arith.constant -1 : i32
    %59 = vector.broadcast %c-1_i32 : i32 to vector<32x64xi32>
    %60 = arith.addi %58, %59 : vector<32x64xi32>
    %61 = arith.cmpi eq, %33, %60 : vector<32x64xi32>
    %62 = arith.andi %56, %61 : vector<32x64xi1>
    %cst_19 = arith.constant 1.000000e+00 : f32
    %cst_20 = arith.constant 0.000000e+00 : f32
    %63 = vector.broadcast %cst_19 : f32 to vector<32x64xf32>
    %64 = vector.broadcast %cst_20 : f32 to vector<32x64xf32>
    %65 = arith.select %62, %63, %64 : vector<32x64xi1>, vector<32x64xf32>
    %66 = arith.truncf %65 : vector<32x64xf32> to vector<32x64xbf16>
    %cst_21 = arith.constant dense<0.000000e+00> : vector<32x64xf32>
    %67 = tpu.matmul %66, %31, %cst_21 {dimension_numbers = #tpu.dot_dimension_numbers<[1], [0], [0], [1], [0, 0, 1, 1], [], []>} : vector<32x64xbf16>, vector<64x64xbf16>, vector<32x64xf32> -> vector<32x64xf32>
    %c2_i32_22 = arith.constant 2 : i32
    %68 = vector.broadcast %c2_i32_22 : i32 to vector<32x64xi32>
    %69 = arith.muli %68, %32 : vector<32x64xi32>
    %c0_i32_23 = arith.constant 0 : i32
    %70 = vector.broadcast %c0_i32_23 : i32 to vector<32x64xi32>
    %71 = arith.addi %69, %70 : vector<32x64xi32>
    %72 = arith.cmpi eq, %33, %71 : vector<32x64xi32>
    %73 = arith.andi %56, %72 : vector<32x64xi1>
    %cst_24 = arith.constant 1.000000e+00 : f32
    %cst_25 = arith.constant 0.000000e+00 : f32
    %74 = vector.broadcast %cst_24 : f32 to vector<32x64xf32>
    %75 = vector.broadcast %cst_25 : f32 to vector<32x64xf32>
    %76 = arith.select %73, %74, %75 : vector<32x64xi1>, vector<32x64xf32>
    %77 = arith.truncf %76 : vector<32x64xf32> to vector<32x64xbf16>
    %cst_26 = arith.constant dense<0.000000e+00> : vector<32x64xf32>
    %78 = tpu.matmul %77, %31, %cst_26 {dimension_numbers = #tpu.dot_dimension_numbers<[1], [0], [0], [1], [0, 0, 1, 1], [], []>} : vector<32x64xbf16>, vector<64x64xbf16>, vector<32x64xf32> -> vector<32x64xf32>
    %c2_i32_27 = arith.constant 2 : i32
    %79 = vector.broadcast %c2_i32_27 : i32 to vector<32x64xi32>
    %80 = arith.muli %79, %32 : vector<32x64xi32>
    %c1_i32 = arith.constant 1 : i32
    %81 = vector.broadcast %c1_i32 : i32 to vector<32x64xi32>
    %82 = arith.addi %80, %81 : vector<32x64xi32>
    %83 = arith.cmpi eq, %33, %82 : vector<32x64xi32>
    %84 = arith.andi %56, %83 : vector<32x64xi1>
    %cst_28 = arith.constant 1.000000e+00 : f32
    %cst_29 = arith.constant 0.000000e+00 : f32
    %85 = vector.broadcast %cst_28 : f32 to vector<32x64xf32>
    %86 = vector.broadcast %cst_29 : f32 to vector<32x64xf32>
    %87 = arith.select %84, %85, %86 : vector<32x64xi1>, vector<32x64xf32>
    %88 = arith.truncf %87 : vector<32x64xf32> to vector<32x64xbf16>
    %cst_30 = arith.constant dense<0.000000e+00> : vector<32x64xf32>
    %89 = tpu.matmul %88, %31, %cst_30 {dimension_numbers = #tpu.dot_dimension_numbers<[1], [0], [0], [1], [0, 0, 1, 1], [], []>} : vector<32x64xbf16>, vector<64x64xbf16>, vector<32x64xf32> -> vector<32x64xf32>
    %90 = arith.maximumf %67, %78 : vector<32x64xf32>
    %91 = arith.maximumf %90, %89 : vector<32x64xf32>
    %92 = arith.truncf %91 : vector<32x64xf32> to vector<32x64xbf16>
    %93 = tpu.iota {dimensions = array<i32: 0>} : vector<32x32xi32>
    %94 = tpu.iota {dimensions = array<i32: 1>} : vector<32x32xi32>
    %c0_i32_31 = arith.constant 0 : i32
    %95 = vector.broadcast %c0_i32_31 : i32 to vector<32x32xi32>
    %96 = arith.cmpi sge, %93, %95 : vector<32x32xi32>
    %c16_i32_32 = arith.constant 16 : i32
    %97 = vector.broadcast %c16_i32_32 : i32 to vector<32x32xi32>
    %98 = arith.cmpi slt, %93, %97 : vector<32x32xi32>
    %99 = arith.andi %96, %98 : vector<32x32xi1>
    %c0_i32_33 = arith.constant 0 : i32
    %100 = vector.broadcast %c0_i32_33 : i32 to vector<32x32xi32>
    %101 = arith.cmpi sge, %94, %100 : vector<32x32xi32>
    %102 = arith.andi %99, %101 : vector<32x32xi1>
    %c16_i32_34 = arith.constant 16 : i32
    %103 = vector.broadcast %c16_i32_34 : i32 to vector<32x32xi32>
    %104 = arith.cmpi slt, %94, %103 : vector<32x32xi32>
    %105 = arith.andi %102, %104 : vector<32x32xi1>
    %c16_i32_35 = arith.constant 16 : i32
    %106 = vector.broadcast %c16_i32_35 : i32 to vector<32x32xi32>
    %107 = arith.cmpi sge, %93, %106 : vector<32x32xi32>
    %c32_i32_36 = arith.constant 32 : i32
    %108 = vector.broadcast %c32_i32_36 : i32 to vector<32x32xi32>
    %109 = arith.cmpi slt, %93, %108 : vector<32x32xi32>
    %110 = arith.andi %107, %109 : vector<32x32xi1>
    %c16_i32_37 = arith.constant 16 : i32
    %111 = vector.broadcast %c16_i32_37 : i32 to vector<32x32xi32>
    %112 = arith.cmpi sge, %94, %111 : vector<32x32xi32>
    %113 = arith.andi %110, %112 : vector<32x32xi1>
    %c32_i32_38 = arith.constant 32 : i32
    %114 = vector.broadcast %c32_i32_38 : i32 to vector<32x32xi32>
    %115 = arith.cmpi slt, %94, %114 : vector<32x32xi32>
    %116 = arith.andi %113, %115 : vector<32x32xi1>
    %117 = arith.ori %105, %116 : vector<32x32xi1>
    %c1_i32_39 = arith.constant 1 : i32
    %118 = vector.broadcast %c1_i32_39 : i32 to vector<32x32xi32>
    %119 = arith.muli %118, %93 : vector<32x32xi32>
    %c-1_i32_40 = arith.constant -1 : i32
    %120 = vector.broadcast %c-1_i32_40 : i32 to vector<32x32xi32>
    %121 = arith.addi %119, %120 : vector<32x32xi32>
    %122 = arith.cmpi eq, %94, %121 : vector<32x32xi32>
    %123 = arith.andi %117, %122 : vector<32x32xi1>
    %cst_41 = arith.constant 1.000000e+00 : f32
    %cst_42 = arith.constant 0.000000e+00 : f32
    %124 = vector.broadcast %cst_41 : f32 to vector<32x32xf32>
    %125 = vector.broadcast %cst_42 : f32 to vector<32x32xf32>
    %126 = arith.select %123, %124, %125 : vector<32x32xi1>, vector<32x32xf32>
    %127 = arith.truncf %126 : vector<32x32xf32> to vector<32x32xbf16>
    %cst_43 = arith.constant dense<0.000000e+00> : vector<32x64xf32>
    %128 = tpu.matmul %127, %92, %cst_43 {dimension_numbers = #tpu.dot_dimension_numbers<[1], [0], [0], [1], [0, 0, 1, 1], [], []>} : vector<32x32xbf16>, vector<32x64xbf16>, vector<32x64xf32> -> vector<32x64xf32>
    %c1_i32_44 = arith.constant 1 : i32
    %129 = vector.broadcast %c1_i32_44 : i32 to vector<32x32xi32>
    %130 = arith.muli %129, %93 : vector<32x32xi32>
    %c0_i32_45 = arith.constant 0 : i32
    %131 = vector.broadcast %c0_i32_45 : i32 to vector<32x32xi32>
    %132 = arith.addi %130, %131 : vector<32x32xi32>
    %133 = arith.cmpi eq, %94, %132 : vector<32x32xi32>
    %134 = arith.andi %117, %133 : vector<32x32xi1>
    %cst_46 = arith.constant 1.000000e+00 : f32
    %cst_47 = arith.constant 0.000000e+00 : f32
    %135 = vector.broadcast %cst_46 : f32 to vector<32x32xf32>
    %136 = vector.broadcast %cst_47 : f32 to vector<32x32xf32>
    %137 = arith.select %134, %135, %136 : vector<32x32xi1>, vector<32x32xf32>
    %138 = arith.truncf %137 : vector<32x32xf32> to vector<32x32xbf16>
    %cst_48 = arith.constant dense<0.000000e+00> : vector<32x64xf32>
    %139 = tpu.matmul %138, %92, %cst_48 {dimension_numbers = #tpu.dot_dimension_numbers<[1], [0], [0], [1], [0, 0, 1, 1], [], []>} : vector<32x32xbf16>, vector<32x64xbf16>, vector<32x64xf32> -> vector<32x64xf32>
    %c1_i32_49 = arith.constant 1 : i32
    %140 = vector.broadcast %c1_i32_49 : i32 to vector<32x32xi32>
    %141 = arith.muli %140, %93 : vector<32x32xi32>
    %c1_i32_50 = arith.constant 1 : i32
    %142 = vector.broadcast %c1_i32_50 : i32 to vector<32x32xi32>
    %143 = arith.addi %141, %142 : vector<32x32xi32>
    %144 = arith.cmpi eq, %94, %143 : vector<32x32xi32>
    %145 = arith.andi %117, %144 : vector<32x32xi1>
    %cst_51 = arith.constant 1.000000e+00 : f32
    %cst_52 = arith.constant 0.000000e+00 : f32
    %146 = vector.broadcast %cst_51 : f32 to vector<32x32xf32>
    %147 = vector.broadcast %cst_52 : f32 to vector<32x32xf32>
    %148 = arith.select %145, %146, %147 : vector<32x32xi1>, vector<32x32xf32>
    %149 = arith.truncf %148 : vector<32x32xf32> to vector<32x32xbf16>
    %cst_53 = arith.constant dense<0.000000e+00> : vector<32x64xf32>
    %150 = tpu.matmul %149, %92, %cst_53 {dimension_numbers = #tpu.dot_dimension_numbers<[1], [0], [0], [1], [0, 0, 1, 1], [], []>} : vector<32x32xbf16>, vector<32x64xbf16>, vector<32x64xf32> -> vector<32x64xf32>
    %151 = arith.truncf %128 : vector<32x64xf32> to vector<32x64xbf16>
    %c0_54 = arith.constant 0 : index
    %c0_55 = arith.constant 0 : index
    %c0_56 = arith.constant 0 : index
    %152 = vector.load %arg4[%c0_54, %c0_55, %c0_56] : memref<3x64x64xbf16, #tpu.memory_space<vmem>>, vector<1x64x64xbf16>
    %153 = vector.shape_cast %152 : vector<1x64x64xbf16> to vector<64x64xbf16>
    %cst_57 = arith.constant dense<0.000000e+00> : vector<32x64xf32>
    %154 = tpu.matmul %151, %153, %cst_57 {dimension_numbers = #tpu.dot_dimension_numbers<[1], [0], [0], [1], [0, 0, 1, 1], [], []>} : vector<32x64xbf16>, vector<64x64xbf16>, vector<32x64xf32> -> vector<32x64xf32>
    %155 = arith.truncf %139 : vector<32x64xf32> to vector<32x64xbf16>
    %c1 = arith.constant 1 : index
    %c0_58 = arith.constant 0 : index
    %c0_59 = arith.constant 0 : index
    %156 = vector.load %arg4[%c1, %c0_58, %c0_59] : memref<3x64x64xbf16, #tpu.memory_space<vmem>>, vector<1x64x64xbf16>
    %157 = vector.shape_cast %156 : vector<1x64x64xbf16> to vector<64x64xbf16>
    %cst_60 = arith.constant dense<0.000000e+00> : vector<32x64xf32>
    %158 = tpu.matmul %155, %157, %cst_60 {dimension_numbers = #tpu.dot_dimension_numbers<[1], [0], [0], [1], [0, 0, 1, 1], [], []>} : vector<32x64xbf16>, vector<64x64xbf16>, vector<32x64xf32> -> vector<32x64xf32>
    %159 = arith.addf %154, %158 : vector<32x64xf32>
    %160 = arith.truncf %150 : vector<32x64xf32> to vector<32x64xbf16>
    %c2 = arith.constant 2 : index
    %c0_61 = arith.constant 0 : index
    %c0_62 = arith.constant 0 : index
    %161 = vector.load %arg4[%c2, %c0_61, %c0_62] : memref<3x64x64xbf16, #tpu.memory_space<vmem>>, vector<1x64x64xbf16>
    %162 = vector.shape_cast %161 : vector<1x64x64xbf16> to vector<64x64xbf16>
    %cst_63 = arith.constant dense<0.000000e+00> : vector<32x64xf32>
    %163 = tpu.matmul %160, %162, %cst_63 {dimension_numbers = #tpu.dot_dimension_numbers<[1], [0], [0], [1], [0, 0, 1, 1], [], []>} : vector<32x64xbf16>, vector<64x64xbf16>, vector<32x64xf32> -> vector<32x64xf32>
    %164 = arith.addf %159, %163 : vector<32x64xf32>
    %cst_64 = arith.constant dense<0.000000e+00> : vector<64xf32>
    %165 = vector.multi_reduction <add>, %164, %cst_64 [0] : vector<32x64xf32> to vector<64xf32>
    %166 = vector.shape_cast %165 : vector<64xf32> to vector<1x64xf32>
    %cst_65 = arith.constant 3.125000e-02 : f32
    %167 = vector.broadcast %cst_65 : f32 to vector<1x64xf32>
    %168 = arith.mulf %166, %167 : vector<1x64xf32>
    %169 = arith.mulf %164, %164 : vector<32x64xf32>
    %cst_66 = arith.constant dense<0.000000e+00> : vector<64xf32>
    %170 = vector.multi_reduction <add>, %169, %cst_66 [0] : vector<32x64xf32> to vector<64xf32>
    %171 = vector.shape_cast %170 : vector<64xf32> to vector<1x64xf32>
    %cst_67 = arith.constant 3.125000e-02 : f32
    %172 = vector.broadcast %cst_67 : f32 to vector<1x64xf32>
    %173 = arith.mulf %171, %172 : vector<1x64xf32>
    %174 = arith.mulf %168, %168 : vector<1x64xf32>
    %175 = arith.subf %173, %174 : vector<1x64xf32>
    %cst_68 = arith.constant 0.000000e+00 : f32
    %176 = vector.broadcast %cst_68 : f32 to vector<1x64xf32>
    %177 = arith.maximumf %175, %176 : vector<1x64xf32>
    %c0_69 = arith.constant 0 : index
    %c0_70 = arith.constant 0 : index
    %178 = vector.load %arg5[%c0_69, %c0_70] : memref<1x64xf32, #tpu.memory_space<vmem>>, vector<1x64xf32>
    %cst_71 = arith.constant 9.99999974E-6 : f32
    %179 = vector.broadcast %cst_71 : f32 to vector<1x64xf32>
    %180 = arith.addf %177, %179 : vector<1x64xf32>
    %181 = math.rsqrt %180 : vector<1x64xf32>
    %182 = arith.mulf %178, %181 : vector<1x64xf32>
    %c0_72 = arith.constant 0 : index
    %c0_73 = arith.constant 0 : index
    %183 = vector.load %arg6[%c0_72, %c0_73] : memref<1x64xf32, #tpu.memory_space<vmem>>, vector<1x64xf32>
    %184 = arith.mulf %168, %182 : vector<1x64xf32>
    %185 = arith.subf %183, %184 : vector<1x64xf32>
    %186 = vector.broadcast %182 : vector<1x64xf32> to vector<32x64xf32>
    %187 = arith.mulf %164, %186 : vector<32x64xf32>
    %188 = vector.broadcast %185 : vector<1x64xf32> to vector<32x64xf32>
    %189 = arith.addf %187, %188 : vector<32x64xf32>
    %cst_74 = arith.constant 0.000000e+00 : f32
    %190 = vector.broadcast %cst_74 : f32 to vector<32x64xf32>
    %191 = arith.maximumf %189, %190 : vector<32x64xf32>
    %192 = arith.truncf %191 : vector<32x64xf32> to vector<32x64xbf16>
    %193 = tpu.iota {dimensions = array<i32: 0>} : vector<32x32xi32>
    %194 = tpu.iota {dimensions = array<i32: 1>} : vector<32x32xi32>
    %c0_i32_75 = arith.constant 0 : i32
    %195 = vector.broadcast %c0_i32_75 : i32 to vector<32x32xi32>
    %196 = arith.cmpi sge, %193, %195 : vector<32x32xi32>
    %c16_i32_76 = arith.constant 16 : i32
    %197 = vector.broadcast %c16_i32_76 : i32 to vector<32x32xi32>
    %198 = arith.cmpi slt, %193, %197 : vector<32x32xi32>
    %199 = arith.andi %196, %198 : vector<32x32xi1>
    %c0_i32_77 = arith.constant 0 : i32
    %200 = vector.broadcast %c0_i32_77 : i32 to vector<32x32xi32>
    %201 = arith.cmpi sge, %194, %200 : vector<32x32xi32>
    %202 = arith.andi %199, %201 : vector<32x32xi1>
    %c16_i32_78 = arith.constant 16 : i32
    %203 = vector.broadcast %c16_i32_78 : i32 to vector<32x32xi32>
    %204 = arith.cmpi slt, %194, %203 : vector<32x32xi32>
    %205 = arith.andi %202, %204 : vector<32x32xi1>
    %c16_i32_79 = arith.constant 16 : i32
    %206 = vector.broadcast %c16_i32_79 : i32 to vector<32x32xi32>
    %207 = arith.cmpi sge, %193, %206 : vector<32x32xi32>
    %c32_i32_80 = arith.constant 32 : i32
    %208 = vector.broadcast %c32_i32_80 : i32 to vector<32x32xi32>
    %209 = arith.cmpi slt, %193, %208 : vector<32x32xi32>
    %210 = arith.andi %207, %209 : vector<32x32xi1>
    %c16_i32_81 = arith.constant 16 : i32
    %211 = vector.broadcast %c16_i32_81 : i32 to vector<32x32xi32>
    %212 = arith.cmpi sge, %194, %211 : vector<32x32xi32>
    %213 = arith.andi %210, %212 : vector<32x32xi1>
    %c32_i32_82 = arith.constant 32 : i32
    %214 = vector.broadcast %c32_i32_82 : i32 to vector<32x32xi32>
    %215 = arith.cmpi slt, %194, %214 : vector<32x32xi32>
    %216 = arith.andi %213, %215 : vector<32x32xi1>
    %217 = arith.ori %205, %216 : vector<32x32xi1>
    %c1_i32_83 = arith.constant 1 : i32
    %218 = vector.broadcast %c1_i32_83 : i32 to vector<32x32xi32>
    %219 = arith.muli %218, %193 : vector<32x32xi32>
    %c-1_i32_84 = arith.constant -1 : i32
    %220 = vector.broadcast %c-1_i32_84 : i32 to vector<32x32xi32>
    %221 = arith.addi %219, %220 : vector<32x32xi32>
    %222 = arith.cmpi eq, %194, %221 : vector<32x32xi32>
    %223 = arith.andi %217, %222 : vector<32x32xi1>
    %cst_85 = arith.constant 1.000000e+00 : f32
    %cst_86 = arith.constant 0.000000e+00 : f32
    %224 = vector.broadcast %cst_85 : f32 to vector<32x32xf32>
    %225 = vector.broadcast %cst_86 : f32 to vector<32x32xf32>
    %226 = arith.select %223, %224, %225 : vector<32x32xi1>, vector<32x32xf32>
    %227 = arith.truncf %226 : vector<32x32xf32> to vector<32x32xbf16>
    %cst_87 = arith.constant dense<0.000000e+00> : vector<32x64xf32>
    %228 = tpu.matmul %227, %192, %cst_87 {dimension_numbers = #tpu.dot_dimension_numbers<[1], [0], [0], [1], [0, 0, 1, 1], [], []>} : vector<32x32xbf16>, vector<32x64xbf16>, vector<32x64xf32> -> vector<32x64xf32>
    %c1_i32_88 = arith.constant 1 : i32
    %229 = vector.broadcast %c1_i32_88 : i32 to vector<32x32xi32>
    %230 = arith.muli %229, %193 : vector<32x32xi32>
    %c0_i32_89 = arith.constant 0 : i32
    %231 = vector.broadcast %c0_i32_89 : i32 to vector<32x32xi32>
    %232 = arith.addi %230, %231 : vector<32x32xi32>
    %233 = arith.cmpi eq, %194, %232 : vector<32x32xi32>
    %234 = arith.andi %217, %233 : vector<32x32xi1>
    %cst_90 = arith.constant 1.000000e+00 : f32
    %cst_91 = arith.constant 0.000000e+00 : f32
    %235 = vector.broadcast %cst_90 : f32 to vector<32x32xf32>
    %236 = vector.broadcast %cst_91 : f32 to vector<32x32xf32>
    %237 = arith.select %234, %235, %236 : vector<32x32xi1>, vector<32x32xf32>
    %238 = arith.truncf %237 : vector<32x32xf32> to vector<32x32xbf16>
    %cst_92 = arith.constant dense<0.000000e+00> : vector<32x64xf32>
    %239 = tpu.matmul %238, %192, %cst_92 {dimension_numbers = #tpu.dot_dimension_numbers<[1], [0], [0], [1], [0, 0, 1, 1], [], []>} : vector<32x32xbf16>, vector<32x64xbf16>, vector<32x64xf32> -> vector<32x64xf32>
    %c1_i32_93 = arith.constant 1 : i32
    %240 = vector.broadcast %c1_i32_93 : i32 to vector<32x32xi32>
    %241 = arith.muli %240, %193 : vector<32x32xi32>
    %c1_i32_94 = arith.constant 1 : i32
    %242 = vector.broadcast %c1_i32_94 : i32 to vector<32x32xi32>
    %243 = arith.addi %241, %242 : vector<32x32xi32>
    %244 = arith.cmpi eq, %194, %243 : vector<32x32xi32>
    %245 = arith.andi %217, %244 : vector<32x32xi1>
    %cst_95 = arith.constant 1.000000e+00 : f32
    %cst_96 = arith.constant 0.000000e+00 : f32
    %246 = vector.broadcast %cst_95 : f32 to vector<32x32xf32>
    %247 = vector.broadcast %cst_96 : f32 to vector<32x32xf32>
    %248 = arith.select %245, %246, %247 : vector<32x32xi1>, vector<32x32xf32>
    %249 = arith.truncf %248 : vector<32x32xf32> to vector<32x32xbf16>
    %cst_97 = arith.constant dense<0.000000e+00> : vector<32x64xf32>
    %250 = tpu.matmul %249, %192, %cst_97 {dimension_numbers = #tpu.dot_dimension_numbers<[1], [0], [0], [1], [0, 0, 1, 1], [], []>} : vector<32x32xbf16>, vector<32x64xbf16>, vector<32x64xf32> -> vector<32x64xf32>
    %251 = arith.truncf %228 : vector<32x64xf32> to vector<32x64xbf16>
    %c0_98 = arith.constant 0 : index
    %c0_99 = arith.constant 0 : index
    %c0_100 = arith.constant 0 : index
    %252 = vector.load %arg7[%c0_98, %c0_99, %c0_100] : memref<3x64x64xbf16, #tpu.memory_space<vmem>>, vector<1x64x64xbf16>
    %253 = vector.shape_cast %252 : vector<1x64x64xbf16> to vector<64x64xbf16>
    %cst_101 = arith.constant dense<0.000000e+00> : vector<32x64xf32>
    %254 = tpu.matmul %251, %253, %cst_101 {dimension_numbers = #tpu.dot_dimension_numbers<[1], [0], [0], [1], [0, 0, 1, 1], [], []>} : vector<32x64xbf16>, vector<64x64xbf16>, vector<32x64xf32> -> vector<32x64xf32>
    %255 = arith.truncf %239 : vector<32x64xf32> to vector<32x64xbf16>
    %c1_102 = arith.constant 1 : index
    %c0_103 = arith.constant 0 : index
    %c0_104 = arith.constant 0 : index
    %256 = vector.load %arg7[%c1_102, %c0_103, %c0_104] : memref<3x64x64xbf16, #tpu.memory_space<vmem>>, vector<1x64x64xbf16>
    %257 = vector.shape_cast %256 : vector<1x64x64xbf16> to vector<64x64xbf16>
    %cst_105 = arith.constant dense<0.000000e+00> : vector<32x64xf32>
    %258 = tpu.matmul %255, %257, %cst_105 {dimension_numbers = #tpu.dot_dimension_numbers<[1], [0], [0], [1], [0, 0, 1, 1], [], []>} : vector<32x64xbf16>, vector<64x64xbf16>, vector<32x64xf32> -> vector<32x64xf32>
    %259 = arith.addf %254, %258 : vector<32x64xf32>
    %260 = arith.truncf %250 : vector<32x64xf32> to vector<32x64xbf16>
    %c2_106 = arith.constant 2 : index
    %c0_107 = arith.constant 0 : index
    %c0_108 = arith.constant 0 : index
    %261 = vector.load %arg7[%c2_106, %c0_107, %c0_108] : memref<3x64x64xbf16, #tpu.memory_space<vmem>>, vector<1x64x64xbf16>
    %262 = vector.shape_cast %261 : vector<1x64x64xbf16> to vector<64x64xbf16>
    %cst_109 = arith.constant dense<0.000000e+00> : vector<32x64xf32>
    %263 = tpu.matmul %260, %262, %cst_109 {dimension_numbers = #tpu.dot_dimension_numbers<[1], [0], [0], [1], [0, 0, 1, 1], [], []>} : vector<32x64xbf16>, vector<64x64xbf16>, vector<32x64xf32> -> vector<32x64xf32>
    %264 = arith.addf %259, %263 : vector<32x64xf32>
    %cst_110 = arith.constant dense<0.000000e+00> : vector<64xf32>
    %265 = vector.multi_reduction <add>, %264, %cst_110 [0] : vector<32x64xf32> to vector<64xf32>
    %266 = vector.shape_cast %265 : vector<64xf32> to vector<1x64xf32>
    %cst_111 = arith.constant 3.125000e-02 : f32
    %267 = vector.broadcast %cst_111 : f32 to vector<1x64xf32>
    %268 = arith.mulf %266, %267 : vector<1x64xf32>
    %269 = arith.mulf %264, %264 : vector<32x64xf32>
    %cst_112 = arith.constant dense<0.000000e+00> : vector<64xf32>
    %270 = vector.multi_reduction <add>, %269, %cst_112 [0] : vector<32x64xf32> to vector<64xf32>
    %271 = vector.shape_cast %270 : vector<64xf32> to vector<1x64xf32>
    %cst_113 = arith.constant 3.125000e-02 : f32
    %272 = vector.broadcast %cst_113 : f32 to vector<1x64xf32>
    %273 = arith.mulf %271, %272 : vector<1x64xf32>
    %274 = arith.mulf %268, %268 : vector<1x64xf32>
    %275 = arith.subf %273, %274 : vector<1x64xf32>
    %cst_114 = arith.constant 0.000000e+00 : f32
    %276 = vector.broadcast %cst_114 : f32 to vector<1x64xf32>
    %277 = arith.maximumf %275, %276 : vector<1x64xf32>
    %c0_115 = arith.constant 0 : index
    %c0_116 = arith.constant 0 : index
    %278 = vector.load %arg8[%c0_115, %c0_116] : memref<1x64xf32, #tpu.memory_space<vmem>>, vector<1x64xf32>
    %cst_117 = arith.constant 9.99999974E-6 : f32
    %279 = vector.broadcast %cst_117 : f32 to vector<1x64xf32>
    %280 = arith.addf %277, %279 : vector<1x64xf32>
    %281 = math.rsqrt %280 : vector<1x64xf32>
    %282 = arith.mulf %278, %281 : vector<1x64xf32>
    %c0_118 = arith.constant 0 : index
    %c0_119 = arith.constant 0 : index
    %283 = vector.load %arg9[%c0_118, %c0_119] : memref<1x64xf32, #tpu.memory_space<vmem>>, vector<1x64xf32>
    %284 = arith.mulf %268, %282 : vector<1x64xf32>
    %285 = arith.subf %283, %284 : vector<1x64xf32>
    %286 = vector.broadcast %282 : vector<1x64xf32> to vector<32x64xf32>
    %287 = arith.mulf %264, %286 : vector<32x64xf32>
    %288 = vector.broadcast %285 : vector<1x64xf32> to vector<32x64xf32>
    %289 = arith.addf %287, %288 : vector<32x64xf32>
    %290 = arith.addf %289, %91 : vector<32x64xf32>
    %cst_120 = arith.constant 0.000000e+00 : f32
    %291 = vector.broadcast %cst_120 : f32 to vector<32x64xf32>
    %292 = arith.maximumf %290, %291 : vector<32x64xf32>
    %293 = arith.truncf %292 : vector<32x64xf32> to vector<32x64xbf16>
    %294 = tpu.iota {dimensions = array<i32: 0>} : vector<16x32xi32>
    %295 = tpu.iota {dimensions = array<i32: 1>} : vector<16x32xi32>
    %c0_i32_121 = arith.constant 0 : i32
    %296 = vector.broadcast %c0_i32_121 : i32 to vector<16x32xi32>
    %297 = arith.cmpi sge, %294, %296 : vector<16x32xi32>
    %c8_i32 = arith.constant 8 : i32
    %298 = vector.broadcast %c8_i32 : i32 to vector<16x32xi32>
    %299 = arith.cmpi slt, %294, %298 : vector<16x32xi32>
    %300 = arith.andi %297, %299 : vector<16x32xi1>
    %c0_i32_122 = arith.constant 0 : i32
    %301 = vector.broadcast %c0_i32_122 : i32 to vector<16x32xi32>
    %302 = arith.cmpi sge, %295, %301 : vector<16x32xi32>
    %303 = arith.andi %300, %302 : vector<16x32xi1>
    %c16_i32_123 = arith.constant 16 : i32
    %304 = vector.broadcast %c16_i32_123 : i32 to vector<16x32xi32>
    %305 = arith.cmpi slt, %295, %304 : vector<16x32xi32>
    %306 = arith.andi %303, %305 : vector<16x32xi1>
    %c8_i32_124 = arith.constant 8 : i32
    %307 = vector.broadcast %c8_i32_124 : i32 to vector<16x32xi32>
    %308 = arith.cmpi sge, %294, %307 : vector<16x32xi32>
    %c16_i32_125 = arith.constant 16 : i32
    %309 = vector.broadcast %c16_i32_125 : i32 to vector<16x32xi32>
    %310 = arith.cmpi slt, %294, %309 : vector<16x32xi32>
    %311 = arith.andi %308, %310 : vector<16x32xi1>
    %c16_i32_126 = arith.constant 16 : i32
    %312 = vector.broadcast %c16_i32_126 : i32 to vector<16x32xi32>
    %313 = arith.cmpi sge, %295, %312 : vector<16x32xi32>
    %314 = arith.andi %311, %313 : vector<16x32xi1>
    %c32_i32_127 = arith.constant 32 : i32
    %315 = vector.broadcast %c32_i32_127 : i32 to vector<16x32xi32>
    %316 = arith.cmpi slt, %295, %315 : vector<16x32xi32>
    %317 = arith.andi %314, %316 : vector<16x32xi1>
    %318 = arith.ori %306, %317 : vector<16x32xi1>
    %c2_i32_128 = arith.constant 2 : i32
    %319 = vector.broadcast %c2_i32_128 : i32 to vector<16x32xi32>
    %320 = arith.muli %319, %294 : vector<16x32xi32>
    %c-1_i32_129 = arith.constant -1 : i32
    %321 = vector.broadcast %c-1_i32_129 : i32 to vector<16x32xi32>
    %322 = arith.addi %320, %321 : vector<16x32xi32>
    %323 = arith.cmpi eq, %295, %322 : vector<16x32xi32>
    %324 = arith.andi %318, %323 : vector<16x32xi1>
    %cst_130 = arith.constant 1.000000e+00 : f32
    %cst_131 = arith.constant 0.000000e+00 : f32
    %325 = vector.broadcast %cst_130 : f32 to vector<16x32xf32>
    %326 = vector.broadcast %cst_131 : f32 to vector<16x32xf32>
    %327 = arith.select %324, %325, %326 : vector<16x32xi1>, vector<16x32xf32>
    %328 = arith.truncf %327 : vector<16x32xf32> to vector<16x32xbf16>
    %cst_132 = arith.constant dense<0.000000e+00> : vector<16x64xf32>
    %329 = tpu.matmul %328, %293, %cst_132 {dimension_numbers = #tpu.dot_dimension_numbers<[1], [0], [0], [1], [0, 0, 1, 1], [], []>} : vector<16x32xbf16>, vector<32x64xbf16>, vector<16x64xf32> -> vector<16x64xf32>
    %c2_i32_133 = arith.constant 2 : i32
    %330 = vector.broadcast %c2_i32_133 : i32 to vector<16x32xi32>
    %331 = arith.muli %330, %294 : vector<16x32xi32>
    %c0_i32_134 = arith.constant 0 : i32
    %332 = vector.broadcast %c0_i32_134 : i32 to vector<16x32xi32>
    %333 = arith.addi %331, %332 : vector<16x32xi32>
    %334 = arith.cmpi eq, %295, %333 : vector<16x32xi32>
    %335 = arith.andi %318, %334 : vector<16x32xi1>
    %cst_135 = arith.constant 1.000000e+00 : f32
    %cst_136 = arith.constant 0.000000e+00 : f32
    %336 = vector.broadcast %cst_135 : f32 to vector<16x32xf32>
    %337 = vector.broadcast %cst_136 : f32 to vector<16x32xf32>
    %338 = arith.select %335, %336, %337 : vector<16x32xi1>, vector<16x32xf32>
    %339 = arith.truncf %338 : vector<16x32xf32> to vector<16x32xbf16>
    %cst_137 = arith.constant dense<0.000000e+00> : vector<16x64xf32>
    %340 = tpu.matmul %339, %293, %cst_137 {dimension_numbers = #tpu.dot_dimension_numbers<[1], [0], [0], [1], [0, 0, 1, 1], [], []>} : vector<16x32xbf16>, vector<32x64xbf16>, vector<16x64xf32> -> vector<16x64xf32>
    %c2_i32_138 = arith.constant 2 : i32
    %341 = vector.broadcast %c2_i32_138 : i32 to vector<16x32xi32>
    %342 = arith.muli %341, %294 : vector<16x32xi32>
    %c1_i32_139 = arith.constant 1 : i32
    %343 = vector.broadcast %c1_i32_139 : i32 to vector<16x32xi32>
    %344 = arith.addi %342, %343 : vector<16x32xi32>
    %345 = arith.cmpi eq, %295, %344 : vector<16x32xi32>
    %346 = arith.andi %318, %345 : vector<16x32xi1>
    %cst_140 = arith.constant 1.000000e+00 : f32
    %cst_141 = arith.constant 0.000000e+00 : f32
    %347 = vector.broadcast %cst_140 : f32 to vector<16x32xf32>
    %348 = vector.broadcast %cst_141 : f32 to vector<16x32xf32>
    %349 = arith.select %346, %347, %348 : vector<16x32xi1>, vector<16x32xf32>
    %350 = arith.truncf %349 : vector<16x32xf32> to vector<16x32xbf16>
    %cst_142 = arith.constant dense<0.000000e+00> : vector<16x64xf32>
    %351 = tpu.matmul %350, %293, %cst_142 {dimension_numbers = #tpu.dot_dimension_numbers<[1], [0], [0], [1], [0, 0, 1, 1], [], []>} : vector<16x32xbf16>, vector<32x64xbf16>, vector<16x64xf32> -> vector<16x64xf32>
    %352 = arith.truncf %329 : vector<16x64xf32> to vector<16x64xbf16>
    %c0_143 = arith.constant 0 : index
    %c0_144 = arith.constant 0 : index
    %c0_145 = arith.constant 0 : index
    %353 = vector.load %arg10[%c0_143, %c0_144, %c0_145] : memref<3x64x128xbf16, #tpu.memory_space<vmem>>, vector<1x64x128xbf16>
    %354 = vector.shape_cast %353 : vector<1x64x128xbf16> to vector<64x128xbf16>
    %cst_146 = arith.constant dense<0.000000e+00> : vector<16x128xf32>
    %355 = tpu.matmul %352, %354, %cst_146 {dimension_numbers = #tpu.dot_dimension_numbers<[1], [0], [0], [1], [0, 0, 1, 1], [], []>} : vector<16x64xbf16>, vector<64x128xbf16>, vector<16x128xf32> -> vector<16x128xf32>
    %356 = arith.truncf %340 : vector<16x64xf32> to vector<16x64xbf16>
    %c1_147 = arith.constant 1 : index
    %c0_148 = arith.constant 0 : index
    %c0_149 = arith.constant 0 : index
    %357 = vector.load %arg10[%c1_147, %c0_148, %c0_149] : memref<3x64x128xbf16, #tpu.memory_space<vmem>>, vector<1x64x128xbf16>
    %358 = vector.shape_cast %357 : vector<1x64x128xbf16> to vector<64x128xbf16>
    %cst_150 = arith.constant dense<0.000000e+00> : vector<16x128xf32>
    %359 = tpu.matmul %356, %358, %cst_150 {dimension_numbers = #tpu.dot_dimension_numbers<[1], [0], [0], [1], [0, 0, 1, 1], [], []>} : vector<16x64xbf16>, vector<64x128xbf16>, vector<16x128xf32> -> vector<16x128xf32>
    %360 = arith.addf %355, %359 : vector<16x128xf32>
    %361 = arith.truncf %351 : vector<16x64xf32> to vector<16x64xbf16>
    %c2_151 = arith.constant 2 : index
    %c0_152 = arith.constant 0 : index
    %c0_153 = arith.constant 0 : index
    %362 = vector.load %arg10[%c2_151, %c0_152, %c0_153] : memref<3x64x128xbf16, #tpu.memory_space<vmem>>, vector<1x64x128xbf16>
    %363 = vector.shape_cast %362 : vector<1x64x128xbf16> to vector<64x128xbf16>
    %cst_154 = arith.constant dense<0.000000e+00> : vector<16x128xf32>
    %364 = tpu.matmul %361, %363, %cst_154 {dimension_numbers = #tpu.dot_dimension_numbers<[1], [0], [0], [1], [0, 0, 1, 1], [], []>} : vector<16x64xbf16>, vector<64x128xbf16>, vector<16x128xf32> -> vector<16x128xf32>
    %365 = arith.addf %360, %364 : vector<16x128xf32>
    %cst_155 = arith.constant dense<0.000000e+00> : vector<128xf32>
    %366 = vector.multi_reduction <add>, %365, %cst_155 [0] : vector<16x128xf32> to vector<128xf32>
    %367 = vector.shape_cast %366 : vector<128xf32> to vector<1x128xf32>
    %cst_156 = arith.constant 6.250000e-02 : f32
    %368 = vector.broadcast %cst_156 : f32 to vector<1x128xf32>
    %369 = arith.mulf %367, %368 : vector<1x128xf32>
    %370 = arith.mulf %365, %365 : vector<16x128xf32>
    %cst_157 = arith.constant dense<0.000000e+00> : vector<128xf32>
    %371 = vector.multi_reduction <add>, %370, %cst_157 [0] : vector<16x128xf32> to vector<128xf32>
    %372 = vector.shape_cast %371 : vector<128xf32> to vector<1x128xf32>
    %cst_158 = arith.constant 6.250000e-02 : f32
    %373 = vector.broadcast %cst_158 : f32 to vector<1x128xf32>
    %374 = arith.mulf %372, %373 : vector<1x128xf32>
    %375 = arith.mulf %369, %369 : vector<1x128xf32>
    %376 = arith.subf %374, %375 : vector<1x128xf32>
    %cst_159 = arith.constant 0.000000e+00 : f32
    %377 = vector.broadcast %cst_159 : f32 to vector<1x128xf32>
    %378 = arith.maximumf %376, %377 : vector<1x128xf32>
    %c0_160 = arith.constant 0 : index
    %c0_161 = arith.constant 0 : index
    %379 = vector.load %arg11[%c0_160, %c0_161] : memref<1x128xf32, #tpu.memory_space<vmem>>, vector<1x128xf32>
    %cst_162 = arith.constant 9.99999974E-6 : f32
    %380 = vector.broadcast %cst_162 : f32 to vector<1x128xf32>
    %381 = arith.addf %378, %380 : vector<1x128xf32>
    %382 = math.rsqrt %381 : vector<1x128xf32>
    %383 = arith.mulf %379, %382 : vector<1x128xf32>
    %c0_163 = arith.constant 0 : index
    %c0_164 = arith.constant 0 : index
    %384 = vector.load %arg12[%c0_163, %c0_164] : memref<1x128xf32, #tpu.memory_space<vmem>>, vector<1x128xf32>
    %385 = arith.mulf %369, %383 : vector<1x128xf32>
    %386 = arith.subf %384, %385 : vector<1x128xf32>
    %387 = vector.broadcast %383 : vector<1x128xf32> to vector<16x128xf32>
    %388 = arith.mulf %365, %387 : vector<16x128xf32>
    %389 = vector.broadcast %386 : vector<1x128xf32> to vector<16x128xf32>
    %390 = arith.addf %388, %389 : vector<16x128xf32>
    %cst_165 = arith.constant 0.000000e+00 : f32
    %391 = vector.broadcast %cst_165 : f32 to vector<16x128xf32>
    %392 = arith.maximumf %390, %391 : vector<16x128xf32>
    %393 = tpu.iota {dimensions = array<i32: 0>} : vector<16x32xi32>
    %394 = tpu.iota {dimensions = array<i32: 1>} : vector<16x32xi32>
    %c0_i32_166 = arith.constant 0 : i32
    %395 = vector.broadcast %c0_i32_166 : i32 to vector<16x32xi32>
    %396 = arith.cmpi sge, %393, %395 : vector<16x32xi32>
    %c8_i32_167 = arith.constant 8 : i32
    %397 = vector.broadcast %c8_i32_167 : i32 to vector<16x32xi32>
    %398 = arith.cmpi slt, %393, %397 : vector<16x32xi32>
    %399 = arith.andi %396, %398 : vector<16x32xi1>
    %c0_i32_168 = arith.constant 0 : i32
    %400 = vector.broadcast %c0_i32_168 : i32 to vector<16x32xi32>
    %401 = arith.cmpi sge, %394, %400 : vector<16x32xi32>
    %402 = arith.andi %399, %401 : vector<16x32xi1>
    %c16_i32_169 = arith.constant 16 : i32
    %403 = vector.broadcast %c16_i32_169 : i32 to vector<16x32xi32>
    %404 = arith.cmpi slt, %394, %403 : vector<16x32xi32>
    %405 = arith.andi %402, %404 : vector<16x32xi1>
    %c8_i32_170 = arith.constant 8 : i32
    %406 = vector.broadcast %c8_i32_170 : i32 to vector<16x32xi32>
    %407 = arith.cmpi sge, %393, %406 : vector<16x32xi32>
    %c16_i32_171 = arith.constant 16 : i32
    %408 = vector.broadcast %c16_i32_171 : i32 to vector<16x32xi32>
    %409 = arith.cmpi slt, %393, %408 : vector<16x32xi32>
    %410 = arith.andi %407, %409 : vector<16x32xi1>
    %c16_i32_172 = arith.constant 16 : i32
    %411 = vector.broadcast %c16_i32_172 : i32 to vector<16x32xi32>
    %412 = arith.cmpi sge, %394, %411 : vector<16x32xi32>
    %413 = arith.andi %410, %412 : vector<16x32xi1>
    %c32_i32_173 = arith.constant 32 : i32
    %414 = vector.broadcast %c32_i32_173 : i32 to vector<16x32xi32>
    %415 = arith.cmpi slt, %394, %414 : vector<16x32xi32>
    %416 = arith.andi %413, %415 : vector<16x32xi1>
    %417 = arith.ori %405, %416 : vector<16x32xi1>
    %c2_i32_174 = arith.constant 2 : i32
    %418 = vector.broadcast %c2_i32_174 : i32 to vector<16x32xi32>
    %419 = arith.muli %418, %393 : vector<16x32xi32>
    %c0_i32_175 = arith.constant 0 : i32
    %420 = vector.broadcast %c0_i32_175 : i32 to vector<16x32xi32>
    %421 = arith.addi %419, %420 : vector<16x32xi32>
    %422 = arith.cmpi eq, %394, %421 : vector<16x32xi32>
    %423 = arith.andi %417, %422 : vector<16x32xi1>
    %cst_176 = arith.constant 1.000000e+00 : f32
    %cst_177 = arith.constant 0.000000e+00 : f32
    %424 = vector.broadcast %cst_176 : f32 to vector<16x32xf32>
    %425 = vector.broadcast %cst_177 : f32 to vector<16x32xf32>
    %426 = arith.select %423, %424, %425 : vector<16x32xi1>, vector<16x32xf32>
    %427 = arith.truncf %426 : vector<16x32xf32> to vector<16x32xbf16>
    %cst_178 = arith.constant dense<0.000000e+00> : vector<16x64xf32>
    %428 = tpu.matmul %427, %293, %cst_178 {dimension_numbers = #tpu.dot_dimension_numbers<[1], [0], [0], [1], [0, 0, 1, 1], [], []>} : vector<16x32xbf16>, vector<32x64xbf16>, vector<16x64xf32> -> vector<16x64xf32>
    %429 = arith.truncf %428 : vector<16x64xf32> to vector<16x64xbf16>
    %c0_179 = arith.constant 0 : index
    %c0_180 = arith.constant 0 : index
    %c0_181 = arith.constant 0 : index
    %430 = vector.load %arg16[%c0_179, %c0_180, %c0_181] : memref<1x64x128xbf16, #tpu.memory_space<vmem>>, vector<1x64x128xbf16>
    %431 = vector.shape_cast %430 : vector<1x64x128xbf16> to vector<64x128xbf16>
    %cst_182 = arith.constant dense<0.000000e+00> : vector<16x128xf32>
    %432 = tpu.matmul %429, %431, %cst_182 {dimension_numbers = #tpu.dot_dimension_numbers<[1], [0], [0], [1], [0, 0, 1, 1], [], []>} : vector<16x64xbf16>, vector<64x128xbf16>, vector<16x128xf32> -> vector<16x128xf32>
    %cst_183 = arith.constant dense<0.000000e+00> : vector<128xf32>
    %433 = vector.multi_reduction <add>, %432, %cst_183 [0] : vector<16x128xf32> to vector<128xf32>
    %434 = vector.shape_cast %433 : vector<128xf32> to vector<1x128xf32>
    %cst_184 = arith.constant 6.250000e-02 : f32
    %435 = vector.broadcast %cst_184 : f32 to vector<1x128xf32>
    %436 = arith.mulf %434, %435 : vector<1x128xf32>
    %437 = arith.mulf %432, %432 : vector<16x128xf32>
    %cst_185 = arith.constant dense<0.000000e+00> : vector<128xf32>
    %438 = vector.multi_reduction <add>, %437, %cst_185 [0] : vector<16x128xf32> to vector<128xf32>
    %439 = vector.shape_cast %438 : vector<128xf32> to vector<1x128xf32>
    %cst_186 = arith.constant 6.250000e-02 : f32
    %440 = vector.broadcast %cst_186 : f32 to vector<1x128xf32>
    %441 = arith.mulf %439, %440 : vector<1x128xf32>
    %442 = arith.mulf %436, %436 : vector<1x128xf32>
    %443 = arith.subf %441, %442 : vector<1x128xf32>
    %cst_187 = arith.constant 0.000000e+00 : f32
    %444 = vector.broadcast %cst_187 : f32 to vector<1x128xf32>
    %445 = arith.maximumf %443, %444 : vector<1x128xf32>
    %c0_188 = arith.constant 0 : index
    %c0_189 = arith.constant 0 : index
    %446 = vector.load %arg17[%c0_188, %c0_189] : memref<1x128xf32, #tpu.memory_space<vmem>>, vector<1x128xf32>
    %cst_190 = arith.constant 9.99999974E-6 : f32
    %447 = vector.broadcast %cst_190 : f32 to vector<1x128xf32>
    %448 = arith.addf %445, %447 : vector<1x128xf32>
    %449 = math.rsqrt %448 : vector<1x128xf32>
    %450 = arith.mulf %446, %449 : vector<1x128xf32>
    %c0_191 = arith.constant 0 : index
    %c0_192 = arith.constant 0 : index
    %451 = vector.load %arg18[%c0_191, %c0_192] : memref<1x128xf32, #tpu.memory_space<vmem>>, vector<1x128xf32>
    %452 = arith.mulf %436, %450 : vector<1x128xf32>
    %453 = arith.subf %451, %452 : vector<1x128xf32>
    %454 = vector.broadcast %450 : vector<1x128xf32> to vector<16x128xf32>
    %455 = arith.mulf %432, %454 : vector<16x128xf32>
    %456 = vector.broadcast %453 : vector<1x128xf32> to vector<16x128xf32>
    %457 = arith.addf %455, %456 : vector<16x128xf32>
    %458 = arith.truncf %392 : vector<16x128xf32> to vector<16x128xbf16>
    %459 = tpu.iota {dimensions = array<i32: 0>} : vector<16x16xi32>
    %460 = tpu.iota {dimensions = array<i32: 1>} : vector<16x16xi32>
    %c0_i32_193 = arith.constant 0 : i32
    %461 = vector.broadcast %c0_i32_193 : i32 to vector<16x16xi32>
    %462 = arith.cmpi sge, %459, %461 : vector<16x16xi32>
    %c8_i32_194 = arith.constant 8 : i32
    %463 = vector.broadcast %c8_i32_194 : i32 to vector<16x16xi32>
    %464 = arith.cmpi slt, %459, %463 : vector<16x16xi32>
    %465 = arith.andi %462, %464 : vector<16x16xi1>
    %c0_i32_195 = arith.constant 0 : i32
    %466 = vector.broadcast %c0_i32_195 : i32 to vector<16x16xi32>
    %467 = arith.cmpi sge, %460, %466 : vector<16x16xi32>
    %468 = arith.andi %465, %467 : vector<16x16xi1>
    %c8_i32_196 = arith.constant 8 : i32
    %469 = vector.broadcast %c8_i32_196 : i32 to vector<16x16xi32>
    %470 = arith.cmpi slt, %460, %469 : vector<16x16xi32>
    %471 = arith.andi %468, %470 : vector<16x16xi1>
    %c8_i32_197 = arith.constant 8 : i32
    %472 = vector.broadcast %c8_i32_197 : i32 to vector<16x16xi32>
    %473 = arith.cmpi sge, %459, %472 : vector<16x16xi32>
    %c16_i32_198 = arith.constant 16 : i32
    %474 = vector.broadcast %c16_i32_198 : i32 to vector<16x16xi32>
    %475 = arith.cmpi slt, %459, %474 : vector<16x16xi32>
    %476 = arith.andi %473, %475 : vector<16x16xi1>
    %c8_i32_199 = arith.constant 8 : i32
    %477 = vector.broadcast %c8_i32_199 : i32 to vector<16x16xi32>
    %478 = arith.cmpi sge, %460, %477 : vector<16x16xi32>
    %479 = arith.andi %476, %478 : vector<16x16xi1>
    %c16_i32_200 = arith.constant 16 : i32
    %480 = vector.broadcast %c16_i32_200 : i32 to vector<16x16xi32>
    %481 = arith.cmpi slt, %460, %480 : vector<16x16xi32>
    %482 = arith.andi %479, %481 : vector<16x16xi1>
    %483 = arith.ori %471, %482 : vector<16x16xi1>
    %c1_i32_201 = arith.constant 1 : i32
    %484 = vector.broadcast %c1_i32_201 : i32 to vector<16x16xi32>
    %485 = arith.muli %484, %459 : vector<16x16xi32>
    %c-1_i32_202 = arith.constant -1 : i32
    %486 = vector.broadcast %c-1_i32_202 : i32 to vector<16x16xi32>
    %487 = arith.addi %485, %486 : vector<16x16xi32>
    %488 = arith.cmpi eq, %460, %487 : vector<16x16xi32>
    %489 = arith.andi %483, %488 : vector<16x16xi1>
    %cst_203 = arith.constant 1.000000e+00 : f32
    %cst_204 = arith.constant 0.000000e+00 : f32
    %490 = vector.broadcast %cst_203 : f32 to vector<16x16xf32>
    %491 = vector.broadcast %cst_204 : f32 to vector<16x16xf32>
    %492 = arith.select %489, %490, %491 : vector<16x16xi1>, vector<16x16xf32>
    %493 = arith.truncf %492 : vector<16x16xf32> to vector<16x16xbf16>
    %cst_205 = arith.constant dense<0.000000e+00> : vector<16x128xf32>
    %494 = tpu.matmul %493, %458, %cst_205 {dimension_numbers = #tpu.dot_dimension_numbers<[1], [0], [0], [1], [0, 0, 1, 1], [], []>} : vector<16x16xbf16>, vector<16x128xbf16>, vector<16x128xf32> -> vector<16x128xf32>
    %c1_i32_206 = arith.constant 1 : i32
    %495 = vector.broadcast %c1_i32_206 : i32 to vector<16x16xi32>
    %496 = arith.muli %495, %459 : vector<16x16xi32>
    %c0_i32_207 = arith.constant 0 : i32
    %497 = vector.broadcast %c0_i32_207 : i32 to vector<16x16xi32>
    %498 = arith.addi %496, %497 : vector<16x16xi32>
    %499 = arith.cmpi eq, %460, %498 : vector<16x16xi32>
    %500 = arith.andi %483, %499 : vector<16x16xi1>
    %cst_208 = arith.constant 1.000000e+00 : f32
    %cst_209 = arith.constant 0.000000e+00 : f32
    %501 = vector.broadcast %cst_208 : f32 to vector<16x16xf32>
    %502 = vector.broadcast %cst_209 : f32 to vector<16x16xf32>
    %503 = arith.select %500, %501, %502 : vector<16x16xi1>, vector<16x16xf32>
    %504 = arith.truncf %503 : vector<16x16xf32> to vector<16x16xbf16>
    %cst_210 = arith.constant dense<0.000000e+00> : vector<16x128xf32>
    %505 = tpu.matmul %504, %458, %cst_210 {dimension_numbers = #tpu.dot_dimension_numbers<[1], [0], [0], [1], [0, 0, 1, 1], [], []>} : vector<16x16xbf16>, vector<16x128xbf16>, vector<16x128xf32> -> vector<16x128xf32>
    %c1_i32_211 = arith.constant 1 : i32
    %506 = vector.broadcast %c1_i32_211 : i32 to vector<16x16xi32>
    %507 = arith.muli %506, %459 : vector<16x16xi32>
    %c1_i32_212 = arith.constant 1 : i32
    %508 = vector.broadcast %c1_i32_212 : i32 to vector<16x16xi32>
    %509 = arith.addi %507, %508 : vector<16x16xi32>
    %510 = arith.cmpi eq, %460, %509 : vector<16x16xi32>
    %511 = arith.andi %483, %510 : vector<16x16xi1>
    %cst_213 = arith.constant 1.000000e+00 : f32
    %cst_214 = arith.constant 0.000000e+00 : f32
    %512 = vector.broadcast %cst_213 : f32 to vector<16x16xf32>
    %513 = vector.broadcast %cst_214 : f32 to vector<16x16xf32>
    %514 = arith.select %511, %512, %513 : vector<16x16xi1>, vector<16x16xf32>
    %515 = arith.truncf %514 : vector<16x16xf32> to vector<16x16xbf16>
    %cst_215 = arith.constant dense<0.000000e+00> : vector<16x128xf32>
    %516 = tpu.matmul %515, %458, %cst_215 {dimension_numbers = #tpu.dot_dimension_numbers<[1], [0], [0], [1], [0, 0, 1, 1], [], []>} : vector<16x16xbf16>, vector<16x128xbf16>, vector<16x128xf32> -> vector<16x128xf32>
    %517 = arith.truncf %494 : vector<16x128xf32> to vector<16x128xbf16>
    %c0_216 = arith.constant 0 : index
    %c0_217 = arith.constant 0 : index
    %c0_218 = arith.constant 0 : index
    %518 = vector.load %arg13[%c0_216, %c0_217, %c0_218] : memref<3x128x128xbf16, #tpu.memory_space<vmem>>, vector<1x128x128xbf16>
    %519 = vector.shape_cast %518 : vector<1x128x128xbf16> to vector<128x128xbf16>
    %cst_219 = arith.constant dense<0.000000e+00> : vector<16x128xf32>
    %520 = tpu.matmul %517, %519, %cst_219 {dimension_numbers = #tpu.dot_dimension_numbers<[1], [0], [0], [1], [0, 0, 1, 1], [], []>} : vector<16x128xbf16>, vector<128x128xbf16>, vector<16x128xf32> -> vector<16x128xf32>
    %521 = arith.truncf %505 : vector<16x128xf32> to vector<16x128xbf16>
    %c1_220 = arith.constant 1 : index
    %c0_221 = arith.constant 0 : index
    %c0_222 = arith.constant 0 : index
    %522 = vector.load %arg13[%c1_220, %c0_221, %c0_222] : memref<3x128x128xbf16, #tpu.memory_space<vmem>>, vector<1x128x128xbf16>
    %523 = vector.shape_cast %522 : vector<1x128x128xbf16> to vector<128x128xbf16>
    %cst_223 = arith.constant dense<0.000000e+00> : vector<16x128xf32>
    %524 = tpu.matmul %521, %523, %cst_223 {dimension_numbers = #tpu.dot_dimension_numbers<[1], [0], [0], [1], [0, 0, 1, 1], [], []>} : vector<16x128xbf16>, vector<128x128xbf16>, vector<16x128xf32> -> vector<16x128xf32>
    %525 = arith.addf %520, %524 : vector<16x128xf32>
    %526 = arith.truncf %516 : vector<16x128xf32> to vector<16x128xbf16>
    %c2_224 = arith.constant 2 : index
    %c0_225 = arith.constant 0 : index
    %c0_226 = arith.constant 0 : index
    %527 = vector.load %arg13[%c2_224, %c0_225, %c0_226] : memref<3x128x128xbf16, #tpu.memory_space<vmem>>, vector<1x128x128xbf16>
    %528 = vector.shape_cast %527 : vector<1x128x128xbf16> to vector<128x128xbf16>
    %cst_227 = arith.constant dense<0.000000e+00> : vector<16x128xf32>
    %529 = tpu.matmul %526, %528, %cst_227 {dimension_numbers = #tpu.dot_dimension_numbers<[1], [0], [0], [1], [0, 0, 1, 1], [], []>} : vector<16x128xbf16>, vector<128x128xbf16>, vector<16x128xf32> -> vector<16x128xf32>
    %530 = arith.addf %525, %529 : vector<16x128xf32>
    %cst_228 = arith.constant dense<0.000000e+00> : vector<128xf32>
    %531 = vector.multi_reduction <add>, %530, %cst_228 [0] : vector<16x128xf32> to vector<128xf32>
    %532 = vector.shape_cast %531 : vector<128xf32> to vector<1x128xf32>
    %cst_229 = arith.constant 6.250000e-02 : f32
    %533 = vector.broadcast %cst_229 : f32 to vector<1x128xf32>
    %534 = arith.mulf %532, %533 : vector<1x128xf32>
    %535 = arith.mulf %530, %530 : vector<16x128xf32>
    %cst_230 = arith.constant dense<0.000000e+00> : vector<128xf32>
    %536 = vector.multi_reduction <add>, %535, %cst_230 [0] : vector<16x128xf32> to vector<128xf32>
    %537 = vector.shape_cast %536 : vector<128xf32> to vector<1x128xf32>
    %cst_231 = arith.constant 6.250000e-02 : f32
    %538 = vector.broadcast %cst_231 : f32 to vector<1x128xf32>
    %539 = arith.mulf %537, %538 : vector<1x128xf32>
    %540 = arith.mulf %534, %534 : vector<1x128xf32>
    %541 = arith.subf %539, %540 : vector<1x128xf32>
    %cst_232 = arith.constant 0.000000e+00 : f32
    %542 = vector.broadcast %cst_232 : f32 to vector<1x128xf32>
    %543 = arith.maximumf %541, %542 : vector<1x128xf32>
    %c0_233 = arith.constant 0 : index
    %c0_234 = arith.constant 0 : index
    %544 = vector.load %arg14[%c0_233, %c0_234] : memref<1x128xf32, #tpu.memory_space<vmem>>, vector<1x128xf32>
    %cst_235 = arith.constant 9.99999974E-6 : f32
    %545 = vector.broadcast %cst_235 : f32 to vector<1x128xf32>
    %546 = arith.addf %543, %545 : vector<1x128xf32>
    %547 = math.rsqrt %546 : vector<1x128xf32>
    %548 = arith.mulf %544, %547 : vector<1x128xf32>
    %c0_236 = arith.constant 0 : index
    %c0_237 = arith.constant 0 : index
    %549 = vector.load %arg15[%c0_236, %c0_237] : memref<1x128xf32, #tpu.memory_space<vmem>>, vector<1x128xf32>
    %550 = arith.mulf %534, %548 : vector<1x128xf32>
    %551 = arith.subf %549, %550 : vector<1x128xf32>
    %552 = vector.broadcast %548 : vector<1x128xf32> to vector<16x128xf32>
    %553 = arith.mulf %530, %552 : vector<16x128xf32>
    %554 = vector.broadcast %551 : vector<1x128xf32> to vector<16x128xf32>
    %555 = arith.addf %553, %554 : vector<16x128xf32>
    %556 = arith.addf %555, %457 : vector<16x128xf32>
    %cst_238 = arith.constant 0.000000e+00 : f32
    %557 = vector.broadcast %cst_238 : f32 to vector<16x128xf32>
    %558 = arith.maximumf %556, %557 : vector<16x128xf32>
    %559 = arith.truncf %558 : vector<16x128xf32> to vector<16x128xbf16>
    %560 = tpu.iota {dimensions = array<i32: 0>} : vector<8x16xi32>
    %561 = tpu.iota {dimensions = array<i32: 1>} : vector<8x16xi32>
    %c0_i32_239 = arith.constant 0 : i32
    %562 = vector.broadcast %c0_i32_239 : i32 to vector<8x16xi32>
    %563 = arith.cmpi sge, %560, %562 : vector<8x16xi32>
    %c4_i32 = arith.constant 4 : i32
    %564 = vector.broadcast %c4_i32 : i32 to vector<8x16xi32>
    %565 = arith.cmpi slt, %560, %564 : vector<8x16xi32>
    %566 = arith.andi %563, %565 : vector<8x16xi1>
    %c0_i32_240 = arith.constant 0 : i32
    %567 = vector.broadcast %c0_i32_240 : i32 to vector<8x16xi32>
    %568 = arith.cmpi sge, %561, %567 : vector<8x16xi32>
    %569 = arith.andi %566, %568 : vector<8x16xi1>
    %c8_i32_241 = arith.constant 8 : i32
    %570 = vector.broadcast %c8_i32_241 : i32 to vector<8x16xi32>
    %571 = arith.cmpi slt, %561, %570 : vector<8x16xi32>
    %572 = arith.andi %569, %571 : vector<8x16xi1>
    %c4_i32_242 = arith.constant 4 : i32
    %573 = vector.broadcast %c4_i32_242 : i32 to vector<8x16xi32>
    %574 = arith.cmpi sge, %560, %573 : vector<8x16xi32>
    %c8_i32_243 = arith.constant 8 : i32
    %575 = vector.broadcast %c8_i32_243 : i32 to vector<8x16xi32>
    %576 = arith.cmpi slt, %560, %575 : vector<8x16xi32>
    %577 = arith.andi %574, %576 : vector<8x16xi1>
    %c8_i32_244 = arith.constant 8 : i32
    %578 = vector.broadcast %c8_i32_244 : i32 to vector<8x16xi32>
    %579 = arith.cmpi sge, %561, %578 : vector<8x16xi32>
    %580 = arith.andi %577, %579 : vector<8x16xi1>
    %c16_i32_245 = arith.constant 16 : i32
    %581 = vector.broadcast %c16_i32_245 : i32 to vector<8x16xi32>
    %582 = arith.cmpi slt, %561, %581 : vector<8x16xi32>
    %583 = arith.andi %580, %582 : vector<8x16xi1>
    %584 = arith.ori %572, %583 : vector<8x16xi1>
    %c2_i32_246 = arith.constant 2 : i32
    %585 = vector.broadcast %c2_i32_246 : i32 to vector<8x16xi32>
    %586 = arith.muli %585, %560 : vector<8x16xi32>
    %c-1_i32_247 = arith.constant -1 : i32
    %587 = vector.broadcast %c-1_i32_247 : i32 to vector<8x16xi32>
    %588 = arith.addi %586, %587 : vector<8x16xi32>
    %589 = arith.cmpi eq, %561, %588 : vector<8x16xi32>
    %590 = arith.andi %584, %589 : vector<8x16xi1>
    %cst_248 = arith.constant 1.000000e+00 : f32
    %cst_249 = arith.constant 0.000000e+00 : f32
    %591 = vector.broadcast %cst_248 : f32 to vector<8x16xf32>
    %592 = vector.broadcast %cst_249 : f32 to vector<8x16xf32>
    %593 = arith.select %590, %591, %592 : vector<8x16xi1>, vector<8x16xf32>
    %594 = arith.truncf %593 : vector<8x16xf32> to vector<8x16xbf16>
    %cst_250 = arith.constant dense<0.000000e+00> : vector<8x128xf32>
    %595 = tpu.matmul %594, %559, %cst_250 {dimension_numbers = #tpu.dot_dimension_numbers<[1], [0], [0], [1], [0, 0, 1, 1], [], []>} : vector<8x16xbf16>, vector<16x128xbf16>, vector<8x128xf32> -> vector<8x128xf32>
    %c2_i32_251 = arith.constant 2 : i32
    %596 = vector.broadcast %c2_i32_251 : i32 to vector<8x16xi32>
    %597 = arith.muli %596, %560 : vector<8x16xi32>
    %c0_i32_252 = arith.constant 0 : i32
    %598 = vector.broadcast %c0_i32_252 : i32 to vector<8x16xi32>
    %599 = arith.addi %597, %598 : vector<8x16xi32>
    %600 = arith.cmpi eq, %561, %599 : vector<8x16xi32>
    %601 = arith.andi %584, %600 : vector<8x16xi1>
    %cst_253 = arith.constant 1.000000e+00 : f32
    %cst_254 = arith.constant 0.000000e+00 : f32
    %602 = vector.broadcast %cst_253 : f32 to vector<8x16xf32>
    %603 = vector.broadcast %cst_254 : f32 to vector<8x16xf32>
    %604 = arith.select %601, %602, %603 : vector<8x16xi1>, vector<8x16xf32>
    %605 = arith.truncf %604 : vector<8x16xf32> to vector<8x16xbf16>
    %cst_255 = arith.constant dense<0.000000e+00> : vector<8x128xf32>
    %606 = tpu.matmul %605, %559, %cst_255 {dimension_numbers = #tpu.dot_dimension_numbers<[1], [0], [0], [1], [0, 0, 1, 1], [], []>} : vector<8x16xbf16>, vector<16x128xbf16>, vector<8x128xf32> -> vector<8x128xf32>
    %c2_i32_256 = arith.constant 2 : i32
    %607 = vector.broadcast %c2_i32_256 : i32 to vector<8x16xi32>
    %608 = arith.muli %607, %560 : vector<8x16xi32>
    %c1_i32_257 = arith.constant 1 : i32
    %609 = vector.broadcast %c1_i32_257 : i32 to vector<8x16xi32>
    %610 = arith.addi %608, %609 : vector<8x16xi32>
    %611 = arith.cmpi eq, %561, %610 : vector<8x16xi32>
    %612 = arith.andi %584, %611 : vector<8x16xi1>
    %cst_258 = arith.constant 1.000000e+00 : f32
    %cst_259 = arith.constant 0.000000e+00 : f32
    %613 = vector.broadcast %cst_258 : f32 to vector<8x16xf32>
    %614 = vector.broadcast %cst_259 : f32 to vector<8x16xf32>
    %615 = arith.select %612, %613, %614 : vector<8x16xi1>, vector<8x16xf32>
    %616 = arith.truncf %615 : vector<8x16xf32> to vector<8x16xbf16>
    %cst_260 = arith.constant dense<0.000000e+00> : vector<8x128xf32>
    %617 = tpu.matmul %616, %559, %cst_260 {dimension_numbers = #tpu.dot_dimension_numbers<[1], [0], [0], [1], [0, 0, 1, 1], [], []>} : vector<8x16xbf16>, vector<16x128xbf16>, vector<8x128xf32> -> vector<8x128xf32>
    %618 = arith.truncf %595 : vector<8x128xf32> to vector<8x128xbf16>
    %c0_261 = arith.constant 0 : index
    %c0_262 = arith.constant 0 : index
    %c0_263 = arith.constant 0 : index
    %619 = vector.load %arg19[%c0_261, %c0_262, %c0_263] : memref<3x128x256xbf16, #tpu.memory_space<vmem>>, vector<1x128x256xbf16>
    %620 = vector.shape_cast %619 : vector<1x128x256xbf16> to vector<128x256xbf16>
    %cst_264 = arith.constant dense<0.000000e+00> : vector<8x256xf32>
    %621 = tpu.matmul %618, %620, %cst_264 {dimension_numbers = #tpu.dot_dimension_numbers<[1], [0], [0], [1], [0, 0, 1, 1], [], []>} : vector<8x128xbf16>, vector<128x256xbf16>, vector<8x256xf32> -> vector<8x256xf32>
    %622 = arith.truncf %606 : vector<8x128xf32> to vector<8x128xbf16>
    %c1_265 = arith.constant 1 : index
    %c0_266 = arith.constant 0 : index
    %c0_267 = arith.constant 0 : index
    %623 = vector.load %arg19[%c1_265, %c0_266, %c0_267] : memref<3x128x256xbf16, #tpu.memory_space<vmem>>, vector<1x128x256xbf16>
    %624 = vector.shape_cast %623 : vector<1x128x256xbf16> to vector<128x256xbf16>
    %cst_268 = arith.constant dense<0.000000e+00> : vector<8x256xf32>
    %625 = tpu.matmul %622, %624, %cst_268 {dimension_numbers = #tpu.dot_dimension_numbers<[1], [0], [0], [1], [0, 0, 1, 1], [], []>} : vector<8x128xbf16>, vector<128x256xbf16>, vector<8x256xf32> -> vector<8x256xf32>
    %626 = arith.addf %621, %625 : vector<8x256xf32>
    %627 = arith.truncf %617 : vector<8x128xf32> to vector<8x128xbf16>
    %c2_269 = arith.constant 2 : index
    %c0_270 = arith.constant 0 : index
    %c0_271 = arith.constant 0 : index
    %628 = vector.load %arg19[%c2_269, %c0_270, %c0_271] : memref<3x128x256xbf16, #tpu.memory_space<vmem>>, vector<1x128x256xbf16>
    %629 = vector.shape_cast %628 : vector<1x128x256xbf16> to vector<128x256xbf16>
    %cst_272 = arith.constant dense<0.000000e+00> : vector<8x256xf32>
    %630 = tpu.matmul %627, %629, %cst_272 {dimension_numbers = #tpu.dot_dimension_numbers<[1], [0], [0], [1], [0, 0, 1, 1], [], []>} : vector<8x128xbf16>, vector<128x256xbf16>, vector<8x256xf32> -> vector<8x256xf32>
    %631 = arith.addf %626, %630 : vector<8x256xf32>
    %cst_273 = arith.constant dense<0.000000e+00> : vector<256xf32>
    %632 = vector.multi_reduction <add>, %631, %cst_273 [0] : vector<8x256xf32> to vector<256xf32>
    %633 = vector.shape_cast %632 : vector<256xf32> to vector<1x256xf32>
    %cst_274 = arith.constant 1.250000e-01 : f32
    %634 = vector.broadcast %cst_274 : f32 to vector<1x256xf32>
    %635 = arith.mulf %633, %634 : vector<1x256xf32>
    %636 = arith.mulf %631, %631 : vector<8x256xf32>
    %cst_275 = arith.constant dense<0.000000e+00> : vector<256xf32>
    %637 = vector.multi_reduction <add>, %636, %cst_275 [0] : vector<8x256xf32> to vector<256xf32>
    %638 = vector.shape_cast %637 : vector<256xf32> to vector<1x256xf32>
    %cst_276 = arith.constant 1.250000e-01 : f32
    %639 = vector.broadcast %cst_276 : f32 to vector<1x256xf32>
    %640 = arith.mulf %638, %639 : vector<1x256xf32>
    %641 = arith.mulf %635, %635 : vector<1x256xf32>
    %642 = arith.subf %640, %641 : vector<1x256xf32>
    %cst_277 = arith.constant 0.000000e+00 : f32
    %643 = vector.broadcast %cst_277 : f32 to vector<1x256xf32>
    %644 = arith.maximumf %642, %643 : vector<1x256xf32>
    %c0_278 = arith.constant 0 : index
    %c0_279 = arith.constant 0 : index
    %645 = vector.load %arg20[%c0_278, %c0_279] : memref<1x256xf32, #tpu.memory_space<vmem>>, vector<1x256xf32>
    %cst_280 = arith.constant 9.99999974E-6 : f32
    %646 = vector.broadcast %cst_280 : f32 to vector<1x256xf32>
    %647 = arith.addf %644, %646 : vector<1x256xf32>
    %648 = math.rsqrt %647 : vector<1x256xf32>
    %649 = arith.mulf %645, %648 : vector<1x256xf32>
    %c0_281 = arith.constant 0 : index
    %c0_282 = arith.constant 0 : index
    %650 = vector.load %arg21[%c0_281, %c0_282] : memref<1x256xf32, #tpu.memory_space<vmem>>, vector<1x256xf32>
    %651 = arith.mulf %635, %649 : vector<1x256xf32>
    %652 = arith.subf %650, %651 : vector<1x256xf32>
    %653 = vector.broadcast %649 : vector<1x256xf32> to vector<8x256xf32>
    %654 = arith.mulf %631, %653 : vector<8x256xf32>
    %655 = vector.broadcast %652 : vector<1x256xf32> to vector<8x256xf32>
    %656 = arith.addf %654, %655 : vector<8x256xf32>
    %cst_283 = arith.constant 0.000000e+00 : f32
    %657 = vector.broadcast %cst_283 : f32 to vector<8x256xf32>
    %658 = arith.maximumf %656, %657 : vector<8x256xf32>
    %659 = tpu.iota {dimensions = array<i32: 0>} : vector<8x16xi32>
    %660 = tpu.iota {dimensions = array<i32: 1>} : vector<8x16xi32>
    %c0_i32_284 = arith.constant 0 : i32
    %661 = vector.broadcast %c0_i32_284 : i32 to vector<8x16xi32>
    %662 = arith.cmpi sge, %659, %661 : vector<8x16xi32>
    %c4_i32_285 = arith.constant 4 : i32
    %663 = vector.broadcast %c4_i32_285 : i32 to vector<8x16xi32>
    %664 = arith.cmpi slt, %659, %663 : vector<8x16xi32>
    %665 = arith.andi %662, %664 : vector<8x16xi1>
    %c0_i32_286 = arith.constant 0 : i32
    %666 = vector.broadcast %c0_i32_286 : i32 to vector<8x16xi32>
    %667 = arith.cmpi sge, %660, %666 : vector<8x16xi32>
    %668 = arith.andi %665, %667 : vector<8x16xi1>
    %c8_i32_287 = arith.constant 8 : i32
    %669 = vector.broadcast %c8_i32_287 : i32 to vector<8x16xi32>
    %670 = arith.cmpi slt, %660, %669 : vector<8x16xi32>
    %671 = arith.andi %668, %670 : vector<8x16xi1>
    %c4_i32_288 = arith.constant 4 : i32
    %672 = vector.broadcast %c4_i32_288 : i32 to vector<8x16xi32>
    %673 = arith.cmpi sge, %659, %672 : vector<8x16xi32>
    %c8_i32_289 = arith.constant 8 : i32
    %674 = vector.broadcast %c8_i32_289 : i32 to vector<8x16xi32>
    %675 = arith.cmpi slt, %659, %674 : vector<8x16xi32>
    %676 = arith.andi %673, %675 : vector<8x16xi1>
    %c8_i32_290 = arith.constant 8 : i32
    %677 = vector.broadcast %c8_i32_290 : i32 to vector<8x16xi32>
    %678 = arith.cmpi sge, %660, %677 : vector<8x16xi32>
    %679 = arith.andi %676, %678 : vector<8x16xi1>
    %c16_i32_291 = arith.constant 16 : i32
    %680 = vector.broadcast %c16_i32_291 : i32 to vector<8x16xi32>
    %681 = arith.cmpi slt, %660, %680 : vector<8x16xi32>
    %682 = arith.andi %679, %681 : vector<8x16xi1>
    %683 = arith.ori %671, %682 : vector<8x16xi1>
    %c2_i32_292 = arith.constant 2 : i32
    %684 = vector.broadcast %c2_i32_292 : i32 to vector<8x16xi32>
    %685 = arith.muli %684, %659 : vector<8x16xi32>
    %c0_i32_293 = arith.constant 0 : i32
    %686 = vector.broadcast %c0_i32_293 : i32 to vector<8x16xi32>
    %687 = arith.addi %685, %686 : vector<8x16xi32>
    %688 = arith.cmpi eq, %660, %687 : vector<8x16xi32>
    %689 = arith.andi %683, %688 : vector<8x16xi1>
    %cst_294 = arith.constant 1.000000e+00 : f32
    %cst_295 = arith.constant 0.000000e+00 : f32
    %690 = vector.broadcast %cst_294 : f32 to vector<8x16xf32>
    %691 = vector.broadcast %cst_295 : f32 to vector<8x16xf32>
    %692 = arith.select %689, %690, %691 : vector<8x16xi1>, vector<8x16xf32>
    %693 = arith.truncf %692 : vector<8x16xf32> to vector<8x16xbf16>
    %cst_296 = arith.constant dense<0.000000e+00> : vector<8x128xf32>
    %694 = tpu.matmul %693, %559, %cst_296 {dimension_numbers = #tpu.dot_dimension_numbers<[1], [0], [0], [1], [0, 0, 1, 1], [], []>} : vector<8x16xbf16>, vector<16x128xbf16>, vector<8x128xf32> -> vector<8x128xf32>
    %695 = arith.truncf %694 : vector<8x128xf32> to vector<8x128xbf16>
    %c0_297 = arith.constant 0 : index
    %c0_298 = arith.constant 0 : index
    %c0_299 = arith.constant 0 : index
    %696 = vector.load %arg25[%c0_297, %c0_298, %c0_299] : memref<1x128x256xbf16, #tpu.memory_space<vmem>>, vector<1x128x256xbf16>
    %697 = vector.shape_cast %696 : vector<1x128x256xbf16> to vector<128x256xbf16>
    %cst_300 = arith.constant dense<0.000000e+00> : vector<8x256xf32>
    %698 = tpu.matmul %695, %697, %cst_300 {dimension_numbers = #tpu.dot_dimension_numbers<[1], [0], [0], [1], [0, 0, 1, 1], [], []>} : vector<8x128xbf16>, vector<128x256xbf16>, vector<8x256xf32> -> vector<8x256xf32>
    %cst_301 = arith.constant dense<0.000000e+00> : vector<256xf32>
    %699 = vector.multi_reduction <add>, %698, %cst_301 [0] : vector<8x256xf32> to vector<256xf32>
    %700 = vector.shape_cast %699 : vector<256xf32> to vector<1x256xf32>
    %cst_302 = arith.constant 1.250000e-01 : f32
    %701 = vector.broadcast %cst_302 : f32 to vector<1x256xf32>
    %702 = arith.mulf %700, %701 : vector<1x256xf32>
    %703 = arith.mulf %698, %698 : vector<8x256xf32>
    %cst_303 = arith.constant dense<0.000000e+00> : vector<256xf32>
    %704 = vector.multi_reduction <add>, %703, %cst_303 [0] : vector<8x256xf32> to vector<256xf32>
    %705 = vector.shape_cast %704 : vector<256xf32> to vector<1x256xf32>
    %cst_304 = arith.constant 1.250000e-01 : f32
    %706 = vector.broadcast %cst_304 : f32 to vector<1x256xf32>
    %707 = arith.mulf %705, %706 : vector<1x256xf32>
    %708 = arith.mulf %702, %702 : vector<1x256xf32>
    %709 = arith.subf %707, %708 : vector<1x256xf32>
    %cst_305 = arith.constant 0.000000e+00 : f32
    %710 = vector.broadcast %cst_305 : f32 to vector<1x256xf32>
    %711 = arith.maximumf %709, %710 : vector<1x256xf32>
    %c0_306 = arith.constant 0 : index
    %c0_307 = arith.constant 0 : index
    %712 = vector.load %arg26[%c0_306, %c0_307] : memref<1x256xf32, #tpu.memory_space<vmem>>, vector<1x256xf32>
    %cst_308 = arith.constant 9.99999974E-6 : f32
    %713 = vector.broadcast %cst_308 : f32 to vector<1x256xf32>
    %714 = arith.addf %711, %713 : vector<1x256xf32>
    %715 = math.rsqrt %714 : vector<1x256xf32>
    %716 = arith.mulf %712, %715 : vector<1x256xf32>
    %c0_309 = arith.constant 0 : index
    %c0_310 = arith.constant 0 : index
    %717 = vector.load %arg27[%c0_309, %c0_310] : memref<1x256xf32, #tpu.memory_space<vmem>>, vector<1x256xf32>
    %718 = arith.mulf %702, %716 : vector<1x256xf32>
    %719 = arith.subf %717, %718 : vector<1x256xf32>
    %720 = vector.broadcast %716 : vector<1x256xf32> to vector<8x256xf32>
    %721 = arith.mulf %698, %720 : vector<8x256xf32>
    %722 = vector.broadcast %719 : vector<1x256xf32> to vector<8x256xf32>
    %723 = arith.addf %721, %722 : vector<8x256xf32>
    %724 = arith.truncf %658 : vector<8x256xf32> to vector<8x256xbf16>
    %725 = tpu.iota {dimensions = array<i32: 0>} : vector<8x8xi32>
    %726 = tpu.iota {dimensions = array<i32: 1>} : vector<8x8xi32>
    %c0_i32_311 = arith.constant 0 : i32
    %727 = vector.broadcast %c0_i32_311 : i32 to vector<8x8xi32>
    %728 = arith.cmpi sge, %725, %727 : vector<8x8xi32>
    %c4_i32_312 = arith.constant 4 : i32
    %729 = vector.broadcast %c4_i32_312 : i32 to vector<8x8xi32>
    %730 = arith.cmpi slt, %725, %729 : vector<8x8xi32>
    %731 = arith.andi %728, %730 : vector<8x8xi1>
    %c0_i32_313 = arith.constant 0 : i32
    %732 = vector.broadcast %c0_i32_313 : i32 to vector<8x8xi32>
    %733 = arith.cmpi sge, %726, %732 : vector<8x8xi32>
    %734 = arith.andi %731, %733 : vector<8x8xi1>
    %c4_i32_314 = arith.constant 4 : i32
    %735 = vector.broadcast %c4_i32_314 : i32 to vector<8x8xi32>
    %736 = arith.cmpi slt, %726, %735 : vector<8x8xi32>
    %737 = arith.andi %734, %736 : vector<8x8xi1>
    %c4_i32_315 = arith.constant 4 : i32
    %738 = vector.broadcast %c4_i32_315 : i32 to vector<8x8xi32>
    %739 = arith.cmpi sge, %725, %738 : vector<8x8xi32>
    %c8_i32_316 = arith.constant 8 : i32
    %740 = vector.broadcast %c8_i32_316 : i32 to vector<8x8xi32>
    %741 = arith.cmpi slt, %725, %740 : vector<8x8xi32>
    %742 = arith.andi %739, %741 : vector<8x8xi1>
    %c4_i32_317 = arith.constant 4 : i32
    %743 = vector.broadcast %c4_i32_317 : i32 to vector<8x8xi32>
    %744 = arith.cmpi sge, %726, %743 : vector<8x8xi32>
    %745 = arith.andi %742, %744 : vector<8x8xi1>
    %c8_i32_318 = arith.constant 8 : i32
    %746 = vector.broadcast %c8_i32_318 : i32 to vector<8x8xi32>
    %747 = arith.cmpi slt, %726, %746 : vector<8x8xi32>
    %748 = arith.andi %745, %747 : vector<8x8xi1>
    %749 = arith.ori %737, %748 : vector<8x8xi1>
    %c1_i32_319 = arith.constant 1 : i32
    %750 = vector.broadcast %c1_i32_319 : i32 to vector<8x8xi32>
    %751 = arith.muli %750, %725 : vector<8x8xi32>
    %c-1_i32_320 = arith.constant -1 : i32
    %752 = vector.broadcast %c-1_i32_320 : i32 to vector<8x8xi32>
    %753 = arith.addi %751, %752 : vector<8x8xi32>
    %754 = arith.cmpi eq, %726, %753 : vector<8x8xi32>
    %755 = arith.andi %749, %754 : vector<8x8xi1>
    %cst_321 = arith.constant 1.000000e+00 : f32
    %cst_322 = arith.constant 0.000000e+00 : f32
    %756 = vector.broadcast %cst_321 : f32 to vector<8x8xf32>
    %757 = vector.broadcast %cst_322 : f32 to vector<8x8xf32>
    %758 = arith.select %755, %756, %757 : vector<8x8xi1>, vector<8x8xf32>
    %759 = arith.truncf %758 : vector<8x8xf32> to vector<8x8xbf16>
    %cst_323 = arith.constant dense<0.000000e+00> : vector<8x256xf32>
    %760 = tpu.matmul %759, %724, %cst_323 {dimension_numbers = #tpu.dot_dimension_numbers<[1], [0], [0], [1], [0, 0, 1, 1], [], []>} : vector<8x8xbf16>, vector<8x256xbf16>, vector<8x256xf32> -> vector<8x256xf32>
    %c1_i32_324 = arith.constant 1 : i32
    %761 = vector.broadcast %c1_i32_324 : i32 to vector<8x8xi32>
    %762 = arith.muli %761, %725 : vector<8x8xi32>
    %c0_i32_325 = arith.constant 0 : i32
    %763 = vector.broadcast %c0_i32_325 : i32 to vector<8x8xi32>
    %764 = arith.addi %762, %763 : vector<8x8xi32>
    %765 = arith.cmpi eq, %726, %764 : vector<8x8xi32>
    %766 = arith.andi %749, %765 : vector<8x8xi1>
    %cst_326 = arith.constant 1.000000e+00 : f32
    %cst_327 = arith.constant 0.000000e+00 : f32
    %767 = vector.broadcast %cst_326 : f32 to vector<8x8xf32>
    %768 = vector.broadcast %cst_327 : f32 to vector<8x8xf32>
    %769 = arith.select %766, %767, %768 : vector<8x8xi1>, vector<8x8xf32>
    %770 = arith.truncf %769 : vector<8x8xf32> to vector<8x8xbf16>
    %cst_328 = arith.constant dense<0.000000e+00> : vector<8x256xf32>
    %771 = tpu.matmul %770, %724, %cst_328 {dimension_numbers = #tpu.dot_dimension_numbers<[1], [0], [0], [1], [0, 0, 1, 1], [], []>} : vector<8x8xbf16>, vector<8x256xbf16>, vector<8x256xf32> -> vector<8x256xf32>
    %c1_i32_329 = arith.constant 1 : i32
    %772 = vector.broadcast %c1_i32_329 : i32 to vector<8x8xi32>
    %773 = arith.muli %772, %725 : vector<8x8xi32>
    %c1_i32_330 = arith.constant 1 : i32
    %774 = vector.broadcast %c1_i32_330 : i32 to vector<8x8xi32>
    %775 = arith.addi %773, %774 : vector<8x8xi32>
    %776 = arith.cmpi eq, %726, %775 : vector<8x8xi32>
    %777 = arith.andi %749, %776 : vector<8x8xi1>
    %cst_331 = arith.constant 1.000000e+00 : f32
    %cst_332 = arith.constant 0.000000e+00 : f32
    %778 = vector.broadcast %cst_331 : f32 to vector<8x8xf32>
    %779 = vector.broadcast %cst_332 : f32 to vector<8x8xf32>
    %780 = arith.select %777, %778, %779 : vector<8x8xi1>, vector<8x8xf32>
    %781 = arith.truncf %780 : vector<8x8xf32> to vector<8x8xbf16>
    %cst_333 = arith.constant dense<0.000000e+00> : vector<8x256xf32>
    %782 = tpu.matmul %781, %724, %cst_333 {dimension_numbers = #tpu.dot_dimension_numbers<[1], [0], [0], [1], [0, 0, 1, 1], [], []>} : vector<8x8xbf16>, vector<8x256xbf16>, vector<8x256xf32> -> vector<8x256xf32>
    %783 = arith.truncf %760 : vector<8x256xf32> to vector<8x256xbf16>
    %c0_334 = arith.constant 0 : index
    %c0_335 = arith.constant 0 : index
    %c0_336 = arith.constant 0 : index
    %784 = vector.load %arg22[%c0_334, %c0_335, %c0_336] : memref<3x256x256xbf16, #tpu.memory_space<vmem>>, vector<1x256x256xbf16>
    %785 = vector.shape_cast %784 : vector<1x256x256xbf16> to vector<256x256xbf16>
    %cst_337 = arith.constant dense<0.000000e+00> : vector<8x256xf32>
    %786 = tpu.matmul %783, %785, %cst_337 {dimension_numbers = #tpu.dot_dimension_numbers<[1], [0], [0], [1], [0, 0, 1, 1], [], []>} : vector<8x256xbf16>, vector<256x256xbf16>, vector<8x256xf32> -> vector<8x256xf32>
    %787 = arith.truncf %771 : vector<8x256xf32> to vector<8x256xbf16>
    %c1_338 = arith.constant 1 : index
    %c0_339 = arith.constant 0 : index
    %c0_340 = arith.constant 0 : index
    %788 = vector.load %arg22[%c1_338, %c0_339, %c0_340] : memref<3x256x256xbf16, #tpu.memory_space<vmem>>, vector<1x256x256xbf16>
    %789 = vector.shape_cast %788 : vector<1x256x256xbf16> to vector<256x256xbf16>
    %cst_341 = arith.constant dense<0.000000e+00> : vector<8x256xf32>
    %790 = tpu.matmul %787, %789, %cst_341 {dimension_numbers = #tpu.dot_dimension_numbers<[1], [0], [0], [1], [0, 0, 1, 1], [], []>} : vector<8x256xbf16>, vector<256x256xbf16>, vector<8x256xf32> -> vector<8x256xf32>
    %791 = arith.addf %786, %790 : vector<8x256xf32>
    %792 = arith.truncf %782 : vector<8x256xf32> to vector<8x256xbf16>
    %c2_342 = arith.constant 2 : index
    %c0_343 = arith.constant 0 : index
    %c0_344 = arith.constant 0 : index
    %793 = vector.load %arg22[%c2_342, %c0_343, %c0_344] : memref<3x256x256xbf16, #tpu.memory_space<vmem>>, vector<1x256x256xbf16>
    %794 = vector.shape_cast %793 : vector<1x256x256xbf16> to vector<256x256xbf16>
    %cst_345 = arith.constant dense<0.000000e+00> : vector<8x256xf32>
    %795 = tpu.matmul %792, %794, %cst_345 {dimension_numbers = #tpu.dot_dimension_numbers<[1], [0], [0], [1], [0, 0, 1, 1], [], []>} : vector<8x256xbf16>, vector<256x256xbf16>, vector<8x256xf32> -> vector<8x256xf32>
    %796 = arith.addf %791, %795 : vector<8x256xf32>
    %cst_346 = arith.constant dense<0.000000e+00> : vector<256xf32>
    %797 = vector.multi_reduction <add>, %796, %cst_346 [0] : vector<8x256xf32> to vector<256xf32>
    %798 = vector.shape_cast %797 : vector<256xf32> to vector<1x256xf32>
    %cst_347 = arith.constant 1.250000e-01 : f32
    %799 = vector.broadcast %cst_347 : f32 to vector<1x256xf32>
    %800 = arith.mulf %798, %799 : vector<1x256xf32>
    %801 = arith.mulf %796, %796 : vector<8x256xf32>
    %cst_348 = arith.constant dense<0.000000e+00> : vector<256xf32>
    %802 = vector.multi_reduction <add>, %801, %cst_348 [0] : vector<8x256xf32> to vector<256xf32>
    %803 = vector.shape_cast %802 : vector<256xf32> to vector<1x256xf32>
    %cst_349 = arith.constant 1.250000e-01 : f32
    %804 = vector.broadcast %cst_349 : f32 to vector<1x256xf32>
    %805 = arith.mulf %803, %804 : vector<1x256xf32>
    %806 = arith.mulf %800, %800 : vector<1x256xf32>
    %807 = arith.subf %805, %806 : vector<1x256xf32>
    %cst_350 = arith.constant 0.000000e+00 : f32
    %808 = vector.broadcast %cst_350 : f32 to vector<1x256xf32>
    %809 = arith.maximumf %807, %808 : vector<1x256xf32>
    %c0_351 = arith.constant 0 : index
    %c0_352 = arith.constant 0 : index
    %810 = vector.load %arg23[%c0_351, %c0_352] : memref<1x256xf32, #tpu.memory_space<vmem>>, vector<1x256xf32>
    %cst_353 = arith.constant 9.99999974E-6 : f32
    %811 = vector.broadcast %cst_353 : f32 to vector<1x256xf32>
    %812 = arith.addf %809, %811 : vector<1x256xf32>
    %813 = math.rsqrt %812 : vector<1x256xf32>
    %814 = arith.mulf %810, %813 : vector<1x256xf32>
    %c0_354 = arith.constant 0 : index
    %c0_355 = arith.constant 0 : index
    %815 = vector.load %arg24[%c0_354, %c0_355] : memref<1x256xf32, #tpu.memory_space<vmem>>, vector<1x256xf32>
    %816 = arith.mulf %800, %814 : vector<1x256xf32>
    %817 = arith.subf %815, %816 : vector<1x256xf32>
    %818 = vector.broadcast %814 : vector<1x256xf32> to vector<8x256xf32>
    %819 = arith.mulf %796, %818 : vector<8x256xf32>
    %820 = vector.broadcast %817 : vector<1x256xf32> to vector<8x256xf32>
    %821 = arith.addf %819, %820 : vector<8x256xf32>
    %822 = arith.addf %821, %723 : vector<8x256xf32>
    %cst_356 = arith.constant 0.000000e+00 : f32
    %823 = vector.broadcast %cst_356 : f32 to vector<8x256xf32>
    %824 = arith.maximumf %822, %823 : vector<8x256xf32>
    %825 = arith.truncf %824 : vector<8x256xf32> to vector<8x256xbf16>
    %826 = tpu.iota {dimensions = array<i32: 0>} : vector<4x8xi32>
    %827 = tpu.iota {dimensions = array<i32: 1>} : vector<4x8xi32>
    %c0_i32_357 = arith.constant 0 : i32
    %828 = vector.broadcast %c0_i32_357 : i32 to vector<4x8xi32>
    %829 = arith.cmpi sge, %826, %828 : vector<4x8xi32>
    %c2_i32_358 = arith.constant 2 : i32
    %830 = vector.broadcast %c2_i32_358 : i32 to vector<4x8xi32>
    %831 = arith.cmpi slt, %826, %830 : vector<4x8xi32>
    %832 = arith.andi %829, %831 : vector<4x8xi1>
    %c0_i32_359 = arith.constant 0 : i32
    %833 = vector.broadcast %c0_i32_359 : i32 to vector<4x8xi32>
    %834 = arith.cmpi sge, %827, %833 : vector<4x8xi32>
    %835 = arith.andi %832, %834 : vector<4x8xi1>
    %c4_i32_360 = arith.constant 4 : i32
    %836 = vector.broadcast %c4_i32_360 : i32 to vector<4x8xi32>
    %837 = arith.cmpi slt, %827, %836 : vector<4x8xi32>
    %838 = arith.andi %835, %837 : vector<4x8xi1>
    %c2_i32_361 = arith.constant 2 : i32
    %839 = vector.broadcast %c2_i32_361 : i32 to vector<4x8xi32>
    %840 = arith.cmpi sge, %826, %839 : vector<4x8xi32>
    %c4_i32_362 = arith.constant 4 : i32
    %841 = vector.broadcast %c4_i32_362 : i32 to vector<4x8xi32>
    %842 = arith.cmpi slt, %826, %841 : vector<4x8xi32>
    %843 = arith.andi %840, %842 : vector<4x8xi1>
    %c4_i32_363 = arith.constant 4 : i32
    %844 = vector.broadcast %c4_i32_363 : i32 to vector<4x8xi32>
    %845 = arith.cmpi sge, %827, %844 : vector<4x8xi32>
    %846 = arith.andi %843, %845 : vector<4x8xi1>
    %c8_i32_364 = arith.constant 8 : i32
    %847 = vector.broadcast %c8_i32_364 : i32 to vector<4x8xi32>
    %848 = arith.cmpi slt, %827, %847 : vector<4x8xi32>
    %849 = arith.andi %846, %848 : vector<4x8xi1>
    %850 = arith.ori %838, %849 : vector<4x8xi1>
    %c2_i32_365 = arith.constant 2 : i32
    %851 = vector.broadcast %c2_i32_365 : i32 to vector<4x8xi32>
    %852 = arith.muli %851, %826 : vector<4x8xi32>
    %c-1_i32_366 = arith.constant -1 : i32
    %853 = vector.broadcast %c-1_i32_366 : i32 to vector<4x8xi32>
    %854 = arith.addi %852, %853 : vector<4x8xi32>
    %855 = arith.cmpi eq, %827, %854 : vector<4x8xi32>
    %856 = arith.andi %850, %855 : vector<4x8xi1>
    %cst_367 = arith.constant 1.000000e+00 : f32
    %cst_368 = arith.constant 0.000000e+00 : f32
    %857 = vector.broadcast %cst_367 : f32 to vector<4x8xf32>
    %858 = vector.broadcast %cst_368 : f32 to vector<4x8xf32>
    %859 = arith.select %856, %857, %858 : vector<4x8xi1>, vector<4x8xf32>
    %860 = arith.truncf %859 : vector<4x8xf32> to vector<4x8xbf16>
    %cst_369 = arith.constant dense<0.000000e+00> : vector<4x256xf32>
    %861 = tpu.matmul %860, %825, %cst_369 {dimension_numbers = #tpu.dot_dimension_numbers<[1], [0], [0], [1], [0, 0, 1, 1], [], []>} : vector<4x8xbf16>, vector<8x256xbf16>, vector<4x256xf32> -> vector<4x256xf32>
    %c2_i32_370 = arith.constant 2 : i32
    %862 = vector.broadcast %c2_i32_370 : i32 to vector<4x8xi32>
    %863 = arith.muli %862, %826 : vector<4x8xi32>
    %c0_i32_371 = arith.constant 0 : i32
    %864 = vector.broadcast %c0_i32_371 : i32 to vector<4x8xi32>
    %865 = arith.addi %863, %864 : vector<4x8xi32>
    %866 = arith.cmpi eq, %827, %865 : vector<4x8xi32>
    %867 = arith.andi %850, %866 : vector<4x8xi1>
    %cst_372 = arith.constant 1.000000e+00 : f32
    %cst_373 = arith.constant 0.000000e+00 : f32
    %868 = vector.broadcast %cst_372 : f32 to vector<4x8xf32>
    %869 = vector.broadcast %cst_373 : f32 to vector<4x8xf32>
    %870 = arith.select %867, %868, %869 : vector<4x8xi1>, vector<4x8xf32>
    %871 = arith.truncf %870 : vector<4x8xf32> to vector<4x8xbf16>
    %cst_374 = arith.constant dense<0.000000e+00> : vector<4x256xf32>
    %872 = tpu.matmul %871, %825, %cst_374 {dimension_numbers = #tpu.dot_dimension_numbers<[1], [0], [0], [1], [0, 0, 1, 1], [], []>} : vector<4x8xbf16>, vector<8x256xbf16>, vector<4x256xf32> -> vector<4x256xf32>
    %c2_i32_375 = arith.constant 2 : i32
    %873 = vector.broadcast %c2_i32_375 : i32 to vector<4x8xi32>
    %874 = arith.muli %873, %826 : vector<4x8xi32>
    %c1_i32_376 = arith.constant 1 : i32
    %875 = vector.broadcast %c1_i32_376 : i32 to vector<4x8xi32>
    %876 = arith.addi %874, %875 : vector<4x8xi32>
    %877 = arith.cmpi eq, %827, %876 : vector<4x8xi32>
    %878 = arith.andi %850, %877 : vector<4x8xi1>
    %cst_377 = arith.constant 1.000000e+00 : f32
    %cst_378 = arith.constant 0.000000e+00 : f32
    %879 = vector.broadcast %cst_377 : f32 to vector<4x8xf32>
    %880 = vector.broadcast %cst_378 : f32 to vector<4x8xf32>
    %881 = arith.select %878, %879, %880 : vector<4x8xi1>, vector<4x8xf32>
    %882 = arith.truncf %881 : vector<4x8xf32> to vector<4x8xbf16>
    %cst_379 = arith.constant dense<0.000000e+00> : vector<4x256xf32>
    %883 = tpu.matmul %882, %825, %cst_379 {dimension_numbers = #tpu.dot_dimension_numbers<[1], [0], [0], [1], [0, 0, 1, 1], [], []>} : vector<4x8xbf16>, vector<8x256xbf16>, vector<4x256xf32> -> vector<4x256xf32>
    %884 = arith.truncf %861 : vector<4x256xf32> to vector<4x256xbf16>
    %c0_380 = arith.constant 0 : index
    %c0_381 = arith.constant 0 : index
    %c0_382 = arith.constant 0 : index
    %885 = vector.load %arg28[%c0_380, %c0_381, %c0_382] : memref<3x256x512xbf16, #tpu.memory_space<vmem>>, vector<1x256x512xbf16>
    %886 = vector.shape_cast %885 : vector<1x256x512xbf16> to vector<256x512xbf16>
    %cst_383 = arith.constant dense<0.000000e+00> : vector<4x512xf32>
    %887 = tpu.matmul %884, %886, %cst_383 {dimension_numbers = #tpu.dot_dimension_numbers<[1], [0], [0], [1], [0, 0, 1, 1], [], []>} : vector<4x256xbf16>, vector<256x512xbf16>, vector<4x512xf32> -> vector<4x512xf32>
    %888 = arith.truncf %872 : vector<4x256xf32> to vector<4x256xbf16>
    %c1_384 = arith.constant 1 : index
    %c0_385 = arith.constant 0 : index
    %c0_386 = arith.constant 0 : index
    %889 = vector.load %arg28[%c1_384, %c0_385, %c0_386] : memref<3x256x512xbf16, #tpu.memory_space<vmem>>, vector<1x256x512xbf16>
    %890 = vector.shape_cast %889 : vector<1x256x512xbf16> to vector<256x512xbf16>
    %cst_387 = arith.constant dense<0.000000e+00> : vector<4x512xf32>
    %891 = tpu.matmul %888, %890, %cst_387 {dimension_numbers = #tpu.dot_dimension_numbers<[1], [0], [0], [1], [0, 0, 1, 1], [], []>} : vector<4x256xbf16>, vector<256x512xbf16>, vector<4x512xf32> -> vector<4x512xf32>
    %892 = arith.addf %887, %891 : vector<4x512xf32>
    %893 = arith.truncf %883 : vector<4x256xf32> to vector<4x256xbf16>
    %c2_388 = arith.constant 2 : index
    %c0_389 = arith.constant 0 : index
    %c0_390 = arith.constant 0 : index
    %894 = vector.load %arg28[%c2_388, %c0_389, %c0_390] : memref<3x256x512xbf16, #tpu.memory_space<vmem>>, vector<1x256x512xbf16>
    %895 = vector.shape_cast %894 : vector<1x256x512xbf16> to vector<256x512xbf16>
    %cst_391 = arith.constant dense<0.000000e+00> : vector<4x512xf32>
    %896 = tpu.matmul %893, %895, %cst_391 {dimension_numbers = #tpu.dot_dimension_numbers<[1], [0], [0], [1], [0, 0, 1, 1], [], []>} : vector<4x256xbf16>, vector<256x512xbf16>, vector<4x512xf32> -> vector<4x512xf32>
    %897 = arith.addf %892, %896 : vector<4x512xf32>
    %cst_392 = arith.constant dense<0.000000e+00> : vector<512xf32>
    %898 = vector.multi_reduction <add>, %897, %cst_392 [0] : vector<4x512xf32> to vector<512xf32>
    %899 = vector.shape_cast %898 : vector<512xf32> to vector<1x512xf32>
    %cst_393 = arith.constant 2.500000e-01 : f32
    %900 = vector.broadcast %cst_393 : f32 to vector<1x512xf32>
    %901 = arith.mulf %899, %900 : vector<1x512xf32>
    %902 = arith.mulf %897, %897 : vector<4x512xf32>
    %cst_394 = arith.constant dense<0.000000e+00> : vector<512xf32>
    %903 = vector.multi_reduction <add>, %902, %cst_394 [0] : vector<4x512xf32> to vector<512xf32>
    %904 = vector.shape_cast %903 : vector<512xf32> to vector<1x512xf32>
    %cst_395 = arith.constant 2.500000e-01 : f32
    %905 = vector.broadcast %cst_395 : f32 to vector<1x512xf32>
    %906 = arith.mulf %904, %905 : vector<1x512xf32>
    %907 = arith.mulf %901, %901 : vector<1x512xf32>
    %908 = arith.subf %906, %907 : vector<1x512xf32>
    %cst_396 = arith.constant 0.000000e+00 : f32
    %909 = vector.broadcast %cst_396 : f32 to vector<1x512xf32>
    %910 = arith.maximumf %908, %909 : vector<1x512xf32>
    %c0_397 = arith.constant 0 : index
    %c0_398 = arith.constant 0 : index
    %911 = vector.load %arg29[%c0_397, %c0_398] : memref<1x512xf32, #tpu.memory_space<vmem>>, vector<1x512xf32>
    %cst_399 = arith.constant 9.99999974E-6 : f32
    %912 = vector.broadcast %cst_399 : f32 to vector<1x512xf32>
    %913 = arith.addf %910, %912 : vector<1x512xf32>
    %914 = math.rsqrt %913 : vector<1x512xf32>
    %915 = arith.mulf %911, %914 : vector<1x512xf32>
    %c0_400 = arith.constant 0 : index
    %c0_401 = arith.constant 0 : index
    %916 = vector.load %arg30[%c0_400, %c0_401] : memref<1x512xf32, #tpu.memory_space<vmem>>, vector<1x512xf32>
    %917 = arith.mulf %901, %915 : vector<1x512xf32>
    %918 = arith.subf %916, %917 : vector<1x512xf32>
    %919 = vector.broadcast %915 : vector<1x512xf32> to vector<4x512xf32>
    %920 = arith.mulf %897, %919 : vector<4x512xf32>
    %921 = vector.broadcast %918 : vector<1x512xf32> to vector<4x512xf32>
    %922 = arith.addf %920, %921 : vector<4x512xf32>
    %cst_402 = arith.constant 0.000000e+00 : f32
    %923 = vector.broadcast %cst_402 : f32 to vector<4x512xf32>
    %924 = arith.maximumf %922, %923 : vector<4x512xf32>
    %925 = tpu.iota {dimensions = array<i32: 0>} : vector<4x8xi32>
    %926 = tpu.iota {dimensions = array<i32: 1>} : vector<4x8xi32>
    %c0_i32_403 = arith.constant 0 : i32
    %927 = vector.broadcast %c0_i32_403 : i32 to vector<4x8xi32>
    %928 = arith.cmpi sge, %925, %927 : vector<4x8xi32>
    %c2_i32_404 = arith.constant 2 : i32
    %929 = vector.broadcast %c2_i32_404 : i32 to vector<4x8xi32>
    %930 = arith.cmpi slt, %925, %929 : vector<4x8xi32>
    %931 = arith.andi %928, %930 : vector<4x8xi1>
    %c0_i32_405 = arith.constant 0 : i32
    %932 = vector.broadcast %c0_i32_405 : i32 to vector<4x8xi32>
    %933 = arith.cmpi sge, %926, %932 : vector<4x8xi32>
    %934 = arith.andi %931, %933 : vector<4x8xi1>
    %c4_i32_406 = arith.constant 4 : i32
    %935 = vector.broadcast %c4_i32_406 : i32 to vector<4x8xi32>
    %936 = arith.cmpi slt, %926, %935 : vector<4x8xi32>
    %937 = arith.andi %934, %936 : vector<4x8xi1>
    %c2_i32_407 = arith.constant 2 : i32
    %938 = vector.broadcast %c2_i32_407 : i32 to vector<4x8xi32>
    %939 = arith.cmpi sge, %925, %938 : vector<4x8xi32>
    %c4_i32_408 = arith.constant 4 : i32
    %940 = vector.broadcast %c4_i32_408 : i32 to vector<4x8xi32>
    %941 = arith.cmpi slt, %925, %940 : vector<4x8xi32>
    %942 = arith.andi %939, %941 : vector<4x8xi1>
    %c4_i32_409 = arith.constant 4 : i32
    %943 = vector.broadcast %c4_i32_409 : i32 to vector<4x8xi32>
    %944 = arith.cmpi sge, %926, %943 : vector<4x8xi32>
    %945 = arith.andi %942, %944 : vector<4x8xi1>
    %c8_i32_410 = arith.constant 8 : i32
    %946 = vector.broadcast %c8_i32_410 : i32 to vector<4x8xi32>
    %947 = arith.cmpi slt, %926, %946 : vector<4x8xi32>
    %948 = arith.andi %945, %947 : vector<4x8xi1>
    %949 = arith.ori %937, %948 : vector<4x8xi1>
    %c2_i32_411 = arith.constant 2 : i32
    %950 = vector.broadcast %c2_i32_411 : i32 to vector<4x8xi32>
    %951 = arith.muli %950, %925 : vector<4x8xi32>
    %c0_i32_412 = arith.constant 0 : i32
    %952 = vector.broadcast %c0_i32_412 : i32 to vector<4x8xi32>
    %953 = arith.addi %951, %952 : vector<4x8xi32>
    %954 = arith.cmpi eq, %926, %953 : vector<4x8xi32>
    %955 = arith.andi %949, %954 : vector<4x8xi1>
    %cst_413 = arith.constant 1.000000e+00 : f32
    %cst_414 = arith.constant 0.000000e+00 : f32
    %956 = vector.broadcast %cst_413 : f32 to vector<4x8xf32>
    %957 = vector.broadcast %cst_414 : f32 to vector<4x8xf32>
    %958 = arith.select %955, %956, %957 : vector<4x8xi1>, vector<4x8xf32>
    %959 = arith.truncf %958 : vector<4x8xf32> to vector<4x8xbf16>
    %cst_415 = arith.constant dense<0.000000e+00> : vector<4x256xf32>
    %960 = tpu.matmul %959, %825, %cst_415 {dimension_numbers = #tpu.dot_dimension_numbers<[1], [0], [0], [1], [0, 0, 1, 1], [], []>} : vector<4x8xbf16>, vector<8x256xbf16>, vector<4x256xf32> -> vector<4x256xf32>
    %961 = arith.truncf %960 : vector<4x256xf32> to vector<4x256xbf16>
    %c0_416 = arith.constant 0 : index
    %c0_417 = arith.constant 0 : index
    %c0_418 = arith.constant 0 : index
    %962 = vector.load %arg34[%c0_416, %c0_417, %c0_418] : memref<1x256x512xbf16, #tpu.memory_space<vmem>>, vector<1x256x512xbf16>
    %963 = vector.shape_cast %962 : vector<1x256x512xbf16> to vector<256x512xbf16>
    %cst_419 = arith.constant dense<0.000000e+00> : vector<4x512xf32>
    %964 = tpu.matmul %961, %963, %cst_419 {dimension_numbers = #tpu.dot_dimension_numbers<[1], [0], [0], [1], [0, 0, 1, 1], [], []>} : vector<4x256xbf16>, vector<256x512xbf16>, vector<4x512xf32> -> vector<4x512xf32>
    %cst_420 = arith.constant dense<0.000000e+00> : vector<512xf32>
    %965 = vector.multi_reduction <add>, %964, %cst_420 [0] : vector<4x512xf32> to vector<512xf32>
    %966 = vector.shape_cast %965 : vector<512xf32> to vector<1x512xf32>
    %cst_421 = arith.constant 2.500000e-01 : f32
    %967 = vector.broadcast %cst_421 : f32 to vector<1x512xf32>
    %968 = arith.mulf %966, %967 : vector<1x512xf32>
    %969 = arith.mulf %964, %964 : vector<4x512xf32>
    %cst_422 = arith.constant dense<0.000000e+00> : vector<512xf32>
    %970 = vector.multi_reduction <add>, %969, %cst_422 [0] : vector<4x512xf32> to vector<512xf32>
    %971 = vector.shape_cast %970 : vector<512xf32> to vector<1x512xf32>
    %cst_423 = arith.constant 2.500000e-01 : f32
    %972 = vector.broadcast %cst_423 : f32 to vector<1x512xf32>
    %973 = arith.mulf %971, %972 : vector<1x512xf32>
    %974 = arith.mulf %968, %968 : vector<1x512xf32>
    %975 = arith.subf %973, %974 : vector<1x512xf32>
    %cst_424 = arith.constant 0.000000e+00 : f32
    %976 = vector.broadcast %cst_424 : f32 to vector<1x512xf32>
    %977 = arith.maximumf %975, %976 : vector<1x512xf32>
    %c0_425 = arith.constant 0 : index
    %c0_426 = arith.constant 0 : index
    %978 = vector.load %arg35[%c0_425, %c0_426] : memref<1x512xf32, #tpu.memory_space<vmem>>, vector<1x512xf32>
    %cst_427 = arith.constant 9.99999974E-6 : f32
    %979 = vector.broadcast %cst_427 : f32 to vector<1x512xf32>
    %980 = arith.addf %977, %979 : vector<1x512xf32>
    %981 = math.rsqrt %980 : vector<1x512xf32>
    %982 = arith.mulf %978, %981 : vector<1x512xf32>
    %c0_428 = arith.constant 0 : index
    %c0_429 = arith.constant 0 : index
    %983 = vector.load %arg36[%c0_428, %c0_429] : memref<1x512xf32, #tpu.memory_space<vmem>>, vector<1x512xf32>
    %984 = arith.mulf %968, %982 : vector<1x512xf32>
    %985 = arith.subf %983, %984 : vector<1x512xf32>
    %986 = vector.broadcast %982 : vector<1x512xf32> to vector<4x512xf32>
    %987 = arith.mulf %964, %986 : vector<4x512xf32>
    %988 = vector.broadcast %985 : vector<1x512xf32> to vector<4x512xf32>
    %989 = arith.addf %987, %988 : vector<4x512xf32>
    %990 = arith.truncf %924 : vector<4x512xf32> to vector<4x512xbf16>
    %991 = tpu.iota {dimensions = array<i32: 0>} : vector<4x4xi32>
    %992 = tpu.iota {dimensions = array<i32: 1>} : vector<4x4xi32>
    %c0_i32_430 = arith.constant 0 : i32
    %993 = vector.broadcast %c0_i32_430 : i32 to vector<4x4xi32>
    %994 = arith.cmpi sge, %991, %993 : vector<4x4xi32>
    %c2_i32_431 = arith.constant 2 : i32
    %995 = vector.broadcast %c2_i32_431 : i32 to vector<4x4xi32>
    %996 = arith.cmpi slt, %991, %995 : vector<4x4xi32>
    %997 = arith.andi %994, %996 : vector<4x4xi1>
    %c0_i32_432 = arith.constant 0 : i32
    %998 = vector.broadcast %c0_i32_432 : i32 to vector<4x4xi32>
    %999 = arith.cmpi sge, %992, %998 : vector<4x4xi32>
    %1000 = arith.andi %997, %999 : vector<4x4xi1>
    %c2_i32_433 = arith.constant 2 : i32
    %1001 = vector.broadcast %c2_i32_433 : i32 to vector<4x4xi32>
    %1002 = arith.cmpi slt, %992, %1001 : vector<4x4xi32>
    %1003 = arith.andi %1000, %1002 : vector<4x4xi1>
    %c2_i32_434 = arith.constant 2 : i32
    %1004 = vector.broadcast %c2_i32_434 : i32 to vector<4x4xi32>
    %1005 = arith.cmpi sge, %991, %1004 : vector<4x4xi32>
    %c4_i32_435 = arith.constant 4 : i32
    %1006 = vector.broadcast %c4_i32_435 : i32 to vector<4x4xi32>
    %1007 = arith.cmpi slt, %991, %1006 : vector<4x4xi32>
    %1008 = arith.andi %1005, %1007 : vector<4x4xi1>
    %c2_i32_436 = arith.constant 2 : i32
    %1009 = vector.broadcast %c2_i32_436 : i32 to vector<4x4xi32>
    %1010 = arith.cmpi sge, %992, %1009 : vector<4x4xi32>
    %1011 = arith.andi %1008, %1010 : vector<4x4xi1>
    %c4_i32_437 = arith.constant 4 : i32
    %1012 = vector.broadcast %c4_i32_437 : i32 to vector<4x4xi32>
    %1013 = arith.cmpi slt, %992, %1012 : vector<4x4xi32>
    %1014 = arith.andi %1011, %1013 : vector<4x4xi1>
    %1015 = arith.ori %1003, %1014 : vector<4x4xi1>
    %c1_i32_438 = arith.constant 1 : i32
    %1016 = vector.broadcast %c1_i32_438 : i32 to vector<4x4xi32>
    %1017 = arith.muli %1016, %991 : vector<4x4xi32>
    %c-1_i32_439 = arith.constant -1 : i32
    %1018 = vector.broadcast %c-1_i32_439 : i32 to vector<4x4xi32>
    %1019 = arith.addi %1017, %1018 : vector<4x4xi32>
    %1020 = arith.cmpi eq, %992, %1019 : vector<4x4xi32>
    %1021 = arith.andi %1015, %1020 : vector<4x4xi1>
    %cst_440 = arith.constant 1.000000e+00 : f32
    %cst_441 = arith.constant 0.000000e+00 : f32
    %1022 = vector.broadcast %cst_440 : f32 to vector<4x4xf32>
    %1023 = vector.broadcast %cst_441 : f32 to vector<4x4xf32>
    %1024 = arith.select %1021, %1022, %1023 : vector<4x4xi1>, vector<4x4xf32>
    %1025 = arith.truncf %1024 : vector<4x4xf32> to vector<4x4xbf16>
    %cst_442 = arith.constant dense<0.000000e+00> : vector<4x512xf32>
    %1026 = tpu.matmul %1025, %990, %cst_442 {dimension_numbers = #tpu.dot_dimension_numbers<[1], [0], [0], [1], [0, 0, 1, 1], [], []>} : vector<4x4xbf16>, vector<4x512xbf16>, vector<4x512xf32> -> vector<4x512xf32>
    %c1_i32_443 = arith.constant 1 : i32
    %1027 = vector.broadcast %c1_i32_443 : i32 to vector<4x4xi32>
    %1028 = arith.muli %1027, %991 : vector<4x4xi32>
    %c0_i32_444 = arith.constant 0 : i32
    %1029 = vector.broadcast %c0_i32_444 : i32 to vector<4x4xi32>
    %1030 = arith.addi %1028, %1029 : vector<4x4xi32>
    %1031 = arith.cmpi eq, %992, %1030 : vector<4x4xi32>
    %1032 = arith.andi %1015, %1031 : vector<4x4xi1>
    %cst_445 = arith.constant 1.000000e+00 : f32
    %cst_446 = arith.constant 0.000000e+00 : f32
    %1033 = vector.broadcast %cst_445 : f32 to vector<4x4xf32>
    %1034 = vector.broadcast %cst_446 : f32 to vector<4x4xf32>
    %1035 = arith.select %1032, %1033, %1034 : vector<4x4xi1>, vector<4x4xf32>
    %1036 = arith.truncf %1035 : vector<4x4xf32> to vector<4x4xbf16>
    %cst_447 = arith.constant dense<0.000000e+00> : vector<4x512xf32>
    %1037 = tpu.matmul %1036, %990, %cst_447 {dimension_numbers = #tpu.dot_dimension_numbers<[1], [0], [0], [1], [0, 0, 1, 1], [], []>} : vector<4x4xbf16>, vector<4x512xbf16>, vector<4x512xf32> -> vector<4x512xf32>
    %c1_i32_448 = arith.constant 1 : i32
    %1038 = vector.broadcast %c1_i32_448 : i32 to vector<4x4xi32>
    %1039 = arith.muli %1038, %991 : vector<4x4xi32>
    %c1_i32_449 = arith.constant 1 : i32
    %1040 = vector.broadcast %c1_i32_449 : i32 to vector<4x4xi32>
    %1041 = arith.addi %1039, %1040 : vector<4x4xi32>
    %1042 = arith.cmpi eq, %992, %1041 : vector<4x4xi32>
    %1043 = arith.andi %1015, %1042 : vector<4x4xi1>
    %cst_450 = arith.constant 1.000000e+00 : f32
    %cst_451 = arith.constant 0.000000e+00 : f32
    %1044 = vector.broadcast %cst_450 : f32 to vector<4x4xf32>
    %1045 = vector.broadcast %cst_451 : f32 to vector<4x4xf32>
    %1046 = arith.select %1043, %1044, %1045 : vector<4x4xi1>, vector<4x4xf32>
    %1047 = arith.truncf %1046 : vector<4x4xf32> to vector<4x4xbf16>
    %cst_452 = arith.constant dense<0.000000e+00> : vector<4x512xf32>
    %1048 = tpu.matmul %1047, %990, %cst_452 {dimension_numbers = #tpu.dot_dimension_numbers<[1], [0], [0], [1], [0, 0, 1, 1], [], []>} : vector<4x4xbf16>, vector<4x512xbf16>, vector<4x512xf32> -> vector<4x512xf32>
    %1049 = arith.truncf %1026 : vector<4x512xf32> to vector<4x512xbf16>
    %c0_453 = arith.constant 0 : index
    %c0_454 = arith.constant 0 : index
    %c0_455 = arith.constant 0 : index
    %1050 = vector.load %arg31[%c0_453, %c0_454, %c0_455] : memref<3x512x512xbf16, #tpu.memory_space<vmem>>, vector<1x512x512xbf16>
    %1051 = vector.shape_cast %1050 : vector<1x512x512xbf16> to vector<512x512xbf16>
    %cst_456 = arith.constant dense<0.000000e+00> : vector<4x512xf32>
    %1052 = tpu.matmul %1049, %1051, %cst_456 {dimension_numbers = #tpu.dot_dimension_numbers<[1], [0], [0], [1], [0, 0, 1, 1], [], []>} : vector<4x512xbf16>, vector<512x512xbf16>, vector<4x512xf32> -> vector<4x512xf32>
    %1053 = arith.truncf %1037 : vector<4x512xf32> to vector<4x512xbf16>
    %c1_457 = arith.constant 1 : index
    %c0_458 = arith.constant 0 : index
    %c0_459 = arith.constant 0 : index
    %1054 = vector.load %arg31[%c1_457, %c0_458, %c0_459] : memref<3x512x512xbf16, #tpu.memory_space<vmem>>, vector<1x512x512xbf16>
    %1055 = vector.shape_cast %1054 : vector<1x512x512xbf16> to vector<512x512xbf16>
    %cst_460 = arith.constant dense<0.000000e+00> : vector<4x512xf32>
    %1056 = tpu.matmul %1053, %1055, %cst_460 {dimension_numbers = #tpu.dot_dimension_numbers<[1], [0], [0], [1], [0, 0, 1, 1], [], []>} : vector<4x512xbf16>, vector<512x512xbf16>, vector<4x512xf32> -> vector<4x512xf32>
    %1057 = arith.addf %1052, %1056 : vector<4x512xf32>
    %1058 = arith.truncf %1048 : vector<4x512xf32> to vector<4x512xbf16>
    %c2_461 = arith.constant 2 : index
    %c0_462 = arith.constant 0 : index
    %c0_463 = arith.constant 0 : index
    %1059 = vector.load %arg31[%c2_461, %c0_462, %c0_463] : memref<3x512x512xbf16, #tpu.memory_space<vmem>>, vector<1x512x512xbf16>
    %1060 = vector.shape_cast %1059 : vector<1x512x512xbf16> to vector<512x512xbf16>
    %cst_464 = arith.constant dense<0.000000e+00> : vector<4x512xf32>
    %1061 = tpu.matmul %1058, %1060, %cst_464 {dimension_numbers = #tpu.dot_dimension_numbers<[1], [0], [0], [1], [0, 0, 1, 1], [], []>} : vector<4x512xbf16>, vector<512x512xbf16>, vector<4x512xf32> -> vector<4x512xf32>
    %1062 = arith.addf %1057, %1061 : vector<4x512xf32>
    %cst_465 = arith.constant dense<0.000000e+00> : vector<512xf32>
    %1063 = vector.multi_reduction <add>, %1062, %cst_465 [0] : vector<4x512xf32> to vector<512xf32>
    %1064 = vector.shape_cast %1063 : vector<512xf32> to vector<1x512xf32>
    %cst_466 = arith.constant 2.500000e-01 : f32
    %1065 = vector.broadcast %cst_466 : f32 to vector<1x512xf32>
    %1066 = arith.mulf %1064, %1065 : vector<1x512xf32>
    %1067 = arith.mulf %1062, %1062 : vector<4x512xf32>
    %cst_467 = arith.constant dense<0.000000e+00> : vector<512xf32>
    %1068 = vector.multi_reduction <add>, %1067, %cst_467 [0] : vector<4x512xf32> to vector<512xf32>
    %1069 = vector.shape_cast %1068 : vector<512xf32> to vector<1x512xf32>
    %cst_468 = arith.constant 2.500000e-01 : f32
    %1070 = vector.broadcast %cst_468 : f32 to vector<1x512xf32>
    %1071 = arith.mulf %1069, %1070 : vector<1x512xf32>
    %1072 = arith.mulf %1066, %1066 : vector<1x512xf32>
    %1073 = arith.subf %1071, %1072 : vector<1x512xf32>
    %cst_469 = arith.constant 0.000000e+00 : f32
    %1074 = vector.broadcast %cst_469 : f32 to vector<1x512xf32>
    %1075 = arith.maximumf %1073, %1074 : vector<1x512xf32>
    %c0_470 = arith.constant 0 : index
    %c0_471 = arith.constant 0 : index
    %1076 = vector.load %arg32[%c0_470, %c0_471] : memref<1x512xf32, #tpu.memory_space<vmem>>, vector<1x512xf32>
    %cst_472 = arith.constant 9.99999974E-6 : f32
    %1077 = vector.broadcast %cst_472 : f32 to vector<1x512xf32>
    %1078 = arith.addf %1075, %1077 : vector<1x512xf32>
    %1079 = math.rsqrt %1078 : vector<1x512xf32>
    %1080 = arith.mulf %1076, %1079 : vector<1x512xf32>
    %c0_473 = arith.constant 0 : index
    %c0_474 = arith.constant 0 : index
    %1081 = vector.load %arg33[%c0_473, %c0_474] : memref<1x512xf32, #tpu.memory_space<vmem>>, vector<1x512xf32>
    %1082 = arith.mulf %1066, %1080 : vector<1x512xf32>
    %1083 = arith.subf %1081, %1082 : vector<1x512xf32>
    %1084 = vector.broadcast %1080 : vector<1x512xf32> to vector<4x512xf32>
    %1085 = arith.mulf %1062, %1084 : vector<4x512xf32>
    %1086 = vector.broadcast %1083 : vector<1x512xf32> to vector<4x512xf32>
    %1087 = arith.addf %1085, %1086 : vector<4x512xf32>
    %1088 = arith.addf %1087, %989 : vector<4x512xf32>
    %cst_475 = arith.constant 0.000000e+00 : f32
    %1089 = vector.broadcast %cst_475 : f32 to vector<4x512xf32>
    %1090 = arith.maximumf %1088, %1089 : vector<4x512xf32>
    %1091 = tpu.iota {dimensions = array<i32: 0>} : vector<2x4xi32>
    %1092 = tpu.iota {dimensions = array<i32: 1>} : vector<2x4xi32>
    %c0_i32_476 = arith.constant 0 : i32
    %1093 = vector.broadcast %c0_i32_476 : i32 to vector<2x4xi32>
    %1094 = arith.cmpi eq, %1091, %1093 : vector<2x4xi32>
    %c0_i32_477 = arith.constant 0 : i32
    %1095 = vector.broadcast %c0_i32_477 : i32 to vector<2x4xi32>
    %1096 = arith.cmpi sge, %1092, %1095 : vector<2x4xi32>
    %1097 = arith.andi %1094, %1096 : vector<2x4xi1>
    %c2_i32_478 = arith.constant 2 : i32
    %1098 = vector.broadcast %c2_i32_478 : i32 to vector<2x4xi32>
    %1099 = arith.cmpi slt, %1092, %1098 : vector<2x4xi32>
    %1100 = arith.andi %1097, %1099 : vector<2x4xi1>
    %c1_i32_479 = arith.constant 1 : i32
    %1101 = vector.broadcast %c1_i32_479 : i32 to vector<2x4xi32>
    %1102 = arith.cmpi eq, %1091, %1101 : vector<2x4xi32>
    %c2_i32_480 = arith.constant 2 : i32
    %1103 = vector.broadcast %c2_i32_480 : i32 to vector<2x4xi32>
    %1104 = arith.cmpi sge, %1092, %1103 : vector<2x4xi32>
    %1105 = arith.andi %1102, %1104 : vector<2x4xi1>
    %c4_i32_481 = arith.constant 4 : i32
    %1106 = vector.broadcast %c4_i32_481 : i32 to vector<2x4xi32>
    %1107 = arith.cmpi slt, %1092, %1106 : vector<2x4xi32>
    %1108 = arith.andi %1105, %1107 : vector<2x4xi1>
    %1109 = arith.ori %1100, %1108 : vector<2x4xi1>
    %cst_482 = arith.constant 5.000000e-01 : f32
    %cst_483 = arith.constant 0.000000e+00 : f32
    %1110 = vector.broadcast %cst_482 : f32 to vector<2x4xf32>
    %1111 = vector.broadcast %cst_483 : f32 to vector<2x4xf32>
    %1112 = arith.select %1109, %1110, %1111 : vector<2x4xi1>, vector<2x4xf32>
    %cst_484 = arith.constant dense<0.000000e+00> : vector<2x512xf32>
    %1113 = tpu.matmul %1112, %1090, %cst_484 {dimension_numbers = #tpu.dot_dimension_numbers<[1], [0], [0], [1], [0, 0, 1, 1], [], []>} : vector<2x4xf32>, vector<4x512xf32>, vector<2x512xf32> -> vector<2x512xf32>
    %c0_485 = arith.constant 0 : index
    %c0_486 = arith.constant 0 : index
    %1114 = vector.load %arg37[%c0_485, %c0_486] : memref<512x128xf32, #tpu.memory_space<vmem>>, vector<512x128xf32>
    %cst_487 = arith.constant dense<0.000000e+00> : vector<2x128xf32>
    %1115 = tpu.matmul %1113, %1114, %cst_487 {dimension_numbers = #tpu.dot_dimension_numbers<[1], [0], [0], [1], [0, 0, 1, 1], [], []>} : vector<2x512xf32>, vector<512x128xf32>, vector<2x128xf32> -> vector<2x128xf32>
    %c0_488 = arith.constant 0 : index
    %c0_489 = arith.constant 0 : index
    %1116 = vector.load %arg38[%c0_488, %c0_489] : memref<1x128xf32, #tpu.memory_space<vmem>>, vector<1x128xf32>
    %1117 = vector.broadcast %1116 : vector<1x128xf32> to vector<2x128xf32>
    %1118 = arith.addf %1115, %1117 : vector<2x128xf32>
    %c0_490 = arith.constant 0 : index
    %c0_491 = arith.constant 0 : index
    %1119 = vector.load %arg39[%c0_490, %c0_491] : memref<2x128xf32, #tpu.memory_space<vmem>>, vector<2x128xf32>
    tpu.vector_store %arg39[%c0_490, %c0_491], %1118 {strides = array<i32>} : memref<2x128xf32, #tpu.memory_space<vmem>>, vector<2x128xf32>,
    return
  }
}

</mosaic_0001>

<llo_original>
// kernel: _lambda_.1
$region0: #{_lambda_.1}
  #allocation0 [shape = 'u32[]', space=smem, size = 0x4, offset = 0x4, fixed_abs, tag = 'smem constant byte address 0x4 - core index']
  #allocation1 [shape = 'u32[144,128]{1,0:T(1,128)}', space=vmem, size = 0x12000, scoped, tag = 'internal scratch']
  %s0 = inlined_call_operand.smem [shape: u32[40], index: -1, kind: input, shape index: {}]
  %s1 = sld [smem:[%s0]]
  %s2 = scalar_lea.smem %s0, 1
  %s3 = sld [smem:[%s2]]
  %s4 = scalar_lea.smem %s0, 2
  %s5 = sld [smem:[%s4]]
  %s6 = scalar_lea.smem %s0, 3
  %s7 = sld [smem:[%s6]]
  %s8 = scalar_lea.smem %s0, 4
  %s9 = sld [smem:[%s8]]
  %s10 = scalar_lea.smem %s0, 5
  %s11 = sld [smem:[%s10]]
  %s12 = scalar_lea.smem %s0, 6
  %s13 = sld [smem:[%s12]]
  %s14 = scalar_lea.smem %s0, 7
  %s15 = sld [smem:[%s14]]
  %s16 = scalar_lea.smem %s0, 8
  %s17 = sld [smem:[%s16]]
  %s18 = scalar_lea.smem %s0, 9
  %s19 = sld [smem:[%s18]]
  %s20 = scalar_lea.smem %s0, 10
  %s21 = sld [smem:[%s20]]
  %s22 = scalar_lea.smem %s0, 11
  %s23 = sld [smem:[%s22]]
  %s24 = scalar_lea.smem %s0, 12
  %s25 = sld [smem:[%s24]]
  %s26 = scalar_lea.smem %s0, 13
  %s27 = sld [smem:[%s26]]
  %s28 = scalar_lea.smem %s0, 14
  %s29 = sld [smem:[%s28]]
  %s30 = scalar_lea.smem %s0, 15
  %s31 = sld [smem:[%s30]]
  %s32 = scalar_lea.smem %s0, 16
  %s33 = sld [smem:[%s32]]
  %s34 = scalar_lea.smem %s0, 17
  %s35 = sld [smem:[%s34]]
  %s36 = scalar_lea.smem %s0, 18
  %s37 = sld [smem:[%s36]]
  %s38 = scalar_lea.smem %s0, 19
  %s39 = sld [smem:[%s38]]
  %s40 = scalar_lea.smem %s0, 20
  %s41 = sld [smem:[%s40]]
  %s42 = scalar_lea.smem %s0, 21
  %s43 = sld [smem:[%s42]]
  %s44 = scalar_lea.smem %s0, 22
  %s45 = sld [smem:[%s44]]
  %s46 = scalar_lea.smem %s0, 23
  %s47 = sld [smem:[%s46]]
  %s48 = scalar_lea.smem %s0, 24
  %s49 = sld [smem:[%s48]]
  %s50 = scalar_lea.smem %s0, 25
  %s51 = sld [smem:[%s50]]
  %s52 = scalar_lea.smem %s0, 26
  %s53 = sld [smem:[%s52]]
  %s54 = scalar_lea.smem %s0, 27
  %s55 = sld [smem:[%s54]]
  %s56 = scalar_lea.smem %s0, 28
  %s57 = sld [smem:[%s56]]
  %s58 = scalar_lea.smem %s0, 29
  %s59 = sld [smem:[%s58]]
  %s60 = scalar_lea.smem %s0, 30
  %s61 = sld [smem:[%s60]]
  %s62 = scalar_lea.smem %s0, 31
  %s63 = sld [smem:[%s62]]
  %s64 = scalar_lea.smem %s0, 32
  %s65 = sld [smem:[%s64]]
  %s66 = scalar_lea.smem %s0, 33
  %s67 = sld [smem:[%s66]]
  %s68 = scalar_lea.smem %s0, 34
  %s69 = sld [smem:[%s68]]
  %s70 = scalar_lea.smem %s0, 35
  %s71 = sld [smem:[%s70]]
  %s72 = scalar_lea.smem %s0, 36
  %s73 = sld [smem:[%s72]]
  %s74 = scalar_lea.smem %s0, 37
  %s75 = sld [smem:[%s74]]
  %s76 = scalar_lea.smem %s0, 38
  %s77 = sld [smem:[%s76]]
  %s78 = scalar_lea.smem %s0, 39
  %s79 = sld [smem:[%s78]]
  %s80 = sld [smem:[#allocation0]]
  $region222: #{_lambda_.1} parent=0
    _
  %s82 = ssub.s32 1, %s80
  %s83 = scalar_select 0, %s82, %s80
  $region1: #{_lambda_.1} parent=0
    #allocation2 [shape = 'u8[8192]{0}', space=vmem, size = 0x2000, scoped, tag = 'input window, operand 1, single buffered']
    #allocation3 [shape = 's32[1]{0}', space=sflag, size = 0x4, scoped, tag = 'scoped memory for _lambda_.1']
    #allocation4 [shape = 's32[1]{0}', space=sflag, size = 0x4, scoped, tag = 'scoped memory for _lambda_.1']
    #allocation5 [shape = 'u8[49152]{0}', space=vmem, size = 0xc000, scoped, tag = 'input window, operand 4, single buffered']
    #allocation6 [shape = 's32[1]{0}', space=sflag, size = 0x4, scoped, tag = 'scoped memory for _lambda_.1']
    #allocation7 [shape = 'u8[49152]{0}', space=vmem, size = 0xc000, scoped, tag = 'input window, operand 7, single buffered']
    #allocation8 [shape = 'u8[49152]{0}', space=vmem, size = 0xc000, scoped, tag = 'input window, operand 10, single buffered']
    #allocation9 [shape = 's32[1]{0}', space=sflag, size = 0x4, scoped, tag = 'scoped memory for _lambda_.1']
    #allocation10 [shape = 'u8[98304]{0}', space=vmem, size = 0x18000, scoped, tag = 'input window, operand 13, single buffered']
    #allocation11 [shape = 'u8[16384]{0}', space=vmem, size = 0x4000, scoped, tag = 'input window, operand 16, single buffered']
    #allocation12 [shape = 's32[1]{0}', space=sflag, size = 0x4, scoped, tag = 'scoped memory for _lambda_.1']
    #allocation13 [shape = 'u8[196608]{0}', space=vmem, size = 0x30000, scoped, tag = 'input window, operand 19, single buffered']
    #allocation14 [shape = 'u8[393216]{0}', space=vmem, size = 0x60000, scoped, tag = 'input window, operand 22, single buffered']
    #allocation15 [shape = 's32[1]{0}', space=sflag, size = 0x4, scoped, tag = 'scoped memory for _lambda_.1']
    #allocation16 [shape = 'u8[65536]{0}', space=vmem, size = 0x10000, scoped, tag = 'input window, operand 25, single buffered']
    #allocation17 [shape = 'u8[786432]{0}', space=vmem, size = 0xc0000, scoped, tag = 'input window, operand 28, single buffered']
    #allocation18 [shape = 's32[1]{0}', space=sflag, size = 0x4, scoped, tag = 'scoped memory for _lambda_.1']
    #allocation19 [shape = 'u8[1572864]{0}', space=vmem, size = 0x180000, scoped, tag = 'input window, operand 31, single buffered']
    #allocation20 [shape = 'u8[262144]{0}', space=vmem, size = 0x40000, scoped, tag = 'input window, operand 34, single buffered']
    #allocation21 [shape = 's32[1]{0}', space=sflag, size = 0x4, scoped, tag = 'scoped memory for _lambda_.1']
    #allocation22 [shape = 'u8[262144]{0}', space=vmem, size = 0x40000, scoped, tag = 'input window, operand 37, single buffered']
    #allocation23 [shape = 'u8[512]{0}', space=vmem, size = 0x400, scoped, tag = 'input window, operand 38, single buffered']
    #allocation24 [shape = 's32[1]{0}', space=sflag, size = 0x4, scoped, tag = 'scoped memory for _lambda_.1']
    #allocation25 [shape = 'u8[1024]{0}', space=vmem, size = 0x400, scoped, tag = 'output window, operand 0, single buffered']
    %84 = vsyncpa [#allocation3], 0
    %85 = vsyncpa [#allocation6], 0
    %86 = vsyncpa [#allocation9], 0
    %87 = vsyncpa [#allocation12], 0
    %88 = vsyncpa [#allocation15], 0
    %89 = vsyncpa [#allocation18], 0
    %90 = vsyncpa [#allocation21], 0
    %91 = vsyncpa [#allocation24], 0
    %92 = vsyncpa [#allocation4], 0
    // Predicated region
    $region2: #{_lambda_.1} parent=1 // pred_check
      _
    $region3: #{_lambda_.1} parent=1 // pred_check_branch
      %94 = sbr.rel (0) target = $region5
    $region4: #{_lambda_.1} parent=1 // pred_region
      _
    $region5: #{_lambda_.1} parent=1 // pred_fallthru
      _
    // Predicated region
    $region6: #{_lambda_.1} parent=1 // pred_check
      _
    $region7: #{_lambda_.1} parent=1 // pred_check_branch
      %96 = sbr.rel (0) target = $region9
    $region8: #{_lambda_.1} parent=1 // pred_region
      %s98 = ssub.s32 256, 256
      %99 = vsyncadd [#allocation3], %s98
      %s100 = sshll.u32 [#allocation2], 4
      %s101 = int_to_ptr.vmem [resolvable:$true] %s100
      %106 = dma.hbm_to_vmem [thread:$0]  %s3, 256, %s101, [#allocation3], 64, 64, 4
    $region9: #{_lambda_.1} parent=1 // pred_fallthru
      _
    // Predicated region
    $region10: #{_lambda_.1} parent=1 // pred_check
      _
    $region11: #{_lambda_.1} parent=1 // pred_check_branch
      %108 = sbr.rel (0) target = $region13
    $region12: #{_lambda_.1} parent=1 // pred_region
      _
    $region13: #{_lambda_.1} parent=1 // pred_fallthru
      _
    // Predicated region
    $region14: #{_lambda_.1} parent=1 // pred_check
      _
    $region15: #{_lambda_.1} parent=1 // pred_check_branch
      %110 = sbr.rel (0) target = $region17
    $region16: #{_lambda_.1} parent=1 // pred_region
      _
    $region17: #{_lambda_.1} parent=1 // pred_fallthru
      _
    // Predicated region
    $region18: #{_lambda_.1} parent=1 // pred_check
      _
    $region19: #{_lambda_.1} parent=1 // pred_check_branch
      %112 = sbr.rel (0) target = $region21
    $region20: #{_lambda_.1} parent=1 // pred_region
      %s114 = ssub.s32 1536, 1536
      %115 = vsyncadd [#allocation6], %s114
      %s116 = sshll.u32 [#allocation5], 4
      %s117 = int_to_ptr.vmem [resolvable:$true] %s116
      %122 = dma.hbm_to_vmem [thread:$0]  %s9, 1536, %s117, [#allocation6], 64, 64, 4
    $region21: #{_lambda_.1} parent=1 // pred_fallthru
      _
    // Predicated region
    $region22: #{_lambda_.1} parent=1 // pred_check
      _
    $region23: #{_lambda_.1} parent=1 // pred_check_branch
      %124 = sbr.rel (0) target = $region25
    $region24: #{_lambda_.1} parent=1 // pred_region
      _
    $region25: #{_lambda_.1} parent=1 // pred_fallthru
      _
    // Predicated region
    $region26: #{_lambda_.1} parent=1 // pred_check
      _
    $region27: #{_lambda_.1} parent=1 // pred_check_branch
      %126 = sbr.rel (0) target = $region29
    $region28: #{_lambda_.1} parent=1 // pred_region
      _
    $region29: #{_lambda_.1} parent=1 // pred_fallthru
      _
    // Predicated region
    $region30: #{_lambda_.1} parent=1 // pred_check
      _
    $region31: #{_lambda_.1} parent=1 // pred_check_branch
      %128 = sbr.rel (0) target = $region33
    $region32: #{_lambda_.1} parent=1 // pred_region
      %s130 = ssub.s32 1536, 1536
      %131 = vsyncadd [#allocation6], %s130
      %s132 = sshll.u32 [#allocation7], 4
      %s133 = int_to_ptr.vmem [resolvable:$true] %s132
      %138 = dma.hbm_to_vmem [thread:$0]  %s15, 1536, %s133, [#allocation6], 64, 64, 4
    $region33: #{_lambda_.1} parent=1 // pred_fallthru
      _
    // Predicated region
    $region34: #{_lambda_.1} parent=1 // pred_check
      _
    $region35: #{_lambda_.1} parent=1 // pred_check_branch
      %140 = sbr.rel (0) target = $region37
    $region36: #{_lambda_.1} parent=1 // pred_region
      _
    $region37: #{_lambda_.1} parent=1 // pred_fallthru
      _
    // Predicated region
    $region38: #{_lambda_.1} parent=1 // pred_check
      _
    $region39: #{_lambda_.1} parent=1 // pred_check_branch
      %142 = sbr.rel (0) target = $region41
    $region40: #{_lambda_.1} parent=1 // pred_region
      _
    $region41: #{_lambda_.1} parent=1 // pred_fallthru
      _
    // Predicated region
    $region42: #{_lambda_.1} parent=1 // pred_check
      _
    $region43: #{_lambda_.1} parent=1 // pred_check_branch
      %144 = sbr.rel (0) target = $region45
    $region44: #{_lambda_.1} parent=1 // pred_region
      %s146 = ssub.s32 1536, 1536
      %147 = vsyncadd [#allocation9], %s146
      %s148 = sshll.u32 [#allocation8], 4
      %s149 = int_to_ptr.vmem [resolvable:$true] %s148
      %154 = dma.hbm_to_vmem [thread:$0]  %s21, 1536, %s149, [#allocation9], 64, 64, 4
    $region45: #{_lambda_.1} parent=1 // pred_fallthru
      _
    // Predicated region
    $region46: #{_lambda_.1} parent=1 // pred_check
      _
    $region47: #{_lambda_.1} parent=1 // pred_check_branch
      %156 = sbr.rel (0) target = $region49
    $region48: #{_lambda_.1} parent=1 // pred_region
      _
    $region49: #{_lambda_.1} parent=1 // pred_fallthru
      _
    // Predicated region
    $region50: #{_lambda_.1} parent=1 // pred_check
      _
    $region51: #{_lambda_.1} parent=1 // pred_check_branch
      %158 = sbr.rel (0) target = $region53
    $region52: #{_lambda_.1} parent=1 // pred_region
      _
    $region53: #{_lambda_.1} parent=1 // pred_fallthru
      _
    // Predicated region
    $region54: #{_lambda_.1} parent=1 // pred_check
      _
    $region55: #{_lambda_.1} parent=1 // pred_check_branch
      %160 = sbr.rel (0) target = $region57
    $region56: #{_lambda_.1} parent=1 // pred_region
      %s162 = ssub.s32 3072, 3072
      %163 = vsyncadd [#allocation9], %s162
      %s164 = sshll.u32 [#allocation10], 4
      %s165 = int_to_ptr.vmem [resolvable:$true] %s164
      %170 = dma.hbm_to_vmem [thread:$0]  %s27, 3072, %s165, [#allocation9], 64, 64, 4
    $region57: #{_lambda_.1} parent=1 // pred_fallthru
      _
    // Predicated region
    $region58: #{_lambda_.1} parent=1 // pred_check
      _
    $region59: #{_lambda_.1} parent=1 // pred_check_branch
      %172 = sbr.rel (0) target = $region61
    $region60: #{_lambda_.1} parent=1 // pred_region
      _
    $region61: #{_lambda_.1} parent=1 // pred_fallthru
      _
    // Predicated region
    $region62: #{_lambda_.1} parent=1 // pred_check
      _
    $region63: #{_lambda_.1} parent=1 // pred_check_branch
      %174 = sbr.rel (0) target = $region65
    $region64: #{_lambda_.1} parent=1 // pred_region
      _
    $region65: #{_lambda_.1} parent=1 // pred_fallthru
      _
    // Predicated region
    $region66: #{_lambda_.1} parent=1 // pred_check
      _
    $region67: #{_lambda_.1} parent=1 // pred_check_branch
      %176 = sbr.rel (0) target = $region69
    $region68: #{_lambda_.1} parent=1 // pred_region
      %s178 = ssub.s32 512, 512
      %179 = vsyncadd [#allocation12], %s178
      %s180 = sshll.u32 [#allocation11], 4
      %s181 = int_to_ptr.vmem [resolvable:$true] %s180
      %186 = dma.hbm_to_vmem [thread:$0]  %s33, 512, %s181, [#allocation12], 64, 64, 4
    $region69: #{_lambda_.1} parent=1 // pred_fallthru
      _
    // Predicated region
    $region70: #{_lambda_.1} parent=1 // pred_check
      _
    $region71: #{_lambda_.1} parent=1 // pred_check_branch
      %188 = sbr.rel (0) target = $region73
    $region72: #{_lambda_.1} parent=1 // pred_region
      _
    $region73: #{_lambda_.1} parent=1 // pred_fallthru
      _
    // Predicated region
    $region74: #{_lambda_.1} parent=1 // pred_check
      _
    $region75: #{_lambda_.1} parent=1 // pred_check_branch
      %190 = sbr.rel (0) target = $region77
    $region76: #{_lambda_.1} parent=1 // pred_region
      _
    $region77: #{_lambda_.1} parent=1 // pred_fallthru
      _
    // Predicated region
    $region78: #{_lambda_.1} parent=1 // pred_check
      _
    $region79: #{_lambda_.1} parent=1 // pred_check_branch
      %192 = sbr.rel (0) target = $region81
    $region80: #{_lambda_.1} parent=1 // pred_region
      %s194 = ssub.s32 6144, 6144
      %195 = vsyncadd [#allocation12], %s194
      %s196 = sshll.u32 [#allocation13], 4
      %s197 = int_to_ptr.vmem [resolvable:$true] %s196
      %202 = dma.hbm_to_vmem [thread:$0]  %s39, 6144, %s197, [#allocation12], 128, 128, 8
    $region81: #{_lambda_.1} parent=1 // pred_fallthru
      _
    // Predicated region
    $region82: #{_lambda_.1} parent=1 // pred_check
      _
    $region83: #{_lambda_.1} parent=1 // pred_check_branch
      %204 = sbr.rel (0) target = $region85
    $region84: #{_lambda_.1} parent=1 // pred_region
      _
    $region85: #{_lambda_.1} parent=1 // pred_fallthru
      _
    // Predicated region
    $region86: #{_lambda_.1} parent=1 // pred_check
      _
    $region87: #{_lambda_.1} parent=1 // pred_check_branch
      %206 = sbr.rel (0) target = $region89
    $region88: #{_lambda_.1} parent=1 // pred_region
      _
    $region89: #{_lambda_.1} parent=1 // pred_fallthru
      _
    // Predicated region
    $region90: #{_lambda_.1} parent=1 // pred_check
      _
    $region91: #{_lambda_.1} parent=1 // pred_check_branch
      %208 = sbr.rel (0) target = $region93
    $region92: #{_lambda_.1} parent=1 // pred_region
      %s210 = ssub.s32 12288, 12288
      %211 = vsyncadd [#allocation15], %s210
      %s212 = sshll.u32 [#allocation14], 4
      %s213 = int_to_ptr.vmem [resolvable:$true] %s212
      %218 = dma.hbm_to_vmem [thread:$0]  %s45, 12288, %s213, [#allocation15], 128, 128, 8
    $region93: #{_lambda_.1} parent=1 // pred_fallthru
      _
    // Predicated region
    $region94: #{_lambda_.1} parent=1 // pred_check
      _
    $region95: #{_lambda_.1} parent=1 // pred_check_branch
      %220 = sbr.rel (0) target = $region97
    $region96: #{_lambda_.1} parent=1 // pred_region
      _
    $region97: #{_lambda_.1} parent=1 // pred_fallthru
      _
    // Predicated region
    $region98: #{_lambda_.1} parent=1 // pred_check
      _
    $region99: #{_lambda_.1} parent=1 // pred_check_branch
      %222 = sbr.rel (0) target = $region101
    $region100: #{_lambda_.1} parent=1 // pred_region
      _
    $region101: #{_lambda_.1} parent=1 // pred_fallthru
      _
    // Predicated region
    $region102: #{_lambda_.1} parent=1 // pred_check
      _
    $region103: #{_lambda_.1} parent=1 // pred_check_branch
      %224 = sbr.rel (0) target = $region105
    $region104: #{_lambda_.1} parent=1 // pred_region
      %s226 = ssub.s32 2048, 2048
      %227 = vsyncadd [#allocation15], %s226
      %s228 = sshll.u32 [#allocation16], 4
      %s229 = int_to_ptr.vmem [resolvable:$true] %s228
      %234 = dma.hbm_to_vmem [thread:$0]  %s51, 2048, %s229, [#allocation15], 128, 128, 8
    $region105: #{_lambda_.1} parent=1 // pred_fallthru
      _
    // Predicated region
    $region106: #{_lambda_.1} parent=1 // pred_check
      _
    $region107: #{_lambda_.1} parent=1 // pred_check_branch
      %236 = sbr.rel (0) target = $region109
    $region108: #{_lambda_.1} parent=1 // pred_region
      _
    $region109: #{_lambda_.1} parent=1 // pred_fallthru
      _
    // Predicated region
    $region110: #{_lambda_.1} parent=1 // pred_check
      _
    $region111: #{_lambda_.1} parent=1 // pred_check_branch
      %238 = sbr.rel (0) target = $region113
    $region112: #{_lambda_.1} parent=1 // pred_region
      _
    $region113: #{_lambda_.1} parent=1 // pred_fallthru
      _
    // Predicated region
    $region114: #{_lambda_.1} parent=1 // pred_check
      _
    $region115: #{_lambda_.1} parent=1 // pred_check_branch
      %240 = sbr.rel (0) target = $region117
    $region116: #{_lambda_.1} parent=1 // pred_region
      %s242 = ssub.s32 24576, 24576
      %243 = vsyncadd [#allocation18], %s242
      %s244 = sshll.u32 [#allocation17], 4
      %s245 = int_to_ptr.vmem [resolvable:$true] %s244
      %250 = dma.hbm_to_vmem [thread:$0]  %s57, 24576, %s245, [#allocation18], 256, 256, 16
    $region117: #{_lambda_.1} parent=1 // pred_fallthru
      _
    // Predicated region
    $region118: #{_lambda_.1} parent=1 // pred_check
      _
    $region119: #{_lambda_.1} parent=1 // pred_check_branch
      %252 = sbr.rel (0) target = $region121
    $region120: #{_lambda_.1} parent=1 // pred_region
      _
    $region121: #{_lambda_.1} parent=1 // pred_fallthru
      _
    // Predicated region
    $region122: #{_lambda_.1} parent=1 // pred_check
      _
    $region123: #{_lambda_.1} parent=1 // pred_check_branch
      %254 = sbr.rel (0) target = $region125
    $region124: #{_lambda_.1} parent=1 // pred_region
      _
    $region125: #{_lambda_.1} parent=1 // pred_fallthru
      _
    // Predicated region
    $region126: #{_lambda_.1} parent=1 // pred_check
      _
    $region127: #{_lambda_.1} parent=1 // pred_check_branch
      %256 = sbr.rel (0) target = $region129
    $region128: #{_lambda_.1} parent=1 // pred_region
      %s258 = ssub.s32 49152, 49152
      %259 = vsyncadd [#allocation18], %s258
      %s260 = sshll.u32 [#allocation19], 4
      %s261 = int_to_ptr.vmem [resolvable:$true] %s260
      %266 = dma.hbm_to_vmem [thread:$0]  %s63, 49152, %s261, [#allocation18], 256, 256, 16
    $region129: #{_lambda_.1} parent=1 // pred_fallthru
      _
    // Predicated region
    $region130: #{_lambda_.1} parent=1 // pred_check
      _
    $region131: #{_lambda_.1} parent=1 // pred_check_branch
      %268 = sbr.rel (0) target = $region133
    $region132: #{_lambda_.1} parent=1 // pred_region
      _
    $region133: #{_lambda_.1} parent=1 // pred_fallthru
      _
    // Predicated region
    $region134: #{_lambda_.1} parent=1 // pred_check
      _
    $region135: #{_lambda_.1} parent=1 // pred_check_branch
      %270 = sbr.rel (0) target = $region137
    $region136: #{_lambda_.1} parent=1 // pred_region
      _
    $region137: #{_lambda_.1} parent=1 // pred_fallthru
      _
    // Predicated region
    $region138: #{_lambda_.1} parent=1 // pred_check
      _
    $region139: #{_lambda_.1} parent=1 // pred_check_branch
      %272 = sbr.rel (0) target = $region141
    $region140: #{_lambda_.1} parent=1 // pred_region
      %s274 = ssub.s32 8192, 8192
      %275 = vsyncadd [#allocation21], %s274
      %s276 = sshll.u32 [#allocation20], 4
      %s277 = int_to_ptr.vmem [resolvable:$true] %s276
      %282 = dma.hbm_to_vmem [thread:$0]  %s69, 8192, %s277, [#allocation21], 256, 256, 16
    $region141: #{_lambda_.1} parent=1 // pred_fallthru
      _
    // Predicated region
    $region142: #{_lambda_.1} parent=1 // pred_check
      _
    $region143: #{_lambda_.1} parent=1 // pred_check_branch
      %284 = sbr.rel (0) target = $region145
    $region144: #{_lambda_.1} parent=1 // pred_region
      _
    $region145: #{_lambda_.1} parent=1 // pred_fallthru
      _
    // Predicated region
    $region146: #{_lambda_.1} parent=1 // pred_check
      _
    $region147: #{_lambda_.1} parent=1 // pred_check_branch
      %286 = sbr.rel (0) target = $region149
    $region148: #{_lambda_.1} parent=1 // pred_region
      _
    $region149: #{_lambda_.1} parent=1 // pred_fallthru
      _
    // Predicated region
    $region150: #{_lambda_.1} parent=1 // pred_check
      _
    $region151: #{_lambda_.1} parent=1 // pred_check_branch
      %288 = sbr.rel (0) target = $region153
    $region152: #{_lambda_.1} parent=1 // pred_region
      %s290 = ssub.s32 8192, 8192
      %291 = vsyncadd [#allocation21], %s290
      %s292 = sshll.u32 [#allocation22], 4
      %s293 = int_to_ptr.vmem [resolvable:$true] %s292
      %298 = dma.hbm_to_vmem [thread:$0]  %s75, 8192, %s293, [#allocation21], 128, 128, 8
    $region153: #{_lambda_.1} parent=1 // pred_fallthru
      _
    // Predicated region
    $region154: #{_lambda_.1} parent=1 // pred_check
      _
    $region155: #{_lambda_.1} parent=1 // pred_check_branch
      %300 = sbr.rel (0) target = $region157
    $region156: #{_lambda_.1} parent=1 // pred_region
      %s302 = ssub.s32 16, 16
      %303 = vsyncadd [#allocation24], %s302
      %s305 = sshll.u32 [#allocation23], 4
      %s306 = int_to_ptr.vmem [resolvable:$true] %s305
      %308 = dma.hbm_to_vmem [thread:$0]  %s77, 16, %s306, [#allocation24]
    $region157: #{_lambda_.1} parent=1 // pred_fallthru
      _
    // Predicated region
    $region158: #{_lambda_.1} parent=1 // pred_check
      _
    $region159: #{_lambda_.1} parent=1 // pred_check_branch
      %310 = sbr.rel (0) target = $region161
    $region160: #{_lambda_.1} parent=1 // pred_region
      %311 = dma.done [#allocation3], 256
    $region161: #{_lambda_.1} parent=1 // pred_fallthru
      _
    // Predicated region
    $region162: #{_lambda_.1} parent=1 // pred_check
      _
    $region163: #{_lambda_.1} parent=1 // pred_check_branch
      %313 = sbr.rel (0) target = $region165
    $region164: #{_lambda_.1} parent=1 // pred_region
      %314 = dma.done [#allocation6], 1536
    $region165: #{_lambda_.1} parent=1 // pred_fallthru
      _
    // Predicated region
    $region166: #{_lambda_.1} parent=1 // pred_check
      _
    $region167: #{_lambda_.1} parent=1 // pred_check_branch
      %316 = sbr.rel (0) target = $region169
    $region168: #{_lambda_.1} parent=1 // pred_region
      %317 = dma.done [#allocation6], 1536
    $region169: #{_lambda_.1} parent=1 // pred_fallthru
      _
    // Predicated region
    $region170: #{_lambda_.1} parent=1 // pred_check
      _
    $region171: #{_lambda_.1} parent=1 // pred_check_branch
      %319 = sbr.rel (0) target = $region173
    $region172: #{_lambda_.1} parent=1 // pred_region
      %320 = dma.done [#allocation9], 1536
    $region173: #{_lambda_.1} parent=1 // pred_fallthru
      _
    // Predicated region
    $region174: #{_lambda_.1} parent=1 // pred_check
      _
    $region175: #{_lambda_.1} parent=1 // pred_check_branch
      %322 = sbr.rel (0) target = $region177
    $region176: #{_lambda_.1} parent=1 // pred_region
      %323 = dma.done [#allocation9], 3072
    $region177: #{_lambda_.1} parent=1 // pred_fallthru
      _
    // Predicated region
    $region178: #{_lambda_.1} parent=1 // pred_check
      _
    $region179: #{_lambda_.1} parent=1 // pred_check_branch
      %325 = sbr.rel (0) target = $region181
    $region180: #{_lambda_.1} parent=1 // pred_region
      %326 = dma.done [#allocation12], 512
    $region181: #{_lambda_.1} parent=1 // pred_fallthru
      _
    // Predicated region
    $region182: #{_lambda_.1} parent=1 // pred_check
      _
    $region183: #{_lambda_.1} parent=1 // pred_check_branch
      %328 = sbr.rel (0) target = $region185
    $region184: #{_lambda_.1} parent=1 // pred_region
      %329 = dma.done [#allocation12], 6144
    $region185: #{_lambda_.1} parent=1 // pred_fallthru
      _
    // Predicated region
    $region186: #{_lambda_.1} parent=1 // pred_check
      _
    $region187: #{_lambda_.1} parent=1 // pred_check_branch
      %331 = sbr.rel (0) target = $region189
    $region188: #{_lambda_.1} parent=1 // pred_region
      %332 = dma.done [#allocation15], 12288
    $region189: #{_lambda_.1} parent=1 // pred_fallthru
      _
    // Predicated region
    $region190: #{_lambda_.1} parent=1 // pred_check
      _
    $region191: #{_lambda_.1} parent=1 // pred_check_branch
      %334 = sbr.rel (0) target = $region193
    $region192: #{_lambda_.1} parent=1 // pred_region
      %335 = dma.done [#allocation15], 2048
    $region193: #{_lambda_.1} parent=1 // pred_fallthru
      _
    // Predicated region
    $region194: #{_lambda_.1} parent=1 // pred_check
      _
    $region195: #{_lambda_.1} parent=1 // pred_check_branch
      %337 = sbr.rel (0) target = $region197
    $region196: #{_lambda_.1} parent=1 // pred_region
      %338 = dma.done [#allocation18], 24576
    $region197: #{_lambda_.1} parent=1 // pred_fallthru
      _
    // Predicated region
    $region198: #{_lambda_.1} parent=1 // pred_check
      _
    $region199: #{_lambda_.1} parent=1 // pred_check_branch
      %340 = sbr.rel (0) target = $region201
    $region200: #{_lambda_.1} parent=1 // pred_region
      %341 = dma.done [#allocation18], 49152
    $region201: #{_lambda_.1} parent=1 // pred_fallthru
      _
    // Predicated region
    $region202: #{_lambda_.1} parent=1 // pred_check
      _
    $region203: #{_lambda_.1} parent=1 // pred_check_branch
      %343 = sbr.rel (0) target = $region205
    $region204: #{_lambda_.1} parent=1 // pred_region
      %344 = dma.done [#allocation21], 8192
    $region205: #{_lambda_.1} parent=1 // pred_fallthru
      _
    // Predicated region
    $region206: #{_lambda_.1} parent=1 // pred_check
      _
    $region207: #{_lambda_.1} parent=1 // pred_check_branch
      %346 = sbr.rel (0) target = $region209
    $region208: #{_lambda_.1} parent=1 // pred_region
      %347 = dma.done [#allocation21], 8192
    $region209: #{_lambda_.1} parent=1 // pred_fallthru
      _
    // Predicated region
    $region210: #{_lambda_.1} parent=1 // pred_check
      _
    $region211: #{_lambda_.1} parent=1 // pred_check_branch
      %349 = sbr.rel (0) target = $region213
    $region212: #{_lambda_.1} parent=1 // pred_region
      %350 = dma.done [#allocation24], 16
    $region213: #{_lambda_.1} parent=1 // pred_fallthru
      _
    %v352 = vld [vmem:[%s1] sm:$0xf]
    %v353 = vld [vmem:[%s1 + $0x4] sm:$0xf]
    %v354 = vld [vmem:[%s1 + $0x8] sm:$0xf]
    %v355 = vld [vmem:[%s1 + $0xc] sm:$0xf]
    %v356 = vld [vmem:[%s1 + $0x10] sm:$0xf]
    %v357 = vld [vmem:[%s1 + $0x14] sm:$0xf]
    %v358 = vld [vmem:[%s1 + $0x18] sm:$0xf]
    %v359 = vld [vmem:[%s1 + $0x1c] sm:$0xf]
    %v360 = vld [vmem:[#allocation2] sm:$0xf]
    %v361 = vld [vmem:[#allocation2 + $0x4] sm:$0xf]
    %v362 = vld [vmem:[#allocation2 + $0x8] sm:$0xf]
    %v363 = vld [vmem:[#allocation2 + $0xc] sm:$0x3]
    %v372 = vunpack.c.l.b16 %v352
    %v373 = vunpack.c.l.b16 %v353
    %v374 = vunpack.c.l.b16 %v354
    %v375 = vunpack.c.l.b16 %v355
    %v376 = vunpack.c.l.b16 %v356
    %v377 = vunpack.c.l.b16 %v357
    %v378 = vunpack.c.l.b16 %v358
    %v379 = vunpack.c.l.b16 %v359
    %v380 = vpack.c.b16 %v373, %v372
    %v381 = vpack.c.b16 %v375, %v374
    %v382 = vpack.c.b16 %v377, %v376
    %v383 = vpack.c.b16 %v379, %v378
    %v388 = vunpack.c.l.b16 %v360
    %v389 = vunpack.c.l.b16 %v361
    %v390 = vunpack.c.l.b16 %v362
    %v391 = vunpack.c.l.b16 %v363
    %v392 = vpack.c.b16 %v389, %v388
    %v393 = vpack.c.b16 %v391, %v390
    %vm395 = vcmask 228352
    %v397 = vsel %vm395, %v380, 0
    %v400 = vsel %vm395, %v381, 0
    %v403 = vsel %vm395, %v382, 0
    %v406 = vsel %vm395, %v383, 0
    %vm408 = vcmask 1045504
    %v410 = vsel %vm408, %v393, 0
    %412 = vmatprep.subr.bf16.mxu0 0
    %413 = vmatpush1.bf16.msra.mxu0 0
    %414 = vmatprep.subr.bf16.mxu0 0
    %415 = vmatpush1.bf16.msra.mxu0 0
    %416 = vmatprep.subr.bf16.mxu0 0
    %417 = vmatpush1.bf16.msra.mxu0 0
    %418 = vmatprep.subr.bf16.mxu0 0
    %419 = vmatpush1.bf16.msra.mxu0 0
    %420 = vmatprep.subr.bf16.mxu0 0
    %421 = vmatpush1.bf16.msra.mxu0 0
    %422 = vmatprep.subr.bf16.mxu0 0
    %423 = vmatpush1.bf16.msra.mxu0 0
    %424 = vmatprep.subr.bf16.mxu0 0
    %425 = vmatpush1.bf16.msra.mxu0 %v410
    %426 = vmatprep.subr.bf16.mxu0 0
    %427 = vmatpush1.bf16.msra.mxu0 %v392
    %428 = vmatprep.subr.bf16.mxu0 0
    %429 = vmatpush2.bf16.msra.mxu0 0
    %430 = vmatprep.subr.bf16.mxu0 0
    %431 = vmatpush2.bf16.msra.mxu0 0
    %432 = vmatprep.subr.bf16.mxu0 0
    %433 = vmatpush2.bf16.msra.mxu0 0
    %434 = vmatprep.subr.bf16.mxu0 0
    %435 = vmatpush2.bf16.msra.mxu0 0
    %436 = vmatprep.subr.bf16.mxu0 0
    %437 = vmatpush2.bf16.msra.mxu0 0
    %438 = vmatprep.subr.bf16.mxu0 0
    %439 = vmatpush2.bf16.msra.mxu0 0
    %440 = vmatprep.subr.bf16.mxu0 0
    %441 = vmatpush2.bf16.msra.mxu0 0
    %442 = vmatprep.subr.bf16.mxu0 0
    %443 = vmatpush2.bf16.msra.mxu0 0
    %444 = vmatprep.mubr.bf16.mxu0 0
    %445 = vmatmul.mubr.bf16.gmra.mxu0 %v397
    %v446 = vpop.f32.mrf.mxu0
    %v447 = vadd.f32 0.0, %v446
    %v448 = vpop.f32.mrf.mxu0
    %v449 = vpop.f32.mrf.mxu0
    %v450 = vadd.f32 0.0, %v449
    %v451 = vpop.f32.mrf.mxu0
    %452 = vmatprep.mubr.bf16.mxu0 0
    %453 = vmatmul.mubr.bf16.gmra.mxu0 %v400
    %v454 = vpop.f32.mrf.mxu0
    %v455 = vadd.f32 0.0, %v454
    %v456 = vpop.f32.mrf.mxu0
    %v457 = vpop.f32.mrf.mxu0
    %v458 = vadd.f32 0.0, %v457
    %v459 = vpop.f32.mrf.mxu0
    %460 = vmatprep.mubr.bf16.mxu0 0
    %461 = vmatmul.mubr.bf16.gmra.mxu0 %v403
    %v462 = vpop.f32.mrf.mxu0
    %v463 = vadd.f32 0.0, %v462
    %v464 = vpop.f32.mrf.mxu0
    %v465 = vpop.f32.mrf.mxu0
    %v466 = vadd.f32 0.0, %v465
    %v467 = vpop.f32.mrf.mxu0
    %468 = vmatprep.mubr.bf16.mxu0 0
    %469 = vmatmul.mubr.bf16.gmra.mxu0 %v406
    %v470 = vpop.f32.mrf.mxu0
    %v471 = vadd.f32 0.0, %v470
    %v472 = vpop.f32.mrf.mxu0
    %v473 = vpop.f32.mrf.mxu0
    %v474 = vadd.f32 0.0, %v473
    %v475 = vpop.f32.mrf.mxu0
    %476 = vdwg.mxu0
    %vm477 = vcmask 523264
    %v478 = vsel %vm477, %v447, 0.0
    %v479 = vsel %vm477, %v450, 0.0
    %v480 = vadd.f32 %v478, %v479
    %v481 = vsel %vm477, %v455, 0.0
    %v482 = vadd.f32 %v480, %v481
    %v483 = vsel %vm477, %v458, 0.0
    %v484 = vadd.f32 %v482, %v483
    %v485 = vsel %vm477, %v463, 0.0
    %v486 = vadd.f32 %v484, %v485
    %v487 = vsel %vm477, %v466, 0.0
    %v488 = vadd.f32 %v486, %v487
    %v489 = vsel %vm477, %v471, 0.0
    %v490 = vadd.f32 %v488, %v489
    %v491 = vsel %vm477, %v474, 0.0
    %v492 = vadd.f32 %v490, %v491
    %v493 = vrot.slane %v492, 4
    %v494 = vadd.f32 %v492, %v493
    %v495 = vrot.slane %v494, 2
    %v496 = vadd.f32 %v494, %v495
    %v497 = vrot.slane %v496, 1
    %v498 = vadd.f32 %v496, %v497
    %v499 = vmul.f32 %v498, 0.015625
    %v500 = vmul.f32 %v447, %v447
    %v501 = vmul.f32 %v450, %v450
    %v502 = vmul.f32 %v455, %v455
    %v503 = vmul.f32 %v458, %v458
    %v504 = vmul.f32 %v463, %v463
    %v505 = vmul.f32 %v466, %v466
    %v506 = vmul.f32 %v471, %v471
    %v507 = vmul.f32 %v474, %v474
    %v508 = vsel %vm477, %v500, 0.0
    %v509 = vsel %vm477, %v501, 0.0
    %v510 = vadd.f32 %v508, %v509
    %v511 = vsel %vm477, %v502, 0.0
    %v512 = vadd.f32 %v510, %v511
    %v513 = vsel %vm477, %v503, 0.0
    %v514 = vadd.f32 %v512, %v513
    %v515 = vsel %vm477, %v504, 0.0
    %v516 = vadd.f32 %v514, %v515
    %v517 = vsel %vm477, %v505, 0.0
    %v518 = vadd.f32 %v516, %v517
    %v519 = vsel %vm477, %v506, 0.0
    %v520 = vadd.f32 %v518, %v519
    %v521 = vsel %vm477, %v507, 0.0
    %v522 = vadd.f32 %v520, %v521
    %v523 = vrot.slane %v522, 4
    %v524 = vadd.f32 %v522, %v523
    %v525 = vrot.slane %v524, 2
    %v526 = vadd.f32 %v524, %v525
    %v527 = vrot.slane %v526, 1
    %v528 = vadd.f32 %v526, %v527
    %v529 = vmul.f32 %v528, 0.015625
    %v530 = vmul.f32 %v499, %v499
    %v531 = vsub.f32 %v529, %v530
    %v532 = vmax.f32 %v531, 0.0
    %v533 = vld [vmem:[%s5] sm:$0x1]
    %v534 = vadd.f32 %v532, 1e-05
    %v535 = vrsqrt.pop %v534
    %v536 = vmul.f32 %v533, %v535
    %v537 = vld [vmem:[%s7] sm:$0x1]
    %v538 = vmul.f32 %v499, %v536
    %v539 = vsub.f32 %v537, %v538
    %v541 = vlaneseq
    %v542 = vshrl.u32 %v541, 7
    %v543 = vsub.s32 0, %v542
    %v544 = vrot.slane %v536, %v543
    %v546 = vmul.f32 %v447, %v544
    %v547 = vmul.f32 %v450, %v544
    %v548 = vmul.f32 %v455, %v544
    %v549 = vmul.f32 %v458, %v544
    %v550 = vmul.f32 %v463, %v544
    %v551 = vmul.f32 %v466, %v544
    %v552 = vmul.f32 %v471, %v544
    %v553 = vmul.f32 %v474, %v544
    %v555 = vlaneseq
    %v556 = vshrl.u32 %v555, 7
    %v557 = vsub.s32 0, %v556
    %v558 = vrot.slane %v539, %v557
    %v560 = vadd.f32 %v546, %v558
    %v561 = vadd.f32 %v547, %v558
    %v562 = vadd.f32 %v548, %v558
    %v563 = vadd.f32 %v549, %v558
    %v564 = vadd.f32 %v550, %v558
    %v565 = vadd.f32 %v551, %v558
    %v566 = vadd.f32 %v552, %v558
    %v567 = vadd.f32 %v553, %v558
    %v568 = vmax.f32 %v560, 0.0
    %v569 = vmax.f32 %v561, 0.0
    %v570 = vmax.f32 %v562, 0.0
    %v571 = vmax.f32 %v563, 0.0
    %v572 = vmax.f32 %v564, 0.0
    %v573 = vmax.f32 %v565, 0.0
    %v574 = vmax.f32 %v566, 0.0
    %v575 = vmax.f32 %v567, 0.0
    %v576 = vpack.c.bf16 %v569, %v568
    %v577 = vpack.c.bf16 %v571, %v570
    %v578 = vpack.c.bf16 %v573, %v572
    %v579 = vpack.c.bf16 %v575, %v574
    %v580 = vlaneseq
    %v581 = vshrl.u32 %v580, 7
    %v582 = vadd.s32 %v581, 8
    %v583 = vadd.s32 %v581, 16
    %v584 = vadd.s32 %v581, 24
    %v585 = vlaneseq
    %v586 = vand.u32 %v585, 127
    %vm587 = vcmp.ge.s32.totalorder %v581, 0
    %vm588 = vcmp.ge.s32.totalorder %v582, 0
    %vm589 = vcmp.ge.s32.totalorder %v583, 0
    %vm590 = vcmp.ge.s32.totalorder %v584, 0
    %vm591 = vcmp.lt.s32.totalorder %v581, 16
    %vm592 = vcmp.lt.s32.totalorder %v582, 16
    %vm593 = vcmp.lt.s32.totalorder %v583, 16
    %vm594 = vcmp.lt.s32.totalorder %v584, 16
    %vm595 = vmand %vm587, %vm591
    %vm596 = vmand %vm588, %vm592
    %vm597 = vmand %vm589, %vm593
    %vm598 = vmand %vm590, %vm594
    %vm599 = vcmp.ge.s32.totalorder %v586, 0
    %vm600 = vmand %vm595, %vm599
    %vm601 = vmand %vm596, %vm599
    %vm602 = vmand %vm597, %vm599
    %vm603 = vmand %vm598, %vm599
    %vm604 = vcmp.lt.s32.totalorder %v586, 32
    %vm605 = vmand %vm600, %vm604
    %vm606 = vmand %vm601, %vm604
    %vm607 = vmand %vm602, %vm604
    %vm608 = vmand %vm603, %vm604
    %vm609 = vcmp.ge.s32.totalorder %v581, 16
    %vm610 = vcmp.ge.s32.totalorder %v582, 16
    %vm611 = vcmp.ge.s32.totalorder %v583, 16
    %vm612 = vcmp.ge.s32.totalorder %v584, 16
    %vm613 = vcmp.lt.s32.totalorder %v581, 32
    %vm614 = vcmp.lt.s32.totalorder %v582, 32
    %vm615 = vcmp.lt.s32.totalorder %v583, 32
    %vm616 = vcmp.lt.s32.totalorder %v584, 32
    %vm617 = vmand %vm609, %vm613
    %vm618 = vmand %vm610, %vm614
    %vm619 = vmand %vm611, %vm615
    %vm620 = vmand %vm612, %vm616
    %vm621 = vcmp.ge.s32.totalorder %v586, 32
    %vm622 = vmand %vm617, %vm621
    %vm623 = vmand %vm618, %vm621
    %vm624 = vmand %vm619, %vm621
    %vm625 = vmand %vm620, %vm621
    %vm626 = vcmp.lt.s32.totalorder %v586, 64
    %vm627 = vmand %vm622, %vm626
    %vm628 = vmand %vm623, %vm626
    %vm629 = vmand %vm624, %vm626
    %vm630 = vmand %vm625, %vm626
    %vm631 = vmor %vm605, %vm627
    %vm632 = vmor %vm606, %vm628
    %vm633 = vmor %vm607, %vm629
    %vm634 = vmor %vm608, %vm630
    %v635 = vmul.u32 %v581, 2
    %v636 = vmul.u32 %v582, 2
    %v637 = vmul.u32 %v583, 2
    %v638 = vmul.u32 %v584, 2
    %v639 = vadd.s32 %v635, 4294967295
    %v640 = vadd.s32 %v636, 4294967295
    %v641 = vadd.s32 %v637, 4294967295
    %v642 = vadd.s32 %v638, 4294967295
    %vm643 = vcmp.eq.s32.totalorder %v586, %v639
    %vm644 = vcmp.eq.s32.totalorder %v586, %v640
    %vm645 = vcmp.eq.s32.totalorder %v586, %v641
    %vm646 = vcmp.eq.s32.totalorder %v586, %v642
    %vm647 = vmand %vm631, %vm643
    %vm648 = vmand %vm632, %vm644
    %vm649 = vmand %vm633, %vm645
    %vm650 = vmand %vm634, %vm646
    %v651 = vsel %vm647, 1.0, 0.0
    %v652 = vsel %vm648, 1.0, 0.0
    %v653 = vsel %vm649, 1.0, 0.0
    %v654 = vsel %vm650, 1.0, 0.0
    %v655 = vpack.c.bf16 %v652, %v651
    %v656 = vpack.c.bf16 %v654, %v653
    %v658 = vsel %vm477, %v655, 0
    %v661 = vsel %vm477, %v656, 0
    %663 = vmatprep.subr.bf16.mxu0 0
    %664 = vmatpush1.bf16.msra.mxu0 0
    %665 = vmatprep.subr.bf16.mxu0 0
    %666 = vmatpush1.bf16.msra.mxu0 0
    %667 = vmatprep.subr.bf16.mxu0 0
    %668 = vmatpush1.bf16.msra.mxu0 0
    %669 = vmatprep.subr.bf16.mxu0 0
    %670 = vmatpush1.bf16.msra.mxu0 0
    %671 = vmatprep.subr.bf16.mxu0 0
    %672 = vmatpush1.bf16.msra.mxu0 %v579
    %673 = vmatprep.subr.bf16.mxu0 0
    %674 = vmatpush1.bf16.msra.mxu0 %v578
    %675 = vmatprep.subr.bf16.mxu0 0
    %676 = vmatpush1.bf16.msra.mxu0 %v577
    %677 = vmatprep.subr.bf16.mxu0 0
    %678 = vmatpush1.bf16.msra.mxu0 %v576
    %679 = vmatprep.subr.bf16.mxu0 0
    %680 = vmatpush2.bf16.msra.mxu0 0
    %681 = vmatprep.subr.bf16.mxu0 0
    %682 = vmatpush2.bf16.msra.mxu0 0
    %683 = vmatprep.subr.bf16.mxu0 0
    %684 = vmatpush2.bf16.msra.mxu0 0
    %685 = vmatprep.subr.bf16.mxu0 0
    %686 = vmatpush2.bf16.msra.mxu0 0
    %687 = vmatprep.subr.bf16.mxu0 0
    %688 = vmatpush2.bf16.msra.mxu0 0
    %689 = vmatprep.subr.bf16.mxu0 0
    %690 = vmatpush2.bf16.msra.mxu0 0
    %691 = vmatprep.subr.bf16.mxu0 0
    %692 = vmatpush2.bf16.msra.mxu0 0
    %693 = vmatprep.subr.bf16.mxu0 0
    %694 = vmatpush2.bf16.msra.mxu0 0
    %695 = vmatprep.mubr.bf16.mxu0 0
    %696 = vmatmul.mubr.bf16.gmra.mxu0 %v658
    %v697 = vpop.f32.mrf.mxu0
    %v698 = vadd.f32 0.0, %v697
    %v699 = vpop.f32.mrf.mxu0
    %v700 = vpop.f32.mrf.mxu0
    %v701 = vadd.f32 0.0, %v700
    %v702 = vpop.f32.mrf.mxu0
    %703 = vmatprep.mubr.bf16.mxu0 0
    %704 = vmatmul.mubr.bf16.gmra.mxu0 %v661
    %v705 = vpop.f32.mrf.mxu0
    %v706 = vadd.f32 0.0, %v705
    %v707 = vpop.f32.mrf.mxu0
    %v708 = vpop.f32.mrf.mxu0
    %v709 = vadd.f32 0.0, %v708
    %v710 = vpop.f32.mrf.mxu0
    %711 = vdwg.mxu0
    %vm712 = vcmp.eq.s32.totalorder %v586, %v635
    %vm713 = vcmp.eq.s32.totalorder %v586, %v636
    %vm714 = vcmp.eq.s32.totalorder %v586, %v637
    %vm715 = vcmp.eq.s32.totalorder %v586, %v638
    %vm716 = vmand %vm631, %vm712
    %vm717 = vmand %vm632, %vm713
    %vm718 = vmand %vm633, %vm714
    %vm719 = vmand %vm634, %vm715
    %v720 = vsel %vm716, 1.0, 0.0
    %v721 = vsel %vm717, 1.0, 0.0
    %v722 = vsel %vm718, 1.0, 0.0
    %v723 = vsel %vm719, 1.0, 0.0
    %v724 = vpack.c.bf16 %v721, %v720
    %v725 = vpack.c.bf16 %v723, %v722
    %v727 = vsel %vm477, %v724, 0
    %v730 = vsel %vm477, %v725, 0
    %732 = vmatprep.subr.bf16.mxu0 0
    %733 = vmatpush1.bf16.msra.mxu0 0
    %734 = vmatprep.subr.bf16.mxu0 0
    %735 = vmatpush1.bf16.msra.mxu0 0
    %736 = vmatprep.subr.bf16.mxu0 0
    %737 = vmatpush1.bf16.msra.mxu0 0
    %738 = vmatprep.subr.bf16.mxu0 0
    %739 = vmatpush1.bf16.msra.mxu0 0
    %740 = vmatprep.subr.bf16.mxu0 0
    %741 = vmatpush1.bf16.msra.mxu0 %v579
    %742 = vmatprep.subr.bf16.mxu0 0
    %743 = vmatpush1.bf16.msra.mxu0 %v578
    %744 = vmatprep.subr.bf16.mxu0 0
    %745 = vmatpush1.bf16.msra.mxu0 %v577
    %746 = vmatprep.subr.bf16.mxu0 0
    %747 = vmatpush1.bf16.msra.mxu0 %v576
    %748 = vmatprep.subr.bf16.mxu0 0
    %749 = vmatpush2.bf16.msra.mxu0 0
    %750 = vmatprep.subr.bf16.mxu0 0
    %751 = vmatpush2.bf16.msra.mxu0 0
    %752 = vmatprep.subr.bf16.mxu0 0
    %753 = vmatpush2.bf16.msra.mxu0 0
    %754 = vmatprep.subr.bf16.mxu0 0
    %755 = vmatpush2.bf16.msra.mxu0 0
    %756 = vmatprep.subr.bf16.mxu0 0
    %757 = vmatpush2.bf16.msra.mxu0 0
    %758 = vmatprep.subr.bf16.mxu0 0
    %759 = vmatpush2.bf16.msra.mxu0 0
    %760 = vmatprep.subr.bf16.mxu0 0
    %761 = vmatpush2.bf16.msra.mxu0 0
    %762 = vmatprep.subr.bf16.mxu0 0
    %763 = vmatpush2.bf16.msra.mxu0 0
    %764 = vmatprep.mubr.bf16.mxu0 0
    %765 = vmatmul.mubr.bf16.gmra.mxu0 %v727
    %v766 = vpop.f32.mrf.mxu0
    %v767 = vadd.f32 0.0, %v766
    %v768 = vpop.f32.mrf.mxu0
    %v769 = vpop.f32.mrf.mxu0
    %v770 = vadd.f32 0.0, %v769
    %v771 = vpop.f32.mrf.mxu0
    %772 = vmatprep.mubr.bf16.mxu0 0
    %773 = vmatmul.mubr.bf16.gmra.mxu0 %v730
    %v774 = vpop.f32.mrf.mxu0
    %v775 = vadd.f32 0.0, %v774
    %v776 = vpop.f32.mrf.mxu0
    %v777 = vpop.f32.mrf.mxu0
    %v778 = vadd.f32 0.0, %v777
    %v779 = vpop.f32.mrf.mxu0
    %780 = vdwg.mxu0
    %v781 = vadd.s32 %v635, 1
    %v782 = vadd.s32 %v636, 1
    %v783 = vadd.s32 %v637, 1
    %v784 = vadd.s32 %v638, 1
    %vm785 = vcmp.eq.s32.totalorder %v586, %v781
    %vm786 = vcmp.eq.s32.totalorder %v586, %v782
    %vm787 = vcmp.eq.s32.totalorder %v586, %v783
    %vm788 = vcmp.eq.s32.totalorder %v586, %v784
    %vm789 = vmand %vm631, %vm785
    %vm790 = vmand %vm632, %vm786
    %vm791 = vmand %vm633, %vm787
    %vm792 = vmand %vm634, %vm788
    %v793 = vsel %vm789, 1.0, 0.0
    %v794 = vsel %vm790, 1.0, 0.0
    %v795 = vsel %vm791, 1.0, 0.0
    %v796 = vsel %vm792, 1.0, 0.0
    %v797 = vpack.c.bf16 %v794, %v793
    %v798 = vpack.c.bf16 %v796, %v795
    %v800 = vsel %vm477, %v797, 0
    %v803 = vsel %vm477, %v798, 0
    %805 = vmatprep.subr.bf16.mxu0 0
    %806 = vmatpush1.bf16.msra.mxu0 0
    %807 = vmatprep.subr.bf16.mxu0 0
    %808 = vmatpush1.bf16.msra.mxu0 0
    %809 = vmatprep.subr.bf16.mxu0 0
    %810 = vmatpush1.bf16.msra.mxu0 0
    %811 = vmatprep.subr.bf16.mxu0 0
    %812 = vmatpush1.bf16.msra.mxu0 0
    %813 = vmatprep.subr.bf16.mxu0 0
    %814 = vmatpush1.bf16.msra.mxu0 %v579
    %815 = vmatprep.subr.bf16.mxu0 0
    %816 = vmatpush1.bf16.msra.mxu0 %v578
    %817 = vmatprep.subr.bf16.mxu0 0
    %818 = vmatpush1.bf16.msra.mxu0 %v577
    %819 = vmatprep.subr.bf16.mxu0 0
    %820 = vmatpush1.bf16.msra.mxu0 %v576
    %821 = vmatprep.subr.bf16.mxu0 0
    %822 = vmatpush2.bf16.msra.mxu0 0
    %823 = vmatprep.subr.bf16.mxu0 0
    %824 = vmatpush2.bf16.msra.mxu0 0
    %825 = vmatprep.subr.bf16.mxu0 0
    %826 = vmatpush2.bf16.msra.mxu0 0
    %827 = vmatprep.subr.bf16.mxu0 0
    %828 = vmatpush2.bf16.msra.mxu0 0
    %829 = vmatprep.subr.bf16.mxu0 0
    %830 = vmatpush2.bf16.msra.mxu0 0
    %831 = vmatprep.subr.bf16.mxu0 0
    %832 = vmatpush2.bf16.msra.mxu0 0
    %833 = vmatprep.subr.bf16.mxu0 0
    %834 = vmatpush2.bf16.msra.mxu0 0
    %835 = vmatprep.subr.bf16.mxu0 0
    %836 = vmatpush2.bf16.msra.mxu0 0
    %837 = vmatprep.mubr.bf16.mxu0 0
    %838 = vmatmul.mubr.bf16.gmra.mxu0 %v800
    %v839 = vpop.f32.mrf.mxu0
    %v840 = vadd.f32 0.0, %v839
    %v841 = vpop.f32.mrf.mxu0
    %v842 = vpop.f32.mrf.mxu0
    %v843 = vadd.f32 0.0, %v842
    %v844 = vpop.f32.mrf.mxu0
    %845 = vmatprep.mubr.bf16.mxu0 0
    %846 = vmatmul.mubr.bf16.gmra.mxu0 %v803
    %v847 = vpop.f32.mrf.mxu0
    %v848 = vadd.f32 0.0, %v847
    %v849 = vpop.f32.mrf.mxu0
    %v850 = vpop.f32.mrf.mxu0
    %v851 = vadd.f32 0.0, %v850
    %v852 = vpop.f32.mrf.mxu0
    %853 = vdwg.mxu0
    %v854 = vmax.f32 %v698, %v767
    %v855 = vmax.f32 %v701, %v770
    %v856 = vmax.f32 %v706, %v775
    %v857 = vmax.f32 %v709, %v778
    %v858 = vmax.f32 %v854, %v840
    %v859 = vmax.f32 %v855, %v843
    %v860 = vmax.f32 %v856, %v848
    %v861 = vmax.f32 %v857, %v851
    %v862 = vpack.c.bf16 %v859, %v858
    %v863 = vpack.c.bf16 %v861, %v860
    %vm864 = vcmp.lt.s32.totalorder %v586, 16
    %vm865 = vmand %vm600, %vm864
    %vm866 = vmand %vm601, %vm864
    %vm867 = vmand %vm602, %vm864
    %vm868 = vmand %vm603, %vm864
    %vm869 = vcmp.ge.s32.totalorder %v586, 16
    %vm870 = vmand %vm617, %vm869
    %vm871 = vmand %vm618, %vm869
    %vm872 = vmand %vm619, %vm869
    %vm873 = vmand %vm620, %vm869
    %vm874 = vmand %vm870, %vm604
    %vm875 = vmand %vm871, %vm604
    %vm876 = vmand %vm872, %vm604
    %vm877 = vmand %vm873, %vm604
    %vm878 = vmor %vm865, %vm874
    %vm879 = vmor %vm866, %vm875
    %vm880 = vmor %vm867, %vm876
    %vm881 = vmor %vm868, %vm877
    %v882 = vadd.s32 %v581, 4294967295
    %v883 = vadd.s32 %v582, 4294967295
    %v884 = vadd.s32 %v583, 4294967295
    %v885 = vadd.s32 %v584, 4294967295
    %vm886 = vcmp.eq.s32.totalorder %v586, %v882
    %vm887 = vcmp.eq.s32.totalorder %v586, %v883
    %vm888 = vcmp.eq.s32.totalorder %v586, %v884
    %vm889 = vcmp.eq.s32.totalorder %v586, %v885
    %vm890 = vmand %vm878, %vm886
    %vm891 = vmand %vm879, %vm887
    %vm892 = vmand %vm880, %vm888
    %vm893 = vmand %vm881, %vm889
    %v894 = vsel %vm890, 1.0, 0.0
    %v895 = vsel %vm891, 1.0, 0.0
    %v896 = vsel %vm892, 1.0, 0.0
    %v897 = vsel %vm893, 1.0, 0.0
    %v898 = vpack.c.bf16 %v895, %v894
    %v899 = vpack.c.bf16 %v897, %v896
    %vm900 = vcmask 261120
    %v902 = vsel %vm900, %v898, 0
    %v905 = vsel %vm900, %v899, 0
    %907 = vmatprep.subr.bf16.mxu0 0
    %908 = vmatpush1.bf16.msra.mxu0 0
    %909 = vmatprep.subr.bf16.mxu0 0
    %910 = vmatpush1.bf16.msra.mxu0 0
    %911 = vmatprep.subr.bf16.mxu0 0
    %912 = vmatpush1.bf16.msra.mxu0 0
    %913 = vmatprep.subr.bf16.mxu0 0
    %914 = vmatpush1.bf16.msra.mxu0 0
    %915 = vmatprep.subr.bf16.mxu0 0
    %916 = vmatpush1.bf16.msra.mxu0 0
    %917 = vmatprep.subr.bf16.mxu0 0
    %918 = vmatpush1.bf16.msra.mxu0 0
    %919 = vmatprep.subr.bf16.mxu0 0
    %920 = vmatpush1.bf16.msra.mxu0 %v863
    %921 = vmatprep.subr.bf16.mxu0 0
    %922 = vmatpush1.bf16.msra.mxu0 %v862
    %923 = vmatprep.subr.bf16.mxu0 0
    %924 = vmatpush2.bf16.msra.mxu0 0
    %925 = vmatprep.subr.bf16.mxu0 0
    %926 = vmatpush2.bf16.msra.mxu0 0
    %927 = vmatprep.subr.bf16.mxu0 0
    %928 = vmatpush2.bf16.msra.mxu0 0
    %929 = vmatprep.subr.bf16.mxu0 0
    %930 = vmatpush2.bf16.msra.mxu0 0
    %931 = vmatprep.subr.bf16.mxu0 0
    %932 = vmatpush2.bf16.msra.mxu0 0
    %933 = vmatprep.subr.bf16.mxu0 0
    %934 = vmatpush2.bf16.msra.mxu0 0
    %935 = vmatprep.subr.bf16.mxu0 0
    %936 = vmatpush2.bf16.msra.mxu0 0
    %937 = vmatprep.subr.bf16.mxu0 0
    %938 = vmatpush2.bf16.msra.mxu0 0
    %939 = vmatprep.mubr.bf16.mxu0 0
    %940 = vmatmul.mubr.bf16.gmra.mxu0 %v902
    %v941 = vpop.f32.mrf.mxu0
    %v942 = vadd.f32 0.0, %v941
    %v943 = vpop.f32.mrf.mxu0
    %v944 = vpop.f32.mrf.mxu0
    %v945 = vadd.f32 0.0, %v944
    %v946 = vpop.f32.mrf.mxu0
    %947 = vmatprep.mubr.bf16.mxu0 0
    %948 = vmatmul.mubr.bf16.gmra.mxu0 %v905
    %v949 = vpop.f32.mrf.mxu0
    %v950 = vadd.f32 0.0, %v949
    %v951 = vpop.f32.mrf.mxu0
    %v952 = vpop.f32.mrf.mxu0
    %v953 = vadd.f32 0.0, %v952
    %v954 = vpop.f32.mrf.mxu0
    %955 = vdwg.mxu0
    %vm956 = vcmp.eq.s32.totalorder %v586, %v581
    %vm957 = vcmp.eq.s32.totalorder %v586, %v582
    %vm958 = vcmp.eq.s32.totalorder %v586, %v583
    %vm959 = vcmp.eq.s32.totalorder %v586, %v584
    %vm960 = vmand %vm878, %vm956
    %vm961 = vmand %vm879, %vm957
    %vm962 = vmand %vm880, %vm958
    %vm963 = vmand %vm881, %vm959
    %v964 = vsel %vm960, 1.0, 0.0
    %v965 = vsel %vm961, 1.0, 0.0
    %v966 = vsel %vm962, 1.0, 0.0
    %v967 = vsel %vm963, 1.0, 0.0
    %v968 = vpack.c.bf16 %v965, %v964
    %v969 = vpack.c.bf16 %v967, %v966
    %v971 = vsel %vm900, %v968, 0
    %v974 = vsel %vm900, %v969, 0
    %976 = vmatprep.subr.bf16.mxu0 0
    %977 = vmatpush1.bf16.msra.mxu0 0
    %978 = vmatprep.subr.bf16.mxu0 0
    %979 = vmatpush1.bf16.msra.mxu0 0
    %980 = vmatprep.subr.bf16.mxu0 0
    %981 = vmatpush1.bf16.msra.mxu0 0
    %982 = vmatprep.subr.bf16.mxu0 0
    %983 = vmatpush1.bf16.msra.mxu0 0
    %984 = vmatprep.subr.bf16.mxu0 0
    %985 = vmatpush1.bf16.msra.mxu0 0
    %986 = vmatprep.subr.bf16.mxu0 0
    %987 = vmatpush1.bf16.msra.mxu0 0
    %988 = vmatprep.subr.bf16.mxu0 0
    %989 = vmatpush1.bf16.msra.mxu0 %v863
    %990 = vmatprep.subr.bf16.mxu0 0
    %991 = vmatpush1.bf16.msra.mxu0 %v862
    %992 = vmatprep.subr.bf16.mxu0 0
    %993 = vmatpush2.bf16.msra.mxu0 0
    %994 = vmatprep.subr.bf16.mxu0 0
    %995 = vmatpush2.bf16.msra.mxu0 0
    %996 = vmatprep.subr.bf16.mxu0 0
    %997 = vmatpush2.bf16.msra.mxu0 0
    %998 = vmatprep.subr.bf16.mxu0 0
    %999 = vmatpush2.bf16.msra.mxu0 0
    %1000 = vmatprep.subr.bf16.mxu0 0
    %1001 = vmatpush2.bf16.msra.mxu0 0
    %1002 = vmatprep.subr.bf16.mxu0 0
    %1003 = vmatpush2.bf16.msra.mxu0 0
    %1004 = vmatprep.subr.bf16.mxu0 0
    %1005 = vmatpush2.bf16.msra.mxu0 0
    %1006 = vmatprep.subr.bf16.mxu0 0
    %1007 = vmatpush2.bf16.msra.mxu0 0
    %1008 = vmatprep.mubr.bf16.mxu0 0
    %1009 = vmatmul.mubr.bf16.gmra.mxu0 %v971
    %v1010 = vpop.f32.mrf.mxu0
    %v1011 = vadd.f32 0.0, %v1010
    %v1012 = vpop.f32.mrf.mxu0
    %v1013 = vpop.f32.mrf.mxu0
    %v1014 = vadd.f32 0.0, %v1013
    %v1015 = vpop.f32.mrf.mxu0
    %1016 = vmatprep.mubr.bf16.mxu0 0
    %1017 = vmatmul.mubr.bf16.gmra.mxu0 %v974
    %v1018 = vpop.f32.mrf.mxu0
    %v1019 = vadd.f32 0.0, %v1018
    %v1020 = vpop.f32.mrf.mxu0
    %v1021 = vpop.f32.mrf.mxu0
    %v1022 = vadd.f32 0.0, %v1021
    %v1023 = vpop.f32.mrf.mxu0
    %1024 = vdwg.mxu0
    %v1025 = vadd.s32 %v581, 1
    %v1026 = vadd.s32 %v582, 1
    %v1027 = vadd.s32 %v583, 1
    %v1028 = vadd.s32 %v584, 1
    %vm1029 = vcmp.eq.s32.totalorder %v586, %v1025
    %vm1030 = vcmp.eq.s32.totalorder %v586, %v1026
    %vm1031 = vcmp.eq.s32.totalorder %v586, %v1027
    %vm1032 = vcmp.eq.s32.totalorder %v586, %v1028
    %vm1033 = vmand %vm878, %vm1029
    %vm1034 = vmand %vm879, %vm1030
    %vm1035 = vmand %vm880, %vm1031
    %vm1036 = vmand %vm881, %vm1032
    %v1037 = vsel %vm1033, 1.0, 0.0
    %v1038 = vsel %vm1034, 1.0, 0.0
    %v1039 = vsel %vm1035, 1.0, 0.0
    %v1040 = vsel %vm1036, 1.0, 0.0
    %v1041 = vpack.c.bf16 %v1038, %v1037
    %v1042 = vpack.c.bf16 %v1040, %v1039
    %v1044 = vsel %vm900, %v1041, 0
    %v1047 = vsel %vm900, %v1042, 0
    %1049 = vmatprep.subr.bf16.mxu0 0
    %1050 = vmatpush1.bf16.msra.mxu0 0
    %1051 = vmatprep.subr.bf16.mxu0 0
    %1052 = vmatpush1.bf16.msra.mxu0 0
    %1053 = vmatprep.subr.bf16.mxu0 0
    %1054 = vmatpush1.bf16.msra.mxu0 0
    %1055 = vmatprep.subr.bf16.mxu0 0
    %1056 = vmatpush1.bf16.msra.mxu0 0
    %1057 = vmatprep.subr.bf16.mxu0 0
    %1058 = vmatpush1.bf16.msra.mxu0 0
    %1059 = vmatprep.subr.bf16.mxu0 0
    %1060 = vmatpush1.bf16.msra.mxu0 0
    %1061 = vmatprep.subr.bf16.mxu0 0
    %1062 = vmatpush1.bf16.msra.mxu0 %v863
    %1063 = vmatprep.subr.bf16.mxu0 0
    %1064 = vmatpush1.bf16.msra.mxu0 %v862
    %1065 = vmatprep.subr.bf16.mxu0 0
    %1066 = vmatpush2.bf16.msra.mxu0 0
    %1067 = vmatprep.subr.bf16.mxu0 0
    %1068 = vmatpush2.bf16.msra.mxu0 0
    %1069 = vmatprep.subr.bf16.mxu0 0
    %1070 = vmatpush2.bf16.msra.mxu0 0
    %1071 = vmatprep.subr.bf16.mxu0 0
    %1072 = vmatpush2.bf16.msra.mxu0 0
    %1073 = vmatprep.subr.bf16.mxu0 0
    %1074 = vmatpush2.bf16.msra.mxu0 0
    %1075 = vmatprep.subr.bf16.mxu0 0
    %1076 = vmatpush2.bf16.msra.mxu0 0
    %1077 = vmatprep.subr.bf16.mxu0 0
    %1078 = vmatpush2.bf16.msra.mxu0 0
    %1079 = vmatprep.subr.bf16.mxu0 0
    %1080 = vmatpush2.bf16.msra.mxu0 0
    %1081 = vmatprep.mubr.bf16.mxu0 0
    %1082 = vmatmul.mubr.bf16.gmra.mxu0 %v1044
    %v1083 = vpop.f32.mrf.mxu0
    %v1084 = vadd.f32 0.0, %v1083
    %v1085 = vpop.f32.mrf.mxu0
    %v1086 = vpop.f32.mrf.mxu0
    %v1087 = vadd.f32 0.0, %v1086
    %v1088 = vpop.f32.mrf.mxu0
    %1089 = vmatprep.mubr.bf16.mxu0 0
    %1090 = vmatmul.mubr.bf16.gmra.mxu0 %v1047
    %v1091 = vpop.f32.mrf.mxu0
    %v1092 = vadd.f32 0.0, %v1091
    %v1093 = vpop.f32.mrf.mxu0
    %v1094 = vpop.f32.mrf.mxu0
    %v1095 = vadd.f32 0.0, %v1094
    %v1096 = vpop.f32.mrf.mxu0
    %1097 = vdwg.mxu0
    %v1098 = vpack.c.bf16 %v945, %v942
    %v1099 = vpack.c.bf16 %v953, %v950
    %v1100 = vld [vmem:[#allocation5] sm:$0xf]
    %v1101 = vld [vmem:[#allocation5 + $0x4] sm:$0xf]
    %v1102 = vld [vmem:[#allocation5 + $0x8] sm:$0xf]
    %v1103 = vld [vmem:[#allocation5 + $0xc] sm:$0xf]
    %v1104 = vld [vmem:[#allocation5 + $0x10] sm:$0xf]
    %v1105 = vld [vmem:[#allocation5 + $0x14] sm:$0xf]
    %v1106 = vld [vmem:[#allocation5 + $0x18] sm:$0xf]
    %v1107 = vld [vmem:[#allocation5 + $0x1c] sm:$0xf]
    %v1108 = vpack.c.bf16 %v1014, %v1011
    %v1109 = vpack.c.bf16 %v1022, %v1019
    %s1110 = scalar_lea.vmem [#allocation5], 32
    %v1111 = vld [vmem:[%s1110] sm:$0xf]
    %v1112 = vld [vmem:[%s1110 + $0x4] sm:$0xf]
    %v1113 = vld [vmem:[%s1110 + $0x8] sm:$0xf]
    %v1114 = vld [vmem:[%s1110 + $0xc] sm:$0xf]
    %v1115 = vld [vmem:[%s1110 + $0x10] sm:$0xf]
    %v1116 = vld [vmem:[%s1110 + $0x14] sm:$0xf]
    %v1117 = vld [vmem:[%s1110 + $0x18] sm:$0xf]
    %v1118 = vld [vmem:[%s1110 + $0x1c] sm:$0xf]
    %v1127 = vunpack.c.l.b16 %v1111
    %v1128 = vunpack.c.l.b16 %v1112
    %v1129 = vunpack.c.l.b16 %v1113
    %v1130 = vunpack.c.l.b16 %v1114
    %v1131 = vunpack.c.l.b16 %v1115
    %v1132 = vunpack.c.l.b16 %v1116
    %v1133 = vunpack.c.l.b16 %v1117
    %v1134 = vunpack.c.l.b16 %v1118
    %v1135 = vpack.c.b16 %v1128, %v1127
    %v1136 = vpack.c.b16 %v1130, %v1129
    %v1137 = vpack.c.b16 %v1132, %v1131
    %v1138 = vpack.c.b16 %v1134, %v1133
    %v1144 = vsel %vm477, %v1108, 0
    %v1147 = vsel %vm477, %v1109, 0
    %1149 = vmatprep.subr.bf16.mxu0 0
    %1150 = vmatpush1.bf16.msra.mxu0 0
    %1151 = vmatprep.subr.bf16.mxu0 0
    %1152 = vmatpush1.bf16.msra.mxu0 0
    %1153 = vmatprep.subr.bf16.mxu0 0
    %1154 = vmatpush1.bf16.msra.mxu0 0
    %1155 = vmatprep.subr.bf16.mxu0 0
    %1156 = vmatpush1.bf16.msra.mxu0 0
    %1157 = vmatprep.subr.bf16.mxu0 0
    %1158 = vmatpush1.bf16.msra.mxu0 %v1138
    %1159 = vmatprep.subr.bf16.mxu0 0
    %1160 = vmatpush1.bf16.msra.mxu0 %v1137
    %1161 = vmatprep.subr.bf16.mxu0 0
    %1162 = vmatpush1.bf16.msra.mxu0 %v1136
    %1163 = vmatprep.subr.bf16.mxu0 0
    %1164 = vmatpush1.bf16.msra.mxu0 %v1135
    %1165 = vmatprep.subr.bf16.mxu0 0
    %1166 = vmatpush2.bf16.msra.mxu0 0
    %1167 = vmatprep.subr.bf16.mxu0 0
    %1168 = vmatpush2.bf16.msra.mxu0 0
    %1169 = vmatprep.subr.bf16.mxu0 0
    %1170 = vmatpush2.bf16.msra.mxu0 0
    %1171 = vmatprep.subr.bf16.mxu0 0
    %1172 = vmatpush2.bf16.msra.mxu0 0
    %1173 = vmatprep.subr.bf16.mxu0 0
    %1174 = vmatpush2.bf16.msra.mxu0 0
    %1175 = vmatprep.subr.bf16.mxu0 0
    %1176 = vmatpush2.bf16.msra.mxu0 0
    %1177 = vmatprep.subr.bf16.mxu0 0
    %1178 = vmatpush2.bf16.msra.mxu0 0
    %1179 = vmatprep.subr.bf16.mxu0 0
    %1180 = vmatpush2.bf16.msra.mxu0 0
    %1181 = vmatprep.mubr.bf16.mxu0 0
    %1182 = vmatmul.mubr.bf16.gmra.mxu0 %v1144
    %v1183 = vpop.f32.mrf.mxu0
    %v1184 = vadd.f32 0.0, %v1183
    %v1185 = vpop.f32.mrf.mxu0
    %v1186 = vpop.f32.mrf.mxu0
    %v1187 = vadd.f32 0.0, %v1186
    %v1188 = vpop.f32.mrf.mxu0
    %1189 = vmatprep.mubr.bf16.mxu0 0
    %1190 = vmatmul.mubr.bf16.gmra.mxu0 %v1147
    %v1191 = vpop.f32.mrf.mxu0
    %v1192 = vadd.f32 0.0, %v1191
    %v1193 = vpop.f32.mrf.mxu0
    %v1194 = vpop.f32.mrf.mxu0
    %v1195 = vadd.f32 0.0, %v1194
    %v1196 = vpop.f32.mrf.mxu0
    %1197 = vdwg.mxu0
    %v1206 = vunpack.c.l.b16 %v1100
    %v1207 = vunpack.c.l.b16 %v1101
    %v1208 = vunpack.c.l.b16 %v1102
    %v1209 = vunpack.c.l.b16 %v1103
    %v1210 = vunpack.c.l.b16 %v1104
    %v1211 = vunpack.c.l.b16 %v1105
    %v1212 = vunpack.c.l.b16 %v1106
    %v1213 = vunpack.c.l.b16 %v1107
    %v1214 = vpack.c.b16 %v1207, %v1206
    %v1215 = vpack.c.b16 %v1209, %v1208
    %v1216 = vpack.c.b16 %v1211, %v1210
    %v1217 = vpack.c.b16 %v1213, %v1212
    %v1223 = vsel %vm477, %v1098, 0
    %v1226 = vsel %vm477, %v1099, 0
    %1228 = vmatprep.subr.bf16.mxu0 0
    %1229 = vmatpush1.bf16.msra.mxu0 0
    %1230 = vmatprep.subr.bf16.mxu0 0
    %1231 = vmatpush1.bf16.msra.mxu0 0
    %1232 = vmatprep.subr.bf16.mxu0 0
    %1233 = vmatpush1.bf16.msra.mxu0 0
    %1234 = vmatprep.subr.bf16.mxu0 0
    %1235 = vmatpush1.bf16.msra.mxu0 0
    %1236 = vmatprep.subr.bf16.mxu0 0
    %1237 = vmatpush1.bf16.msra.mxu0 %v1217
    %1238 = vmatprep.subr.bf16.mxu0 0
    %1239 = vmatpush1.bf16.msra.mxu0 %v1216
    %1240 = vmatprep.subr.bf16.mxu0 0
    %1241 = vmatpush1.bf16.msra.mxu0 %v1215
    %1242 = vmatprep.subr.bf16.mxu0 0
    %1243 = vmatpush1.bf16.msra.mxu0 %v1214
    %1244 = vmatprep.subr.bf16.mxu0 0
    %1245 = vmatpush2.bf16.msra.mxu0 0
    %1246 = vmatprep.subr.bf16.mxu0 0
    %1247 = vmatpush2.bf16.msra.mxu0 0
    %1248 = vmatprep.subr.bf16.mxu0 0
    %1249 = vmatpush2.bf16.msra.mxu0 0
    %1250 = vmatprep.subr.bf16.mxu0 0
    %1251 = vmatpush2.bf16.msra.mxu0 0
    %1252 = vmatprep.subr.bf16.mxu0 0
    %1253 = vmatpush2.bf16.msra.mxu0 0
    %1254 = vmatprep.subr.bf16.mxu0 0
    %1255 = vmatpush2.bf16.msra.mxu0 0
    %1256 = vmatprep.subr.bf16.mxu0 0
    %1257 = vmatpush2.bf16.msra.mxu0 0
    %1258 = vmatprep.subr.bf16.mxu0 0
    %1259 = vmatpush2.bf16.msra.mxu0 0
    %1260 = vmatprep.mubr.bf16.mxu0 0
    %1261 = vmatmul.mubr.bf16.gmra.mxu0 %v1223
    %v1262 = vpop.f32.mrf.mxu0
    %v1263 = vadd.f32 %v1184, %v1262
    %v1264 = vpop.f32.mrf.mxu0
    %v1265 = vpop.f32.mrf.mxu0
    %v1266 = vadd.f32 %v1187, %v1265
    %v1267 = vpop.f32.mrf.mxu0
    %1268 = vmatprep.mubr.bf16.mxu0 0
    %1269 = vmatmul.mubr.bf16.gmra.mxu0 %v1226
    %v1270 = vpop.f32.mrf.mxu0
    %v1271 = vadd.f32 %v1192, %v1270
    %v1272 = vpop.f32.mrf.mxu0
    %v1273 = vpop.f32.mrf.mxu0
    %v1274 = vadd.f32 %v1195, %v1273
    %v1275 = vpop.f32.mrf.mxu0
    %1276 = vdwg.mxu0
    %v1277 = vpack.c.bf16 %v1087, %v1084
    %v1278 = vpack.c.bf16 %v1095, %v1092
    %s1279 = scalar_lea.vmem [#allocation5], 64
    %v1280 = vld [vmem:[%s1279] sm:$0xf]
    %v1281 = vld [vmem:[%s1279 + $0x4] sm:$0xf]
    %v1282 = vld [vmem:[%s1279 + $0x8] sm:$0xf]
    %v1283 = vld [vmem:[%s1279 + $0xc] sm:$0xf]
    %v1284 = vld [vmem:[%s1279 + $0x10] sm:$0xf]
    %v1285 = vld [vmem:[%s1279 + $0x14] sm:$0xf]
    %v1286 = vld [vmem:[%s1279 + $0x18] sm:$0xf]
    %v1287 = vld [vmem:[%s1279 + $0x1c] sm:$0xf]
    %v1296 = vunpack.c.l.b16 %v1280
    %v1297 = vunpack.c.l.b16 %v1281
    %v1298 = vunpack.c.l.b16 %v1282
    %v1299 = vunpack.c.l.b16 %v1283
    %v1300 = vunpack.c.l.b16 %v1284
    %v1301 = vunpack.c.l.b16 %v1285
    %v1302 = vunpack.c.l.b16 %v1286
    %v1303 = vunpack.c.l.b16 %v1287
    %v1304 = vpack.c.b16 %v1297, %v1296
    %v1305 = vpack.c.b16 %v1299, %v1298
    %v1306 = vpack.c.b16 %v1301, %v1300
    %v1307 = vpack.c.b16 %v1303, %v1302
    %v1313 = vsel %vm477, %v1277, 0
    %v1316 = vsel %vm477, %v1278, 0
    %1318 = vmatprep.subr.bf16.mxu0 0
    %1319 = vmatpush1.bf16.msra.mxu0 0
    %1320 = vmatprep.subr.bf16.mxu0 0
    %1321 = vmatpush1.bf16.msra.mxu0 0
    %1322 = vmatprep.subr.bf16.mxu0 0
    %1323 = vmatpush1.bf16.msra.mxu0 0
    %1324 = vmatprep.subr.bf16.mxu0 0
    %1325 = vmatpush1.bf16.msra.mxu0 0
    %1326 = vmatprep.subr.bf16.mxu0 0
    %1327 = vmatpush1.bf16.msra.mxu0 %v1307
    %1328 = vmatprep.subr.bf16.mxu0 0
    %1329 = vmatpush1.bf16.msra.mxu0 %v1306
    %1330 = vmatprep.subr.bf16.mxu0 0
    %1331 = vmatpush1.bf16.msra.mxu0 %v1305
    %1332 = vmatprep.subr.bf16.mxu0 0
    %1333 = vmatpush1.bf16.msra.mxu0 %v1304
    %1334 = vmatprep.subr.bf16.mxu0 0
    %1335 = vmatpush2.bf16.msra.mxu0 0
    %1336 = vmatprep.subr.bf16.mxu0 0
    %1337 = vmatpush2.bf16.msra.mxu0 0
    %1338 = vmatprep.subr.bf16.mxu0 0
    %1339 = vmatpush2.bf16.msra.mxu0 0
    %1340 = vmatprep.subr.bf16.mxu0 0
    %1341 = vmatpush2.bf16.msra.mxu0 0
    %1342 = vmatprep.subr.bf16.mxu0 0
    %1343 = vmatpush2.bf16.msra.mxu0 0
    %1344 = vmatprep.subr.bf16.mxu0 0
    %1345 = vmatpush2.bf16.msra.mxu0 0
    %1346 = vmatprep.subr.bf16.mxu0 0
    %1347 = vmatpush2.bf16.msra.mxu0 0
    %1348 = vmatprep.subr.bf16.mxu0 0
    %1349 = vmatpush2.bf16.msra.mxu0 0
    %1350 = vmatprep.mubr.bf16.mxu0 0
    %1351 = vmatmul.mubr.bf16.gmra.mxu0 %v1313
    %v1352 = vpop.f32.mrf.mxu0
    %v1353 = vadd.f32 0.0, %v1352
    %v1354 = vpop.f32.mrf.mxu0
    %v1355 = vpop.f32.mrf.mxu0
    %v1356 = vadd.f32 0.0, %v1355
    %v1357 = vpop.f32.mrf.mxu0
    %1358 = vmatprep.mubr.bf16.mxu0 0
    %1359 = vmatmul.mubr.bf16.gmra.mxu0 %v1316
    %v1360 = vpop.f32.mrf.mxu0
    %v1361 = vadd.f32 0.0, %v1360
    %v1362 = vpop.f32.mrf.mxu0
    %v1363 = vpop.f32.mrf.mxu0
    %v1364 = vadd.f32 0.0, %v1363
    %v1365 = vpop.f32.mrf.mxu0
    %1366 = vdwg.mxu0
    %v1367 = vadd.f32 %v1263, %v1353
    %v1368 = vadd.f32 %v1266, %v1356
    %v1369 = vadd.f32 %v1271, %v1361
    %v1370 = vadd.f32 %v1274, %v1364
    %v1371 = vsel %vm477, %v1367, 0.0
    %v1372 = vsel %vm477, %v1368, 0.0
    %v1373 = vadd.f32 %v1371, %v1372
    %v1374 = vsel %vm477, %v1369, 0.0
    %v1375 = vadd.f32 %v1373, %v1374
    %v1376 = vsel %vm477, %v1370, 0.0
    %v1377 = vadd.f32 %v1375, %v1376
    %v1378 = vrot.slane %v1377, 4
    %v1379 = vadd.f32 %v1377, %v1378
    %v1380 = vrot.slane %v1379, 2
    %v1381 = vadd.f32 %v1379, %v1380
    %v1382 = vrot.slane %v1381, 1
    %v1383 = vadd.f32 %v1381, %v1382
    %v1384 = vmul.f32 %v1383, 0.03125
    %v1385 = vmul.f32 %v1367, %v1367
    %v1386 = vmul.f32 %v1368, %v1368
    %v1387 = vmul.f32 %v1369, %v1369
    %v1388 = vmul.f32 %v1370, %v1370
    %v1389 = vsel %vm477, %v1385, 0.0
    %v1390 = vsel %vm477, %v1386, 0.0
    %v1391 = vadd.f32 %v1389, %v1390
    %v1392 = vsel %vm477, %v1387, 0.0
    %v1393 = vadd.f32 %v1391, %v1392
    %v1394 = vsel %vm477, %v1388, 0.0
    %v1395 = vadd.f32 %v1393, %v1394
    %v1396 = vrot.slane %v1395, 4
    %v1397 = vadd.f32 %v1395, %v1396
    %v1398 = vrot.slane %v1397, 2
    %v1399 = vadd.f32 %v1397, %v1398
    %v1400 = vrot.slane %v1399, 1
    %v1401 = vadd.f32 %v1399, %v1400
    %v1402 = vmul.f32 %v1401, 0.03125
    %v1403 = vmul.f32 %v1384, %v1384
    %v1404 = vsub.f32 %v1402, %v1403
    %v1405 = vmax.f32 %v1404, 0.0
    %v1406 = vld [vmem:[%s11] sm:$0x1]
    %v1407 = vadd.f32 %v1405, 1e-05
    %v1408 = vrsqrt.pop %v1407
    %v1409 = vmul.f32 %v1406, %v1408
    %v1410 = vld [vmem:[%s13] sm:$0x1]
    %v1411 = vmul.f32 %v1384, %v1409
    %v1412 = vsub.f32 %v1410, %v1411
    %v1414 = vlaneseq
    %v1415 = vshrl.u32 %v1414, 7
    %v1416 = vsub.s32 0, %v1415
    %v1417 = vrot.slane %v1409, %v1416
    %v1419 = vmul.f32 %v1367, %v1417
    %v1420 = vmul.f32 %v1368, %v1417
    %v1421 = vmul.f32 %v1369, %v1417
    %v1422 = vmul.f32 %v1370, %v1417
    %v1424 = vlaneseq
    %v1425 = vshrl.u32 %v1424, 7
    %v1426 = vsub.s32 0, %v1425
    %v1427 = vrot.slane %v1412, %v1426
    %v1429 = vadd.f32 %v1419, %v1427
    %v1430 = vadd.f32 %v1420, %v1427
    %v1431 = vadd.f32 %v1421, %v1427
    %v1432 = vadd.f32 %v1422, %v1427
    %v1433 = vmax.f32 %v1429, 0.0
    %v1434 = vmax.f32 %v1430, 0.0
    %v1435 = vmax.f32 %v1431, 0.0
    %v1436 = vmax.f32 %v1432, 0.0
    %v1437 = vpack.c.bf16 %v1434, %v1433
    %v1438 = vpack.c.bf16 %v1436, %v1435
    %1439 = vmatprep.subr.bf16.mxu0 0
    %1440 = vmatpush1.bf16.msra.mxu0 0
    %1441 = vmatprep.subr.bf16.mxu0 0
    %1442 = vmatpush1.bf16.msra.mxu0 0
    %1443 = vmatprep.subr.bf16.mxu0 0
    %1444 = vmatpush1.bf16.msra.mxu0 0
    %1445 = vmatprep.subr.bf16.mxu0 0
    %1446 = vmatpush1.bf16.msra.mxu0 0
    %1447 = vmatprep.subr.bf16.mxu0 0
    %1448 = vmatpush1.bf16.msra.mxu0 0
    %1449 = vmatprep.subr.bf16.mxu0 0
    %1450 = vmatpush1.bf16.msra.mxu0 0
    %1451 = vmatprep.subr.bf16.mxu0 0
    %1452 = vmatpush1.bf16.msra.mxu0 %v1438
    %1453 = vmatprep.subr.bf16.mxu0 0
    %1454 = vmatpush1.bf16.msra.mxu0 %v1437
    %1455 = vmatprep.subr.bf16.mxu0 0
    %1456 = vmatpush2.bf16.msra.mxu0 0
    %1457 = vmatprep.subr.bf16.mxu0 0
    %1458 = vmatpush2.bf16.msra.mxu0 0
    %1459 = vmatprep.subr.bf16.mxu0 0
    %1460 = vmatpush2.bf16.msra.mxu0 0
    %1461 = vmatprep.subr.bf16.mxu0 0
    %1462 = vmatpush2.bf16.msra.mxu0 0
    %1463 = vmatprep.subr.bf16.mxu0 0
    %1464 = vmatpush2.bf16.msra.mxu0 0
    %1465 = vmatprep.subr.bf16.mxu0 0
    %1466 = vmatpush2.bf16.msra.mxu0 0
    %1467 = vmatprep.subr.bf16.mxu0 0
    %1468 = vmatpush2.bf16.msra.mxu0 0
    %1469 = vmatprep.subr.bf16.mxu0 0
    %1470 = vmatpush2.bf16.msra.mxu0 0
    %1471 = vmatprep.mubr.bf16.mxu0 0
    %1472 = vmatmul.mubr.bf16.gmra.mxu0 %v902
    %v1473 = vpop.f32.mrf.mxu0
    %v1474 = vadd.f32 0.0, %v1473
    %v1475 = vpop.f32.mrf.mxu0
    %v1476 = vpop.f32.mrf.mxu0
    %v1477 = vadd.f32 0.0, %v1476
    %v1478 = vpop.f32.mrf.mxu0
    %1479 = vmatprep.mubr.bf16.mxu0 0
    %1480 = vmatmul.mubr.bf16.gmra.mxu0 %v905
    %v1481 = vpop.f32.mrf.mxu0
    %v1482 = vadd.f32 0.0, %v1481
    %v1483 = vpop.f32.mrf.mxu0
    %v1484 = vpop.f32.mrf.mxu0
    %v1485 = vadd.f32 0.0, %v1484
    %v1486 = vpop.f32.mrf.mxu0
    %1487 = vdwg.mxu0
    %1488 = vmatprep.subr.bf16.mxu0 0
    %1489 = vmatpush1.bf16.msra.mxu0 0
    %1490 = vmatprep.subr.bf16.mxu0 0
    %1491 = vmatpush1.bf16.msra.mxu0 0
    %1492 = vmatprep.subr.bf16.mxu0 0
    %1493 = vmatpush1.bf16.msra.mxu0 0
    %1494 = vmatprep.subr.bf16.mxu0 0
    %1495 = vmatpush1.bf16.msra.mxu0 0
    %1496 = vmatprep.subr.bf16.mxu0 0
    %1497 = vmatpush1.bf16.msra.mxu0 0
    %1498 = vmatprep.subr.bf16.mxu0 0
    %1499 = vmatpush1.bf16.msra.mxu0 0
    %1500 = vmatprep.subr.bf16.mxu0 0
    %1501 = vmatpush1.bf16.msra.mxu0 %v1438
    %1502 = vmatprep.subr.bf16.mxu0 0
    %1503 = vmatpush1.bf16.msra.mxu0 %v1437
    %1504 = vmatprep.subr.bf16.mxu0 0
    %1505 = vmatpush2.bf16.msra.mxu0 0
    %1506 = vmatprep.subr.bf16.mxu0 0
    %1507 = vmatpush2.bf16.msra.mxu0 0
    %1508 = vmatprep.subr.bf16.mxu0 0
    %1509 = vmatpush2.bf16.msra.mxu0 0
    %1510 = vmatprep.subr.bf16.mxu0 0
    %1511 = vmatpush2.bf16.msra.mxu0 0
    %1512 = vmatprep.subr.bf16.mxu0 0
    %1513 = vmatpush2.bf16.msra.mxu0 0
    %1514 = vmatprep.subr.bf16.mxu0 0
    %1515 = vmatpush2.bf16.msra.mxu0 0
    %1516 = vmatprep.subr.bf16.mxu0 0
    %1517 = vmatpush2.bf16.msra.mxu0 0
    %1518 = vmatprep.subr.bf16.mxu0 0
    %1519 = vmatpush2.bf16.msra.mxu0 0
    %1520 = vmatprep.mubr.bf16.mxu0 0
    %1521 = vmatmul.mubr.bf16.gmra.mxu0 %v971
    %v1522 = vpop.f32.mrf.mxu0
    %v1523 = vadd.f32 0.0, %v1522
    %v1524 = vpop.f32.mrf.mxu0
    %v1525 = vpop.f32.mrf.mxu0
    %v1526 = vadd.f32 0.0, %v1525
    %v1527 = vpop.f32.mrf.mxu0
    %1528 = vmatprep.mubr.bf16.mxu0 0
    %1529 = vmatmul.mubr.bf16.gmra.mxu0 %v974
    %v1530 = vpop.f32.mrf.mxu0
    %v1531 = vadd.f32 0.0, %v1530
    %v1532 = vpop.f32.mrf.mxu0
    %v1533 = vpop.f32.mrf.mxu0
    %v1534 = vadd.f32 0.0, %v1533
    %v1535 = vpop.f32.mrf.mxu0
    %1536 = vdwg.mxu0
    %1537 = vmatprep.subr.bf16.mxu0 0
    %1538 = vmatpush1.bf16.msra.mxu0 0
    %1539 = vmatprep.subr.bf16.mxu0 0
    %1540 = vmatpush1.bf16.msra.mxu0 0
    %1541 = vmatprep.subr.bf16.mxu0 0
    %1542 = vmatpush1.bf16.msra.mxu0 0
    %1543 = vmatprep.subr.bf16.mxu0 0
    %1544 = vmatpush1.bf16.msra.mxu0 0
    %1545 = vmatprep.subr.bf16.mxu0 0
    %1546 = vmatpush1.bf16.msra.mxu0 0
    %1547 = vmatprep.subr.bf16.mxu0 0
    %1548 = vmatpush1.bf16.msra.mxu0 0
    %1549 = vmatprep.subr.bf16.mxu0 0
    %1550 = vmatpush1.bf16.msra.mxu0 %v1438
    %1551 = vmatprep.subr.bf16.mxu0 0
    %1552 = vmatpush1.bf16.msra.mxu0 %v1437
    %1553 = vmatprep.subr.bf16.mxu0 0
    %1554 = vmatpush2.bf16.msra.mxu0 0
    %1555 = vmatprep.subr.bf16.mxu0 0
    %1556 = vmatpush2.bf16.msra.mxu0 0
    %1557 = vmatprep.subr.bf16.mxu0 0
    %1558 = vmatpush2.bf16.msra.mxu0 0
    %1559 = vmatprep.subr.bf16.mxu0 0
    %1560 = vmatpush2.bf16.msra.mxu0 0
    %1561 = vmatprep.subr.bf16.mxu0 0
    %1562 = vmatpush2.bf16.msra.mxu0 0
    %1563 = vmatprep.subr.bf16.mxu0 0
    %1564 = vmatpush2.bf16.msra.mxu0 0
    %1565 = vmatprep.subr.bf16.mxu0 0
    %1566 = vmatpush2.bf16.msra.mxu0 0
    %1567 = vmatprep.subr.bf16.mxu0 0
    %1568 = vmatpush2.bf16.msra.mxu0 0
    %1569 = vmatprep.mubr.bf16.mxu0 0
    %1570 = vmatmul.mubr.bf16.gmra.mxu0 %v1044
    %v1571 = vpop.f32.mrf.mxu0
    %v1572 = vadd.f32 0.0, %v1571
    %v1573 = vpop.f32.mrf.mxu0
    %v1574 = vpop.f32.mrf.mxu0
    %v1575 = vadd.f32 0.0, %v1574
    %v1576 = vpop.f32.mrf.mxu0
    %1577 = vmatprep.mubr.bf16.mxu0 0
    %1578 = vmatmul.mubr.bf16.gmra.mxu0 %v1047
    %v1579 = vpop.f32.mrf.mxu0
    %v1580 = vadd.f32 0.0, %v1579
    %v1581 = vpop.f32.mrf.mxu0
    %v1582 = vpop.f32.mrf.mxu0
    %v1583 = vadd.f32 0.0, %v1582
    %v1584 = vpop.f32.mrf.mxu0
    %1585 = vdwg.mxu0
    %v1586 = vpack.c.bf16 %v1477, %v1474
    %v1587 = vpack.c.bf16 %v1485, %v1482
    %v1588 = vld [vmem:[#allocation7] sm:$0xf]
    %v1589 = vld [vmem:[#allocation7 + $0x4] sm:$0xf]
    %v1590 = vld [vmem:[#allocation7 + $0x8] sm:$0xf]
    %v1591 = vld [vmem:[#allocation7 + $0xc] sm:$0xf]
    %v1592 = vld [vmem:[#allocation7 + $0x10] sm:$0xf]
    %v1593 = vld [vmem:[#allocation7 + $0x14] sm:$0xf]
    %v1594 = vld [vmem:[#allocation7 + $0x18] sm:$0xf]
    %v1595 = vld [vmem:[#allocation7 + $0x1c] sm:$0xf]
    %v1596 = vpack.c.bf16 %v1526, %v1523
    %v1597 = vpack.c.bf16 %v1534, %v1531
    %s1598 = scalar_lea.vmem [#allocation7], 32
    %v1599 = vld [vmem:[%s1598] sm:$0xf]
    %v1600 = vld [vmem:[%s1598 + $0x4] sm:$0xf]
    %v1601 = vld [vmem:[%s1598 + $0x8] sm:$0xf]
    %v1602 = vld [vmem:[%s1598 + $0xc] sm:$0xf]
    %v1603 = vld [vmem:[%s1598 + $0x10] sm:$0xf]
    %v1604 = vld [vmem:[%s1598 + $0x14] sm:$0xf]
    %v1605 = vld [vmem:[%s1598 + $0x18] sm:$0xf]
    %v1606 = vld [vmem:[%s1598 + $0x1c] sm:$0xf]
    %v1615 = vunpack.c.l.b16 %v1599
    %v1616 = vunpack.c.l.b16 %v1600
    %v1617 = vunpack.c.l.b16 %v1601
    %v1618 = vunpack.c.l.b16 %v1602
    %v1619 = vunpack.c.l.b16 %v1603
    %v1620 = vunpack.c.l.b16 %v1604
    %v1621 = vunpack.c.l.b16 %v1605
    %v1622 = vunpack.c.l.b16 %v1606
    %v1623 = vpack.c.b16 %v1616, %v1615
    %v1624 = vpack.c.b16 %v1618, %v1617
    %v1625 = vpack.c.b16 %v1620, %v1619
    %v1626 = vpack.c.b16 %v1622, %v1621
    %v1632 = vsel %vm477, %v1596, 0
    %v1635 = vsel %vm477, %v1597, 0
    %1637 = vmatprep.subr.bf16.mxu0 0
    %1638 = vmatpush1.bf16.msra.mxu0 0
    %1639 = vmatprep.subr.bf16.mxu0 0
    %1640 = vmatpush1.bf16.msra.mxu0 0
    %1641 = vmatprep.subr.bf16.mxu0 0
    %1642 = vmatpush1.bf16.msra.mxu0 0
    %1643 = vmatprep.subr.bf16.mxu0 0
    %1644 = vmatpush1.bf16.msra.mxu0 0
    %1645 = vmatprep.subr.bf16.mxu0 0
    %1646 = vmatpush1.bf16.msra.mxu0 %v1626
    %1647 = vmatprep.subr.bf16.mxu0 0
    %1648 = vmatpush1.bf16.msra.mxu0 %v1625
    %1649 = vmatprep.subr.bf16.mxu0 0
    %1650 = vmatpush1.bf16.msra.mxu0 %v1624
    %1651 = vmatprep.subr.bf16.mxu0 0
    %1652 = vmatpush1.bf16.msra.mxu0 %v1623
    %1653 = vmatprep.subr.bf16.mxu0 0
    %1654 = vmatpush2.bf16.msra.mxu0 0
    %1655 = vmatprep.subr.bf16.mxu0 0
    %1656 = vmatpush2.bf16.msra.mxu0 0
    %1657 = vmatprep.subr.bf16.mxu0 0
    %1658 = vmatpush2.bf16.msra.mxu0 0
    %1659 = vmatprep.subr.bf16.mxu0 0
    %1660 = vmatpush2.bf16.msra.mxu0 0
    %1661 = vmatprep.subr.bf16.mxu0 0
    %1662 = vmatpush2.bf16.msra.mxu0 0
    %1663 = vmatprep.subr.bf16.mxu0 0
    %1664 = vmatpush2.bf16.msra.mxu0 0
    %1665 = vmatprep.subr.bf16.mxu0 0
    %1666 = vmatpush2.bf16.msra.mxu0 0
    %1667 = vmatprep.subr.bf16.mxu0 0
    %1668 = vmatpush2.bf16.msra.mxu0 0
    %1669 = vmatprep.mubr.bf16.mxu0 0
    %1670 = vmatmul.mubr.bf16.gmra.mxu0 %v1632
    %v1671 = vpop.f32.mrf.mxu0
    %v1672 = vadd.f32 0.0, %v1671
    %v1673 = vpop.f32.mrf.mxu0
    %v1674 = vpop.f32.mrf.mxu0
    %v1675 = vadd.f32 0.0, %v1674
    %v1676 = vpop.f32.mrf.mxu0
    %1677 = vmatprep.mubr.bf16.mxu0 0
    %1678 = vmatmul.mubr.bf16.gmra.mxu0 %v1635
    %v1679 = vpop.f32.mrf.mxu0
    %v1680 = vadd.f32 0.0, %v1679
    %v1681 = vpop.f32.mrf.mxu0
    %v1682 = vpop.f32.mrf.mxu0
    %v1683 = vadd.f32 0.0, %v1682
    %v1684 = vpop.f32.mrf.mxu0
    %1685 = vdwg.mxu0
    %v1694 = vunpack.c.l.b16 %v1588
    %v1695 = vunpack.c.l.b16 %v1589
    %v1696 = vunpack.c.l.b16 %v1590
    %v1697 = vunpack.c.l.b16 %v1591
    %v1698 = vunpack.c.l.b16 %v1592
    %v1699 = vunpack.c.l.b16 %v1593
    %v1700 = vunpack.c.l.b16 %v1594
    %v1701 = vunpack.c.l.b16 %v1595
    %v1702 = vpack.c.b16 %v1695, %v1694
    %v1703 = vpack.c.b16 %v1697, %v1696
    %v1704 = vpack.c.b16 %v1699, %v1698
    %v1705 = vpack.c.b16 %v1701, %v1700
    %v1711 = vsel %vm477, %v1586, 0
    %v1714 = vsel %vm477, %v1587, 0
    %1716 = vmatprep.subr.bf16.mxu0 0
    %1717 = vmatpush1.bf16.msra.mxu0 0
    %1718 = vmatprep.subr.bf16.mxu0 0
    %1719 = vmatpush1.bf16.msra.mxu0 0
    %1720 = vmatprep.subr.bf16.mxu0 0
    %1721 = vmatpush1.bf16.msra.mxu0 0
    %1722 = vmatprep.subr.bf16.mxu0 0
    %1723 = vmatpush1.bf16.msra.mxu0 0
    %1724 = vmatprep.subr.bf16.mxu0 0
    %1725 = vmatpush1.bf16.msra.mxu0 %v1705
    %1726 = vmatprep.subr.bf16.mxu0 0
    %1727 = vmatpush1.bf16.msra.mxu0 %v1704
    %1728 = vmatprep.subr.bf16.mxu0 0
    %1729 = vmatpush1.bf16.msra.mxu0 %v1703
    %1730 = vmatprep.subr.bf16.mxu0 0
    %1731 = vmatpush1.bf16.msra.mxu0 %v1702
    %1732 = vmatprep.subr.bf16.mxu0 0
    %1733 = vmatpush2.bf16.msra.mxu0 0
    %1734 = vmatprep.subr.bf16.mxu0 0
    %1735 = vmatpush2.bf16.msra.mxu0 0
    %1736 = vmatprep.subr.bf16.mxu0 0
    %1737 = vmatpush2.bf16.msra.mxu0 0
    %1738 = vmatprep.subr.bf16.mxu0 0
    %1739 = vmatpush2.bf16.msra.mxu0 0
    %1740 = vmatprep.subr.bf16.mxu0 0
    %1741 = vmatpush2.bf16.msra.mxu0 0
    %1742 = vmatprep.subr.bf16.mxu0 0
    %1743 = vmatpush2.bf16.msra.mxu0 0
    %1744 = vmatprep.subr.bf16.mxu0 0
    %1745 = vmatpush2.bf16.msra.mxu0 0
    %1746 = vmatprep.subr.bf16.mxu0 0
    %1747 = vmatpush2.bf16.msra.mxu0 0
    %1748 = vmatprep.mubr.bf16.mxu0 0
    %1749 = vmatmul.mubr.bf16.gmra.mxu0 %v1711
    %v1750 = vpop.f32.mrf.mxu0
    %v1751 = vadd.f32 %v1672, %v1750
    %v1752 = vpop.f32.mrf.mxu0
    %v1753 = vpop.f32.mrf.mxu0
    %v1754 = vadd.f32 %v1675, %v1753
    %v1755 = vpop.f32.mrf.mxu0
    %1756 = vmatprep.mubr.bf16.mxu0 0
    %1757 = vmatmul.mubr.bf16.gmra.mxu0 %v1714
    %v1758 = vpop.f32.mrf.mxu0
    %v1759 = vadd.f32 %v1680, %v1758
    %v1760 = vpop.f32.mrf.mxu0
    %v1761 = vpop.f32.mrf.mxu0
    %v1762 = vadd.f32 %v1683, %v1761
    %v1763 = vpop.f32.mrf.mxu0
    %1764 = vdwg.mxu0
    %v1765 = vpack.c.bf16 %v1575, %v1572
    %v1766 = vpack.c.bf16 %v1583, %v1580
    %s1767 = scalar_lea.vmem [#allocation7], 64
    %v1768 = vld [vmem:[%s1767] sm:$0xf]
    %v1769 = vld [vmem:[%s1767 + $0x4] sm:$0xf]
    %v1770 = vld [vmem:[%s1767 + $0x8] sm:$0xf]
    %v1771 = vld [vmem:[%s1767 + $0xc] sm:$0xf]
    %v1772 = vld [vmem:[%s1767 + $0x10] sm:$0xf]
    %v1773 = vld [vmem:[%s1767 + $0x14] sm:$0xf]
    %v1774 = vld [vmem:[%s1767 + $0x18] sm:$0xf]
    %v1775 = vld [vmem:[%s1767 + $0x1c] sm:$0xf]
    %v1784 = vunpack.c.l.b16 %v1768
    %v1785 = vunpack.c.l.b16 %v1769
    %v1786 = vunpack.c.l.b16 %v1770
    %v1787 = vunpack.c.l.b16 %v1771
    %v1788 = vunpack.c.l.b16 %v1772
    %v1789 = vunpack.c.l.b16 %v1773
    %v1790 = vunpack.c.l.b16 %v1774
    %v1791 = vunpack.c.l.b16 %v1775
    %v1792 = vpack.c.b16 %v1785, %v1784
    %v1793 = vpack.c.b16 %v1787, %v1786
    %v1794 = vpack.c.b16 %v1789, %v1788
    %v1795 = vpack.c.b16 %v1791, %v1790
    %v1801 = vsel %vm477, %v1765, 0
    %v1804 = vsel %vm477, %v1766, 0
    %1806 = vmatprep.subr.bf16.mxu0 0
    %1807 = vmatpush1.bf16.msra.mxu0 0
    %1808 = vmatprep.subr.bf16.mxu0 0
    %1809 = vmatpush1.bf16.msra.mxu0 0
    %1810 = vmatprep.subr.bf16.mxu0 0
    %1811 = vmatpush1.bf16.msra.mxu0 0
    %1812 = vmatprep.subr.bf16.mxu0 0
    %1813 = vmatpush1.bf16.msra.mxu0 0
    %1814 = vmatprep.subr.bf16.mxu0 0
    %1815 = vmatpush1.bf16.msra.mxu0 %v1795
    %1816 = vmatprep.subr.bf16.mxu0 0
    %1817 = vmatpush1.bf16.msra.mxu0 %v1794
    %1818 = vmatprep.subr.bf16.mxu0 0
    %1819 = vmatpush1.bf16.msra.mxu0 %v1793
    %1820 = vmatprep.subr.bf16.mxu0 0
    %1821 = vmatpush1.bf16.msra.mxu0 %v1792
    %1822 = vmatprep.subr.bf16.mxu0 0
    %1823 = vmatpush2.bf16.msra.mxu0 0
    %1824 = vmatprep.subr.bf16.mxu0 0
    %1825 = vmatpush2.bf16.msra.mxu0 0
    %1826 = vmatprep.subr.bf16.mxu0 0
    %1827 = vmatpush2.bf16.msra.mxu0 0
    %1828 = vmatprep.subr.bf16.mxu0 0
    %1829 = vmatpush2.bf16.msra.mxu0 0
    %1830 = vmatprep.subr.bf16.mxu0 0
    %1831 = vmatpush2.bf16.msra.mxu0 0
    %1832 = vmatprep.subr.bf16.mxu0 0
    %1833 = vmatpush2.bf16.msra.mxu0 0
    %1834 = vmatprep.subr.bf16.mxu0 0
    %1835 = vmatpush2.bf16.msra.mxu0 0
    %1836 = vmatprep.subr.bf16.mxu0 0
    %1837 = vmatpush2.bf16.msra.mxu0 0
    %1838 = vmatprep.mubr.bf16.mxu0 0
    %1839 = vmatmul.mubr.bf16.gmra.mxu0 %v1801
    %v1840 = vpop.f32.mrf.mxu0
    %v1841 = vadd.f32 0.0, %v1840
    %v1842 = vpop.f32.mrf.mxu0
    %v1843 = vpop.f32.mrf.mxu0
    %v1844 = vadd.f32 0.0, %v1843
    %v1845 = vpop.f32.mrf.mxu0
    %1846 = vmatprep.mubr.bf16.mxu0 0
    %1847 = vmatmul.mubr.bf16.gmra.mxu0 %v1804
    %v1848 = vpop.f32.mrf.mxu0
    %v1849 = vadd.f32 0.0, %v1848
    %v1850 = vpop.f32.mrf.mxu0
    %v1851 = vpop.f32.mrf.mxu0
    %v1852 = vadd.f32 0.0, %v1851
    %v1853 = vpop.f32.mrf.mxu0
    %1854 = vdwg.mxu0
    %v1855 = vadd.f32 %v1751, %v1841
    %v1856 = vadd.f32 %v1754, %v1844
    %v1857 = vadd.f32 %v1759, %v1849
    %v1858 = vadd.f32 %v1762, %v1852
    %v1859 = vsel %vm477, %v1855, 0.0
    %v1860 = vsel %vm477, %v1856, 0.0
    %v1861 = vadd.f32 %v1859, %v1860
    %v1862 = vsel %vm477, %v1857, 0.0
    %v1863 = vadd.f32 %v1861, %v1862
    %v1864 = vsel %vm477, %v1858, 0.0
    %v1865 = vadd.f32 %v1863, %v1864
    %v1866 = vrot.slane %v1865, 4
    %v1867 = vadd.f32 %v1865, %v1866
    %v1868 = vrot.slane %v1867, 2
    %v1869 = vadd.f32 %v1867, %v1868
    %v1870 = vrot.slane %v1869, 1
    %v1871 = vadd.f32 %v1869, %v1870
    %v1872 = vmul.f32 %v1871, 0.03125
    %v1873 = vmul.f32 %v1855, %v1855
    %v1874 = vmul.f32 %v1856, %v1856
    %v1875 = vmul.f32 %v1857, %v1857
    %v1876 = vmul.f32 %v1858, %v1858
    %v1877 = vsel %vm477, %v1873, 0.0
    %v1878 = vsel %vm477, %v1874, 0.0
    %v1879 = vadd.f32 %v1877, %v1878
    %v1880 = vsel %vm477, %v1875, 0.0
    %v1881 = vadd.f32 %v1879, %v1880
    %v1882 = vsel %vm477, %v1876, 0.0
    %v1883 = vadd.f32 %v1881, %v1882
    %v1884 = vrot.slane %v1883, 4
    %v1885 = vadd.f32 %v1883, %v1884
    %v1886 = vrot.slane %v1885, 2
    %v1887 = vadd.f32 %v1885, %v1886
    %v1888 = vrot.slane %v1887, 1
    %v1889 = vadd.f32 %v1887, %v1888
    %v1890 = vmul.f32 %v1889, 0.03125
    %v1891 = vmul.f32 %v1872, %v1872
    %v1892 = vsub.f32 %v1890, %v1891
    %v1893 = vmax.f32 %v1892, 0.0
    %v1894 = vld [vmem:[%s17] sm:$0x1]
    %v1895 = vadd.f32 %v1893, 1e-05
    %v1896 = vrsqrt.pop %v1895
    %v1897 = vmul.f32 %v1894, %v1896
    %v1898 = vld [vmem:[%s19] sm:$0x1]
    %v1899 = vmul.f32 %v1872, %v1897
    %v1900 = vsub.f32 %v1898, %v1899
    %v1902 = vlaneseq
    %v1903 = vshrl.u32 %v1902, 7
    %v1904 = vsub.s32 0, %v1903
    %v1905 = vrot.slane %v1897, %v1904
    %v1907 = vmul.f32 %v1855, %v1905
    %v1908 = vmul.f32 %v1856, %v1905
    %v1909 = vmul.f32 %v1857, %v1905
    %v1910 = vmul.f32 %v1858, %v1905
    %v1912 = vlaneseq
    %v1913 = vshrl.u32 %v1912, 7
    %v1914 = vsub.s32 0, %v1913
    %v1915 = vrot.slane %v1900, %v1914
    %v1917 = vadd.f32 %v1907, %v1915
    %v1918 = vadd.f32 %v1908, %v1915
    %v1919 = vadd.f32 %v1909, %v1915
    %v1920 = vadd.f32 %v1910, %v1915
    %v1921 = vadd.f32 %v1917, %v858
    %v1922 = vadd.f32 %v1918, %v859
    %v1923 = vadd.f32 %v1919, %v860
    %v1924 = vadd.f32 %v1920, %v861
    %v1925 = vmax.f32 %v1921, 0.0
    %v1926 = vmax.f32 %v1922, 0.0
    %v1927 = vmax.f32 %v1923, 0.0
    %v1928 = vmax.f32 %v1924, 0.0
    %v1929 = vpack.c.bf16 %v1926, %v1925
    %v1930 = vpack.c.bf16 %v1928, %v1927
    %vm1931 = vcmp.lt.s32.totalorder %v581, 8
    %vm1932 = vcmp.lt.s32.totalorder %v582, 8
    %vm1933 = vmand %vm587, %vm1931
    %vm1934 = vmand %vm588, %vm1932
    %vm1935 = vmand %vm1933, %vm599
    %vm1936 = vmand %vm1934, %vm599
    %vm1937 = vmand %vm1935, %vm864
    %vm1938 = vmand %vm1936, %vm864
    %vm1939 = vcmp.ge.s32.totalorder %v581, 8
    %vm1940 = vcmp.ge.s32.totalorder %v582, 8
    %vm1941 = vmand %vm1939, %vm591
    %vm1942 = vmand %vm1940, %vm592
    %vm1943 = vmand %vm1941, %vm869
    %vm1944 = vmand %vm1942, %vm869
    %vm1945 = vmand %vm1943, %vm604
    %vm1946 = vmand %vm1944, %vm604
    %vm1947 = vmor %vm1937, %vm1945
    %vm1948 = vmor %vm1938, %vm1946
    %vm1949 = vmand %vm1947, %vm643
    %vm1950 = vmand %vm1948, %vm644
    %v1951 = vsel %vm1949, 1.0, 0.0
    %v1952 = vsel %vm1950, 1.0, 0.0
    %v1953 = vpack.c.bf16 %v1952, %v1951
    %v1955 = vsel %vm900, %v1953, 0
    %1957 = vmatprep.subr.bf16.mxu0 0
    %1958 = vmatpush1.bf16.msra.mxu0 0
    %1959 = vmatprep.subr.bf16.mxu0 0
    %1960 = vmatpush1.bf16.msra.mxu0 0
    %1961 = vmatprep.subr.bf16.mxu0 0
    %1962 = vmatpush1.bf16.msra.mxu0 0
    %1963 = vmatprep.subr.bf16.mxu0 0
    %1964 = vmatpush1.bf16.msra.mxu0 0
    %1965 = vmatprep.subr.bf16.mxu0 0
    %1966 = vmatpush1.bf16.msra.mxu0 0
    %1967 = vmatprep.subr.bf16.mxu0 0
    %1968 = vmatpush1.bf16.msra.mxu0 0
    %1969 = vmatprep.subr.bf16.mxu0 0
    %1970 = vmatpush1.bf16.msra.mxu0 %v1930
    %1971 = vmatprep.subr.bf16.mxu0 0
    %1972 = vmatpush1.bf16.msra.mxu0 %v1929
    %1973 = vmatprep.subr.bf16.mxu0 0
    %1974 = vmatpush2.bf16.msra.mxu0 0
    %1975 = vmatprep.subr.bf16.mxu0 0
    %1976 = vmatpush2.bf16.msra.mxu0 0
    %1977 = vmatprep.subr.bf16.mxu0 0
    %1978 = vmatpush2.bf16.msra.mxu0 0
    %1979 = vmatprep.subr.bf16.mxu0 0
    %1980 = vmatpush2.bf16.msra.mxu0 0
    %1981 = vmatprep.subr.bf16.mxu0 0
    %1982 = vmatpush2.bf16.msra.mxu0 0
    %1983 = vmatprep.subr.bf16.mxu0 0
    %1984 = vmatpush2.bf16.msra.mxu0 0
    %1985 = vmatprep.subr.bf16.mxu0 0
    %1986 = vmatpush2.bf16.msra.mxu0 0
    %1987 = vmatprep.subr.bf16.mxu0 0
    %1988 = vmatpush2.bf16.msra.mxu0 0
    %1989 = vmatprep.mubr.bf16.mxu0 0
    %1990 = vmatmul.mubr.bf16.gmra.mxu0 %v1955
    %v1991 = vpop.f32.mrf.mxu0
    %v1992 = vadd.f32 0.0, %v1991
    %v1993 = vpop.f32.mrf.mxu0
    %v1994 = vpop.f32.mrf.mxu0
    %v1995 = vadd.f32 0.0, %v1994
    %v1996 = vpop.f32.mrf.mxu0
    %1997 = vdwg.mxu0
    %vm1998 = vmand %vm1947, %vm712
    %vm1999 = vmand %vm1948, %vm713
    %v2000 = vsel %vm1998, 1.0, 0.0
    %v2001 = vsel %vm1999, 1.0, 0.0
    %v2002 = vpack.c.bf16 %v2001, %v2000
    %v2004 = vsel %vm900, %v2002, 0
    %2006 = vmatprep.subr.bf16.mxu0 0
    %2007 = vmatpush1.bf16.msra.mxu0 0
    %2008 = vmatprep.subr.bf16.mxu0 0
    %2009 = vmatpush1.bf16.msra.mxu0 0
    %2010 = vmatprep.subr.bf16.mxu0 0
    %2011 = vmatpush1.bf16.msra.mxu0 0
    %2012 = vmatprep.subr.bf16.mxu0 0
    %2013 = vmatpush1.bf16.msra.mxu0 0
    %2014 = vmatprep.subr.bf16.mxu0 0
    %2015 = vmatpush1.bf16.msra.mxu0 0
    %2016 = vmatprep.subr.bf16.mxu0 0
    %2017 = vmatpush1.bf16.msra.mxu0 0
    %2018 = vmatprep.subr.bf16.mxu0 0
    %2019 = vmatpush1.bf16.msra.mxu0 %v1930
    %2020 = vmatprep.subr.bf16.mxu0 0
    %2021 = vmatpush1.bf16.msra.mxu0 %v1929
    %2022 = vmatprep.subr.bf16.mxu0 0
    %2023 = vmatpush2.bf16.msra.mxu0 0
    %2024 = vmatprep.subr.bf16.mxu0 0
    %2025 = vmatpush2.bf16.msra.mxu0 0
    %2026 = vmatprep.subr.bf16.mxu0 0
    %2027 = vmatpush2.bf16.msra.mxu0 0
    %2028 = vmatprep.subr.bf16.mxu0 0
    %2029 = vmatpush2.bf16.msra.mxu0 0
    %2030 = vmatprep.subr.bf16.mxu0 0
    %2031 = vmatpush2.bf16.msra.mxu0 0
    %2032 = vmatprep.subr.bf16.mxu0 0
    %2033 = vmatpush2.bf16.msra.mxu0 0
    %2034 = vmatprep.subr.bf16.mxu0 0
    %2035 = vmatpush2.bf16.msra.mxu0 0
    %2036 = vmatprep.subr.bf16.mxu0 0
    %2037 = vmatpush2.bf16.msra.mxu0 0
    %2038 = vmatprep.mubr.bf16.mxu0 0
    %2039 = vmatmul.mubr.bf16.gmra.mxu0 %v2004
    %v2040 = vpop.f32.mrf.mxu0
    %v2041 = vadd.f32 0.0, %v2040
    %v2042 = vpop.f32.mrf.mxu0
    %v2043 = vpop.f32.mrf.mxu0
    %v2044 = vadd.f32 0.0, %v2043
    %v2045 = vpop.f32.mrf.mxu0
    %2046 = vdwg.mxu0
    %vm2047 = vmand %vm1947, %vm785
    %vm2048 = vmand %vm1948, %vm786
    %v2049 = vsel %vm2047, 1.0, 0.0
    %v2050 = vsel %vm2048, 1.0, 0.0
    %v2051 = vpack.c.bf16 %v2050, %v2049
    %v2053 = vsel %vm900, %v2051, 0
    %2055 = vmatprep.subr.bf16.mxu0 0
    %2056 = vmatpush1.bf16.msra.mxu0 0
    %2057 = vmatprep.subr.bf16.mxu0 0
    %2058 = vmatpush1.bf16.msra.mxu0 0
    %2059 = vmatprep.subr.bf16.mxu0 0
    %2060 = vmatpush1.bf16.msra.mxu0 0
    %2061 = vmatprep.subr.bf16.mxu0 0
    %2062 = vmatpush1.bf16.msra.mxu0 0
    %2063 = vmatprep.subr.bf16.mxu0 0
    %2064 = vmatpush1.bf16.msra.mxu0 0
    %2065 = vmatprep.subr.bf16.mxu0 0
    %2066 = vmatpush1.bf16.msra.mxu0 0
    %2067 = vmatprep.subr.bf16.mxu0 0
    %2068 = vmatpush1.bf16.msra.mxu0 %v1930
    %2069 = vmatprep.subr.bf16.mxu0 0
    %2070 = vmatpush1.bf16.msra.mxu0 %v1929
    %2071 = vmatprep.subr.bf16.mxu0 0
    %2072 = vmatpush2.bf16.msra.mxu0 0
    %2073 = vmatprep.subr.bf16.mxu0 0
    %2074 = vmatpush2.bf16.msra.mxu0 0
    %2075 = vmatprep.subr.bf16.mxu0 0
    %2076 = vmatpush2.bf16.msra.mxu0 0
    %2077 = vmatprep.subr.bf16.mxu0 0
    %2078 = vmatpush2.bf16.msra.mxu0 0
    %2079 = vmatprep.subr.bf16.mxu0 0
    %2080 = vmatpush2.bf16.msra.mxu0 0
    %2081 = vmatprep.subr.bf16.mxu0 0
    %2082 = vmatpush2.bf16.msra.mxu0 0
    %2083 = vmatprep.subr.bf16.mxu0 0
    %2084 = vmatpush2.bf16.msra.mxu0 0
    %2085 = vmatprep.subr.bf16.mxu0 0
    %2086 = vmatpush2.bf16.msra.mxu0 0
    %2087 = vmatprep.mubr.bf16.mxu0 0
    %2088 = vmatmul.mubr.bf16.gmra.mxu0 %v2053
    %v2089 = vpop.f32.mrf.mxu0
    %v2090 = vadd.f32 0.0, %v2089
    %v2091 = vpop.f32.mrf.mxu0
    %v2092 = vpop.f32.mrf.mxu0
    %v2093 = vadd.f32 0.0, %v2092
    %v2094 = vpop.f32.mrf.mxu0
    %2095 = vdwg.mxu0
    %v2096 = vpack.c.bf16 %v1995, %v1992
    %v2097 = vld [vmem:[#allocation8] sm:$0xf]
    %v2098 = vld [vmem:[#allocation8 + $0x4] sm:$0xf]
    %v2099 = vld [vmem:[#allocation8 + $0x8] sm:$0xf]
    %v2100 = vld [vmem:[#allocation8 + $0xc] sm:$0xf]
    %v2101 = vld [vmem:[#allocation8 + $0x10] sm:$0xf]
    %v2102 = vld [vmem:[#allocation8 + $0x14] sm:$0xf]
    %v2103 = vld [vmem:[#allocation8 + $0x18] sm:$0xf]
    %v2104 = vld [vmem:[#allocation8 + $0x1c] sm:$0xf]
    %v2105 = vpack.c.bf16 %v2044, %v2041
    %s2106 = scalar_lea.vmem [#allocation8], 32
    %v2107 = vld [vmem:[%s2106] sm:$0xf]
    %v2108 = vld [vmem:[%s2106 + $0x4] sm:$0xf]
    %v2109 = vld [vmem:[%s2106 + $0x8] sm:$0xf]
    %v2110 = vld [vmem:[%s2106 + $0xc] sm:$0xf]
    %v2111 = vld [vmem:[%s2106 + $0x10] sm:$0xf]
    %v2112 = vld [vmem:[%s2106 + $0x14] sm:$0xf]
    %v2113 = vld [vmem:[%s2106 + $0x18] sm:$0xf]
    %v2114 = vld [vmem:[%s2106 + $0x1c] sm:$0xf]
    %v2123 = vunpack.c.l.b16 %v2107
    %v2124 = vunpack.c.l.b16 %v2108
    %v2125 = vunpack.c.l.b16 %v2109
    %v2126 = vunpack.c.l.b16 %v2110
    %v2127 = vunpack.c.l.b16 %v2111
    %v2128 = vunpack.c.l.b16 %v2112
    %v2129 = vunpack.c.l.b16 %v2113
    %v2130 = vunpack.c.l.b16 %v2114
    %v2131 = vpack.c.b16 %v2124, %v2123
    %v2132 = vpack.c.b16 %v2126, %v2125
    %v2133 = vpack.c.b16 %v2128, %v2127
    %v2134 = vpack.c.b16 %v2130, %v2129
    %v2140 = vsel %vm477, %v2105, 0
    %2142 = vmatprep.subr.bf16.mxu0 0
    %2143 = vmatpush1.bf16.msra.mxu0 0
    %2144 = vmatprep.subr.bf16.mxu0 0
    %2145 = vmatpush1.bf16.msra.mxu0 0
    %2146 = vmatprep.subr.bf16.mxu0 0
    %2147 = vmatpush1.bf16.msra.mxu0 0
    %2148 = vmatprep.subr.bf16.mxu0 0
    %2149 = vmatpush1.bf16.msra.mxu0 0
    %2150 = vmatprep.subr.bf16.mxu0 0
    %2151 = vmatpush1.bf16.msra.mxu0 %v2134
    %2152 = vmatprep.subr.bf16.mxu0 0
    %2153 = vmatpush1.bf16.msra.mxu0 %v2133
    %2154 = vmatprep.subr.bf16.mxu0 0
    %2155 = vmatpush1.bf16.msra.mxu0 %v2132
    %2156 = vmatprep.subr.bf16.mxu0 0
    %2157 = vmatpush1.bf16.msra.mxu0 %v2131
    %2158 = vmatprep.subr.bf16.mxu0 0
    %2159 = vmatpush2.bf16.msra.mxu0 0
    %2160 = vmatprep.subr.bf16.mxu0 0
    %2161 = vmatpush2.bf16.msra.mxu0 0
    %2162 = vmatprep.subr.bf16.mxu0 0
    %2163 = vmatpush2.bf16.msra.mxu0 0
    %2164 = vmatprep.subr.bf16.mxu0 0
    %2165 = vmatpush2.bf16.msra.mxu0 0
    %2166 = vmatprep.subr.bf16.mxu0 0
    %2167 = vmatpush2.bf16.msra.mxu0 0
    %2168 = vmatprep.subr.bf16.mxu0 0
    %2169 = vmatpush2.bf16.msra.mxu0 0
    %2170 = vmatprep.subr.bf16.mxu0 0
    %2171 = vmatpush2.bf16.msra.mxu0 0
    %2172 = vmatprep.subr.bf16.mxu0 0
    %2173 = vmatpush2.bf16.msra.mxu0 0
    %2174 = vmatprep.mubr.bf16.mxu0 0
    %2175 = vmatmul.mubr.bf16.gmra.mxu0 %v2140
    %v2176 = vpop.f32.mrf.mxu0
    %v2177 = vadd.f32 0.0, %v2176
    %v2178 = vpop.f32.mrf.mxu0
    %v2179 = vpop.f32.mrf.mxu0
    %v2180 = vadd.f32 0.0, %v2179
    %v2181 = vpop.f32.mrf.mxu0
    %2182 = vdwg.mxu0
    %v2191 = vunpack.c.l.b16 %v2097
    %v2192 = vunpack.c.l.b16 %v2098
    %v2193 = vunpack.c.l.b16 %v2099
    %v2194 = vunpack.c.l.b16 %v2100
    %v2195 = vunpack.c.l.b16 %v2101
    %v2196 = vunpack.c.l.b16 %v2102
    %v2197 = vunpack.c.l.b16 %v2103
    %v2198 = vunpack.c.l.b16 %v2104
    %v2199 = vpack.c.b16 %v2192, %v2191
    %v2200 = vpack.c.b16 %v2194, %v2193
    %v2201 = vpack.c.b16 %v2196, %v2195
    %v2202 = vpack.c.b16 %v2198, %v2197
    %v2208 = vsel %vm477, %v2096, 0
    %2210 = vmatprep.subr.bf16.mxu0 0
    %2211 = vmatpush1.bf16.msra.mxu0 0
    %2212 = vmatprep.subr.bf16.mxu0 0
    %2213 = vmatpush1.bf16.msra.mxu0 0
    %2214 = vmatprep.subr.bf16.mxu0 0
    %2215 = vmatpush1.bf16.msra.mxu0 0
    %2216 = vmatprep.subr.bf16.mxu0 0
    %2217 = vmatpush1.bf16.msra.mxu0 0
    %2218 = vmatprep.subr.bf16.mxu0 0
    %2219 = vmatpush1.bf16.msra.mxu0 %v2202
    %2220 = vmatprep.subr.bf16.mxu0 0
    %2221 = vmatpush1.bf16.msra.mxu0 %v2201
    %2222 = vmatprep.subr.bf16.mxu0 0
    %2223 = vmatpush1.bf16.msra.mxu0 %v2200
    %2224 = vmatprep.subr.bf16.mxu0 0
    %2225 = vmatpush1.bf16.msra.mxu0 %v2199
    %2226 = vmatprep.subr.bf16.mxu0 0
    %2227 = vmatpush2.bf16.msra.mxu0 0
    %2228 = vmatprep.subr.bf16.mxu0 0
    %2229 = vmatpush2.bf16.msra.mxu0 0
    %2230 = vmatprep.subr.bf16.mxu0 0
    %2231 = vmatpush2.bf16.msra.mxu0 0
    %2232 = vmatprep.subr.bf16.mxu0 0
    %2233 = vmatpush2.bf16.msra.mxu0 0
    %2234 = vmatprep.subr.bf16.mxu0 0
    %2235 = vmatpush2.bf16.msra.mxu0 0
    %2236 = vmatprep.subr.bf16.mxu0 0
    %2237 = vmatpush2.bf16.msra.mxu0 0
    %2238 = vmatprep.subr.bf16.mxu0 0
    %2239 = vmatpush2.bf16.msra.mxu0 0
    %2240 = vmatprep.subr.bf16.mxu0 0
    %2241 = vmatpush2.bf16.msra.mxu0 0
    %2242 = vmatprep.mubr.bf16.mxu0 0
    %2243 = vmatmul.mubr.bf16.gmra.mxu0 %v2208
    %v2244 = vpop.f32.mrf.mxu0
    %v2245 = vadd.f32 %v2177, %v2244
    %v2246 = vpop.f32.mrf.mxu0
    %v2247 = vpop.f32.mrf.mxu0
    %v2248 = vadd.f32 %v2180, %v2247
    %v2249 = vpop.f32.mrf.mxu0
    %2250 = vdwg.mxu0
    %v2251 = vpack.c.bf16 %v2093, %v2090
    %s2252 = scalar_lea.vmem [#allocation8], 64
    %v2253 = vld [vmem:[%s2252] sm:$0xf]
    %v2254 = vld [vmem:[%s2252 + $0x4] sm:$0xf]
    %v2255 = vld [vmem:[%s2252 + $0x8] sm:$0xf]
    %v2256 = vld [vmem:[%s2252 + $0xc] sm:$0xf]
    %v2257 = vld [vmem:[%s2252 + $0x10] sm:$0xf]
    %v2258 = vld [vmem:[%s2252 + $0x14] sm:$0xf]
    %v2259 = vld [vmem:[%s2252 + $0x18] sm:$0xf]
    %v2260 = vld [vmem:[%s2252 + $0x1c] sm:$0xf]
    %v2269 = vunpack.c.l.b16 %v2253
    %v2270 = vunpack.c.l.b16 %v2254
    %v2271 = vunpack.c.l.b16 %v2255
    %v2272 = vunpack.c.l.b16 %v2256
    %v2273 = vunpack.c.l.b16 %v2257
    %v2274 = vunpack.c.l.b16 %v2258
    %v2275 = vunpack.c.l.b16 %v2259
    %v2276 = vunpack.c.l.b16 %v2260
    %v2277 = vpack.c.b16 %v2270, %v2269
    %v2278 = vpack.c.b16 %v2272, %v2271
    %v2279 = vpack.c.b16 %v2274, %v2273
    %v2280 = vpack.c.b16 %v2276, %v2275
    %v2286 = vsel %vm477, %v2251, 0
    %2288 = vmatprep.subr.bf16.mxu0 0
    %2289 = vmatpush1.bf16.msra.mxu0 0
    %2290 = vmatprep.subr.bf16.mxu0 0
    %2291 = vmatpush1.bf16.msra.mxu0 0
    %2292 = vmatprep.subr.bf16.mxu0 0
    %2293 = vmatpush1.bf16.msra.mxu0 0
    %2294 = vmatprep.subr.bf16.mxu0 0
    %2295 = vmatpush1.bf16.msra.mxu0 0
    %2296 = vmatprep.subr.bf16.mxu0 0
    %2297 = vmatpush1.bf16.msra.mxu0 %v2280
    %2298 = vmatprep.subr.bf16.mxu0 0
    %2299 = vmatpush1.bf16.msra.mxu0 %v2279
    %2300 = vmatprep.subr.bf16.mxu0 0
    %2301 = vmatpush1.bf16.msra.mxu0 %v2278
    %2302 = vmatprep.subr.bf16.mxu0 0
    %2303 = vmatpush1.bf16.msra.mxu0 %v2277
    %2304 = vmatprep.subr.bf16.mxu0 0
    %2305 = vmatpush2.bf16.msra.mxu0 0
    %2306 = vmatprep.subr.bf16.mxu0 0
    %2307 = vmatpush2.bf16.msra.mxu0 0
    %2308 = vmatprep.subr.bf16.mxu0 0
    %2309 = vmatpush2.bf16.msra.mxu0 0
    %2310 = vmatprep.subr.bf16.mxu0 0
    %2311 = vmatpush2.bf16.msra.mxu0 0
    %2312 = vmatprep.subr.bf16.mxu0 0
    %2313 = vmatpush2.bf16.msra.mxu0 0
    %2314 = vmatprep.subr.bf16.mxu0 0
    %2315 = vmatpush2.bf16.msra.mxu0 0
    %2316 = vmatprep.subr.bf16.mxu0 0
    %2317 = vmatpush2.bf16.msra.mxu0 0
    %2318 = vmatprep.subr.bf16.mxu0 0
    %2319 = vmatpush2.bf16.msra.mxu0 0
    %2320 = vmatprep.mubr.bf16.mxu0 0
    %2321 = vmatmul.mubr.bf16.gmra.mxu0 %v2286
    %v2322 = vpop.f32.mrf.mxu0
    %v2323 = vadd.f32 0.0, %v2322
    %v2324 = vpop.f32.mrf.mxu0
    %v2325 = vpop.f32.mrf.mxu0
    %v2326 = vadd.f32 0.0, %v2325
    %v2327 = vpop.f32.mrf.mxu0
    %2328 = vdwg.mxu0
    %v2329 = vadd.f32 %v2245, %v2323
    %v2330 = vadd.f32 %v2248, %v2326
    %v2331 = vadd.f32 %v2329, %v2330
    %v2332 = vrot.slane %v2331, 4
    %v2333 = vadd.f32 %v2331, %v2332
    %v2334 = vrot.slane %v2333, 2
    %v2335 = vadd.f32 %v2333, %v2334
    %v2336 = vrot.slane %v2335, 1
    %v2337 = vadd.f32 %v2335, %v2336
    %v2338 = vmul.f32 %v2337, 0.0625
    %v2339 = vmul.f32 %v2329, %v2329
    %v2340 = vmul.f32 %v2330, %v2330
    %v2341 = vadd.f32 %v2339, %v2340
    %v2342 = vrot.slane %v2341, 4
    %v2343 = vadd.f32 %v2341, %v2342
    %v2344 = vrot.slane %v2343, 2
    %v2345 = vadd.f32 %v2343, %v2344
    %v2346 = vrot.slane %v2345, 1
    %v2347 = vadd.f32 %v2345, %v2346
    %v2348 = vmul.f32 %v2347, 0.0625
    %v2349 = vmul.f32 %v2338, %v2338
    %v2350 = vsub.f32 %v2348, %v2349
    %v2351 = vmax.f32 %v2350, 0.0
    %v2352 = vld [vmem:[%s23] sm:$0x1]
    %v2353 = vadd.f32 %v2351, 1e-05
    %v2354 = vrsqrt.pop %v2353
    %v2355 = vmul.f32 %v2352, %v2354
    %v2356 = vld [vmem:[%s25] sm:$0x1]
    %v2357 = vmul.f32 %v2338, %v2355
    %v2358 = vsub.f32 %v2356, %v2357
    %v2360 = vlaneseq
    %v2361 = vshrl.u32 %v2360, 7
    %v2362 = vsub.s32 0, %v2361
    %v2363 = vrot.slane %v2355, %v2362
    %v2365 = vmul.f32 %v2329, %v2363
    %v2366 = vmul.f32 %v2330, %v2363
    %v2368 = vlaneseq
    %v2369 = vshrl.u32 %v2368, 7
    %v2370 = vsub.s32 0, %v2369
    %v2371 = vrot.slane %v2358, %v2370
    %v2373 = vadd.f32 %v2365, %v2371
    %v2374 = vadd.f32 %v2366, %v2371
    %v2375 = vmax.f32 %v2373, 0.0
    %v2376 = vmax.f32 %v2374, 0.0
    %v2377 = vld [vmem:[#allocation11] sm:$0xf]
    %v2378 = vld [vmem:[#allocation11 + $0x4] sm:$0xf]
    %v2379 = vld [vmem:[#allocation11 + $0x8] sm:$0xf]
    %v2380 = vld [vmem:[#allocation11 + $0xc] sm:$0xf]
    %v2381 = vld [vmem:[#allocation11 + $0x10] sm:$0xf]
    %v2382 = vld [vmem:[#allocation11 + $0x14] sm:$0xf]
    %v2383 = vld [vmem:[#allocation11 + $0x18] sm:$0xf]
    %v2384 = vld [vmem:[#allocation11 + $0x1c] sm:$0xf]
    %v2393 = vunpack.c.l.b16 %v2377
    %v2394 = vunpack.c.l.b16 %v2378
    %v2395 = vunpack.c.l.b16 %v2379
    %v2396 = vunpack.c.l.b16 %v2380
    %v2397 = vunpack.c.l.b16 %v2381
    %v2398 = vunpack.c.l.b16 %v2382
    %v2399 = vunpack.c.l.b16 %v2383
    %v2400 = vunpack.c.l.b16 %v2384
    %v2401 = vpack.c.b16 %v2394, %v2393
    %v2402 = vpack.c.b16 %v2396, %v2395
    %v2403 = vpack.c.b16 %v2398, %v2397
    %v2404 = vpack.c.b16 %v2400, %v2399
    %2409 = vmatprep.subr.bf16.mxu0 0
    %2410 = vmatpush1.bf16.msra.mxu0 0
    %2411 = vmatprep.subr.bf16.mxu0 0
    %2412 = vmatpush1.bf16.msra.mxu0 0
    %2413 = vmatprep.subr.bf16.mxu0 0
    %2414 = vmatpush1.bf16.msra.mxu0 0
    %2415 = vmatprep.subr.bf16.mxu0 0
    %2416 = vmatpush1.bf16.msra.mxu0 0
    %2417 = vmatprep.subr.bf16.mxu0 0
    %2418 = vmatpush1.bf16.msra.mxu0 %v2404
    %2419 = vmatprep.subr.bf16.mxu0 0
    %2420 = vmatpush1.bf16.msra.mxu0 %v2403
    %2421 = vmatprep.subr.bf16.mxu0 0
    %2422 = vmatpush1.bf16.msra.mxu0 %v2402
    %2423 = vmatprep.subr.bf16.mxu0 0
    %2424 = vmatpush1.bf16.msra.mxu0 %v2401
    %2425 = vmatprep.subr.bf16.mxu0 0
    %2426 = vmatpush2.bf16.msra.mxu0 0
    %2427 = vmatprep.subr.bf16.mxu0 0
    %2428 = vmatpush2.bf16.msra.mxu0 0
    %2429 = vmatprep.subr.bf16.mxu0 0
    %2430 = vmatpush2.bf16.msra.mxu0 0
    %2431 = vmatprep.subr.bf16.mxu0 0
    %2432 = vmatpush2.bf16.msra.mxu0 0
    %2433 = vmatprep.subr.bf16.mxu0 0
    %2434 = vmatpush2.bf16.msra.mxu0 0
    %2435 = vmatprep.subr.bf16.mxu0 0
    %2436 = vmatpush2.bf16.msra.mxu0 0
    %2437 = vmatprep.subr.bf16.mxu0 0
    %2438 = vmatpush2.bf16.msra.mxu0 0
    %2439 = vmatprep.subr.bf16.mxu0 0
    %2440 = vmatpush2.bf16.msra.mxu0 0
    %2441 = vmatprep.mubr.bf16.mxu0 0
    %2442 = vmatmul.mubr.bf16.gmra.mxu0 %v2140
    %v2443 = vpop.f32.mrf.mxu0
    %v2444 = vadd.f32 0.0, %v2443
    %v2445 = vpop.f32.mrf.mxu0
    %v2446 = vpop.f32.mrf.mxu0
    %v2447 = vadd.f32 0.0, %v2446
    %v2448 = vpop.f32.mrf.mxu0
    %2449 = vdwg.mxu0
    %v2450 = vadd.f32 %v2444, %v2447
    %v2451 = vrot.slane %v2450, 4
    %v2452 = vadd.f32 %v2450, %v2451
    %v2453 = vrot.slane %v2452, 2
    %v2454 = vadd.f32 %v2452, %v2453
    %v2455 = vrot.slane %v2454, 1
    %v2456 = vadd.f32 %v2454, %v2455
    %v2457 = vmul.f32 %v2456, 0.0625
    %v2458 = vmul.f32 %v2444, %v2444
    %v2459 = vmul.f32 %v2447, %v2447
    %v2460 = vadd.f32 %v2458, %v2459
    %v2461 = vrot.slane %v2460, 4
    %v2462 = vadd.f32 %v2460, %v2461
    %v2463 = vrot.slane %v2462, 2
    %v2464 = vadd.f32 %v2462, %v2463
    %v2465 = vrot.slane %v2464, 1
    %v2466 = vadd.f32 %v2464, %v2465
    %v2467 = vmul.f32 %v2466, 0.0625
    %v2468 = vmul.f32 %v2457, %v2457
    %v2469 = vsub.f32 %v2467, %v2468
    %v2470 = vmax.f32 %v2469, 0.0
    %v2471 = vld [vmem:[%s35] sm:$0x1]
    %v2472 = vadd.f32 %v2470, 1e-05
    %v2473 = vrsqrt.pop %v2472
    %v2474 = vmul.f32 %v2471, %v2473
    %v2475 = vld [vmem:[%s37] sm:$0x1]
    %v2476 = vmul.f32 %v2457, %v2474
    %v2477 = vsub.f32 %v2475, %v2476
    %v2479 = vlaneseq
    %v2480 = vshrl.u32 %v2479, 7
    %v2481 = vsub.s32 0, %v2480
    %v2482 = vrot.slane %v2474, %v2481
    %v2484 = vmul.f32 %v2444, %v2482
    %v2485 = vmul.f32 %v2447, %v2482
    %v2487 = vlaneseq
    %v2488 = vshrl.u32 %v2487, 7
    %v2489 = vsub.s32 0, %v2488
    %v2490 = vrot.slane %v2477, %v2489
    %v2492 = vadd.f32 %v2484, %v2490
    %v2493 = vadd.f32 %v2485, %v2490
    %v2494 = vpack.c.bf16 %v2376, %v2375
    %vm2495 = vcmp.lt.s32.totalorder %v586, 8
    %vm2496 = vmand %vm1935, %vm2495
    %vm2497 = vmand %vm1936, %vm2495
    %vm2498 = vcmp.ge.s32.totalorder %v586, 8
    %vm2499 = vmand %vm1941, %vm2498
    %vm2500 = vmand %vm1942, %vm2498
    %vm2501 = vmand %vm2499, %vm864
    %vm2502 = vmand %vm2500, %vm864
    %vm2503 = vmor %vm2496, %vm2501
    %vm2504 = vmor %vm2497, %vm2502
    %vm2505 = vmand %vm2503, %vm886
    %vm2506 = vmand %vm2504, %vm887
    %v2507 = vsel %vm2505, 1.0, 0.0
    %v2508 = vsel %vm2506, 1.0, 0.0
    %v2509 = vpack.c.bf16 %v2508, %v2507
    %vm2510 = vcmask 130048
    %v2512 = vsel %vm2510, %v2509, 0
    %2514 = vmatprep.subr.bf16.mxu0 0
    %2515 = vmatpush1.bf16.msra.mxu0 0
    %2516 = vmatprep.subr.bf16.mxu0 0
    %2517 = vmatpush1.bf16.msra.mxu0 0
    %2518 = vmatprep.subr.bf16.mxu0 0
    %2519 = vmatpush1.bf16.msra.mxu0 0
    %2520 = vmatprep.subr.bf16.mxu0 0
    %2521 = vmatpush1.bf16.msra.mxu0 0
    %2522 = vmatprep.subr.bf16.mxu0 0
    %2523 = vmatpush1.bf16.msra.mxu0 0
    %2524 = vmatprep.subr.bf16.mxu0 0
    %2525 = vmatpush1.bf16.msra.mxu0 0
    %2526 = vmatprep.subr.bf16.mxu0 0
    %2527 = vmatpush1.bf16.msra.mxu0 0
    %2528 = vmatprep.subr.bf16.mxu0 0
    %2529 = vmatpush1.bf16.msra.mxu0 %v2494
    %2530 = vmatprep.subr.bf16.mxu0 0
    %2531 = vmatpush2.bf16.msra.mxu0 0
    %2532 = vmatprep.subr.bf16.mxu0 0
    %2533 = vmatpush2.bf16.msra.mxu0 0
    %2534 = vmatprep.subr.bf16.mxu0 0
    %2535 = vmatpush2.bf16.msra.mxu0 0
    %2536 = vmatprep.subr.bf16.mxu0 0
    %2537 = vmatpush2.bf16.msra.mxu0 0
    %2538 = vmatprep.subr.bf16.mxu0 0
    %2539 = vmatpush2.bf16.msra.mxu0 0
    %2540 = vmatprep.subr.bf16.mxu0 0
    %2541 = vmatpush2.bf16.msra.mxu0 0
    %2542 = vmatprep.subr.bf16.mxu0 0
    %2543 = vmatpush2.bf16.msra.mxu0 0
    %2544 = vmatprep.subr.bf16.mxu0 0
    %2545 = vmatpush2.bf16.msra.mxu0 0
    %2546 = vmatprep.mubr.bf16.mxu0 0
    %2547 = vmatmul.mubr.bf16.gmra.mxu0 %v2512
    %v2548 = vpop.f32.mrf.mxu0
    %v2549 = vadd.f32 0.0, %v2548
    %v2550 = vpop.f32.mrf.mxu0
    %v2551 = vpop.f32.mrf.mxu0
    %v2552 = vadd.f32 0.0, %v2551
    %v2553 = vpop.f32.mrf.mxu0
    %2554 = vdwg.mxu0
    %vm2555 = vmand %vm2503, %vm956
    %vm2556 = vmand %vm2504, %vm957
    %v2557 = vsel %vm2555, 1.0, 0.0
    %v2558 = vsel %vm2556, 1.0, 0.0
    %v2559 = vpack.c.bf16 %v2558, %v2557
    %v2561 = vsel %vm2510, %v2559, 0
    %2563 = vmatprep.subr.bf16.mxu0 0
    %2564 = vmatpush1.bf16.msra.mxu0 0
    %2565 = vmatprep.subr.bf16.mxu0 0
    %2566 = vmatpush1.bf16.msra.mxu0 0
    %2567 = vmatprep.subr.bf16.mxu0 0
    %2568 = vmatpush1.bf16.msra.mxu0 0
    %2569 = vmatprep.subr.bf16.mxu0 0
    %2570 = vmatpush1.bf16.msra.mxu0 0
    %2571 = vmatprep.subr.bf16.mxu0 0
    %2572 = vmatpush1.bf16.msra.mxu0 0
    %2573 = vmatprep.subr.bf16.mxu0 0
    %2574 = vmatpush1.bf16.msra.mxu0 0
    %2575 = vmatprep.subr.bf16.mxu0 0
    %2576 = vmatpush1.bf16.msra.mxu0 0
    %2577 = vmatprep.subr.bf16.mxu0 0
    %2578 = vmatpush1.bf16.msra.mxu0 %v2494
    %2579 = vmatprep.subr.bf16.mxu0 0
    %2580 = vmatpush2.bf16.msra.mxu0 0
    %2581 = vmatprep.subr.bf16.mxu0 0
    %2582 = vmatpush2.bf16.msra.mxu0 0
    %2583 = vmatprep.subr.bf16.mxu0 0
    %2584 = vmatpush2.bf16.msra.mxu0 0
    %2585 = vmatprep.subr.bf16.mxu0 0
    %2586 = vmatpush2.bf16.msra.mxu0 0
    %2587 = vmatprep.subr.bf16.mxu0 0
    %2588 = vmatpush2.bf16.msra.mxu0 0
    %2589 = vmatprep.subr.bf16.mxu0 0
    %2590 = vmatpush2.bf16.msra.mxu0 0
    %2591 = vmatprep.subr.bf16.mxu0 0
    %2592 = vmatpush2.bf16.msra.mxu0 0
    %2593 = vmatprep.subr.bf16.mxu0 0
    %2594 = vmatpush2.bf16.msra.mxu0 0
    %2595 = vmatprep.mubr.bf16.mxu0 0
    %2596 = vmatmul.mubr.bf16.gmra.mxu0 %v2561
    %v2597 = vpop.f32.mrf.mxu0
    %v2598 = vadd.f32 0.0, %v2597
    %v2599 = vpop.f32.mrf.mxu0
    %v2600 = vpop.f32.mrf.mxu0
    %v2601 = vadd.f32 0.0, %v2600
    %v2602 = vpop.f32.mrf.mxu0
    %2603 = vdwg.mxu0
    %vm2604 = vmand %vm2503, %vm1029
    %vm2605 = vmand %vm2504, %vm1030
    %v2606 = vsel %vm2604, 1.0, 0.0
    %v2607 = vsel %vm2605, 1.0, 0.0
    %v2608 = vpack.c.bf16 %v2607, %v2606
    %v2610 = vsel %vm2510, %v2608, 0
    %2612 = vmatprep.subr.bf16.mxu0 0
    %2613 = vmatpush1.bf16.msra.mxu0 0
    %2614 = vmatprep.subr.bf16.mxu0 0
    %2615 = vmatpush1.bf16.msra.mxu0 0
    %2616 = vmatprep.subr.bf16.mxu0 0
    %2617 = vmatpush1.bf16.msra.mxu0 0
    %2618 = vmatprep.subr.bf16.mxu0 0
    %2619 = vmatpush1.bf16.msra.mxu0 0
    %2620 = vmatprep.subr.bf16.mxu0 0
    %2621 = vmatpush1.bf16.msra.mxu0 0
    %2622 = vmatprep.subr.bf16.mxu0 0
    %2623 = vmatpush1.bf16.msra.mxu0 0
    %2624 = vmatprep.subr.bf16.mxu0 0
    %2625 = vmatpush1.bf16.msra.mxu0 0
    %2626 = vmatprep.subr.bf16.mxu0 0
    %2627 = vmatpush1.bf16.msra.mxu0 %v2494
    %2628 = vmatprep.subr.bf16.mxu0 0
    %2629 = vmatpush2.bf16.msra.mxu0 0
    %2630 = vmatprep.subr.bf16.mxu0 0
    %2631 = vmatpush2.bf16.msra.mxu0 0
    %2632 = vmatprep.subr.bf16.mxu0 0
    %2633 = vmatpush2.bf16.msra.mxu0 0
    %2634 = vmatprep.subr.bf16.mxu0 0
    %2635 = vmatpush2.bf16.msra.mxu0 0
    %2636 = vmatprep.subr.bf16.mxu0 0
    %2637 = vmatpush2.bf16.msra.mxu0 0
    %2638 = vmatprep.subr.bf16.mxu0 0
    %2639 = vmatpush2.bf16.msra.mxu0 0
    %2640 = vmatprep.subr.bf16.mxu0 0
    %2641 = vmatpush2.bf16.msra.mxu0 0
    %2642 = vmatprep.subr.bf16.mxu0 0
    %2643 = vmatpush2.bf16.msra.mxu0 0
    %2644 = vmatprep.mubr.bf16.mxu0 0
    %2645 = vmatmul.mubr.bf16.gmra.mxu0 %v2610
    %v2646 = vpop.f32.mrf.mxu0
    %v2647 = vadd.f32 0.0, %v2646
    %v2648 = vpop.f32.mrf.mxu0
    %v2649 = vpop.f32.mrf.mxu0
    %v2650 = vadd.f32 0.0, %v2649
    %v2651 = vpop.f32.mrf.mxu0
    %2652 = vdwg.mxu0
    %v2653 = vpack.c.bf16 %v2552, %v2549
    %v2654 = vld [vmem:[#allocation10] sm:$0xf]
    %v2655 = vld [vmem:[#allocation10 + $0x4] sm:$0xf]
    %v2656 = vld [vmem:[#allocation10 + $0x8] sm:$0xf]
    %v2657 = vld [vmem:[#allocation10 + $0xc] sm:$0xf]
    %v2658 = vld [vmem:[#allocation10 + $0x10] sm:$0xf]
    %v2659 = vld [vmem:[#allocation10 + $0x14] sm:$0xf]
    %v2660 = vld [vmem:[#allocation10 + $0x18] sm:$0xf]
    %v2661 = vld [vmem:[#allocation10 + $0x1c] sm:$0xf]
    %v2662 = vld [vmem:[#allocation10 + $0x20] sm:$0xf]
    %v2663 = vld [vmem:[#allocation10 + $0x24] sm:$0xf]
    %v2664 = vld [vmem:[#allocation10 + $0x28] sm:$0xf]
    %v2665 = vld [vmem:[#allocation10 + $0x2c] sm:$0xf]
    %v2666 = vld [vmem:[#allocation10 + $0x30] sm:$0xf]
    %v2667 = vld [vmem:[#allocation10 + $0x34] sm:$0xf]
    %v2668 = vld [vmem:[#allocation10 + $0x38] sm:$0xf]
    %v2669 = vld [vmem:[#allocation10 + $0x3c] sm:$0xf]
    %v2670 = vpack.c.bf16 %v2601, %v2598
    %s2671 = scalar_lea.vmem [#allocation10], 64
    %v2672 = vld [vmem:[%s2671] sm:$0xf]
    %v2673 = vld [vmem:[%s2671 + $0x4] sm:$0xf]
    %v2674 = vld [vmem:[%s2671 + $0x8] sm:$0xf]
    %v2675 = vld [vmem:[%s2671 + $0xc] sm:$0xf]
    %v2676 = vld [vmem:[%s2671 + $0x10] sm:$0xf]
    %v2677 = vld [vmem:[%s2671 + $0x14] sm:$0xf]
    %v2678 = vld [vmem:[%s2671 + $0x18] sm:$0xf]
    %v2679 = vld [vmem:[%s2671 + $0x1c] sm:$0xf]
    %v2680 = vld [vmem:[%s2671 + $0x20] sm:$0xf]
    %v2681 = vld [vmem:[%s2671 + $0x24] sm:$0xf]
    %v2682 = vld [vmem:[%s2671 + $0x28] sm:$0xf]
    %v2683 = vld [vmem:[%s2671 + $0x2c] sm:$0xf]
    %v2684 = vld [vmem:[%s2671 + $0x30] sm:$0xf]
    %v2685 = vld [vmem:[%s2671 + $0x34] sm:$0xf]
    %v2686 = vld [vmem:[%s2671 + $0x38] sm:$0xf]
    %v2687 = vld [vmem:[%s2671 + $0x3c] sm:$0xf]
    %v2704 = vunpack.c.l.b16 %v2672
    %v2705 = vunpack.c.l.b16 %v2673
    %v2706 = vunpack.c.l.b16 %v2674
    %v2707 = vunpack.c.l.b16 %v2675
    %v2708 = vunpack.c.l.b16 %v2676
    %v2709 = vunpack.c.l.b16 %v2677
    %v2710 = vunpack.c.l.b16 %v2678
    %v2711 = vunpack.c.l.b16 %v2679
    %v2712 = vunpack.c.l.b16 %v2680
    %v2713 = vunpack.c.l.b16 %v2681
    %v2714 = vunpack.c.l.b16 %v2682
    %v2715 = vunpack.c.l.b16 %v2683
    %v2716 = vunpack.c.l.b16 %v2684
    %v2717 = vunpack.c.l.b16 %v2685
    %v2718 = vunpack.c.l.b16 %v2686
    %v2719 = vunpack.c.l.b16 %v2687
    %v2720 = vpack.c.b16 %v2705, %v2704
    %v2721 = vpack.c.b16 %v2707, %v2706
    %v2722 = vpack.c.b16 %v2709, %v2708
    %v2723 = vpack.c.b16 %v2711, %v2710
    %v2724 = vpack.c.b16 %v2713, %v2712
    %v2725 = vpack.c.b16 %v2715, %v2714
    %v2726 = vpack.c.b16 %v2717, %v2716
    %v2727 = vpack.c.b16 %v2719, %v2718
    %2736 = vmatprep.subr.bf16.mxu0 0
    %2737 = vmatpush1.bf16.msra.mxu0 %v2727
    %2738 = vmatprep.subr.bf16.mxu0 0
    %2739 = vmatpush1.bf16.msra.mxu0 %v2726
    %2740 = vmatprep.subr.bf16.mxu0 0
    %2741 = vmatpush1.bf16.msra.mxu0 %v2725
    %2742 = vmatprep.subr.bf16.mxu0 0
    %2743 = vmatpush1.bf16.msra.mxu0 %v2724
    %2744 = vmatprep.subr.bf16.mxu0 0
    %2745 = vmatpush1.bf16.msra.mxu0 %v2723
    %2746 = vmatprep.subr.bf16.mxu0 0
    %2747 = vmatpush1.bf16.msra.mxu0 %v2722
    %2748 = vmatprep.subr.bf16.mxu0 0
    %2749 = vmatpush1.bf16.msra.mxu0 %v2721
    %2750 = vmatprep.subr.bf16.mxu0 0
    %2751 = vmatpush1.bf16.msra.mxu0 %v2720
    %2752 = vmatprep.subr.bf16.mxu0 0
    %2753 = vmatpush2.bf16.msra.mxu0 0
    %2754 = vmatprep.subr.bf16.mxu0 0
    %2755 = vmatpush2.bf16.msra.mxu0 0
    %2756 = vmatprep.subr.bf16.mxu0 0
    %2757 = vmatpush2.bf16.msra.mxu0 0
    %2758 = vmatprep.subr.bf16.mxu0 0
    %2759 = vmatpush2.bf16.msra.mxu0 0
    %2760 = vmatprep.subr.bf16.mxu0 0
    %2761 = vmatpush2.bf16.msra.mxu0 0
    %2762 = vmatprep.subr.bf16.mxu0 0
    %2763 = vmatpush2.bf16.msra.mxu0 0
    %2764 = vmatprep.subr.bf16.mxu0 0
    %2765 = vmatpush2.bf16.msra.mxu0 0
    %2766 = vmatprep.subr.bf16.mxu0 0
    %2767 = vmatpush2.bf16.msra.mxu0 0
    %2768 = vmatprep.mubr.bf16.mxu0 0
    %2769 = vmatmul.mubr.bf16.gmra.mxu0 %v2670
    %v2770 = vpop.f32.mrf.mxu0
    %v2771 = vadd.f32 0.0, %v2770
    %v2772 = vpop.f32.mrf.mxu0
    %v2773 = vpop.f32.mrf.mxu0
    %v2774 = vadd.f32 0.0, %v2773
    %v2775 = vpop.f32.mrf.mxu0
    %2776 = vdwg.mxu0
    %v2793 = vunpack.c.l.b16 %v2654
    %v2794 = vunpack.c.l.b16 %v2655
    %v2795 = vunpack.c.l.b16 %v2656
    %v2796 = vunpack.c.l.b16 %v2657
    %v2797 = vunpack.c.l.b16 %v2658
    %v2798 = vunpack.c.l.b16 %v2659
    %v2799 = vunpack.c.l.b16 %v2660
    %v2800 = vunpack.c.l.b16 %v2661
    %v2801 = vunpack.c.l.b16 %v2662
    %v2802 = vunpack.c.l.b16 %v2663
    %v2803 = vunpack.c.l.b16 %v2664
    %v2804 = vunpack.c.l.b16 %v2665
    %v2805 = vunpack.c.l.b16 %v2666
    %v2806 = vunpack.c.l.b16 %v2667
    %v2807 = vunpack.c.l.b16 %v2668
    %v2808 = vunpack.c.l.b16 %v2669
    %v2809 = vpack.c.b16 %v2794, %v2793
    %v2810 = vpack.c.b16 %v2796, %v2795
    %v2811 = vpack.c.b16 %v2798, %v2797
    %v2812 = vpack.c.b16 %v2800, %v2799
    %v2813 = vpack.c.b16 %v2802, %v2801
    %v2814 = vpack.c.b16 %v2804, %v2803
    %v2815 = vpack.c.b16 %v2806, %v2805
    %v2816 = vpack.c.b16 %v2808, %v2807
    %2825 = vmatprep.subr.bf16.mxu0 0
    %2826 = vmatpush1.bf16.msra.mxu0 %v2816
    %2827 = vmatprep.subr.bf16.mxu0 0
    %2828 = vmatpush1.bf16.msra.mxu0 %v2815
    %2829 = vmatprep.subr.bf16.mxu0 0
    %2830 = vmatpush1.bf16.msra.mxu0 %v2814
    %2831 = vmatprep.subr.bf16.mxu0 0
    %2832 = vmatpush1.bf16.msra.mxu0 %v2813
    %2833 = vmatprep.subr.bf16.mxu0 0
    %2834 = vmatpush1.bf16.msra.mxu0 %v2812
    %2835 = vmatprep.subr.bf16.mxu0 0
    %2836 = vmatpush1.bf16.msra.mxu0 %v2811
    %2837 = vmatprep.subr.bf16.mxu0 0
    %2838 = vmatpush1.bf16.msra.mxu0 %v2810
    %2839 = vmatprep.subr.bf16.mxu0 0
    %2840 = vmatpush1.bf16.msra.mxu0 %v2809
    %2841 = vmatprep.subr.bf16.mxu0 0
    %2842 = vmatpush2.bf16.msra.mxu0 0
    %2843 = vmatprep.subr.bf16.mxu0 0
    %2844 = vmatpush2.bf16.msra.mxu0 0
    %2845 = vmatprep.subr.bf16.mxu0 0
    %2846 = vmatpush2.bf16.msra.mxu0 0
    %2847 = vmatprep.subr.bf16.mxu0 0
    %2848 = vmatpush2.bf16.msra.mxu0 0
    %2849 = vmatprep.subr.bf16.mxu0 0
    %2850 = vmatpush2.bf16.msra.mxu0 0
    %2851 = vmatprep.subr.bf16.mxu0 0
    %2852 = vmatpush2.bf16.msra.mxu0 0
    %2853 = vmatprep.subr.bf16.mxu0 0
    %2854 = vmatpush2.bf16.msra.mxu0 0
    %2855 = vmatprep.subr.bf16.mxu0 0
    %2856 = vmatpush2.bf16.msra.mxu0 0
    %2857 = vmatprep.mubr.bf16.mxu0 0
    %2858 = vmatmul.mubr.bf16.gmra.mxu0 %v2653
    %v2859 = vpop.f32.mrf.mxu0
    %v2860 = vadd.f32 %v2771, %v2859
    %v2861 = vpop.f32.mrf.mxu0
    %v2862 = vpop.f32.mrf.mxu0
    %v2863 = vadd.f32 %v2774, %v2862
    %v2864 = vpop.f32.mrf.mxu0
    %2865 = vdwg.mxu0
    %v2866 = vpack.c.bf16 %v2650, %v2647
    %s2867 = scalar_lea.vmem [#allocation10], 128
    %v2868 = vld [vmem:[%s2867] sm:$0xf]
    %v2869 = vld [vmem:[%s2867 + $0x4] sm:$0xf]
    %v2870 = vld [vmem:[%s2867 + $0x8] sm:$0xf]
    %v2871 = vld [vmem:[%s2867 + $0xc] sm:$0xf]
    %v2872 = vld [vmem:[%s2867 + $0x10] sm:$0xf]
    %v2873 = vld [vmem:[%s2867 + $0x14] sm:$0xf]
    %v2874 = vld [vmem:[%s2867 + $0x18] sm:$0xf]
    %v2875 = vld [vmem:[%s2867 + $0x1c] sm:$0xf]
    %v2876 = vld [vmem:[%s2867 + $0x20] sm:$0xf]
    %v2877 = vld [vmem:[%s2867 + $0x24] sm:$0xf]
    %v2878 = vld [vmem:[%s2867 + $0x28] sm:$0xf]
    %v2879 = vld [vmem:[%s2867 + $0x2c] sm:$0xf]
    %v2880 = vld [vmem:[%s2867 + $0x30] sm:$0xf]
    %v2881 = vld [vmem:[%s2867 + $0x34] sm:$0xf]
    %v2882 = vld [vmem:[%s2867 + $0x38] sm:$0xf]
    %v2883 = vld [vmem:[%s2867 + $0x3c] sm:$0xf]
    %v2900 = vunpack.c.l.b16 %v2868
    %v2901 = vunpack.c.l.b16 %v2869
    %v2902 = vunpack.c.l.b16 %v2870
    %v2903 = vunpack.c.l.b16 %v2871
    %v2904 = vunpack.c.l.b16 %v2872
    %v2905 = vunpack.c.l.b16 %v2873
    %v2906 = vunpack.c.l.b16 %v2874
    %v2907 = vunpack.c.l.b16 %v2875
    %v2908 = vunpack.c.l.b16 %v2876
    %v2909 = vunpack.c.l.b16 %v2877
    %v2910 = vunpack.c.l.b16 %v2878
    %v2911 = vunpack.c.l.b16 %v2879
    %v2912 = vunpack.c.l.b16 %v2880
    %v2913 = vunpack.c.l.b16 %v2881
    %v2914 = vunpack.c.l.b16 %v2882
    %v2915 = vunpack.c.l.b16 %v2883
    %v2916 = vpack.c.b16 %v2901, %v2900
    %v2917 = vpack.c.b16 %v2903, %v2902
    %v2918 = vpack.c.b16 %v2905, %v2904
    %v2919 = vpack.c.b16 %v2907, %v2906
    %v2920 = vpack.c.b16 %v2909, %v2908
    %v2921 = vpack.c.b16 %v2911, %v2910
    %v2922 = vpack.c.b16 %v2913, %v2912
    %v2923 = vpack.c.b16 %v2915, %v2914
    %2932 = vmatprep.subr.bf16.mxu0 0
    %2933 = vmatpush1.bf16.msra.mxu0 %v2923
    %2934 = vmatprep.subr.bf16.mxu0 0
    %2935 = vmatpush1.bf16.msra.mxu0 %v2922
    %2936 = vmatprep.subr.bf16.mxu0 0
    %2937 = vmatpush1.bf16.msra.mxu0 %v2921
    %2938 = vmatprep.subr.bf16.mxu0 0
    %2939 = vmatpush1.bf16.msra.mxu0 %v2920
    %2940 = vmatprep.subr.bf16.mxu0 0
    %2941 = vmatpush1.bf16.msra.mxu0 %v2919
    %2942 = vmatprep.subr.bf16.mxu0 0
    %2943 = vmatpush1.bf16.msra.mxu0 %v2918
    %2944 = vmatprep.subr.bf16.mxu0 0
    %2945 = vmatpush1.bf16.msra.mxu0 %v2917
    %2946 = vmatprep.subr.bf16.mxu0 0
    %2947 = vmatpush1.bf16.msra.mxu0 %v2916
    %2948 = vmatprep.subr.bf16.mxu0 0
    %2949 = vmatpush2.bf16.msra.mxu0 0
    %2950 = vmatprep.subr.bf16.mxu0 0
    %2951 = vmatpush2.bf16.msra.mxu0 0
    %2952 = vmatprep.subr.bf16.mxu0 0
    %2953 = vmatpush2.bf16.msra.mxu0 0
    %2954 = vmatprep.subr.bf16.mxu0 0
    %2955 = vmatpush2.bf16.msra.mxu0 0
    %2956 = vmatprep.subr.bf16.mxu0 0
    %2957 = vmatpush2.bf16.msra.mxu0 0
    %2958 = vmatprep.subr.bf16.mxu0 0
    %2959 = vmatpush2.bf16.msra.mxu0 0
    %2960 = vmatprep.subr.bf16.mxu0 0
    %2961 = vmatpush2.bf16.msra.mxu0 0
    %2962 = vmatprep.subr.bf16.mxu0 0
    %2963 = vmatpush2.bf16.msra.mxu0 0
    %2964 = vmatprep.mubr.bf16.mxu0 0
    %2965 = vmatmul.mubr.bf16.gmra.mxu0 %v2866
    %v2966 = vpop.f32.mrf.mxu0
    %v2967 = vadd.f32 0.0, %v2966
    %v2968 = vpop.f32.mrf.mxu0
    %v2969 = vpop.f32.mrf.mxu0
    %v2970 = vadd.f32 0.0, %v2969
    %v2971 = vpop.f32.mrf.mxu0
    %2972 = vdwg.mxu0
    %v2973 = vadd.f32 %v2860, %v2967
    %v2974 = vadd.f32 %v2863, %v2970
    %v2975 = vadd.f32 %v2973, %v2974
    %v2976 = vrot.slane %v2975, 4
    %v2977 = vadd.f32 %v2975, %v2976
    %v2978 = vrot.slane %v2977, 2
    %v2979 = vadd.f32 %v2977, %v2978
    %v2980 = vrot.slane %v2979, 1
    %v2981 = vadd.f32 %v2979, %v2980
    %v2982 = vmul.f32 %v2981, 0.0625
    %v2983 = vmul.f32 %v2973, %v2973
    %v2984 = vmul.f32 %v2974, %v2974
    %v2985 = vadd.f32 %v2983, %v2984
    %v2986 = vrot.slane %v2985, 4
    %v2987 = vadd.f32 %v2985, %v2986
    %v2988 = vrot.slane %v2987, 2
    %v2989 = vadd.f32 %v2987, %v2988
    %v2990 = vrot.slane %v2989, 1
    %v2991 = vadd.f32 %v2989, %v2990
    %v2992 = vmul.f32 %v2991, 0.0625
    %v2993 = vmul.f32 %v2982, %v2982
    %v2994 = vsub.f32 %v2992, %v2993
    %v2995 = vmax.f32 %v2994, 0.0
    %v2996 = vld [vmem:[%s29] sm:$0x1]
    %v2997 = vadd.f32 %v2995, 1e-05
    %v2998 = vrsqrt.pop %v2997
    %v2999 = vmul.f32 %v2996, %v2998
    %v3000 = vld [vmem:[%s31] sm:$0x1]
    %v3001 = vmul.f32 %v2982, %v2999
    %v3002 = vsub.f32 %v3000, %v3001
    %v3004 = vlaneseq
    %v3005 = vshrl.u32 %v3004, 7
    %v3006 = vsub.s32 0, %v3005
    %v3007 = vrot.slane %v2999, %v3006
    %v3009 = vmul.f32 %v2973, %v3007
    %v3010 = vmul.f32 %v2974, %v3007
    %v3012 = vlaneseq
    %v3013 = vshrl.u32 %v3012, 7
    %v3014 = vsub.s32 0, %v3013
    %v3015 = vrot.slane %v3002, %v3014
    %v3017 = vadd.f32 %v3009, %v3015
    %v3018 = vadd.f32 %v3010, %v3015
    %v3019 = vadd.f32 %v3017, %v2492
    %v3020 = vadd.f32 %v3018, %v2493
    %v3021 = vmax.f32 %v3019, 0.0
    %v3022 = vmax.f32 %v3020, 0.0
    %v3023 = vpack.c.bf16 %v3022, %v3021
    %vm3024 = vcmp.lt.s32.totalorder %v581, 4
    %vm3025 = vmand %vm587, %vm3024
    %vm3026 = vmand %vm3025, %vm599
    %vm3027 = vmand %vm3026, %vm2495
    %vm3028 = vcmp.ge.s32.totalorder %v581, 4
    %vm3029 = vmand %vm3028, %vm1931
    %vm3030 = vmand %vm3029, %vm2498
    %vm3031 = vmand %vm3030, %vm864
    %vm3032 = vmor %vm3027, %vm3031
    %vm3033 = vmand %vm3032, %vm643
    %v3034 = vsel %vm3033, 1.0, 0.0
    %v3035 = vpack.c.bf16 %v3034, %v3034
    %v3037 = vsel %vm2510, %v3035, 0
    %3039 = vmatprep.subr.bf16.mxu0 0
    %3040 = vmatpush1.bf16.msra.mxu0 0
    %3041 = vmatprep.subr.bf16.mxu0 0
    %3042 = vmatpush1.bf16.msra.mxu0 0
    %3043 = vmatprep.subr.bf16.mxu0 0
    %3044 = vmatpush1.bf16.msra.mxu0 0
    %3045 = vmatprep.subr.bf16.mxu0 0
    %3046 = vmatpush1.bf16.msra.mxu0 0
    %3047 = vmatprep.subr.bf16.mxu0 0
    %3048 = vmatpush1.bf16.msra.mxu0 0
    %3049 = vmatprep.subr.bf16.mxu0 0
    %3050 = vmatpush1.bf16.msra.mxu0 0
    %3051 = vmatprep.subr.bf16.mxu0 0
    %3052 = vmatpush1.bf16.msra.mxu0 0
    %3053 = vmatprep.subr.bf16.mxu0 0
    %3054 = vmatpush1.bf16.msra.mxu0 %v3023
    %3055 = vmatprep.subr.bf16.mxu0 0
    %3056 = vmatpush2.bf16.msra.mxu0 0
    %3057 = vmatprep.subr.bf16.mxu0 0
    %3058 = vmatpush2.bf16.msra.mxu0 0
    %3059 = vmatprep.subr.bf16.mxu0 0
    %3060 = vmatpush2.bf16.msra.mxu0 0
    %3061 = vmatprep.subr.bf16.mxu0 0
    %3062 = vmatpush2.bf16.msra.mxu0 0
    %3063 = vmatprep.subr.bf16.mxu0 0
    %3064 = vmatpush2.bf16.msra.mxu0 0
    %3065 = vmatprep.subr.bf16.mxu0 0
    %3066 = vmatpush2.bf16.msra.mxu0 0
    %3067 = vmatprep.subr.bf16.mxu0 0
    %3068 = vmatpush2.bf16.msra.mxu0 0
    %3069 = vmatprep.subr.bf16.mxu0 0
    %3070 = vmatpush2.bf16.msra.mxu0 0
    %3071 = vmatprep.mubr.bf16.mxu0 0
    %3072 = vmatmul.mubr.bf16.gmra.mxu0 %v3037
    %v3073 = vpop.f32.mrf.mxu0
    %v3074 = vadd.f32 0.0, %v3073
    %v3075 = vpop.f32.mrf.mxu0
    %v3076 = vpop.f32.mrf.mxu0
    %v3077 = vpop.f32.mrf.mxu0
    %3078 = vdwg.mxu0
    %vm3079 = vmand %vm3032, %vm712
    %v3080 = vsel %vm3079, 1.0, 0.0
    %v3081 = vpack.c.bf16 %v3080, %v3080
    %v3083 = vsel %vm2510, %v3081, 0
    %3085 = vmatprep.subr.bf16.mxu0 0
    %3086 = vmatpush1.bf16.msra.mxu0 0
    %3087 = vmatprep.subr.bf16.mxu0 0
    %3088 = vmatpush1.bf16.msra.mxu0 0
    %3089 = vmatprep.subr.bf16.mxu0 0
    %3090 = vmatpush1.bf16.msra.mxu0 0
    %3091 = vmatprep.subr.bf16.mxu0 0
    %3092 = vmatpush1.bf16.msra.mxu0 0
    %3093 = vmatprep.subr.bf16.mxu0 0
    %3094 = vmatpush1.bf16.msra.mxu0 0
    %3095 = vmatprep.subr.bf16.mxu0 0
    %3096 = vmatpush1.bf16.msra.mxu0 0
    %3097 = vmatprep.subr.bf16.mxu0 0
    %3098 = vmatpush1.bf16.msra.mxu0 0
    %3099 = vmatprep.subr.bf16.mxu0 0
    %3100 = vmatpush1.bf16.msra.mxu0 %v3023
    %3101 = vmatprep.subr.bf16.mxu0 0
    %3102 = vmatpush2.bf16.msra.mxu0 0
    %3103 = vmatprep.subr.bf16.mxu0 0
    %3104 = vmatpush2.bf16.msra.mxu0 0
    %3105 = vmatprep.subr.bf16.mxu0 0
    %3106 = vmatpush2.bf16.msra.mxu0 0
    %3107 = vmatprep.subr.bf16.mxu0 0
    %3108 = vmatpush2.bf16.msra.mxu0 0
    %3109 = vmatprep.subr.bf16.mxu0 0
    %3110 = vmatpush2.bf16.msra.mxu0 0
    %3111 = vmatprep.subr.bf16.mxu0 0
    %3112 = vmatpush2.bf16.msra.mxu0 0
    %3113 = vmatprep.subr.bf16.mxu0 0
    %3114 = vmatpush2.bf16.msra.mxu0 0
    %3115 = vmatprep.subr.bf16.mxu0 0
    %3116 = vmatpush2.bf16.msra.mxu0 0
    %3117 = vmatprep.mubr.bf16.mxu0 0
    %3118 = vmatmul.mubr.bf16.gmra.mxu0 %v3083
    %v3119 = vpop.f32.mrf.mxu0
    %v3120 = vadd.f32 0.0, %v3119
    %v3121 = vpop.f32.mrf.mxu0
    %v3122 = vpop.f32.mrf.mxu0
    %v3123 = vpop.f32.mrf.mxu0
    %3124 = vdwg.mxu0
    %vm3125 = vmand %vm3032, %vm785
    %v3126 = vsel %vm3125, 1.0, 0.0
    %v3127 = vpack.c.bf16 %v3126, %v3126
    %v3129 = vsel %vm2510, %v3127, 0
    %3131 = vmatprep.subr.bf16.mxu0 0
    %3132 = vmatpush1.bf16.msra.mxu0 0
    %3133 = vmatprep.subr.bf16.mxu0 0
    %3134 = vmatpush1.bf16.msra.mxu0 0
    %3135 = vmatprep.subr.bf16.mxu0 0
    %3136 = vmatpush1.bf16.msra.mxu0 0
    %3137 = vmatprep.subr.bf16.mxu0 0
    %3138 = vmatpush1.bf16.msra.mxu0 0
    %3139 = vmatprep.subr.bf16.mxu0 0
    %3140 = vmatpush1.bf16.msra.mxu0 0
    %3141 = vmatprep.subr.bf16.mxu0 0
    %3142 = vmatpush1.bf16.msra.mxu0 0
    %3143 = vmatprep.subr.bf16.mxu0 0
    %3144 = vmatpush1.bf16.msra.mxu0 0
    %3145 = vmatprep.subr.bf16.mxu0 0
    %3146 = vmatpush1.bf16.msra.mxu0 %v3023
    %3147 = vmatprep.subr.bf16.mxu0 0
    %3148 = vmatpush2.bf16.msra.mxu0 0
    %3149 = vmatprep.subr.bf16.mxu0 0
    %3150 = vmatpush2.bf16.msra.mxu0 0
    %3151 = vmatprep.subr.bf16.mxu0 0
    %3152 = vmatpush2.bf16.msra.mxu0 0
    %3153 = vmatprep.subr.bf16.mxu0 0
    %3154 = vmatpush2.bf16.msra.mxu0 0
    %3155 = vmatprep.subr.bf16.mxu0 0
    %3156 = vmatpush2.bf16.msra.mxu0 0
    %3157 = vmatprep.subr.bf16.mxu0 0
    %3158 = vmatpush2.bf16.msra.mxu0 0
    %3159 = vmatprep.subr.bf16.mxu0 0
    %3160 = vmatpush2.bf16.msra.mxu0 0
    %3161 = vmatprep.subr.bf16.mxu0 0
    %3162 = vmatpush2.bf16.msra.mxu0 0
    %3163 = vmatprep.mubr.bf16.mxu0 0
    %3164 = vmatmul.mubr.bf16.gmra.mxu0 %v3129
    %v3165 = vpop.f32.mrf.mxu0
    %v3166 = vadd.f32 0.0, %v3165
    %v3167 = vpop.f32.mrf.mxu0
    %v3168 = vpop.f32.mrf.mxu0
    %v3169 = vpop.f32.mrf.mxu0
    %3170 = vdwg.mxu0
    %v3171 = vpack.c.bf16 %v3074, %v3074
    %v3172 = vld [vmem:[#allocation13] sm:$0xff]
    %v3173 = vld [vmem:[#allocation13 + $0x8] sm:$0xff]
    %v3174 = vld [vmem:[#allocation13 + $0x10] sm:$0xff]
    %v3175 = vld [vmem:[#allocation13 + $0x18] sm:$0xff]
    %v3176 = vld [vmem:[#allocation13 + $0x20] sm:$0xff]
    %v3177 = vld [vmem:[#allocation13 + $0x28] sm:$0xff]
    %v3178 = vld [vmem:[#allocation13 + $0x30] sm:$0xff]
    %v3179 = vld [vmem:[#allocation13 + $0x38] sm:$0xff]
    %v3180 = vld [vmem:[#allocation13 + $0x40] sm:$0xff]
    %v3181 = vld [vmem:[#allocation13 + $0x48] sm:$0xff]
    %v3182 = vld [vmem:[#allocation13 + $0x50] sm:$0xff]
    %v3183 = vld [vmem:[#allocation13 + $0x58] sm:$0xff]
    %v3184 = vld [vmem:[#allocation13 + $0x60] sm:$0xff]
    %v3185 = vld [vmem:[#allocation13 + $0x68] sm:$0xff]
    %v3186 = vld [vmem:[#allocation13 + $0x70] sm:$0xff]
    %v3187 = vld [vmem:[#allocation13 + $0x78] sm:$0xff]
    %v3188 = vpack.c.bf16 %v3120, %v3120
    %s3189 = scalar_lea.vmem [#allocation13], 128
    %v3190 = vld [vmem:[%s3189] sm:$0xff]
    %v3191 = vld [vmem:[%s3189 + $0x8] sm:$0xff]
    %v3192 = vld [vmem:[%s3189 + $0x10] sm:$0xff]
    %v3193 = vld [vmem:[%s3189 + $0x18] sm:$0xff]
    %v3194 = vld [vmem:[%s3189 + $0x20] sm:$0xff]
    %v3195 = vld [vmem:[%s3189 + $0x28] sm:$0xff]
    %v3196 = vld [vmem:[%s3189 + $0x30] sm:$0xff]
    %v3197 = vld [vmem:[%s3189 + $0x38] sm:$0xff]
    %v3198 = vld [vmem:[%s3189 + $0x40] sm:$0xff]
    %v3199 = vld [vmem:[%s3189 + $0x48] sm:$0xff]
    %v3200 = vld [vmem:[%s3189 + $0x50] sm:$0xff]
    %v3201 = vld [vmem:[%s3189 + $0x58] sm:$0xff]
    %v3202 = vld [vmem:[%s3189 + $0x60] sm:$0xff]
    %v3203 = vld [vmem:[%s3189 + $0x68] sm:$0xff]
    %v3204 = vld [vmem:[%s3189 + $0x70] sm:$0xff]
    %v3205 = vld [vmem:[%s3189 + $0x78] sm:$0xff]
    %v3222 = vunpack.c.l.b16 %v3190
    %v3223 = vunpack.c.h.b16 %v3190
    %v3224 = vunpack.c.l.b16 %v3191
    %v3225 = vunpack.c.h.b16 %v3191
    %v3226 = vunpack.c.l.b16 %v3192
    %v3227 = vunpack.c.h.b16 %v3192
    %v3228 = vunpack.c.l.b16 %v3193
    %v3229 = vunpack.c.h.b16 %v3193
    %v3230 = vunpack.c.l.b16 %v3194
    %v3231 = vunpack.c.h.b16 %v3194
    %v3232 = vunpack.c.l.b16 %v3195
    %v3233 = vunpack.c.h.b16 %v3195
    %v3234 = vunpack.c.l.b16 %v3196
    %v3235 = vunpack.c.h.b16 %v3196
    %v3236 = vunpack.c.l.b16 %v3197
    %v3237 = vunpack.c.h.b16 %v3197
    %v3238 = vunpack.c.l.b16 %v3198
    %v3239 = vunpack.c.h.b16 %v3198
    %v3240 = vunpack.c.l.b16 %v3199
    %v3241 = vunpack.c.h.b16 %v3199
    %v3242 = vunpack.c.l.b16 %v3200
    %v3243 = vunpack.c.h.b16 %v3200
    %v3244 = vunpack.c.l.b16 %v3201
    %v3245 = vunpack.c.h.b16 %v3201
    %v3246 = vunpack.c.l.b16 %v3202
    %v3247 = vunpack.c.h.b16 %v3202
    %v3248 = vunpack.c.l.b16 %v3203
    %v3249 = vunpack.c.h.b16 %v3203
    %v3250 = vunpack.c.l.b16 %v3204
    %v3251 = vunpack.c.h.b16 %v3204
    %v3252 = vunpack.c.l.b16 %v3205
    %v3253 = vunpack.c.h.b16 %v3205
    %v3254 = vpack.c.b16 %v3224, %v3222
    %v3255 = vpack.c.b16 %v3225, %v3223
    %v3256 = vpack.c.b16 %v3228, %v3226
    %v3257 = vpack.c.b16 %v3229, %v3227
    %v3258 = vpack.c.b16 %v3232, %v3230
    %v3259 = vpack.c.b16 %v3233, %v3231
    %v3260 = vpack.c.b16 %v3236, %v3234
    %v3261 = vpack.c.b16 %v3237, %v3235
    %v3262 = vpack.c.b16 %v3240, %v3238
    %v3263 = vpack.c.b16 %v3241, %v3239
    %v3264 = vpack.c.b16 %v3244, %v3242
    %v3265 = vpack.c.b16 %v3245, %v3243
    %v3266 = vpack.c.b16 %v3248, %v3246
    %v3267 = vpack.c.b16 %v3249, %v3247
    %v3268 = vpack.c.b16 %v3252, %v3250
    %v3269 = vpack.c.b16 %v3253, %v3251
    %3286 = vmatprep.subr.bf16.mxu0 %v3269
    %3287 = vmatpush1.bf16.msra.mxu0 %v3268
    %3288 = vmatprep.subr.bf16.mxu0 %v3267
    %3289 = vmatpush1.bf16.msra.mxu0 %v3266
    %3290 = vmatprep.subr.bf16.mxu0 %v3265
    %3291 = vmatpush1.bf16.msra.mxu0 %v3264
    %3292 = vmatprep.subr.bf16.mxu0 %v3263
    %3293 = vmatpush1.bf16.msra.mxu0 %v3262
    %3294 = vmatprep.subr.bf16.mxu0 %v3261
    %3295 = vmatpush1.bf16.msra.mxu0 %v3260
    %3296 = vmatprep.subr.bf16.mxu0 %v3259
    %3297 = vmatpush1.bf16.msra.mxu0 %v3258
    %3298 = vmatprep.subr.bf16.mxu0 %v3257
    %3299 = vmatpush1.bf16.msra.mxu0 %v3256
    %3300 = vmatprep.subr.bf16.mxu0 %v3255
    %3301 = vmatpush1.bf16.msra.mxu0 %v3254
    %3302 = vmatprep.subr.bf16.mxu0 0
    %3303 = vmatpush2.bf16.msra.mxu0 0
    %3304 = vmatprep.subr.bf16.mxu0 0
    %3305 = vmatpush2.bf16.msra.mxu0 0
    %3306 = vmatprep.subr.bf16.mxu0 0
    %3307 = vmatpush2.bf16.msra.mxu0 0
    %3308 = vmatprep.subr.bf16.mxu0 0
    %3309 = vmatpush2.bf16.msra.mxu0 0
    %3310 = vmatprep.subr.bf16.mxu0 0
    %3311 = vmatpush2.bf16.msra.mxu0 0
    %3312 = vmatprep.subr.bf16.mxu0 0
    %3313 = vmatpush2.bf16.msra.mxu0 0
    %3314 = vmatprep.subr.bf16.mxu0 0
    %3315 = vmatpush2.bf16.msra.mxu0 0
    %3316 = vmatprep.subr.bf16.mxu0 0
    %3317 = vmatpush2.bf16.msra.mxu0 0
    %3318 = vmatprep.mubr.bf16.mxu0 0
    %3319 = vmatmul.mubr.bf16.gmra.mxu0 %v3188
    %v3320 = vpop.f32.mrf.mxu0
    %v3321 = vadd.f32 0.0, %v3320
    %v3322 = vpop.f32.mrf.mxu0
    %v3323 = vadd.f32 0.0, %v3322
    %v3324 = vpop.f32.mrf.mxu0
    %v3325 = vpop.f32.mrf.mxu0
    %3326 = vdwg.mxu0
    %v3343 = vunpack.c.l.b16 %v3172
    %v3344 = vunpack.c.h.b16 %v3172
    %v3345 = vunpack.c.l.b16 %v3173
    %v3346 = vunpack.c.h.b16 %v3173
    %v3347 = vunpack.c.l.b16 %v3174
    %v3348 = vunpack.c.h.b16 %v3174
    %v3349 = vunpack.c.l.b16 %v3175
    %v3350 = vunpack.c.h.b16 %v3175
    %v3351 = vunpack.c.l.b16 %v3176
    %v3352 = vunpack.c.h.b16 %v3176
    %v3353 = vunpack.c.l.b16 %v3177
    %v3354 = vunpack.c.h.b16 %v3177
    %v3355 = vunpack.c.l.b16 %v3178
    %v3356 = vunpack.c.h.b16 %v3178
    %v3357 = vunpack.c.l.b16 %v3179
    %v3358 = vunpack.c.h.b16 %v3179
    %v3359 = vunpack.c.l.b16 %v3180
    %v3360 = vunpack.c.h.b16 %v3180
    %v3361 = vunpack.c.l.b16 %v3181
    %v3362 = vunpack.c.h.b16 %v3181
    %v3363 = vunpack.c.l.b16 %v3182
    %v3364 = vunpack.c.h.b16 %v3182
    %v3365 = vunpack.c.l.b16 %v3183
    %v3366 = vunpack.c.h.b16 %v3183
    %v3367 = vunpack.c.l.b16 %v3184
    %v3368 = vunpack.c.h.b16 %v3184
    %v3369 = vunpack.c.l.b16 %v3185
    %v3370 = vunpack.c.h.b16 %v3185
    %v3371 = vunpack.c.l.b16 %v3186
    %v3372 = vunpack.c.h.b16 %v3186
    %v3373 = vunpack.c.l.b16 %v3187
    %v3374 = vunpack.c.h.b16 %v3187
    %v3375 = vpack.c.b16 %v3345, %v3343
    %v3376 = vpack.c.b16 %v3346, %v3344
    %v3377 = vpack.c.b16 %v3349, %v3347
    %v3378 = vpack.c.b16 %v3350, %v3348
    %v3379 = vpack.c.b16 %v3353, %v3351
    %v3380 = vpack.c.b16 %v3354, %v3352
    %v3381 = vpack.c.b16 %v3357, %v3355
    %v3382 = vpack.c.b16 %v3358, %v3356
    %v3383 = vpack.c.b16 %v3361, %v3359
    %v3384 = vpack.c.b16 %v3362, %v3360
    %v3385 = vpack.c.b16 %v3365, %v3363
    %v3386 = vpack.c.b16 %v3366, %v3364
    %v3387 = vpack.c.b16 %v3369, %v3367
    %v3388 = vpack.c.b16 %v3370, %v3368
    %v3389 = vpack.c.b16 %v3373, %v3371
    %v3390 = vpack.c.b16 %v3374, %v3372
    %3407 = vmatprep.subr.bf16.mxu0 %v3390
    %3408 = vmatpush1.bf16.msra.mxu0 %v3389
    %3409 = vmatprep.subr.bf16.mxu0 %v3388
    %3410 = vmatpush1.bf16.msra.mxu0 %v3387
    %3411 = vmatprep.subr.bf16.mxu0 %v3386
    %3412 = vmatpush1.bf16.msra.mxu0 %v3385
    %3413 = vmatprep.subr.bf16.mxu0 %v3384
    %3414 = vmatpush1.bf16.msra.mxu0 %v3383
    %3415 = vmatprep.subr.bf16.mxu0 %v3382
    %3416 = vmatpush1.bf16.msra.mxu0 %v3381
    %3417 = vmatprep.subr.bf16.mxu0 %v3380
    %3418 = vmatpush1.bf16.msra.mxu0 %v3379
    %3419 = vmatprep.subr.bf16.mxu0 %v3378
    %3420 = vmatpush1.bf16.msra.mxu0 %v3377
    %3421 = vmatprep.subr.bf16.mxu0 %v3376
    %3422 = vmatpush1.bf16.msra.mxu0 %v3375
    %3423 = vmatprep.subr.bf16.mxu0 0
    %3424 = vmatpush2.bf16.msra.mxu0 0
    %3425 = vmatprep.subr.bf16.mxu0 0
    %3426 = vmatpush2.bf16.msra.mxu0 0
    %3427 = vmatprep.subr.bf16.mxu0 0
    %3428 = vmatpush2.bf16.msra.mxu0 0
    %3429 = vmatprep.subr.bf16.mxu0 0
    %3430 = vmatpush2.bf16.msra.mxu0 0
    %3431 = vmatprep.subr.bf16.mxu0 0
    %3432 = vmatpush2.bf16.msra.mxu0 0
    %3433 = vmatprep.subr.bf16.mxu0 0
    %3434 = vmatpush2.bf16.msra.mxu0 0
    %3435 = vmatprep.subr.bf16.mxu0 0
    %3436 = vmatpush2.bf16.msra.mxu0 0
    %3437 = vmatprep.subr.bf16.mxu0 0
    %3438 = vmatpush2.bf16.msra.mxu0 0
    %3439 = vmatprep.mubr.bf16.mxu0 0
    %3440 = vmatmul.mubr.bf16.gmra.mxu0 %v3171
    %v3441 = vpop.f32.mrf.mxu0
    %v3442 = vadd.f32 %v3321, %v3441
    %v3443 = vpop.f32.mrf.mxu0
    %v3444 = vadd.f32 %v3323, %v3443
    %v3445 = vpop.f32.mrf.mxu0
    %v3446 = vpop.f32.mrf.mxu0
    %3447 = vdwg.mxu0
    %v3448 = vpack.c.bf16 %v3166, %v3166
    %s3449 = scalar_lea.vmem [#allocation13], 256
    %v3450 = vld [vmem:[%s3449] sm:$0xff]
    %v3451 = vld [vmem:[%s3449 + $0x8] sm:$0xff]
    %v3452 = vld [vmem:[%s3449 + $0x10] sm:$0xff]
    %v3453 = vld [vmem:[%s3449 + $0x18] sm:$0xff]
    %v3454 = vld [vmem:[%s3449 + $0x20] sm:$0xff]
    %v3455 = vld [vmem:[%s3449 + $0x28] sm:$0xff]
    %v3456 = vld [vmem:[%s3449 + $0x30] sm:$0xff]
    %v3457 = vld [vmem:[%s3449 + $0x38] sm:$0xff]
    %v3458 = vld [vmem:[%s3449 + $0x40] sm:$0xff]
    %v3459 = vld [vmem:[%s3449 + $0x48] sm:$0xff]
    %v3460 = vld [vmem:[%s3449 + $0x50] sm:$0xff]
    %v3461 = vld [vmem:[%s3449 + $0x58] sm:$0xff]
    %v3462 = vld [vmem:[%s3449 + $0x60] sm:$0xff]
    %v3463 = vld [vmem:[%s3449 + $0x68] sm:$0xff]
    %v3464 = vld [vmem:[%s3449 + $0x70] sm:$0xff]
    %v3465 = vld [vmem:[%s3449 + $0x78] sm:$0xff]
    %v3482 = vunpack.c.l.b16 %v3450
    %v3483 = vunpack.c.h.b16 %v3450
    %v3484 = vunpack.c.l.b16 %v3451
    %v3485 = vunpack.c.h.b16 %v3451
    %v3486 = vunpack.c.l.b16 %v3452
    %v3487 = vunpack.c.h.b16 %v3452
    %v3488 = vunpack.c.l.b16 %v3453
    %v3489 = vunpack.c.h.b16 %v3453
    %v3490 = vunpack.c.l.b16 %v3454
    %v3491 = vunpack.c.h.b16 %v3454
    %v3492 = vunpack.c.l.b16 %v3455
    %v3493 = vunpack.c.h.b16 %v3455
    %v3494 = vunpack.c.l.b16 %v3456
    %v3495 = vunpack.c.h.b16 %v3456
    %v3496 = vunpack.c.l.b16 %v3457
    %v3497 = vunpack.c.h.b16 %v3457
    %v3498 = vunpack.c.l.b16 %v3458
    %v3499 = vunpack.c.h.b16 %v3458
    %v3500 = vunpack.c.l.b16 %v3459
    %v3501 = vunpack.c.h.b16 %v3459
    %v3502 = vunpack.c.l.b16 %v3460
    %v3503 = vunpack.c.h.b16 %v3460
    %v3504 = vunpack.c.l.b16 %v3461
    %v3505 = vunpack.c.h.b16 %v3461
    %v3506 = vunpack.c.l.b16 %v3462
    %v3507 = vunpack.c.h.b16 %v3462
    %v3508 = vunpack.c.l.b16 %v3463
    %v3509 = vunpack.c.h.b16 %v3463
    %v3510 = vunpack.c.l.b16 %v3464
    %v3511 = vunpack.c.h.b16 %v3464
    %v3512 = vunpack.c.l.b16 %v3465
    %v3513 = vunpack.c.h.b16 %v3465
    %v3514 = vpack.c.b16 %v3484, %v3482
    %v3515 = vpack.c.b16 %v3485, %v3483
    %v3516 = vpack.c.b16 %v3488, %v3486
    %v3517 = vpack.c.b16 %v3489, %v3487
    %v3518 = vpack.c.b16 %v3492, %v3490
    %v3519 = vpack.c.b16 %v3493, %v3491
    %v3520 = vpack.c.b16 %v3496, %v3494
    %v3521 = vpack.c.b16 %v3497, %v3495
    %v3522 = vpack.c.b16 %v3500, %v3498
    %v3523 = vpack.c.b16 %v3501, %v3499
    %v3524 = vpack.c.b16 %v3504, %v3502
    %v3525 = vpack.c.b16 %v3505, %v3503
    %v3526 = vpack.c.b16 %v3508, %v3506
    %v3527 = vpack.c.b16 %v3509, %v3507
    %v3528 = vpack.c.b16 %v3512, %v3510
    %v3529 = vpack.c.b16 %v3513, %v3511
    %3546 = vmatprep.subr.bf16.mxu0 %v3529
    %3547 = vmatpush1.bf16.msra.mxu0 %v3528
    %3548 = vmatprep.subr.bf16.mxu0 %v3527
    %3549 = vmatpush1.bf16.msra.mxu0 %v3526
    %3550 = vmatprep.subr.bf16.mxu0 %v3525
    %3551 = vmatpush1.bf16.msra.mxu0 %v3524
    %3552 = vmatprep.subr.bf16.mxu0 %v3523
    %3553 = vmatpush1.bf16.msra.mxu0 %v3522
    %3554 = vmatprep.subr.bf16.mxu0 %v3521
    %3555 = vmatpush1.bf16.msra.mxu0 %v3520
    %3556 = vmatprep.subr.bf16.mxu0 %v3519
    %3557 = vmatpush1.bf16.msra.mxu0 %v3518
    %3558 = vmatprep.subr.bf16.mxu0 %v3517
    %3559 = vmatpush1.bf16.msra.mxu0 %v3516
    %3560 = vmatprep.subr.bf16.mxu0 %v3515
    %3561 = vmatpush1.bf16.msra.mxu0 %v3514
    %3562 = vmatprep.subr.bf16.mxu0 0
    %3563 = vmatpush2.bf16.msra.mxu0 0
    %3564 = vmatprep.subr.bf16.mxu0 0
    %3565 = vmatpush2.bf16.msra.mxu0 0
    %3566 = vmatprep.subr.bf16.mxu0 0
    %3567 = vmatpush2.bf16.msra.mxu0 0
    %3568 = vmatprep.subr.bf16.mxu0 0
    %3569 = vmatpush2.bf16.msra.mxu0 0
    %3570 = vmatprep.subr.bf16.mxu0 0
    %3571 = vmatpush2.bf16.msra.mxu0 0
    %3572 = vmatprep.subr.bf16.mxu0 0
    %3573 = vmatpush2.bf16.msra.mxu0 0
    %3574 = vmatprep.subr.bf16.mxu0 0
    %3575 = vmatpush2.bf16.msra.mxu0 0
    %3576 = vmatprep.subr.bf16.mxu0 0
    %3577 = vmatpush2.bf16.msra.mxu0 0
    %3578 = vmatprep.mubr.bf16.mxu0 0
    %3579 = vmatmul.mubr.bf16.gmra.mxu0 %v3448
    %v3580 = vpop.f32.mrf.mxu0
    %v3581 = vadd.f32 0.0, %v3580
    %v3582 = vpop.f32.mrf.mxu0
    %v3583 = vadd.f32 0.0, %v3582
    %v3584 = vpop.f32.mrf.mxu0
    %v3585 = vpop.f32.mrf.mxu0
    %3586 = vdwg.mxu0
    %v3587 = vadd.f32 %v3442, %v3581
    %v3588 = vadd.f32 %v3444, %v3583
    %v3589 = vrot.slane %v3587, 4
    %v3590 = vadd.f32 %v3587, %v3589
    %v3591 = vrot.slane %v3590, 2
    %v3592 = vadd.f32 %v3590, %v3591
    %v3593 = vrot.slane %v3592, 1
    %v3594 = vadd.f32 %v3592, %v3593
    %v3595 = vrot.slane %v3588, 4
    %v3596 = vadd.f32 %v3588, %v3595
    %v3597 = vrot.slane %v3596, 2
    %v3598 = vadd.f32 %v3596, %v3597
    %v3599 = vrot.slane %v3598, 1
    %v3600 = vadd.f32 %v3598, %v3599
    %v3601 = vmul.f32 %v3594, 0.125
    %v3602 = vmul.f32 %v3600, 0.125
    %v3603 = vmul.f32 %v3587, %v3587
    %v3604 = vmul.f32 %v3588, %v3588
    %v3605 = vrot.slane %v3603, 4
    %v3606 = vadd.f32 %v3603, %v3605
    %v3607 = vrot.slane %v3606, 2
    %v3608 = vadd.f32 %v3606, %v3607
    %v3609 = vrot.slane %v3608, 1
    %v3610 = vadd.f32 %v3608, %v3609
    %v3611 = vrot.slane %v3604, 4
    %v3612 = vadd.f32 %v3604, %v3611
    %v3613 = vrot.slane %v3612, 2
    %v3614 = vadd.f32 %v3612, %v3613
    %v3615 = vrot.slane %v3614, 1
    %v3616 = vadd.f32 %v3614, %v3615
    %v3617 = vmul.f32 %v3610, 0.125
    %v3618 = vmul.f32 %v3616, 0.125
    %v3619 = vmul.f32 %v3601, %v3601
    %v3620 = vmul.f32 %v3602, %v3602
    %v3621 = vsub.f32 %v3617, %v3619
    %v3622 = vsub.f32 %v3618, %v3620
    %v3623 = vmax.f32 %v3621, 0.0
    %v3624 = vmax.f32 %v3622, 0.0
    %v3625 = vld [vmem:[%s41] sm:$0x3]
    %v3626 = vadd.f32 %v3623, 1e-05
    %v3627 = vadd.f32 %v3624, 1e-05
    %v3628 = vrsqrt.pop %v3626
    %v3629 = vrsqrt.pop %v3627
    %v3632 = vcombine.low %v3628, %v3629
    %v3634 = vunpack.c.l.s4 1966171168
    %v3635 = vunpack.c.0.s8 %v3634
    %v3636 = vlaneseq
    %v3637 = vshrl.u32 %v3636, 7
    %v3638 = vsub.s32 %v3635, %v3637
    %v3639 = vrot.slane %v3632, %v3638
    %v3641 = vunpack.c.l.s4 1966171168
    %v3642 = vunpack.c.0.s8 %v3641
    %v3643 = vlaneseq
    %v3644 = vshrl.u32 %v3643, 7
    %v3645 = vsub.s32 %v3642, %v3644
    %v3646 = vrot.slane %v3639, %v3645
    %v3648 = vmul.f32 %v3625, %v3646
    %v3649 = vld [vmem:[%s43] sm:$0x3]
    %v3651 = vlaneseq
    %v3652 = vshrl.u32 %v3651, 7
    %v3653 = vsub.s32 0, %v3652
    %v3654 = vrot.slane %v3648, %v3653
    %v3655 = vlaneseq
    %v3656 = vshrl.u32 %v3655, 7
    %v3657 = vsub.s32 1, %v3656
    %v3658 = vrot.slane %v3648, %v3657
    %v3661 = vmul.f32 %v3601, %v3654
    %v3662 = vmul.f32 %v3602, %v3658
    %v3665 = vcombine.low %v3661, %v3662
    %v3667 = vunpack.c.l.s4 1966171168
    %v3668 = vunpack.c.0.s8 %v3667
    %v3669 = vlaneseq
    %v3670 = vshrl.u32 %v3669, 7
    %v3671 = vsub.s32 %v3668, %v3670
    %v3672 = vrot.slane %v3665, %v3671
    %v3674 = vunpack.c.l.s4 1966171168
    %v3675 = vunpack.c.0.s8 %v3674
    %v3676 = vlaneseq
    %v3677 = vshrl.u32 %v3676, 7
    %v3678 = vsub.s32 %v3675, %v3677
    %v3679 = vrot.slane %v3672, %v3678
    %v3681 = vsub.f32 %v3649, %v3679
    %v3682 = vmul.f32 %v3587, %v3654
    %v3683 = vmul.f32 %v3588, %v3658
    %v3685 = vlaneseq
    %v3686 = vshrl.u32 %v3685, 7
    %v3687 = vsub.s32 0, %v3686
    %v3688 = vrot.slane %v3681, %v3687
    %v3689 = vlaneseq
    %v3690 = vshrl.u32 %v3689, 7
    %v3691 = vsub.s32 1, %v3690
    %v3692 = vrot.slane %v3681, %v3691
    %v3695 = vadd.f32 %v3682, %v3688
    %v3696 = vadd.f32 %v3683, %v3692
    %v3697 = vmax.f32 %v3695, 0.0
    %v3698 = vmax.f32 %v3696, 0.0
    %v3699 = vld [vmem:[#allocation16] sm:$0xff]
    %v3700 = vld [vmem:[#allocation16 + $0x8] sm:$0xff]
    %v3701 = vld [vmem:[#allocation16 + $0x10] sm:$0xff]
    %v3702 = vld [vmem:[#allocation16 + $0x18] sm:$0xff]
    %v3703 = vld [vmem:[#allocation16 + $0x20] sm:$0xff]
    %v3704 = vld [vmem:[#allocation16 + $0x28] sm:$0xff]
    %v3705 = vld [vmem:[#allocation16 + $0x30] sm:$0xff]
    %v3706 = vld [vmem:[#allocation16 + $0x38] sm:$0xff]
    %v3707 = vld [vmem:[#allocation16 + $0x40] sm:$0xff]
    %v3708 = vld [vmem:[#allocation16 + $0x48] sm:$0xff]
    %v3709 = vld [vmem:[#allocation16 + $0x50] sm:$0xff]
    %v3710 = vld [vmem:[#allocation16 + $0x58] sm:$0xff]
    %v3711 = vld [vmem:[#allocation16 + $0x60] sm:$0xff]
    %v3712 = vld [vmem:[#allocation16 + $0x68] sm:$0xff]
    %v3713 = vld [vmem:[#allocation16 + $0x70] sm:$0xff]
    %v3714 = vld [vmem:[#allocation16 + $0x78] sm:$0xff]
    %v3731 = vunpack.c.l.b16 %v3699
    %v3732 = vunpack.c.h.b16 %v3699
    %v3733 = vunpack.c.l.b16 %v3700
    %v3734 = vunpack.c.h.b16 %v3700
    %v3735 = vunpack.c.l.b16 %v3701
    %v3736 = vunpack.c.h.b16 %v3701
    %v3737 = vunpack.c.l.b16 %v3702
    %v3738 = vunpack.c.h.b16 %v3702
    %v3739 = vunpack.c.l.b16 %v3703
    %v3740 = vunpack.c.h.b16 %v3703
    %v3741 = vunpack.c.l.b16 %v3704
    %v3742 = vunpack.c.h.b16 %v3704
    %v3743 = vunpack.c.l.b16 %v3705
    %v3744 = vunpack.c.h.b16 %v3705
    %v3745 = vunpack.c.l.b16 %v3706
    %v3746 = vunpack.c.h.b16 %v3706
    %v3747 = vunpack.c.l.b16 %v3707
    %v3748 = vunpack.c.h.b16 %v3707
    %v3749 = vunpack.c.l.b16 %v3708
    %v3750 = vunpack.c.h.b16 %v3708
    %v3751 = vunpack.c.l.b16 %v3709
    %v3752 = vunpack.c.h.b16 %v3709
    %v3753 = vunpack.c.l.b16 %v3710
    %v3754 = vunpack.c.h.b16 %v3710
    %v3755 = vunpack.c.l.b16 %v3711
    %v3756 = vunpack.c.h.b16 %v3711
    %v3757 = vunpack.c.l.b16 %v3712
    %v3758 = vunpack.c.h.b16 %v3712
    %v3759 = vunpack.c.l.b16 %v3713
    %v3760 = vunpack.c.h.b16 %v3713
    %v3761 = vunpack.c.l.b16 %v3714
    %v3762 = vunpack.c.h.b16 %v3714
    %v3763 = vpack.c.b16 %v3733, %v3731
    %v3764 = vpack.c.b16 %v3734, %v3732
    %v3765 = vpack.c.b16 %v3737, %v3735
    %v3766 = vpack.c.b16 %v3738, %v3736
    %v3767 = vpack.c.b16 %v3741, %v3739
    %v3768 = vpack.c.b16 %v3742, %v3740
    %v3769 = vpack.c.b16 %v3745, %v3743
    %v3770 = vpack.c.b16 %v3746, %v3744
    %v3771 = vpack.c.b16 %v3749, %v3747
    %v3772 = vpack.c.b16 %v3750, %v3748
    %v3773 = vpack.c.b16 %v3753, %v3751
    %v3774 = vpack.c.b16 %v3754, %v3752
    %v3775 = vpack.c.b16 %v3757, %v3755
    %v3776 = vpack.c.b16 %v3758, %v3756
    %v3777 = vpack.c.b16 %v3761, %v3759
    %v3778 = vpack.c.b16 %v3762, %v3760
    %3795 = vmatprep.subr.bf16.mxu0 %v3778
    %3796 = vmatpush1.bf16.msra.mxu0 %v3777
    %3797 = vmatprep.subr.bf16.mxu0 %v3776
    %3798 = vmatpush1.bf16.msra.mxu0 %v3775
    %3799 = vmatprep.subr.bf16.mxu0 %v3774
    %3800 = vmatpush1.bf16.msra.mxu0 %v3773
    %3801 = vmatprep.subr.bf16.mxu0 %v3772
    %3802 = vmatpush1.bf16.msra.mxu0 %v3771
    %3803 = vmatprep.subr.bf16.mxu0 %v3770
    %3804 = vmatpush1.bf16.msra.mxu0 %v3769
    %3805 = vmatprep.subr.bf16.mxu0 %v3768
    %3806 = vmatpush1.bf16.msra.mxu0 %v3767
    %3807 = vmatprep.subr.bf16.mxu0 %v3766
    %3808 = vmatpush1.bf16.msra.mxu0 %v3765
    %3809 = vmatprep.subr.bf16.mxu0 %v3764
    %3810 = vmatpush1.bf16.msra.mxu0 %v3763
    %3811 = vmatprep.subr.bf16.mxu0 0
    %3812 = vmatpush2.bf16.msra.mxu0 0
    %3813 = vmatprep.subr.bf16.mxu0 0
    %3814 = vmatpush2.bf16.msra.mxu0 0
    %3815 = vmatprep.subr.bf16.mxu0 0
    %3816 = vmatpush2.bf16.msra.mxu0 0
    %3817 = vmatprep.subr.bf16.mxu0 0
    %3818 = vmatpush2.bf16.msra.mxu0 0
    %3819 = vmatprep.subr.bf16.mxu0 0
    %3820 = vmatpush2.bf16.msra.mxu0 0
    %3821 = vmatprep.subr.bf16.mxu0 0
    %3822 = vmatpush2.bf16.msra.mxu0 0
    %3823 = vmatprep.subr.bf16.mxu0 0
    %3824 = vmatpush2.bf16.msra.mxu0 0
    %3825 = vmatprep.subr.bf16.mxu0 0
    %3826 = vmatpush2.bf16.msra.mxu0 0
    %3827 = vmatprep.mubr.bf16.mxu0 0
    %3828 = vmatmul.mubr.bf16.gmra.mxu0 %v3188
    %v3829 = vpop.f32.mrf.mxu0
    %v3830 = vadd.f32 0.0, %v3829
    %v3831 = vpop.f32.mrf.mxu0
    %v3832 = vadd.f32 0.0, %v3831
    %v3833 = vpop.f32.mrf.mxu0
    %v3834 = vpop.f32.mrf.mxu0
    %3835 = vdwg.mxu0
    %v3836 = vrot.slane %v3830, 4
    %v3837 = vadd.f32 %v3830, %v3836
    %v3838 = vrot.slane %v3837, 2
    %v3839 = vadd.f32 %v3837, %v3838
    %v3840 = vrot.slane %v3839, 1
    %v3841 = vadd.f32 %v3839, %v3840
    %v3842 = vrot.slane %v3832, 4
    %v3843 = vadd.f32 %v3832, %v3842
    %v3844 = vrot.slane %v3843, 2
    %v3845 = vadd.f32 %v3843, %v3844
    %v3846 = vrot.slane %v3845, 1
    %v3847 = vadd.f32 %v3845, %v3846
    %v3848 = vmul.f32 %v3841, 0.125
    %v3849 = vmul.f32 %v3847, 0.125
    %v3850 = vmul.f32 %v3830, %v3830
    %v3851 = vmul.f32 %v3832, %v3832
    %v3852 = vrot.slane %v3850, 4
    %v3853 = vadd.f32 %v3850, %v3852
    %v3854 = vrot.slane %v3853, 2
    %v3855 = vadd.f32 %v3853, %v3854
    %v3856 = vrot.slane %v3855, 1
    %v3857 = vadd.f32 %v3855, %v3856
    %v3858 = vrot.slane %v3851, 4
    %v3859 = vadd.f32 %v3851, %v3858
    %v3860 = vrot.slane %v3859, 2
    %v3861 = vadd.f32 %v3859, %v3860
    %v3862 = vrot.slane %v3861, 1
    %v3863 = vadd.f32 %v3861, %v3862
    %v3864 = vmul.f32 %v3857, 0.125
    %v3865 = vmul.f32 %v3863, 0.125
    %v3866 = vmul.f32 %v3848, %v3848
    %v3867 = vmul.f32 %v3849, %v3849
    %v3868 = vsub.f32 %v3864, %v3866
    %v3869 = vsub.f32 %v3865, %v3867
    %v3870 = vmax.f32 %v3868, 0.0
    %v3871 = vmax.f32 %v3869, 0.0
    %v3872 = vld [vmem:[%s53] sm:$0x3]
    %v3873 = vadd.f32 %v3870, 1e-05
    %v3874 = vadd.f32 %v3871, 1e-05
    %v3875 = vrsqrt.pop %v3873
    %v3876 = vrsqrt.pop %v3874
    %v3879 = vcombine.low %v3875, %v3876
    %v3881 = vunpack.c.l.s4 1966171168
    %v3882 = vunpack.c.0.s8 %v3881
    %v3883 = vlaneseq
    %v3884 = vshrl.u32 %v3883, 7
    %v3885 = vsub.s32 %v3882, %v3884
    %v3886 = vrot.slane %v3879, %v3885
    %v3888 = vunpack.c.l.s4 1966171168
    %v3889 = vunpack.c.0.s8 %v3888
    %v3890 = vlaneseq
    %v3891 = vshrl.u32 %v3890, 7
    %v3892 = vsub.s32 %v3889, %v3891
    %v3893 = vrot.slane %v3886, %v3892
    %v3895 = vmul.f32 %v3872, %v3893
    %v3896 = vld [vmem:[%s55] sm:$0x3]
    %v3898 = vlaneseq
    %v3899 = vshrl.u32 %v3898, 7
    %v3900 = vsub.s32 0, %v3899
    %v3901 = vrot.slane %v3895, %v3900
    %v3902 = vlaneseq
    %v3903 = vshrl.u32 %v3902, 7
    %v3904 = vsub.s32 1, %v3903
    %v3905 = vrot.slane %v3895, %v3904
    %v3908 = vmul.f32 %v3848, %v3901
    %v3909 = vmul.f32 %v3849, %v3905
    %v3912 = vcombine.low %v3908, %v3909
    %v3914 = vunpack.c.l.s4 1966171168
    %v3915 = vunpack.c.0.s8 %v3914
    %v3916 = vlaneseq
    %v3917 = vshrl.u32 %v3916, 7
    %v3918 = vsub.s32 %v3915, %v3917
    %v3919 = vrot.slane %v3912, %v3918
    %v3921 = vunpack.c.l.s4 1966171168
    %v3922 = vunpack.c.0.s8 %v3921
    %v3923 = vlaneseq
    %v3924 = vshrl.u32 %v3923, 7
    %v3925 = vsub.s32 %v3922, %v3924
    %v3926 = vrot.slane %v3919, %v3925
    %v3928 = vsub.f32 %v3896, %v3926
    %v3929 = vmul.f32 %v3830, %v3901
    %v3930 = vmul.f32 %v3832, %v3905
    %v3932 = vlaneseq
    %v3933 = vshrl.u32 %v3932, 7
    %v3934 = vsub.s32 0, %v3933
    %v3935 = vrot.slane %v3928, %v3934
    %v3936 = vlaneseq
    %v3937 = vshrl.u32 %v3936, 7
    %v3938 = vsub.s32 1, %v3937
    %v3939 = vrot.slane %v3928, %v3938
    %v3942 = vadd.f32 %v3929, %v3935
    %v3943 = vadd.f32 %v3930, %v3939
    %v3944 = vpack.c.bf16 %v3697, %v3697
    %v3945 = vpack.c.bf16 %v3698, %v3698
    %vm3946 = vcmp.lt.s32.totalorder %v586, 4
    %vm3947 = vmand %vm3026, %vm3946
    %vm3948 = vcmp.ge.s32.totalorder %v586, 4
    %vm3949 = vmand %vm3029, %vm3948
    %vm3950 = vmand %vm3949, %vm2495
    %vm3951 = vmor %vm3947, %vm3950
    %vm3952 = vmand %vm3951, %vm886
    %v3953 = vsel %vm3952, 1.0, 0.0
    %v3954 = vpack.c.bf16 %v3953, %v3953
    %vm3955 = vcmask 64512
    %v3957 = vsel %vm3955, %v3954, 0
    %vm3959 = vcmask 1043456
    %v3961 = vsel %vm3959, %v3944, 0
    %v3964 = vsel %vm3959, %v3945, 0
    %3966 = vmatprep.subr.bf16.mxu0 0
    %3967 = vmatpush1.bf16.msra.mxu0 0
    %3968 = vmatprep.subr.bf16.mxu0 0
    %3969 = vmatpush1.bf16.msra.mxu0 0
    %3970 = vmatprep.subr.bf16.mxu0 0
    %3971 = vmatpush1.bf16.msra.mxu0 0
    %3972 = vmatprep.subr.bf16.mxu0 0
    %3973 = vmatpush1.bf16.msra.mxu0 0
    %3974 = vmatprep.subr.bf16.mxu0 0
    %3975 = vmatpush1.bf16.msra.mxu0 0
    %3976 = vmatprep.subr.bf16.mxu0 0
    %3977 = vmatpush1.bf16.msra.mxu0 0
    %3978 = vmatprep.subr.bf16.mxu0 0
    %3979 = vmatpush1.bf16.msra.mxu0 0
    %3980 = vmatprep.subr.bf16.mxu0 %v3964
    %3981 = vmatpush1.bf16.msra.mxu0 %v3961
    %3982 = vmatprep.subr.bf16.mxu0 0
    %3983 = vmatpush2.bf16.msra.mxu0 0
    %3984 = vmatprep.subr.bf16.mxu0 0
    %3985 = vmatpush2.bf16.msra.mxu0 0
    %3986 = vmatprep.subr.bf16.mxu0 0
    %3987 = vmatpush2.bf16.msra.mxu0 0
    %3988 = vmatprep.subr.bf16.mxu0 0
    %3989 = vmatpush2.bf16.msra.mxu0 0
    %3990 = vmatprep.subr.bf16.mxu0 0
    %3991 = vmatpush2.bf16.msra.mxu0 0
    %3992 = vmatprep.subr.bf16.mxu0 0
    %3993 = vmatpush2.bf16.msra.mxu0 0
    %3994 = vmatprep.subr.bf16.mxu0 0
    %3995 = vmatpush2.bf16.msra.mxu0 0
    %3996 = vmatprep.subr.bf16.mxu0 0
    %3997 = vmatpush2.bf16.msra.mxu0 0
    %3998 = vmatprep.mubr.bf16.mxu0 0
    %3999 = vmatmul.mubr.bf16.gmra.mxu0 %v3957
    %v4000 = vpop.f32.mrf.mxu0
    %v4001 = vadd.f32 0.0, %v4000
    %v4002 = vpop.f32.mrf.mxu0
    %v4003 = vadd.f32 0.0, %v4002
    %v4004 = vpop.f32.mrf.mxu0
    %v4005 = vpop.f32.mrf.mxu0
    %4006 = vdwg.mxu0
    %vm4007 = vmand %vm3951, %vm956
    %v4008 = vsel %vm4007, 1.0, 0.0
    %v4009 = vpack.c.bf16 %v4008, %v4008
    %v4011 = vsel %vm3955, %v4009, 0
    %4013 = vmatprep.subr.bf16.mxu0 0
    %4014 = vmatpush1.bf16.msra.mxu0 0
    %4015 = vmatprep.subr.bf16.mxu0 0
    %4016 = vmatpush1.bf16.msra.mxu0 0
    %4017 = vmatprep.subr.bf16.mxu0 0
    %4018 = vmatpush1.bf16.msra.mxu0 0
    %4019 = vmatprep.subr.bf16.mxu0 0
    %4020 = vmatpush1.bf16.msra.mxu0 0
    %4021 = vmatprep.subr.bf16.mxu0 0
    %4022 = vmatpush1.bf16.msra.mxu0 0
    %4023 = vmatprep.subr.bf16.mxu0 0
    %4024 = vmatpush1.bf16.msra.mxu0 0
    %4025 = vmatprep.subr.bf16.mxu0 0
    %4026 = vmatpush1.bf16.msra.mxu0 0
    %4027 = vmatprep.subr.bf16.mxu0 %v3964
    %4028 = vmatpush1.bf16.msra.mxu0 %v3961
    %4029 = vmatprep.subr.bf16.mxu0 0
    %4030 = vmatpush2.bf16.msra.mxu0 0
    %4031 = vmatprep.subr.bf16.mxu0 0
    %4032 = vmatpush2.bf16.msra.mxu0 0
    %4033 = vmatprep.subr.bf16.mxu0 0
    %4034 = vmatpush2.bf16.msra.mxu0 0
    %4035 = vmatprep.subr.bf16.mxu0 0
    %4036 = vmatpush2.bf16.msra.mxu0 0
    %4037 = vmatprep.subr.bf16.mxu0 0
    %4038 = vmatpush2.bf16.msra.mxu0 0
    %4039 = vmatprep.subr.bf16.mxu0 0
    %4040 = vmatpush2.bf16.msra.mxu0 0
    %4041 = vmatprep.subr.bf16.mxu0 0
    %4042 = vmatpush2.bf16.msra.mxu0 0
    %4043 = vmatprep.subr.bf16.mxu0 0
    %4044 = vmatpush2.bf16.msra.mxu0 0
    %4045 = vmatprep.mubr.bf16.mxu0 0
    %4046 = vmatmul.mubr.bf16.gmra.mxu0 %v4011
    %v4047 = vpop.f32.mrf.mxu0
    %v4048 = vadd.f32 0.0, %v4047
    %v4049 = vpop.f32.mrf.mxu0
    %v4050 = vadd.f32 0.0, %v4049
    %v4051 = vpop.f32.mrf.mxu0
    %v4052 = vpop.f32.mrf.mxu0
    %4053 = vdwg.mxu0
    %vm4054 = vmand %vm3951, %vm1029
    %v4055 = vsel %vm4054, 1.0, 0.0
    %v4056 = vpack.c.bf16 %v4055, %v4055
    %v4058 = vsel %vm3955, %v4056, 0
    %4060 = vmatprep.subr.bf16.mxu0 0
    %4061 = vmatpush1.bf16.msra.mxu0 0
    %4062 = vmatprep.subr.bf16.mxu0 0
    %4063 = vmatpush1.bf16.msra.mxu0 0
    %4064 = vmatprep.subr.bf16.mxu0 0
    %4065 = vmatpush1.bf16.msra.mxu0 0
    %4066 = vmatprep.subr.bf16.mxu0 0
    %4067 = vmatpush1.bf16.msra.mxu0 0
    %4068 = vmatprep.subr.bf16.mxu0 0
    %4069 = vmatpush1.bf16.msra.mxu0 0
    %4070 = vmatprep.subr.bf16.mxu0 0
    %4071 = vmatpush1.bf16.msra.mxu0 0
    %4072 = vmatprep.subr.bf16.mxu0 0
    %4073 = vmatpush1.bf16.msra.mxu0 0
    %4074 = vmatprep.subr.bf16.mxu0 %v3964
    %4075 = vmatpush1.bf16.msra.mxu0 %v3961
    %4076 = vmatprep.subr.bf16.mxu0 0
    %4077 = vmatpush2.bf16.msra.mxu0 0
    %4078 = vmatprep.subr.bf16.mxu0 0
    %4079 = vmatpush2.bf16.msra.mxu0 0
    %4080 = vmatprep.subr.bf16.mxu0 0
    %4081 = vmatpush2.bf16.msra.mxu0 0
    %4082 = vmatprep.subr.bf16.mxu0 0
    %4083 = vmatpush2.bf16.msra.mxu0 0
    %4084 = vmatprep.subr.bf16.mxu0 0
    %4085 = vmatpush2.bf16.msra.mxu0 0
    %4086 = vmatprep.subr.bf16.mxu0 0
    %4087 = vmatpush2.bf16.msra.mxu0 0
    %4088 = vmatprep.subr.bf16.mxu0 0
    %4089 = vmatpush2.bf16.msra.mxu0 0
    %4090 = vmatprep.subr.bf16.mxu0 0
    %4091 = vmatpush2.bf16.msra.mxu0 0
    %4092 = vmatprep.mubr.bf16.mxu0 0
    %4093 = vmatmul.mubr.bf16.gmra.mxu0 %v4058
    %v4094 = vpop.f32.mrf.mxu0
    %v4095 = vadd.f32 0.0, %v4094
    %v4096 = vpop.f32.mrf.mxu0
    %v4097 = vadd.f32 0.0, %v4096
    %v4098 = vpop.f32.mrf.mxu0
    %v4099 = vpop.f32.mrf.mxu0
    %4100 = vdwg.mxu0
    %v4101 = vpack.c.bf16 %v4001, %v4001
    %v4102 = vpack.c.bf16 %v4003, %v4003
    %v4103 = vld [vmem:[#allocation14] sm:$0xff]
    %v4104 = vld [vmem:[#allocation14 + $0x8] sm:$0xff]
    %v4105 = vld [vmem:[#allocation14 + $0x10] sm:$0xff]
    %v4106 = vld [vmem:[#allocation14 + $0x18] sm:$0xff]
    %v4107 = vld [vmem:[#allocation14 + $0x20] sm:$0xff]
    %v4108 = vld [vmem:[#allocation14 + $0x28] sm:$0xff]
    %v4109 = vld [vmem:[#allocation14 + $0x30] sm:$0xff]
    %v4110 = vld [vmem:[#allocation14 + $0x38] sm:$0xff]
    %v4111 = vld [vmem:[#allocation14 + $0x40] sm:$0xff]
    %v4112 = vld [vmem:[#allocation14 + $0x48] sm:$0xff]
    %v4113 = vld [vmem:[#allocation14 + $0x50] sm:$0xff]
    %v4114 = vld [vmem:[#allocation14 + $0x58] sm:$0xff]
    %v4115 = vld [vmem:[#allocation14 + $0x60] sm:$0xff]
    %v4116 = vld [vmem:[#allocation14 + $0x68] sm:$0xff]
    %v4117 = vld [vmem:[#allocation14 + $0x70] sm:$0xff]
    %v4118 = vld [vmem:[#allocation14 + $0x78] sm:$0xff]
    %v4119 = vld [vmem:[#allocation14 + $0x80] sm:$0xff]
    %v4120 = vld [vmem:[#allocation14 + $0x88] sm:$0xff]
    %v4121 = vld [vmem:[#allocation14 + $0x90] sm:$0xff]
    %v4122 = vld [vmem:[#allocation14 + $0x98] sm:$0xff]
    %v4123 = vld [vmem:[#allocation14 + $0xa0] sm:$0xff]
    %v4124 = vld [vmem:[#allocation14 + $0xa8] sm:$0xff]
    %v4125 = vld [vmem:[#allocation14 + $0xb0] sm:$0xff]
    %v4126 = vld [vmem:[#allocation14 + $0xb8] sm:$0xff]
    %v4127 = vld [vmem:[#allocation14 + $0xc0] sm:$0xff]
    %v4128 = vld [vmem:[#allocation14 + $0xc8] sm:$0xff]
    %v4129 = vld [vmem:[#allocation14 + $0xd0] sm:$0xff]
    %v4130 = vld [vmem:[#allocation14 + $0xd8] sm:$0xff]
    %v4131 = vld [vmem:[#allocation14 + $0xe0] sm:$0xff]
    %v4132 = vld [vmem:[#allocation14 + $0xe8] sm:$0xff]
    %v4133 = vld [vmem:[#allocation14 + $0xf0] sm:$0xff]
    %v4134 = vld [vmem:[#allocation14 + $0xf8] sm:$0xff]
    %v4135 = vpack.c.bf16 %v4048, %v4048
    %v4136 = vpack.c.bf16 %v4050, %v4050
    %s4137 = scalar_lea.vmem [#allocation14], 256
    %v4138 = vld [vmem:[%s4137] sm:$0xff]
    %v4139 = vld [vmem:[%s4137 + $0x8] sm:$0xff]
    %v4140 = vld [vmem:[%s4137 + $0x10] sm:$0xff]
    %v4141 = vld [vmem:[%s4137 + $0x18] sm:$0xff]
    %v4142 = vld [vmem:[%s4137 + $0x20] sm:$0xff]
    %v4143 = vld [vmem:[%s4137 + $0x28] sm:$0xff]
    %v4144 = vld [vmem:[%s4137 + $0x30] sm:$0xff]
    %v4145 = vld [vmem:[%s4137 + $0x38] sm:$0xff]
    %v4146 = vld [vmem:[%s4137 + $0x40] sm:$0xff]
    %v4147 = vld [vmem:[%s4137 + $0x48] sm:$0xff]
    %v4148 = vld [vmem:[%s4137 + $0x50] sm:$0xff]
    %v4149 = vld [vmem:[%s4137 + $0x58] sm:$0xff]
    %v4150 = vld [vmem:[%s4137 + $0x60] sm:$0xff]
    %v4151 = vld [vmem:[%s4137 + $0x68] sm:$0xff]
    %v4152 = vld [vmem:[%s4137 + $0x70] sm:$0xff]
    %v4153 = vld [vmem:[%s4137 + $0x78] sm:$0xff]
    %v4154 = vld [vmem:[%s4137 + $0x80] sm:$0xff]
    %v4155 = vld [vmem:[%s4137 + $0x88] sm:$0xff]
    %v4156 = vld [vmem:[%s4137 + $0x90] sm:$0xff]
    %v4157 = vld [vmem:[%s4137 + $0x98] sm:$0xff]
    %v4158 = vld [vmem:[%s4137 + $0xa0] sm:$0xff]
    %v4159 = vld [vmem:[%s4137 + $0xa8] sm:$0xff]
    %v4160 = vld [vmem:[%s4137 + $0xb0] sm:$0xff]
    %v4161 = vld [vmem:[%s4137 + $0xb8] sm:$0xff]
    %v4162 = vld [vmem:[%s4137 + $0xc0] sm:$0xff]
    %v4163 = vld [vmem:[%s4137 + $0xc8] sm:$0xff]
    %v4164 = vld [vmem:[%s4137 + $0xd0] sm:$0xff]
    %v4165 = vld [vmem:[%s4137 + $0xd8] sm:$0xff]
    %v4166 = vld [vmem:[%s4137 + $0xe0] sm:$0xff]
    %v4167 = vld [vmem:[%s4137 + $0xe8] sm:$0xff]
    %v4168 = vld [vmem:[%s4137 + $0xf0] sm:$0xff]
    %v4169 = vld [vmem:[%s4137 + $0xf8] sm:$0xff]
    %v4202 = vunpack.c.l.b16 %v4138
    %v4203 = vunpack.c.h.b16 %v4138
    %v4204 = vunpack.c.l.b16 %v4139
    %v4205 = vunpack.c.h.b16 %v4139
    %v4206 = vunpack.c.l.b16 %v4140
    %v4207 = vunpack.c.h.b16 %v4140
    %v4208 = vunpack.c.l.b16 %v4141
    %v4209 = vunpack.c.h.b16 %v4141
    %v4210 = vunpack.c.l.b16 %v4142
    %v4211 = vunpack.c.h.b16 %v4142
    %v4212 = vunpack.c.l.b16 %v4143
    %v4213 = vunpack.c.h.b16 %v4143
    %v4214 = vunpack.c.l.b16 %v4144
    %v4215 = vunpack.c.h.b16 %v4144
    %v4216 = vunpack.c.l.b16 %v4145
    %v4217 = vunpack.c.h.b16 %v4145
    %v4218 = vunpack.c.l.b16 %v4146
    %v4219 = vunpack.c.h.b16 %v4146
    %v4220 = vunpack.c.l.b16 %v4147
    %v4221 = vunpack.c.h.b16 %v4147
    %v4222 = vunpack.c.l.b16 %v4148
    %v4223 = vunpack.c.h.b16 %v4148
    %v4224 = vunpack.c.l.b16 %v4149
    %v4225 = vunpack.c.h.b16 %v4149
    %v4226 = vunpack.c.l.b16 %v4150
    %v4227 = vunpack.c.h.b16 %v4150
    %v4228 = vunpack.c.l.b16 %v4151
    %v4229 = vunpack.c.h.b16 %v4151
    %v4230 = vunpack.c.l.b16 %v4152
    %v4231 = vunpack.c.h.b16 %v4152
    %v4232 = vunpack.c.l.b16 %v4153
    %v4233 = vunpack.c.h.b16 %v4153
    %v4234 = vunpack.c.l.b16 %v4154
    %v4235 = vunpack.c.h.b16 %v4154
    %v4236 = vunpack.c.l.b16 %v4155
    %v4237 = vunpack.c.h.b16 %v4155
    %v4238 = vunpack.c.l.b16 %v4156
    %v4239 = vunpack.c.h.b16 %v4156
    %v4240 = vunpack.c.l.b16 %v4157
    %v4241 = vunpack.c.h.b16 %v4157
    %v4242 = vunpack.c.l.b16 %v4158
    %v4243 = vunpack.c.h.b16 %v4158
    %v4244 = vunpack.c.l.b16 %v4159
    %v4245 = vunpack.c.h.b16 %v4159
    %v4246 = vunpack.c.l.b16 %v4160
    %v4247 = vunpack.c.h.b16 %v4160
    %v4248 = vunpack.c.l.b16 %v4161
    %v4249 = vunpack.c.h.b16 %v4161
    %v4250 = vunpack.c.l.b16 %v4162
    %v4251 = vunpack.c.h.b16 %v4162
    %v4252 = vunpack.c.l.b16 %v4163
    %v4253 = vunpack.c.h.b16 %v4163
    %v4254 = vunpack.c.l.b16 %v4164
    %v4255 = vunpack.c.h.b16 %v4164
    %v4256 = vunpack.c.l.b16 %v4165
    %v4257 = vunpack.c.h.b16 %v4165
    %v4258 = vunpack.c.l.b16 %v4166
    %v4259 = vunpack.c.h.b16 %v4166
    %v4260 = vunpack.c.l.b16 %v4167
    %v4261 = vunpack.c.h.b16 %v4167
    %v4262 = vunpack.c.l.b16 %v4168
    %v4263 = vunpack.c.h.b16 %v4168
    %v4264 = vunpack.c.l.b16 %v4169
    %v4265 = vunpack.c.h.b16 %v4169
    %v4266 = vpack.c.b16 %v4204, %v4202
    %v4267 = vpack.c.b16 %v4205, %v4203
    %v4268 = vpack.c.b16 %v4208, %v4206
    %v4269 = vpack.c.b16 %v4209, %v4207
    %v4270 = vpack.c.b16 %v4212, %v4210
    %v4271 = vpack.c.b16 %v4213, %v4211
    %v4272 = vpack.c.b16 %v4216, %v4214
    %v4273 = vpack.c.b16 %v4217, %v4215
    %v4274 = vpack.c.b16 %v4220, %v4218
    %v4275 = vpack.c.b16 %v4221, %v4219
    %v4276 = vpack.c.b16 %v4224, %v4222
    %v4277 = vpack.c.b16 %v4225, %v4223
    %v4278 = vpack.c.b16 %v4228, %v4226
    %v4279 = vpack.c.b16 %v4229, %v4227
    %v4280 = vpack.c.b16 %v4232, %v4230
    %v4281 = vpack.c.b16 %v4233, %v4231
    %v4282 = vpack.c.b16 %v4236, %v4234
    %v4283 = vpack.c.b16 %v4237, %v4235
    %v4284 = vpack.c.b16 %v4240, %v4238
    %v4285 = vpack.c.b16 %v4241, %v4239
    %v4286 = vpack.c.b16 %v4244, %v4242
    %v4287 = vpack.c.b16 %v4245, %v4243
    %v4288 = vpack.c.b16 %v4248, %v4246
    %v4289 = vpack.c.b16 %v4249, %v4247
    %v4290 = vpack.c.b16 %v4252, %v4250
    %v4291 = vpack.c.b16 %v4253, %v4251
    %v4292 = vpack.c.b16 %v4256, %v4254
    %v4293 = vpack.c.b16 %v4257, %v4255
    %v4294 = vpack.c.b16 %v4260, %v4258
    %v4295 = vpack.c.b16 %v4261, %v4259
    %v4296 = vpack.c.b16 %v4264, %v4262
    %v4297 = vpack.c.b16 %v4265, %v4263
    %4330 = vmatprep.subr.bf16.mxu0 %v4281
    %4331 = vmatpush1.bf16.msra.mxu0 %v4280
    %4332 = vmatprep.subr.bf16.mxu0 %v4279
    %4333 = vmatpush1.bf16.msra.mxu0 %v4278
    %4334 = vmatprep.subr.bf16.mxu0 %v4277
    %4335 = vmatpush1.bf16.msra.mxu0 %v4276
    %4336 = vmatprep.subr.bf16.mxu0 %v4275
    %4337 = vmatpush1.bf16.msra.mxu0 %v4274
    %4338 = vmatprep.subr.bf16.mxu0 %v4273
    %4339 = vmatpush1.bf16.msra.mxu0 %v4272
    %4340 = vmatprep.subr.bf16.mxu0 %v4271
    %4341 = vmatpush1.bf16.msra.mxu0 %v4270
    %4342 = vmatprep.subr.bf16.mxu0 %v4269
    %4343 = vmatpush1.bf16.msra.mxu0 %v4268
    %4344 = vmatprep.subr.bf16.mxu0 %v4267
    %4345 = vmatpush1.bf16.msra.mxu0 %v4266
    %4346 = vmatprep.subr.bf16.mxu0 %v4297
    %4347 = vmatpush2.bf16.msra.mxu0 %v4296
    %4348 = vmatprep.subr.bf16.mxu0 %v4295
    %4349 = vmatpush2.bf16.msra.mxu0 %v4294
    %4350 = vmatprep.subr.bf16.mxu0 %v4293
    %4351 = vmatpush2.bf16.msra.mxu0 %v4292
    %4352 = vmatprep.subr.bf16.mxu0 %v4291
    %4353 = vmatpush2.bf16.msra.mxu0 %v4290
    %4354 = vmatprep.subr.bf16.mxu0 %v4289
    %4355 = vmatpush2.bf16.msra.mxu0 %v4288
    %4356 = vmatprep.subr.bf16.mxu0 %v4287
    %4357 = vmatpush2.bf16.msra.mxu0 %v4286
    %4358 = vmatprep.subr.bf16.mxu0 %v4285
    %4359 = vmatpush2.bf16.msra.mxu0 %v4284
    %4360 = vmatprep.subr.bf16.mxu0 %v4283
    %4361 = vmatpush2.bf16.msra.mxu0 %v4282
    %4362 = vmatprep.mubr.bf16.mxu0 %v4136
    %4363 = vmatmul.mubr.bf16.gmra.mxu0 %v4135
    %v4364 = vpop.f32.mrf.mxu0
    %v4365 = vadd.f32 0.0, %v4364
    %v4366 = vpop.f32.mrf.mxu0
    %v4367 = vadd.f32 0.0, %v4366
    %v4368 = vpop.f32.mrf.mxu0
    %v4369 = vpop.f32.mrf.mxu0
    %4370 = vdwg.mxu0
    %v4403 = vunpack.c.l.b16 %v4103
    %v4404 = vunpack.c.h.b16 %v4103
    %v4405 = vunpack.c.l.b16 %v4104
    %v4406 = vunpack.c.h.b16 %v4104
    %v4407 = vunpack.c.l.b16 %v4105
    %v4408 = vunpack.c.h.b16 %v4105
    %v4409 = vunpack.c.l.b16 %v4106
    %v4410 = vunpack.c.h.b16 %v4106
    %v4411 = vunpack.c.l.b16 %v4107
    %v4412 = vunpack.c.h.b16 %v4107
    %v4413 = vunpack.c.l.b16 %v4108
    %v4414 = vunpack.c.h.b16 %v4108
    %v4415 = vunpack.c.l.b16 %v4109
    %v4416 = vunpack.c.h.b16 %v4109
    %v4417 = vunpack.c.l.b16 %v4110
    %v4418 = vunpack.c.h.b16 %v4110
    %v4419 = vunpack.c.l.b16 %v4111
    %v4420 = vunpack.c.h.b16 %v4111
    %v4421 = vunpack.c.l.b16 %v4112
    %v4422 = vunpack.c.h.b16 %v4112
    %v4423 = vunpack.c.l.b16 %v4113
    %v4424 = vunpack.c.h.b16 %v4113
    %v4425 = vunpack.c.l.b16 %v4114
    %v4426 = vunpack.c.h.b16 %v4114
    %v4427 = vunpack.c.l.b16 %v4115
    %v4428 = vunpack.c.h.b16 %v4115
    %v4429 = vunpack.c.l.b16 %v4116
    %v4430 = vunpack.c.h.b16 %v4116
    %v4431 = vunpack.c.l.b16 %v4117
    %v4432 = vunpack.c.h.b16 %v4117
    %v4433 = vunpack.c.l.b16 %v4118
    %v4434 = vunpack.c.h.b16 %v4118
    %v4435 = vunpack.c.l.b16 %v4119
    %v4436 = vunpack.c.h.b16 %v4119
    %v4437 = vunpack.c.l.b16 %v4120
    %v4438 = vunpack.c.h.b16 %v4120
    %v4439 = vunpack.c.l.b16 %v4121
    %v4440 = vunpack.c.h.b16 %v4121
    %v4441 = vunpack.c.l.b16 %v4122
    %v4442 = vunpack.c.h.b16 %v4122
    %v4443 = vunpack.c.l.b16 %v4123
    %v4444 = vunpack.c.h.b16 %v4123
    %v4445 = vunpack.c.l.b16 %v4124
    %v4446 = vunpack.c.h.b16 %v4124
    %v4447 = vunpack.c.l.b16 %v4125
    %v4448 = vunpack.c.h.b16 %v4125
    %v4449 = vunpack.c.l.b16 %v4126
    %v4450 = vunpack.c.h.b16 %v4126
    %v4451 = vunpack.c.l.b16 %v4127
    %v4452 = vunpack.c.h.b16 %v4127
    %v4453 = vunpack.c.l.b16 %v4128
    %v4454 = vunpack.c.h.b16 %v4128
    %v4455 = vunpack.c.l.b16 %v4129
    %v4456 = vunpack.c.h.b16 %v4129
    %v4457 = vunpack.c.l.b16 %v4130
    %v4458 = vunpack.c.h.b16 %v4130
    %v4459 = vunpack.c.l.b16 %v4131
    %v4460 = vunpack.c.h.b16 %v4131
    %v4461 = vunpack.c.l.b16 %v4132
    %v4462 = vunpack.c.h.b16 %v4132
    %v4463 = vunpack.c.l.b16 %v4133
    %v4464 = vunpack.c.h.b16 %v4133
    %v4465 = vunpack.c.l.b16 %v4134
    %v4466 = vunpack.c.h.b16 %v4134
    %v4467 = vpack.c.b16 %v4405, %v4403
    %v4468 = vpack.c.b16 %v4406, %v4404
    %v4469 = vpack.c.b16 %v4409, %v4407
    %v4470 = vpack.c.b16 %v4410, %v4408
    %v4471 = vpack.c.b16 %v4413, %v4411
    %v4472 = vpack.c.b16 %v4414, %v4412
    %v4473 = vpack.c.b16 %v4417, %v4415
    %v4474 = vpack.c.b16 %v4418, %v4416
    %v4475 = vpack.c.b16 %v4421, %v4419
    %v4476 = vpack.c.b16 %v4422, %v4420
    %v4477 = vpack.c.b16 %v4425, %v4423
    %v4478 = vpack.c.b16 %v4426, %v4424
    %v4479 = vpack.c.b16 %v4429, %v4427
    %v4480 = vpack.c.b16 %v4430, %v4428
    %v4481 = vpack.c.b16 %v4433, %v4431
    %v4482 = vpack.c.b16 %v4434, %v4432
    %v4483 = vpack.c.b16 %v4437, %v4435
    %v4484 = vpack.c.b16 %v4438, %v4436
    %v4485 = vpack.c.b16 %v4441, %v4439
    %v4486 = vpack.c.b16 %v4442, %v4440
    %v4487 = vpack.c.b16 %v4445, %v4443
    %v4488 = vpack.c.b16 %v4446, %v4444
    %v4489 = vpack.c.b16 %v4449, %v4447
    %v4490 = vpack.c.b16 %v4450, %v4448
    %v4491 = vpack.c.b16 %v4453, %v4451
    %v4492 = vpack.c.b16 %v4454, %v4452
    %v4493 = vpack.c.b16 %v4457, %v4455
    %v4494 = vpack.c.b16 %v4458, %v4456
    %v4495 = vpack.c.b16 %v4461, %v4459
    %v4496 = vpack.c.b16 %v4462, %v4460
    %v4497 = vpack.c.b16 %v4465, %v4463
    %v4498 = vpack.c.b16 %v4466, %v4464
    %4531 = vmatprep.subr.bf16.mxu0 %v4482
    %4532 = vmatpush1.bf16.msra.mxu0 %v4481
    %4533 = vmatprep.subr.bf16.mxu0 %v4480
    %4534 = vmatpush1.bf16.msra.mxu0 %v4479
    %4535 = vmatprep.subr.bf16.mxu0 %v4478
    %4536 = vmatpush1.bf16.msra.mxu0 %v4477
    %4537 = vmatprep.subr.bf16.mxu0 %v4476
    %4538 = vmatpush1.bf16.msra.mxu0 %v4475
    %4539 = vmatprep.subr.bf16.mxu0 %v4474
    %4540 = vmatpush1.bf16.msra.mxu0 %v4473
    %4541 = vmatprep.subr.bf16.mxu0 %v4472
    %4542 = vmatpush1.bf16.msra.mxu0 %v4471
    %4543 = vmatprep.subr.bf16.mxu0 %v4470
    %4544 = vmatpush1.bf16.msra.mxu0 %v4469
    %4545 = vmatprep.subr.bf16.mxu0 %v4468
    %4546 = vmatpush1.bf16.msra.mxu0 %v4467
    %4547 = vmatprep.subr.bf16.mxu0 %v4498
    %4548 = vmatpush2.bf16.msra.mxu0 %v4497
    %4549 = vmatprep.subr.bf16.mxu0 %v4496
    %4550 = vmatpush2.bf16.msra.mxu0 %v4495
    %4551 = vmatprep.subr.bf16.mxu0 %v4494
    %4552 = vmatpush2.bf16.msra.mxu0 %v4493
    %4553 = vmatprep.subr.bf16.mxu0 %v4492
    %4554 = vmatpush2.bf16.msra.mxu0 %v4491
    %4555 = vmatprep.subr.bf16.mxu0 %v4490
    %4556 = vmatpush2.bf16.msra.mxu0 %v4489
    %4557 = vmatprep.subr.bf16.mxu0 %v4488
    %4558 = vmatpush2.bf16.msra.mxu0 %v4487
    %4559 = vmatprep.subr.bf16.mxu0 %v4486
    %4560 = vmatpush2.bf16.msra.mxu0 %v4485
    %4561 = vmatprep.subr.bf16.mxu0 %v4484
    %4562 = vmatpush2.bf16.msra.mxu0 %v4483
    %4563 = vmatprep.mubr.bf16.mxu0 %v4102
    %4564 = vmatmul.mubr.bf16.gmra.mxu0 %v4101
    %v4565 = vpop.f32.mrf.mxu0
    %v4566 = vadd.f32 %v4365, %v4565
    %v4567 = vpop.f32.mrf.mxu0
    %v4568 = vadd.f32 %v4367, %v4567
    %v4569 = vpop.f32.mrf.mxu0
    %v4570 = vpop.f32.mrf.mxu0
    %4571 = vdwg.mxu0
    %v4572 = vpack.c.bf16 %v4095, %v4095
    %v4573 = vpack.c.bf16 %v4097, %v4097
    %s4574 = scalar_lea.vmem [#allocation14], 512
    %v4575 = vld [vmem:[%s4574] sm:$0xff]
    %v4576 = vld [vmem:[%s4574 + $0x8] sm:$0xff]
    %v4577 = vld [vmem:[%s4574 + $0x10] sm:$0xff]
    %v4578 = vld [vmem:[%s4574 + $0x18] sm:$0xff]
    %v4579 = vld [vmem:[%s4574 + $0x20] sm:$0xff]
    %v4580 = vld [vmem:[%s4574 + $0x28] sm:$0xff]
    %v4581 = vld [vmem:[%s4574 + $0x30] sm:$0xff]
    %v4582 = vld [vmem:[%s4574 + $0x38] sm:$0xff]
    %v4583 = vld [vmem:[%s4574 + $0x40] sm:$0xff]
    %v4584 = vld [vmem:[%s4574 + $0x48] sm:$0xff]
    %v4585 = vld [vmem:[%s4574 + $0x50] sm:$0xff]
    %v4586 = vld [vmem:[%s4574 + $0x58] sm:$0xff]
    %v4587 = vld [vmem:[%s4574 + $0x60] sm:$0xff]
    %v4588 = vld [vmem:[%s4574 + $0x68] sm:$0xff]
    %v4589 = vld [vmem:[%s4574 + $0x70] sm:$0xff]
    %v4590 = vld [vmem:[%s4574 + $0x78] sm:$0xff]
    %v4591 = vld [vmem:[%s4574 + $0x80] sm:$0xff]
    %v4592 = vld [vmem:[%s4574 + $0x88] sm:$0xff]
    %v4593 = vld [vmem:[%s4574 + $0x90] sm:$0xff]
    %v4594 = vld [vmem:[%s4574 + $0x98] sm:$0xff]
    %v4595 = vld [vmem:[%s4574 + $0xa0] sm:$0xff]
    %v4596 = vld [vmem:[%s4574 + $0xa8] sm:$0xff]
    %v4597 = vld [vmem:[%s4574 + $0xb0] sm:$0xff]
    %v4598 = vld [vmem:[%s4574 + $0xb8] sm:$0xff]
    %v4599 = vld [vmem:[%s4574 + $0xc0] sm:$0xff]
    %v4600 = vld [vmem:[%s4574 + $0xc8] sm:$0xff]
    %v4601 = vld [vmem:[%s4574 + $0xd0] sm:$0xff]
    %v4602 = vld [vmem:[%s4574 + $0xd8] sm:$0xff]
    %v4603 = vld [vmem:[%s4574 + $0xe0] sm:$0xff]
    %v4604 = vld [vmem:[%s4574 + $0xe8] sm:$0xff]
    %v4605 = vld [vmem:[%s4574 + $0xf0] sm:$0xff]
    %v4606 = vld [vmem:[%s4574 + $0xf8] sm:$0xff]
    %v4639 = vunpack.c.l.b16 %v4575
    %v4640 = vunpack.c.h.b16 %v4575
    %v4641 = vunpack.c.l.b16 %v4576
    %v4642 = vunpack.c.h.b16 %v4576
    %v4643 = vunpack.c.l.b16 %v4577
    %v4644 = vunpack.c.h.b16 %v4577
    %v4645 = vunpack.c.l.b16 %v4578
    %v4646 = vunpack.c.h.b16 %v4578
    %v4647 = vunpack.c.l.b16 %v4579
    %v4648 = vunpack.c.h.b16 %v4579
    %v4649 = vunpack.c.l.b16 %v4580
    %v4650 = vunpack.c.h.b16 %v4580
    %v4651 = vunpack.c.l.b16 %v4581
    %v4652 = vunpack.c.h.b16 %v4581
    %v4653 = vunpack.c.l.b16 %v4582
    %v4654 = vunpack.c.h.b16 %v4582
    %v4655 = vunpack.c.l.b16 %v4583
    %v4656 = vunpack.c.h.b16 %v4583
    %v4657 = vunpack.c.l.b16 %v4584
    %v4658 = vunpack.c.h.b16 %v4584
    %v4659 = vunpack.c.l.b16 %v4585
    %v4660 = vunpack.c.h.b16 %v4585
    %v4661 = vunpack.c.l.b16 %v4586
    %v4662 = vunpack.c.h.b16 %v4586
    %v4663 = vunpack.c.l.b16 %v4587
    %v4664 = vunpack.c.h.b16 %v4587
    %v4665 = vunpack.c.l.b16 %v4588
    %v4666 = vunpack.c.h.b16 %v4588
    %v4667 = vunpack.c.l.b16 %v4589
    %v4668 = vunpack.c.h.b16 %v4589
    %v4669 = vunpack.c.l.b16 %v4590
    %v4670 = vunpack.c.h.b16 %v4590
    %v4671 = vunpack.c.l.b16 %v4591
    %v4672 = vunpack.c.h.b16 %v4591
    %v4673 = vunpack.c.l.b16 %v4592
    %v4674 = vunpack.c.h.b16 %v4592
    %v4675 = vunpack.c.l.b16 %v4593
    %v4676 = vunpack.c.h.b16 %v4593
    %v4677 = vunpack.c.l.b16 %v4594
    %v4678 = vunpack.c.h.b16 %v4594
    %v4679 = vunpack.c.l.b16 %v4595
    %v4680 = vunpack.c.h.b16 %v4595
    %v4681 = vunpack.c.l.b16 %v4596
    %v4682 = vunpack.c.h.b16 %v4596
    %v4683 = vunpack.c.l.b16 %v4597
    %v4684 = vunpack.c.h.b16 %v4597
    %v4685 = vunpack.c.l.b16 %v4598
    %v4686 = vunpack.c.h.b16 %v4598
    %v4687 = vunpack.c.l.b16 %v4599
    %v4688 = vunpack.c.h.b16 %v4599
    %v4689 = vunpack.c.l.b16 %v4600
    %v4690 = vunpack.c.h.b16 %v4600
    %v4691 = vunpack.c.l.b16 %v4601
    %v4692 = vunpack.c.h.b16 %v4601
    %v4693 = vunpack.c.l.b16 %v4602
    %v4694 = vunpack.c.h.b16 %v4602
    %v4695 = vunpack.c.l.b16 %v4603
    %v4696 = vunpack.c.h.b16 %v4603
    %v4697 = vunpack.c.l.b16 %v4604
    %v4698 = vunpack.c.h.b16 %v4604
    %v4699 = vunpack.c.l.b16 %v4605
    %v4700 = vunpack.c.h.b16 %v4605
    %v4701 = vunpack.c.l.b16 %v4606
    %v4702 = vunpack.c.h.b16 %v4606
    %v4703 = vpack.c.b16 %v4641, %v4639
    %v4704 = vpack.c.b16 %v4642, %v4640
    %v4705 = vpack.c.b16 %v4645, %v4643
    %v4706 = vpack.c.b16 %v4646, %v4644
    %v4707 = vpack.c.b16 %v4649, %v4647
    %v4708 = vpack.c.b16 %v4650, %v4648
    %v4709 = vpack.c.b16 %v4653, %v4651
    %v4710 = vpack.c.b16 %v4654, %v4652
    %v4711 = vpack.c.b16 %v4657, %v4655
    %v4712 = vpack.c.b16 %v4658, %v4656
    %v4713 = vpack.c.b16 %v4661, %v4659
    %v4714 = vpack.c.b16 %v4662, %v4660
    %v4715 = vpack.c.b16 %v4665, %v4663
    %v4716 = vpack.c.b16 %v4666, %v4664
    %v4717 = vpack.c.b16 %v4669, %v4667
    %v4718 = vpack.c.b16 %v4670, %v4668
    %v4719 = vpack.c.b16 %v4673, %v4671
    %v4720 = vpack.c.b16 %v4674, %v4672
    %v4721 = vpack.c.b16 %v4677, %v4675
    %v4722 = vpack.c.b16 %v4678, %v4676
    %v4723 = vpack.c.b16 %v4681, %v4679
    %v4724 = vpack.c.b16 %v4682, %v4680
    %v4725 = vpack.c.b16 %v4685, %v4683
    %v4726 = vpack.c.b16 %v4686, %v4684
    %v4727 = vpack.c.b16 %v4689, %v4687
    %v4728 = vpack.c.b16 %v4690, %v4688
    %v4729 = vpack.c.b16 %v4693, %v4691
    %v4730 = vpack.c.b16 %v4694, %v4692
    %v4731 = vpack.c.b16 %v4697, %v4695
    %v4732 = vpack.c.b16 %v4698, %v4696
    %v4733 = vpack.c.b16 %v4701, %v4699
    %v4734 = vpack.c.b16 %v4702, %v4700
    %4767 = vmatprep.subr.bf16.mxu0 %v4718
    %4768 = vmatpush1.bf16.msra.mxu0 %v4717
    %4769 = vmatprep.subr.bf16.mxu0 %v4716
    %4770 = vmatpush1.bf16.msra.mxu0 %v4715
    %4771 = vmatprep.subr.bf16.mxu0 %v4714
    %4772 = vmatpush1.bf16.msra.mxu0 %v4713
    %4773 = vmatprep.subr.bf16.mxu0 %v4712
    %4774 = vmatpush1.bf16.msra.mxu0 %v4711
    %4775 = vmatprep.subr.bf16.mxu0 %v4710
    %4776 = vmatpush1.bf16.msra.mxu0 %v4709
    %4777 = vmatprep.subr.bf16.mxu0 %v4708
    %4778 = vmatpush1.bf16.msra.mxu0 %v4707
    %4779 = vmatprep.subr.bf16.mxu0 %v4706
    %4780 = vmatpush1.bf16.msra.mxu0 %v4705
    %4781 = vmatprep.subr.bf16.mxu0 %v4704
    %4782 = vmatpush1.bf16.msra.mxu0 %v4703
    %4783 = vmatprep.subr.bf16.mxu0 %v4734
    %4784 = vmatpush2.bf16.msra.mxu0 %v4733
    %4785 = vmatprep.subr.bf16.mxu0 %v4732
    %4786 = vmatpush2.bf16.msra.mxu0 %v4731
    %4787 = vmatprep.subr.bf16.mxu0 %v4730
    %4788 = vmatpush2.bf16.msra.mxu0 %v4729
    %4789 = vmatprep.subr.bf16.mxu0 %v4728
    %4790 = vmatpush2.bf16.msra.mxu0 %v4727
    %4791 = vmatprep.subr.bf16.mxu0 %v4726
    %4792 = vmatpush2.bf16.msra.mxu0 %v4725
    %4793 = vmatprep.subr.bf16.mxu0 %v4724
    %4794 = vmatpush2.bf16.msra.mxu0 %v4723
    %4795 = vmatprep.subr.bf16.mxu0 %v4722
    %4796 = vmatpush2.bf16.msra.mxu0 %v4721
    %4797 = vmatprep.subr.bf16.mxu0 %v4720
    %4798 = vmatpush2.bf16.msra.mxu0 %v4719
    %4799 = vmatprep.mubr.bf16.mxu0 %v4573
    %4800 = vmatmul.mubr.bf16.gmra.mxu0 %v4572
    %v4801 = vpop.f32.mrf.mxu0
    %v4802 = vadd.f32 0.0, %v4801
    %v4803 = vpop.f32.mrf.mxu0
    %v4804 = vadd.f32 0.0, %v4803
    %v4805 = vpop.f32.mrf.mxu0
    %v4806 = vpop.f32.mrf.mxu0
    %4807 = vdwg.mxu0
    %v4808 = vadd.f32 %v4566, %v4802
    %v4809 = vadd.f32 %v4568, %v4804
    %v4810 = vrot.slane %v4808, 4
    %v4811 = vadd.f32 %v4808, %v4810
    %v4812 = vrot.slane %v4811, 2
    %v4813 = vadd.f32 %v4811, %v4812
    %v4814 = vrot.slane %v4813, 1
    %v4815 = vadd.f32 %v4813, %v4814
    %v4816 = vrot.slane %v4809, 4
    %v4817 = vadd.f32 %v4809, %v4816
    %v4818 = vrot.slane %v4817, 2
    %v4819 = vadd.f32 %v4817, %v4818
    %v4820 = vrot.slane %v4819, 1
    %v4821 = vadd.f32 %v4819, %v4820
    %v4822 = vmul.f32 %v4815, 0.125
    %v4823 = vmul.f32 %v4821, 0.125
    %v4824 = vmul.f32 %v4808, %v4808
    %v4825 = vmul.f32 %v4809, %v4809
    %v4826 = vrot.slane %v4824, 4
    %v4827 = vadd.f32 %v4824, %v4826
    %v4828 = vrot.slane %v4827, 2
    %v4829 = vadd.f32 %v4827, %v4828
    %v4830 = vrot.slane %v4829, 1
    %v4831 = vadd.f32 %v4829, %v4830
    %v4832 = vrot.slane %v4825, 4
    %v4833 = vadd.f32 %v4825, %v4832
    %v4834 = vrot.slane %v4833, 2
    %v4835 = vadd.f32 %v4833, %v4834
    %v4836 = vrot.slane %v4835, 1
    %v4837 = vadd.f32 %v4835, %v4836
    %v4838 = vmul.f32 %v4831, 0.125
    %v4839 = vmul.f32 %v4837, 0.125
    %v4840 = vmul.f32 %v4822, %v4822
    %v4841 = vmul.f32 %v4823, %v4823
    %v4842 = vsub.f32 %v4838, %v4840
    %v4843 = vsub.f32 %v4839, %v4841
    %v4844 = vmax.f32 %v4842, 0.0
    %v4845 = vmax.f32 %v4843, 0.0
    %v4846 = vld [vmem:[%s47] sm:$0x3]
    %v4847 = vadd.f32 %v4844, 1e-05
    %v4848 = vadd.f32 %v4845, 1e-05
    %v4849 = vrsqrt.pop %v4847
    %v4850 = vrsqrt.pop %v4848
    %v4853 = vcombine.low %v4849, %v4850
    %v4855 = vunpack.c.l.s4 1966171168
    %v4856 = vunpack.c.0.s8 %v4855
    %v4857 = vlaneseq
    %v4858 = vshrl.u32 %v4857, 7
    %v4859 = vsub.s32 %v4856, %v4858
    %v4860 = vrot.slane %v4853, %v4859
    %v4862 = vunpack.c.l.s4 1966171168
    %v4863 = vunpack.c.0.s8 %v4862
    %v4864 = vlaneseq
    %v4865 = vshrl.u32 %v4864, 7
    %v4866 = vsub.s32 %v4863, %v4865
    %v4867 = vrot.slane %v4860, %v4866
    %v4869 = vmul.f32 %v4846, %v4867
    %v4870 = vld [vmem:[%s49] sm:$0x3]
    %v4872 = vlaneseq
    %v4873 = vshrl.u32 %v4872, 7
    %v4874 = vsub.s32 0, %v4873
    %v4875 = vrot.slane %v4869, %v4874
    %v4876 = vlaneseq
    %v4877 = vshrl.u32 %v4876, 7
    %v4878 = vsub.s32 1, %v4877
    %v4879 = vrot.slane %v4869, %v4878
    %v4882 = vmul.f32 %v4822, %v4875
    %v4883 = vmul.f32 %v4823, %v4879
    %v4886 = vcombine.low %v4882, %v4883
    %v4888 = vunpack.c.l.s4 1966171168
    %v4889 = vunpack.c.0.s8 %v4888
    %v4890 = vlaneseq
    %v4891 = vshrl.u32 %v4890, 7
    %v4892 = vsub.s32 %v4889, %v4891
    %v4893 = vrot.slane %v4886, %v4892
    %v4895 = vunpack.c.l.s4 1966171168
    %v4896 = vunpack.c.0.s8 %v4895
    %v4897 = vlaneseq
    %v4898 = vshrl.u32 %v4897, 7
    %v4899 = vsub.s32 %v4896, %v4898
    %v4900 = vrot.slane %v4893, %v4899
    %v4902 = vsub.f32 %v4870, %v4900
    %v4903 = vmul.f32 %v4808, %v4875
    %v4904 = vmul.f32 %v4809, %v4879
    %v4906 = vlaneseq
    %v4907 = vshrl.u32 %v4906, 7
    %v4908 = vsub.s32 0, %v4907
    %v4909 = vrot.slane %v4902, %v4908
    %v4910 = vlaneseq
    %v4911 = vshrl.u32 %v4910, 7
    %v4912 = vsub.s32 1, %v4911
    %v4913 = vrot.slane %v4902, %v4912
    %v4916 = vadd.f32 %v4903, %v4909
    %v4917 = vadd.f32 %v4904, %v4913
    %v4918 = vadd.f32 %v4916, %v3942
    %v4919 = vadd.f32 %v4917, %v3943
    %v4920 = vmax.f32 %v4918, 0.0
    %v4921 = vmax.f32 %v4919, 0.0
    %v4922 = vpack.c.bf16 %v4920, %v4920
    %v4923 = vpack.c.bf16 %v4921, %v4921
    %vm4924 = vcmp.lt.s32.totalorder %v581, 2
    %vm4925 = vmand %vm587, %vm4924
    %vm4926 = vmand %vm4925, %vm599
    %vm4927 = vmand %vm4926, %vm3946
    %vm4928 = vcmp.ge.s32.totalorder %v581, 2
    %vm4929 = vmand %vm4928, %vm3024
    %vm4930 = vmand %vm4929, %vm3948
    %vm4931 = vmand %vm4930, %vm2495
    %vm4932 = vmor %vm4927, %vm4931
    %vm4933 = vmand %vm4932, %vm643
    %v4934 = vsel %vm4933, 1.0, 0.0
    %v4935 = vpack.c.bf16 %v4934, %v4934
    %v4937 = vsel %vm3955, %v4935, 0
    %v4940 = vsel %vm3959, %v4922, 0
    %v4943 = vsel %vm3959, %v4923, 0
    %4945 = vmatprep.subr.bf16.mxu0 0
    %4946 = vmatpush1.bf16.msra.mxu0 0
    %4947 = vmatprep.subr.bf16.mxu0 0
    %4948 = vmatpush1.bf16.msra.mxu0 0
    %4949 = vmatprep.subr.bf16.mxu0 0
    %4950 = vmatpush1.bf16.msra.mxu0 0
    %4951 = vmatprep.subr.bf16.mxu0 0
    %4952 = vmatpush1.bf16.msra.mxu0 0
    %4953 = vmatprep.subr.bf16.mxu0 0
    %4954 = vmatpush1.bf16.msra.mxu0 0
    %4955 = vmatprep.subr.bf16.mxu0 0
    %4956 = vmatpush1.bf16.msra.mxu0 0
    %4957 = vmatprep.subr.bf16.mxu0 0
    %4958 = vmatpush1.bf16.msra.mxu0 0
    %4959 = vmatprep.subr.bf16.mxu0 %v4943
    %4960 = vmatpush1.bf16.msra.mxu0 %v4940
    %4961 = vmatprep.subr.bf16.mxu0 0
    %4962 = vmatpush2.bf16.msra.mxu0 0
    %4963 = vmatprep.subr.bf16.mxu0 0
    %4964 = vmatpush2.bf16.msra.mxu0 0
    %4965 = vmatprep.subr.bf16.mxu0 0
    %4966 = vmatpush2.bf16.msra.mxu0 0
    %4967 = vmatprep.subr.bf16.mxu0 0
    %4968 = vmatpush2.bf16.msra.mxu0 0
    %4969 = vmatprep.subr.bf16.mxu0 0
    %4970 = vmatpush2.bf16.msra.mxu0 0
    %4971 = vmatprep.subr.bf16.mxu0 0
    %4972 = vmatpush2.bf16.msra.mxu0 0
    %4973 = vmatprep.subr.bf16.mxu0 0
    %4974 = vmatpush2.bf16.msra.mxu0 0
    %4975 = vmatprep.subr.bf16.mxu0 0
    %4976 = vmatpush2.bf16.msra.mxu0 0
    %4977 = vmatprep.mubr.bf16.mxu0 0
    %4978 = vmatmul.mubr.bf16.gmra.mxu0 %v4937
    %v4979 = vpop.f32.mrf.mxu0
    %v4980 = vadd.f32 0.0, %v4979
    %v4981 = vpop.f32.mrf.mxu0
    %v4982 = vadd.f32 0.0, %v4981
    %v4983 = vpop.f32.mrf.mxu0
    %v4984 = vpop.f32.mrf.mxu0
    %4985 = vdwg.mxu0
    %vm4986 = vmand %vm4932, %vm712
    %v4987 = vsel %vm4986, 1.0, 0.0
    %v4988 = vpack.c.bf16 %v4987, %v4987
    %v4990 = vsel %vm3955, %v4988, 0
    %4992 = vmatprep.subr.bf16.mxu0 0
    %4993 = vmatpush1.bf16.msra.mxu0 0
    %4994 = vmatprep.subr.bf16.mxu0 0
    %4995 = vmatpush1.bf16.msra.mxu0 0
    %4996 = vmatprep.subr.bf16.mxu0 0
    %4997 = vmatpush1.bf16.msra.mxu0 0
    %4998 = vmatprep.subr.bf16.mxu0 0
    %4999 = vmatpush1.bf16.msra.mxu0 0
    %5000 = vmatprep.subr.bf16.mxu0 0
    %5001 = vmatpush1.bf16.msra.mxu0 0
    %5002 = vmatprep.subr.bf16.mxu0 0
    %5003 = vmatpush1.bf16.msra.mxu0 0
    %5004 = vmatprep.subr.bf16.mxu0 0
    %5005 = vmatpush1.bf16.msra.mxu0 0
    %5006 = vmatprep.subr.bf16.mxu0 %v4943
    %5007 = vmatpush1.bf16.msra.mxu0 %v4940
    %5008 = vmatprep.subr.bf16.mxu0 0
    %5009 = vmatpush2.bf16.msra.mxu0 0
    %5010 = vmatprep.subr.bf16.mxu0 0
    %5011 = vmatpush2.bf16.msra.mxu0 0
    %5012 = vmatprep.subr.bf16.mxu0 0
    %5013 = vmatpush2.bf16.msra.mxu0 0
    %5014 = vmatprep.subr.bf16.mxu0 0
    %5015 = vmatpush2.bf16.msra.mxu0 0
    %5016 = vmatprep.subr.bf16.mxu0 0
    %5017 = vmatpush2.bf16.msra.mxu0 0
    %5018 = vmatprep.subr.bf16.mxu0 0
    %5019 = vmatpush2.bf16.msra.mxu0 0
    %5020 = vmatprep.subr.bf16.mxu0 0
    %5021 = vmatpush2.bf16.msra.mxu0 0
    %5022 = vmatprep.subr.bf16.mxu0 0
    %5023 = vmatpush2.bf16.msra.mxu0 0
    %5024 = vmatprep.mubr.bf16.mxu0 0
    %5025 = vmatmul.mubr.bf16.gmra.mxu0 %v4990
    %v5026 = vpop.f32.mrf.mxu0
    %v5027 = vadd.f32 0.0, %v5026
    %v5028 = vpop.f32.mrf.mxu0
    %v5029 = vadd.f32 0.0, %v5028
    %v5030 = vpop.f32.mrf.mxu0
    %v5031 = vpop.f32.mrf.mxu0
    %5032 = vdwg.mxu0
    %vm5033 = vmand %vm4932, %vm785
    %v5034 = vsel %vm5033, 1.0, 0.0
    %v5035 = vpack.c.bf16 %v5034, %v5034
    %v5037 = vsel %vm3955, %v5035, 0
    %5039 = vmatprep.subr.bf16.mxu0 0
    %5040 = vmatpush1.bf16.msra.mxu0 0
    %5041 = vmatprep.subr.bf16.mxu0 0
    %5042 = vmatpush1.bf16.msra.mxu0 0
    %5043 = vmatprep.subr.bf16.mxu0 0
    %5044 = vmatpush1.bf16.msra.mxu0 0
    %5045 = vmatprep.subr.bf16.mxu0 0
    %5046 = vmatpush1.bf16.msra.mxu0 0
    %5047 = vmatprep.subr.bf16.mxu0 0
    %5048 = vmatpush1.bf16.msra.mxu0 0
    %5049 = vmatprep.subr.bf16.mxu0 0
    %5050 = vmatpush1.bf16.msra.mxu0 0
    %5051 = vmatprep.subr.bf16.mxu0 0
    %5052 = vmatpush1.bf16.msra.mxu0 0
    %5053 = vmatprep.subr.bf16.mxu0 %v4943
    %5054 = vmatpush1.bf16.msra.mxu0 %v4940
    %5055 = vmatprep.subr.bf16.mxu0 0
    %5056 = vmatpush2.bf16.msra.mxu0 0
    %5057 = vmatprep.subr.bf16.mxu0 0
    %5058 = vmatpush2.bf16.msra.mxu0 0
    %5059 = vmatprep.subr.bf16.mxu0 0
    %5060 = vmatpush2.bf16.msra.mxu0 0
    %5061 = vmatprep.subr.bf16.mxu0 0
    %5062 = vmatpush2.bf16.msra.mxu0 0
    %5063 = vmatprep.subr.bf16.mxu0 0
    %5064 = vmatpush2.bf16.msra.mxu0 0
    %5065 = vmatprep.subr.bf16.mxu0 0
    %5066 = vmatpush2.bf16.msra.mxu0 0
    %5067 = vmatprep.subr.bf16.mxu0 0
    %5068 = vmatpush2.bf16.msra.mxu0 0
    %5069 = vmatprep.subr.bf16.mxu0 0
    %5070 = vmatpush2.bf16.msra.mxu0 0
    %5071 = vmatprep.mubr.bf16.mxu0 0
    %5072 = vmatmul.mubr.bf16.gmra.mxu0 %v5037
    %v5073 = vpop.f32.mrf.mxu0
    %v5074 = vadd.f32 0.0, %v5073
    %v5075 = vpop.f32.mrf.mxu0
    %v5076 = vadd.f32 0.0, %v5075
    %v5077 = vpop.f32.mrf.mxu0
    %v5078 = vpop.f32.mrf.mxu0
    %5079 = vdwg.mxu0
    %v5080 = vpack.c.bf16 %v4980, %v4980
    %v5081 = vpack.c.bf16 %v4982, %v4982
    %v5082 = vld [vmem:[#allocation17] sm:$0xff]
    %v5083 = vld [vmem:[#allocation17 + $0x8] sm:$0xff]
    %v5084 = vld [vmem:[#allocation17 + $0x10] sm:$0xff]
    %v5085 = vld [vmem:[#allocation17 + $0x18] sm:$0xff]
    %v5086 = vld [vmem:[#allocation17 + $0x20] sm:$0xff]
    %v5087 = vld [vmem:[#allocation17 + $0x28] sm:$0xff]
    %v5088 = vld [vmem:[#allocation17 + $0x30] sm:$0xff]
    %v5089 = vld [vmem:[#allocation17 + $0x38] sm:$0xff]
    %v5090 = vld [vmem:[#allocation17 + $0x40] sm:$0xff]
    %v5091 = vld [vmem:[#allocation17 + $0x48] sm:$0xff]
    %v5092 = vld [vmem:[#allocation17 + $0x50] sm:$0xff]
    %v5093 = vld [vmem:[#allocation17 + $0x58] sm:$0xff]
    %v5094 = vld [vmem:[#allocation17 + $0x60] sm:$0xff]
    %v5095 = vld [vmem:[#allocation17 + $0x68] sm:$0xff]
    %v5096 = vld [vmem:[#allocation17 + $0x70] sm:$0xff]
    %v5097 = vld [vmem:[#allocation17 + $0x78] sm:$0xff]
    %v5098 = vld [vmem:[#allocation17 + $0x80] sm:$0xff]
    %v5099 = vld [vmem:[#allocation17 + $0x88] sm:$0xff]
    %v5100 = vld [vmem:[#allocation17 + $0x90] sm:$0xff]
    %v5101 = vld [vmem:[#allocation17 + $0x98] sm:$0xff]
    %v5102 = vld [vmem:[#allocation17 + $0xa0] sm:$0xff]
    %v5103 = vld [vmem:[#allocation17 + $0xa8] sm:$0xff]
    %v5104 = vld [vmem:[#allocation17 + $0xb0] sm:$0xff]
    %v5105 = vld [vmem:[#allocation17 + $0xb8] sm:$0xff]
    %v5106 = vld [vmem:[#allocation17 + $0xc0] sm:$0xff]
    %v5107 = vld [vmem:[#allocation17 + $0xc8] sm:$0xff]
    %v5108 = vld [vmem:[#allocation17 + $0xd0] sm:$0xff]
    %v5109 = vld [vmem:[#allocation17 + $0xd8] sm:$0xff]
    %v5110 = vld [vmem:[#allocation17 + $0xe0] sm:$0xff]
    %v5111 = vld [vmem:[#allocation17 + $0xe8] sm:$0xff]
    %v5112 = vld [vmem:[#allocation17 + $0xf0] sm:$0xff]
    %v5113 = vld [vmem:[#allocation17 + $0xf8] sm:$0xff]
    %v5114 = vld [vmem:[#allocation17 + $0x100] sm:$0xff]
    %v5115 = vld [vmem:[#allocation17 + $0x108] sm:$0xff]
    %v5116 = vld [vmem:[#allocation17 + $0x110] sm:$0xff]
    %v5117 = vld [vmem:[#allocation17 + $0x118] sm:$0xff]
    %v5118 = vld [vmem:[#allocation17 + $0x120] sm:$0xff]
    %v5119 = vld [vmem:[#allocation17 + $0x128] sm:$0xff]
    %v5120 = vld [vmem:[#allocation17 + $0x130] sm:$0xff]
    %v5121 = vld [vmem:[#allocation17 + $0x138] sm:$0xff]
    %v5122 = vld [vmem:[#allocation17 + $0x140] sm:$0xff]
    %v5123 = vld [vmem:[#allocation17 + $0x148] sm:$0xff]
    %v5124 = vld [vmem:[#allocation17 + $0x150] sm:$0xff]
    %v5125 = vld [vmem:[#allocation17 + $0x158] sm:$0xff]
    %v5126 = vld [vmem:[#allocation17 + $0x160] sm:$0xff]
    %v5127 = vld [vmem:[#allocation17 + $0x168] sm:$0xff]
    %v5128 = vld [vmem:[#allocation17 + $0x170] sm:$0xff]
    %v5129 = vld [vmem:[#allocation17 + $0x178] sm:$0xff]
    %v5130 = vld [vmem:[#allocation17 + $0x180] sm:$0xff]
    %v5131 = vld [vmem:[#allocation17 + $0x188] sm:$0xff]
    %v5132 = vld [vmem:[#allocation17 + $0x190] sm:$0xff]
    %v5133 = vld [vmem:[#allocation17 + $0x198] sm:$0xff]
    %v5134 = vld [vmem:[#allocation17 + $0x1a0] sm:$0xff]
    %v5135 = vld [vmem:[#allocation17 + $0x1a8] sm:$0xff]
    %v5136 = vld [vmem:[#allocation17 + $0x1b0] sm:$0xff]
    %v5137 = vld [vmem:[#allocation17 + $0x1b8] sm:$0xff]
    %v5138 = vld [vmem:[#allocation17 + $0x1c0] sm:$0xff]
    %v5139 = vld [vmem:[#allocation17 + $0x1c8] sm:$0xff]
    %v5140 = vld [vmem:[#allocation17 + $0x1d0] sm:$0xff]
    %v5141 = vld [vmem:[#allocation17 + $0x1d8] sm:$0xff]
    %v5142 = vld [vmem:[#allocation17 + $0x1e0] sm:$0xff]
    %v5143 = vld [vmem:[#allocation17 + $0x1e8] sm:$0xff]
    %v5144 = vld [vmem:[#allocation17 + $0x1f0] sm:$0xff]
    %v5145 = vld [vmem:[#allocation17 + $0x1f8] sm:$0xff]
    %v5146 = vpack.c.bf16 %v5027, %v5027
    %v5147 = vpack.c.bf16 %v5029, %v5029
    %s5148 = scalar_lea.vmem [#allocation17], 512
    %v5149 = vld [vmem:[%s5148] sm:$0xff]
    %v5150 = vld [vmem:[%s5148 + $0x8] sm:$0xff]
    %v5151 = vld [vmem:[%s5148 + $0x10] sm:$0xff]
    %v5152 = vld [vmem:[%s5148 + $0x18] sm:$0xff]
    %v5153 = vld [vmem:[%s5148 + $0x20] sm:$0xff]
    %v5154 = vld [vmem:[%s5148 + $0x28] sm:$0xff]
    %v5155 = vld [vmem:[%s5148 + $0x30] sm:$0xff]
    %v5156 = vld [vmem:[%s5148 + $0x38] sm:$0xff]
    %v5157 = vld [vmem:[%s5148 + $0x40] sm:$0xff]
    %v5158 = vld [vmem:[%s5148 + $0x48] sm:$0xff]
    %v5159 = vld [vmem:[%s5148 + $0x50] sm:$0xff]
    %v5160 = vld [vmem:[%s5148 + $0x58] sm:$0xff]
    %v5161 = vld [vmem:[%s5148 + $0x60] sm:$0xff]
    %v5162 = vld [vmem:[%s5148 + $0x68] sm:$0xff]
    %v5163 = vld [vmem:[%s5148 + $0x70] sm:$0xff]
    %v5164 = vld [vmem:[%s5148 + $0x78] sm:$0xff]
    %v5165 = vld [vmem:[%s5148 + $0x80] sm:$0xff]
    %v5166 = vld [vmem:[%s5148 + $0x88] sm:$0xff]
    %v5167 = vld [vmem:[%s5148 + $0x90] sm:$0xff]
    %v5168 = vld [vmem:[%s5148 + $0x98] sm:$0xff]
    %v5169 = vld [vmem:[%s5148 + $0xa0] sm:$0xff]
    %v5170 = vld [vmem:[%s5148 + $0xa8] sm:$0xff]
    %v5171 = vld [vmem:[%s5148 + $0xb0] sm:$0xff]
    %v5172 = vld [vmem:[%s5148 + $0xb8] sm:$0xff]
    %v5173 = vld [vmem:[%s5148 + $0xc0] sm:$0xff]
    %v5174 = vld [vmem:[%s5148 + $0xc8] sm:$0xff]
    %v5175 = vld [vmem:[%s5148 + $0xd0] sm:$0xff]
    %v5176 = vld [vmem:[%s5148 + $0xd8] sm:$0xff]
    %v5177 = vld [vmem:[%s5148 + $0xe0] sm:$0xff]
    %v5178 = vld [vmem:[%s5148 + $0xe8] sm:$0xff]
    %v5179 = vld [vmem:[%s5148 + $0xf0] sm:$0xff]
    %v5180 = vld [vmem:[%s5148 + $0xf8] sm:$0xff]
    %v5181 = vld [vmem:[%s5148 + $0x100] sm:$0xff]
    %v5182 = vld [vmem:[%s5148 + $0x108] sm:$0xff]
    %v5183 = vld [vmem:[%s5148 + $0x110] sm:$0xff]
    %v5184 = vld [vmem:[%s5148 + $0x118] sm:$0xff]
    %v5185 = vld [vmem:[%s5148 + $0x120] sm:$0xff]
    %v5186 = vld [vmem:[%s5148 + $0x128] sm:$0xff]
    %v5187 = vld [vmem:[%s5148 + $0x130] sm:$0xff]
    %v5188 = vld [vmem:[%s5148 + $0x138] sm:$0xff]
    %v5189 = vld [vmem:[%s5148 + $0x140] sm:$0xff]
    %v5190 = vld [vmem:[%s5148 + $0x148] sm:$0xff]
    %v5191 = vld [vmem:[%s5148 + $0x150] sm:$0xff]
    %v5192 = vld [vmem:[%s5148 + $0x158] sm:$0xff]
    %v5193 = vld [vmem:[%s5148 + $0x160] sm:$0xff]
    %v5194 = vld [vmem:[%s5148 + $0x168] sm:$0xff]
    %v5195 = vld [vmem:[%s5148 + $0x170] sm:$0xff]
    %v5196 = vld [vmem:[%s5148 + $0x178] sm:$0xff]
    %v5197 = vld [vmem:[%s5148 + $0x180] sm:$0xff]
    %v5198 = vld [vmem:[%s5148 + $0x188] sm:$0xff]
    %v5199 = vld [vmem:[%s5148 + $0x190] sm:$0xff]
    %v5200 = vld [vmem:[%s5148 + $0x198] sm:$0xff]
    %v5201 = vld [vmem:[%s5148 + $0x1a0] sm:$0xff]
    %v5202 = vld [vmem:[%s5148 + $0x1a8] sm:$0xff]
    %v5203 = vld [vmem:[%s5148 + $0x1b0] sm:$0xff]
    %v5204 = vld [vmem:[%s5148 + $0x1b8] sm:$0xff]
    %v5205 = vld [vmem:[%s5148 + $0x1c0] sm:$0xff]
    %v5206 = vld [vmem:[%s5148 + $0x1c8] sm:$0xff]
    %v5207 = vld [vmem:[%s5148 + $0x1d0] sm:$0xff]
    %v5208 = vld [vmem:[%s5148 + $0x1d8] sm:$0xff]
    %v5209 = vld [vmem:[%s5148 + $0x1e0] sm:$0xff]
    %v5210 = vld [vmem:[%s5148 + $0x1e8] sm:$0xff]
    %v5211 = vld [vmem:[%s5148 + $0x1f0] sm:$0xff]
    %v5212 = vld [vmem:[%s5148 + $0x1f8] sm:$0xff]
    %v5277 = vunpack.c.l.b16 %v5149
    %v5278 = vunpack.c.h.b16 %v5149
    %v5279 = vunpack.c.l.b16 %v5150
    %v5280 = vunpack.c.h.b16 %v5150
    %v5281 = vunpack.c.l.b16 %v5151
    %v5282 = vunpack.c.h.b16 %v5151
    %v5283 = vunpack.c.l.b16 %v5152
    %v5284 = vunpack.c.h.b16 %v5152
    %v5285 = vunpack.c.l.b16 %v5153
    %v5286 = vunpack.c.h.b16 %v5153
    %v5287 = vunpack.c.l.b16 %v5154
    %v5288 = vunpack.c.h.b16 %v5154
    %v5289 = vunpack.c.l.b16 %v5155
    %v5290 = vunpack.c.h.b16 %v5155
    %v5291 = vunpack.c.l.b16 %v5156
    %v5292 = vunpack.c.h.b16 %v5156
    %v5293 = vunpack.c.l.b16 %v5157
    %v5294 = vunpack.c.h.b16 %v5157
    %v5295 = vunpack.c.l.b16 %v5158
    %v5296 = vunpack.c.h.b16 %v5158
    %v5297 = vunpack.c.l.b16 %v5159
    %v5298 = vunpack.c.h.b16 %v5159
    %v5299 = vunpack.c.l.b16 %v5160
    %v5300 = vunpack.c.h.b16 %v5160
    %v5301 = vunpack.c.l.b16 %v5161
    %v5302 = vunpack.c.h.b16 %v5161
    %v5303 = vunpack.c.l.b16 %v5162
    %v5304 = vunpack.c.h.b16 %v5162
    %v5305 = vunpack.c.l.b16 %v5163
    %v5306 = vunpack.c.h.b16 %v5163
    %v5307 = vunpack.c.l.b16 %v5164
    %v5308 = vunpack.c.h.b16 %v5164
    %v5309 = vunpack.c.l.b16 %v5165
    %v5310 = vunpack.c.h.b16 %v5165
    %v5311 = vunpack.c.l.b16 %v5166
    %v5312 = vunpack.c.h.b16 %v5166
    %v5313 = vunpack.c.l.b16 %v5167
    %v5314 = vunpack.c.h.b16 %v5167
    %v5315 = vunpack.c.l.b16 %v5168
    %v5316 = vunpack.c.h.b16 %v5168
    %v5317 = vunpack.c.l.b16 %v5169
    %v5318 = vunpack.c.h.b16 %v5169
    %v5319 = vunpack.c.l.b16 %v5170
    %v5320 = vunpack.c.h.b16 %v5170
    %v5321 = vunpack.c.l.b16 %v5171
    %v5322 = vunpack.c.h.b16 %v5171
    %v5323 = vunpack.c.l.b16 %v5172
    %v5324 = vunpack.c.h.b16 %v5172
    %v5325 = vunpack.c.l.b16 %v5173
    %v5326 = vunpack.c.h.b16 %v5173
    %v5327 = vunpack.c.l.b16 %v5174
    %v5328 = vunpack.c.h.b16 %v5174
    %v5329 = vunpack.c.l.b16 %v5175
    %v5330 = vunpack.c.h.b16 %v5175
    %v5331 = vunpack.c.l.b16 %v5176
    %v5332 = vunpack.c.h.b16 %v5176
    %v5333 = vunpack.c.l.b16 %v5177
    %v5334 = vunpack.c.h.b16 %v5177
    %v5335 = vunpack.c.l.b16 %v5178
    %v5336 = vunpack.c.h.b16 %v5178
    %v5337 = vunpack.c.l.b16 %v5179
    %v5338 = vunpack.c.h.b16 %v5179
    %v5339 = vunpack.c.l.b16 %v5180
    %v5340 = vunpack.c.h.b16 %v5180
    %v5341 = vunpack.c.l.b16 %v5181
    %v5342 = vunpack.c.h.b16 %v5181
    %v5343 = vunpack.c.l.b16 %v5182
    %v5344 = vunpack.c.h.b16 %v5182
    %v5345 = vunpack.c.l.b16 %v5183
    %v5346 = vunpack.c.h.b16 %v5183
    %v5347 = vunpack.c.l.b16 %v5184
    %v5348 = vunpack.c.h.b16 %v5184
    %v5349 = vunpack.c.l.b16 %v5185
    %v5350 = vunpack.c.h.b16 %v5185
    %v5351 = vunpack.c.l.b16 %v5186
    %v5352 = vunpack.c.h.b16 %v5186
    %v5353 = vunpack.c.l.b16 %v5187
    %v5354 = vunpack.c.h.b16 %v5187
    %v5355 = vunpack.c.l.b16 %v5188
    %v5356 = vunpack.c.h.b16 %v5188
    %v5357 = vunpack.c.l.b16 %v5189
    %v5358 = vunpack.c.h.b16 %v5189
    %v5359 = vunpack.c.l.b16 %v5190
    %v5360 = vunpack.c.h.b16 %v5190
    %v5361 = vunpack.c.l.b16 %v5191
    %v5362 = vunpack.c.h.b16 %v5191
    %v5363 = vunpack.c.l.b16 %v5192
    %v5364 = vunpack.c.h.b16 %v5192
    %v5365 = vunpack.c.l.b16 %v5193
    %v5366 = vunpack.c.h.b16 %v5193
    %v5367 = vunpack.c.l.b16 %v5194
    %v5368 = vunpack.c.h.b16 %v5194
    %v5369 = vunpack.c.l.b16 %v5195
    %v5370 = vunpack.c.h.b16 %v5195
    %v5371 = vunpack.c.l.b16 %v5196
    %v5372 = vunpack.c.h.b16 %v5196
    %v5373 = vunpack.c.l.b16 %v5197
    %v5374 = vunpack.c.h.b16 %v5197
    %v5375 = vunpack.c.l.b16 %v5198
    %v5376 = vunpack.c.h.b16 %v5198
    %v5377 = vunpack.c.l.b16 %v5199
    %v5378 = vunpack.c.h.b16 %v5199
    %v5379 = vunpack.c.l.b16 %v5200
    %v5380 = vunpack.c.h.b16 %v5200
    %v5381 = vunpack.c.l.b16 %v5201
    %v5382 = vunpack.c.h.b16 %v5201
    %v5383 = vunpack.c.l.b16 %v5202
    %v5384 = vunpack.c.h.b16 %v5202
    %v5385 = vunpack.c.l.b16 %v5203
    %v5386 = vunpack.c.h.b16 %v5203
    %v5387 = vunpack.c.l.b16 %v5204
    %v5388 = vunpack.c.h.b16 %v5204
    %v5389 = vunpack.c.l.b16 %v5205
    %v5390 = vunpack.c.h.b16 %v5205
    %v5391 = vunpack.c.l.b16 %v5206
    %v5392 = vunpack.c.h.b16 %v5206
    %v5393 = vunpack.c.l.b16 %v5207
    %v5394 = vunpack.c.h.b16 %v5207
    %v5395 = vunpack.c.l.b16 %v5208
    %v5396 = vunpack.c.h.b16 %v5208
    %v5397 = vunpack.c.l.b16 %v5209
    %v5398 = vunpack.c.h.b16 %v5209
    %v5399 = vunpack.c.l.b16 %v5210
    %v5400 = vunpack.c.h.b16 %v5210
    %v5401 = vunpack.c.l.b16 %v5211
    %v5402 = vunpack.c.h.b16 %v5211
    %v5403 = vunpack.c.l.b16 %v5212
    %v5404 = vunpack.c.h.b16 %v5212
    %v5405 = vpack.c.b16 %v5281, %v5277
    %v5406 = vpack.c.b16 %v5282, %v5278
    %v5407 = vpack.c.b16 %v5283, %v5279
    %v5408 = vpack.c.b16 %v5284, %v5280
    %v5409 = vpack.c.b16 %v5289, %v5285
    %v5410 = vpack.c.b16 %v5290, %v5286
    %v5411 = vpack.c.b16 %v5291, %v5287
    %v5412 = vpack.c.b16 %v5292, %v5288
    %v5413 = vpack.c.b16 %v5297, %v5293
    %v5414 = vpack.c.b16 %v5298, %v5294
    %v5415 = vpack.c.b16 %v5299, %v5295
    %v5416 = vpack.c.b16 %v5300, %v5296
    %v5417 = vpack.c.b16 %v5305, %v5301
    %v5418 = vpack.c.b16 %v5306, %v5302
    %v5419 = vpack.c.b16 %v5307, %v5303
    %v5420 = vpack.c.b16 %v5308, %v5304
    %v5421 = vpack.c.b16 %v5313, %v5309
    %v5422 = vpack.c.b16 %v5314, %v5310
    %v5423 = vpack.c.b16 %v5315, %v5311
    %v5424 = vpack.c.b16 %v5316, %v5312
    %v5425 = vpack.c.b16 %v5321, %v5317
    %v5426 = vpack.c.b16 %v5322, %v5318
    %v5427 = vpack.c.b16 %v5323, %v5319
    %v5428 = vpack.c.b16 %v5324, %v5320
    %v5429 = vpack.c.b16 %v5329, %v5325
    %v5430 = vpack.c.b16 %v5330, %v5326
    %v5431 = vpack.c.b16 %v5331, %v5327
    %v5432 = vpack.c.b16 %v5332, %v5328
    %v5433 = vpack.c.b16 %v5337, %v5333
    %v5434 = vpack.c.b16 %v5338, %v5334
    %v5435 = vpack.c.b16 %v5339, %v5335
    %v5436 = vpack.c.b16 %v5340, %v5336
    %v5437 = vpack.c.b16 %v5345, %v5341
    %v5438 = vpack.c.b16 %v5346, %v5342
    %v5439 = vpack.c.b16 %v5347, %v5343
    %v5440 = vpack.c.b16 %v5348, %v5344
    %v5441 = vpack.c.b16 %v5353, %v5349
    %v5442 = vpack.c.b16 %v5354, %v5350
    %v5443 = vpack.c.b16 %v5355, %v5351
    %v5444 = vpack.c.b16 %v5356, %v5352
    %v5445 = vpack.c.b16 %v5361, %v5357
    %v5446 = vpack.c.b16 %v5362, %v5358
    %v5447 = vpack.c.b16 %v5363, %v5359
    %v5448 = vpack.c.b16 %v5364, %v5360
    %v5449 = vpack.c.b16 %v5369, %v5365
    %v5450 = vpack.c.b16 %v5370, %v5366
    %v5451 = vpack.c.b16 %v5371, %v5367
    %v5452 = vpack.c.b16 %v5372, %v5368
    %v5453 = vpack.c.b16 %v5377, %v5373
    %v5454 = vpack.c.b16 %v5378, %v5374
    %v5455 = vpack.c.b16 %v5379, %v5375
    %v5456 = vpack.c.b16 %v5380, %v5376
    %v5457 = vpack.c.b16 %v5385, %v5381
    %v5458 = vpack.c.b16 %v5386, %v5382
    %v5459 = vpack.c.b16 %v5387, %v5383
    %v5460 = vpack.c.b16 %v5388, %v5384
    %v5461 = vpack.c.b16 %v5393, %v5389
    %v5462 = vpack.c.b16 %v5394, %v5390
    %v5463 = vpack.c.b16 %v5395, %v5391
    %v5464 = vpack.c.b16 %v5396, %v5392
    %v5465 = vpack.c.b16 %v5401, %v5397
    %v5466 = vpack.c.b16 %v5402, %v5398
    %v5467 = vpack.c.b16 %v5403, %v5399
    %v5468 = vpack.c.b16 %v5404, %v5400
    %5533 = vmatprep.subr.bf16.mxu0 %v5434
    %5534 = vmatpush1.bf16.msra.mxu0 %v5433
    %5535 = vmatprep.subr.bf16.mxu0 %v5430
    %5536 = vmatpush1.bf16.msra.mxu0 %v5429
    %5537 = vmatprep.subr.bf16.mxu0 %v5426
    %5538 = vmatpush1.bf16.msra.mxu0 %v5425
    %5539 = vmatprep.subr.bf16.mxu0 %v5422
    %5540 = vmatpush1.bf16.msra.mxu0 %v5421
    %5541 = vmatprep.subr.bf16.mxu0 %v5418
    %5542 = vmatpush1.bf16.msra.mxu0 %v5417
    %5543 = vmatprep.subr.bf16.mxu0 %v5414
    %5544 = vmatpush1.bf16.msra.mxu0 %v5413
    %5545 = vmatprep.subr.bf16.mxu0 %v5410
    %5546 = vmatpush1.bf16.msra.mxu0 %v5409
    %5547 = vmatprep.subr.bf16.mxu0 %v5406
    %5548 = vmatpush1.bf16.msra.mxu0 %v5405
    %5549 = vmatprep.subr.bf16.mxu0 %v5466
    %5550 = vmatpush2.bf16.msra.mxu0 %v5465
    %5551 = vmatprep.subr.bf16.mxu0 %v5462
    %5552 = vmatpush2.bf16.msra.mxu0 %v5461
    %5553 = vmatprep.subr.bf16.mxu0 %v5458
    %5554 = vmatpush2.bf16.msra.mxu0 %v5457
    %5555 = vmatprep.subr.bf16.mxu0 %v5454
    %5556 = vmatpush2.bf16.msra.mxu0 %v5453
    %5557 = vmatprep.subr.bf16.mxu0 %v5450
    %5558 = vmatpush2.bf16.msra.mxu0 %v5449
    %5559 = vmatprep.subr.bf16.mxu0 %v5446
    %5560 = vmatpush2.bf16.msra.mxu0 %v5445
    %5561 = vmatprep.subr.bf16.mxu0 %v5442
    %5562 = vmatpush2.bf16.msra.mxu0 %v5441
    %5563 = vmatprep.subr.bf16.mxu0 %v5438
    %5564 = vmatpush2.bf16.msra.mxu0 %v5437
    %5565 = vmatprep.mubr.bf16.mxu0 %v5147
    %5566 = vmatmul.mubr.bf16.gmra.mxu0 %v5146
    %v5567 = vpop.f32.mrf.mxu0
    %v5568 = vadd.f32 0.0, %v5567
    %v5569 = vpop.f32.mrf.mxu0
    %v5570 = vadd.f32 0.0, %v5569
    %v5571 = vpop.f32.mrf.mxu0
    %v5572 = vpop.f32.mrf.mxu0
    %5573 = vdwg.mxu0
    %5574 = vmatprep.subr.bf16.mxu0 %v5436
    %5575 = vmatpush1.bf16.msra.mxu0 %v5435
    %5576 = vmatprep.subr.bf16.mxu0 %v5432
    %5577 = vmatpush1.bf16.msra.mxu0 %v5431
    %5578 = vmatprep.subr.bf16.mxu0 %v5428
    %5579 = vmatpush1.bf16.msra.mxu0 %v5427
    %5580 = vmatprep.subr.bf16.mxu0 %v5424
    %5581 = vmatpush1.bf16.msra.mxu0 %v5423
    %5582 = vmatprep.subr.bf16.mxu0 %v5420
    %5583 = vmatpush1.bf16.msra.mxu0 %v5419
    %5584 = vmatprep.subr.bf16.mxu0 %v5416
    %5585 = vmatpush1.bf16.msra.mxu0 %v5415
    %5586 = vmatprep.subr.bf16.mxu0 %v5412
    %5587 = vmatpush1.bf16.msra.mxu0 %v5411
    %5588 = vmatprep.subr.bf16.mxu0 %v5408
    %5589 = vmatpush1.bf16.msra.mxu0 %v5407
    %5590 = vmatprep.subr.bf16.mxu0 %v5468
    %5591 = vmatpush2.bf16.msra.mxu0 %v5467
    %5592 = vmatprep.subr.bf16.mxu0 %v5464
    %5593 = vmatpush2.bf16.msra.mxu0 %v5463
    %5594 = vmatprep.subr.bf16.mxu0 %v5460
    %5595 = vmatpush2.bf16.msra.mxu0 %v5459
    %5596 = vmatprep.subr.bf16.mxu0 %v5456
    %5597 = vmatpush2.bf16.msra.mxu0 %v5455
    %5598 = vmatprep.subr.bf16.mxu0 %v5452
    %5599 = vmatpush2.bf16.msra.mxu0 %v5451
    %5600 = vmatprep.subr.bf16.mxu0 %v5448
    %5601 = vmatpush2.bf16.msra.mxu0 %v5447
    %5602 = vmatprep.subr.bf16.mxu0 %v5444
    %5603 = vmatpush2.bf16.msra.mxu0 %v5443
    %5604 = vmatprep.subr.bf16.mxu0 %v5440
    %5605 = vmatpush2.bf16.msra.mxu0 %v5439
    %5606 = vmatprep.mubr.bf16.mxu0 %v5147
    %5607 = vmatmul.mubr.bf16.gmra.mxu0 %v5146
    %v5608 = vpop.f32.mrf.mxu0
    %v5609 = vadd.f32 0.0, %v5608
    %v5610 = vpop.f32.mrf.mxu0
    %v5611 = vadd.f32 0.0, %v5610
    %v5612 = vpop.f32.mrf.mxu0
    %v5613 = vpop.f32.mrf.mxu0
    %5614 = vdwg.mxu0
    %v5679 = vunpack.c.l.b16 %v5082
    %v5680 = vunpack.c.h.b16 %v5082
    %v5681 = vunpack.c.l.b16 %v5083
    %v5682 = vunpack.c.h.b16 %v5083
    %v5683 = vunpack.c.l.b16 %v5084
    %v5684 = vunpack.c.h.b16 %v5084
    %v5685 = vunpack.c.l.b16 %v5085
    %v5686 = vunpack.c.h.b16 %v5085
    %v5687 = vunpack.c.l.b16 %v5086
    %v5688 = vunpack.c.h.b16 %v5086
    %v5689 = vunpack.c.l.b16 %v5087
    %v5690 = vunpack.c.h.b16 %v5087
    %v5691 = vunpack.c.l.b16 %v5088
    %v5692 = vunpack.c.h.b16 %v5088
    %v5693 = vunpack.c.l.b16 %v5089
    %v5694 = vunpack.c.h.b16 %v5089
    %v5695 = vunpack.c.l.b16 %v5090
    %v5696 = vunpack.c.h.b16 %v5090
    %v5697 = vunpack.c.l.b16 %v5091
    %v5698 = vunpack.c.h.b16 %v5091
    %v5699 = vunpack.c.l.b16 %v5092
    %v5700 = vunpack.c.h.b16 %v5092
    %v5701 = vunpack.c.l.b16 %v5093
    %v5702 = vunpack.c.h.b16 %v5093
    %v5703 = vunpack.c.l.b16 %v5094
    %v5704 = vunpack.c.h.b16 %v5094
    %v5705 = vunpack.c.l.b16 %v5095
    %v5706 = vunpack.c.h.b16 %v5095
    %v5707 = vunpack.c.l.b16 %v5096
    %v5708 = vunpack.c.h.b16 %v5096
    %v5709 = vunpack.c.l.b16 %v5097
    %v5710 = vunpack.c.h.b16 %v5097
    %v5711 = vunpack.c.l.b16 %v5098
    %v5712 = vunpack.c.h.b16 %v5098
    %v5713 = vunpack.c.l.b16 %v5099
    %v5714 = vunpack.c.h.b16 %v5099
    %v5715 = vunpack.c.l.b16 %v5100
    %v5716 = vunpack.c.h.b16 %v5100
    %v5717 = vunpack.c.l.b16 %v5101
    %v5718 = vunpack.c.h.b16 %v5101
    %v5719 = vunpack.c.l.b16 %v5102
    %v5720 = vunpack.c.h.b16 %v5102
    %v5721 = vunpack.c.l.b16 %v5103
    %v5722 = vunpack.c.h.b16 %v5103
    %v5723 = vunpack.c.l.b16 %v5104
    %v5724 = vunpack.c.h.b16 %v5104
    %v5725 = vunpack.c.l.b16 %v5105
    %v5726 = vunpack.c.h.b16 %v5105
    %v5727 = vunpack.c.l.b16 %v5106
    %v5728 = vunpack.c.h.b16 %v5106
    %v5729 = vunpack.c.l.b16 %v5107
    %v5730 = vunpack.c.h.b16 %v5107
    %v5731 = vunpack.c.l.b16 %v5108
    %v5732 = vunpack.c.h.b16 %v5108
    %v5733 = vunpack.c.l.b16 %v5109
    %v5734 = vunpack.c.h.b16 %v5109
    %v5735 = vunpack.c.l.b16 %v5110
    %v5736 = vunpack.c.h.b16 %v5110
    %v5737 = vunpack.c.l.b16 %v5111
    %v5738 = vunpack.c.h.b16 %v5111
    %v5739 = vunpack.c.l.b16 %v5112
    %v5740 = vunpack.c.h.b16 %v5112
    %v5741 = vunpack.c.l.b16 %v5113
    %v5742 = vunpack.c.h.b16 %v5113
    %v5743 = vunpack.c.l.b16 %v5114
    %v5744 = vunpack.c.h.b16 %v5114
    %v5745 = vunpack.c.l.b16 %v5115
    %v5746 = vunpack.c.h.b16 %v5115
    %v5747 = vunpack.c.l.b16 %v5116
    %v5748 = vunpack.c.h.b16 %v5116
    %v5749 = vunpack.c.l.b16 %v5117
    %v5750 = vunpack.c.h.b16 %v5117
    %v5751 = vunpack.c.l.b16 %v5118
    %v5752 = vunpack.c.h.b16 %v5118
    %v5753 = vunpack.c.l.b16 %v5119
    %v5754 = vunpack.c.h.b16 %v5119
    %v5755 = vunpack.c.l.b16 %v5120
    %v5756 = vunpack.c.h.b16 %v5120
    %v5757 = vunpack.c.l.b16 %v5121
    %v5758 = vunpack.c.h.b16 %v5121
    %v5759 = vunpack.c.l.b16 %v5122
    %v5760 = vunpack.c.h.b16 %v5122
    %v5761 = vunpack.c.l.b16 %v5123
    %v5762 = vunpack.c.h.b16 %v5123
    %v5763 = vunpack.c.l.b16 %v5124
    %v5764 = vunpack.c.h.b16 %v5124
    %v5765 = vunpack.c.l.b16 %v5125
    %v5766 = vunpack.c.h.b16 %v5125
    %v5767 = vunpack.c.l.b16 %v5126
    %v5768 = vunpack.c.h.b16 %v5126
    %v5769 = vunpack.c.l.b16 %v5127
    %v5770 = vunpack.c.h.b16 %v5127
    %v5771 = vunpack.c.l.b16 %v5128
    %v5772 = vunpack.c.h.b16 %v5128
    %v5773 = vunpack.c.l.b16 %v5129
    %v5774 = vunpack.c.h.b16 %v5129
    %v5775 = vunpack.c.l.b16 %v5130
    %v5776 = vunpack.c.h.b16 %v5130
    %v5777 = vunpack.c.l.b16 %v5131
    %v5778 = vunpack.c.h.b16 %v5131
    %v5779 = vunpack.c.l.b16 %v5132
    %v5780 = vunpack.c.h.b16 %v5132
    %v5781 = vunpack.c.l.b16 %v5133
    %v5782 = vunpack.c.h.b16 %v5133
    %v5783 = vunpack.c.l.b16 %v5134
    %v5784 = vunpack.c.h.b16 %v5134
    %v5785 = vunpack.c.l.b16 %v5135
    %v5786 = vunpack.c.h.b16 %v5135
    %v5787 = vunpack.c.l.b16 %v5136
    %v5788 = vunpack.c.h.b16 %v5136
    %v5789 = vunpack.c.l.b16 %v5137
    %v5790 = vunpack.c.h.b16 %v5137
    %v5791 = vunpack.c.l.b16 %v5138
    %v5792 = vunpack.c.h.b16 %v5138
    %v5793 = vunpack.c.l.b16 %v5139
    %v5794 = vunpack.c.h.b16 %v5139
    %v5795 = vunpack.c.l.b16 %v5140
    %v5796 = vunpack.c.h.b16 %v5140
    %v5797 = vunpack.c.l.b16 %v5141
    %v5798 = vunpack.c.h.b16 %v5141
    %v5799 = vunpack.c.l.b16 %v5142
    %v5800 = vunpack.c.h.b16 %v5142
    %v5801 = vunpack.c.l.b16 %v5143
    %v5802 = vunpack.c.h.b16 %v5143
    %v5803 = vunpack.c.l.b16 %v5144
    %v5804 = vunpack.c.h.b16 %v5144
    %v5805 = vunpack.c.l.b16 %v5145
    %v5806 = vunpack.c.h.b16 %v5145
    %v5807 = vpack.c.b16 %v5683, %v5679
    %v5808 = vpack.c.b16 %v5684, %v5680
    %v5809 = vpack.c.b16 %v5685, %v5681
    %v5810 = vpack.c.b16 %v5686, %v5682
    %v5811 = vpack.c.b16 %v5691, %v5687
    %v5812 = vpack.c.b16 %v5692, %v5688
    %v5813 = vpack.c.b16 %v5693, %v5689
    %v5814 = vpack.c.b16 %v5694, %v5690
    %v5815 = vpack.c.b16 %v5699, %v5695
    %v5816 = vpack.c.b16 %v5700, %v5696
    %v5817 = vpack.c.b16 %v5701, %v5697
    %v5818 = vpack.c.b16 %v5702, %v5698
    %v5819 = vpack.c.b16 %v5707, %v5703
    %v5820 = vpack.c.b16 %v5708, %v5704
    %v5821 = vpack.c.b16 %v5709, %v5705
    %v5822 = vpack.c.b16 %v5710, %v5706
    %v5823 = vpack.c.b16 %v5715, %v5711
    %v5824 = vpack.c.b16 %v5716, %v5712
    %v5825 = vpack.c.b16 %v5717, %v5713
    %v5826 = vpack.c.b16 %v5718, %v5714
    %v5827 = vpack.c.b16 %v5723, %v5719
    %v5828 = vpack.c.b16 %v5724, %v5720
    %v5829 = vpack.c.b16 %v5725, %v5721
    %v5830 = vpack.c.b16 %v5726, %v5722
    %v5831 = vpack.c.b16 %v5731, %v5727
    %v5832 = vpack.c.b16 %v5732, %v5728
    %v5833 = vpack.c.b16 %v5733, %v5729
    %v5834 = vpack.c.b16 %v5734, %v5730
    %v5835 = vpack.c.b16 %v5739, %v5735
    %v5836 = vpack.c.b16 %v5740, %v5736
    %v5837 = vpack.c.b16 %v5741, %v5737
    %v5838 = vpack.c.b16 %v5742, %v5738
    %v5839 = vpack.c.b16 %v5747, %v5743
    %v5840 = vpack.c.b16 %v5748, %v5744
    %v5841 = vpack.c.b16 %v5749, %v5745
    %v5842 = vpack.c.b16 %v5750, %v5746
    %v5843 = vpack.c.b16 %v5755, %v5751
    %v5844 = vpack.c.b16 %v5756, %v5752
    %v5845 = vpack.c.b16 %v5757, %v5753
    %v5846 = vpack.c.b16 %v5758, %v5754
    %v5847 = vpack.c.b16 %v5763, %v5759
    %v5848 = vpack.c.b16 %v5764, %v5760
    %v5849 = vpack.c.b16 %v5765, %v5761
    %v5850 = vpack.c.b16 %v5766, %v5762
    %v5851 = vpack.c.b16 %v5771, %v5767
    %v5852 = vpack.c.b16 %v5772, %v5768
    %v5853 = vpack.c.b16 %v5773, %v5769
    %v5854 = vpack.c.b16 %v5774, %v5770
    %v5855 = vpack.c.b16 %v5779, %v5775
    %v5856 = vpack.c.b16 %v5780, %v5776
    %v5857 = vpack.c.b16 %v5781, %v5777
    %v5858 = vpack.c.b16 %v5782, %v5778
    %v5859 = vpack.c.b16 %v5787, %v5783
    %v5860 = vpack.c.b16 %v5788, %v5784
    %v5861 = vpack.c.b16 %v5789, %v5785
    %v5862 = vpack.c.b16 %v5790, %v5786
    %v5863 = vpack.c.b16 %v5795, %v5791
    %v5864 = vpack.c.b16 %v5796, %v5792
    %v5865 = vpack.c.b16 %v5797, %v5793
    %v5866 = vpack.c.b16 %v5798, %v5794
    %v5867 = vpack.c.b16 %v5803, %v5799
    %v5868 = vpack.c.b16 %v5804, %v5800
    %v5869 = vpack.c.b16 %v5805, %v5801
    %v5870 = vpack.c.b16 %v5806, %v5802
    %5935 = vmatprep.subr.bf16.mxu0 %v5836
    %5936 = vmatpush1.bf16.msra.mxu0 %v5835
    %5937 = vmatprep.subr.bf16.mxu0 %v5832
    %5938 = vmatpush1.bf16.msra.mxu0 %v5831
    %5939 = vmatprep.subr.bf16.mxu0 %v5828
    %5940 = vmatpush1.bf16.msra.mxu0 %v5827
    %5941 = vmatprep.subr.bf16.mxu0 %v5824
    %5942 = vmatpush1.bf16.msra.mxu0 %v5823
    %5943 = vmatprep.subr.bf16.mxu0 %v5820
    %5944 = vmatpush1.bf16.msra.mxu0 %v5819
    %5945 = vmatprep.subr.bf16.mxu0 %v5816
    %5946 = vmatpush1.bf16.msra.mxu0 %v5815
    %5947 = vmatprep.subr.bf16.mxu0 %v5812
    %5948 = vmatpush1.bf16.msra.mxu0 %v5811
    %5949 = vmatprep.subr.bf16.mxu0 %v5808
    %5950 = vmatpush1.bf16.msra.mxu0 %v5807
    %5951 = vmatprep.subr.bf16.mxu0 %v5868
    %5952 = vmatpush2.bf16.msra.mxu0 %v5867
    %5953 = vmatprep.subr.bf16.mxu0 %v5864
    %5954 = vmatpush2.bf16.msra.mxu0 %v5863
    %5955 = vmatprep.subr.bf16.mxu0 %v5860
    %5956 = vmatpush2.bf16.msra.mxu0 %v5859
    %5957 = vmatprep.subr.bf16.mxu0 %v5856
    %5958 = vmatpush2.bf16.msra.mxu0 %v5855
    %5959 = vmatprep.subr.bf16.mxu0 %v5852
    %5960 = vmatpush2.bf16.msra.mxu0 %v5851
    %5961 = vmatprep.subr.bf16.mxu0 %v5848
    %5962 = vmatpush2.bf16.msra.mxu0 %v5847
    %5963 = vmatprep.subr.bf16.mxu0 %v5844
    %5964 = vmatpush2.bf16.msra.mxu0 %v5843
    %5965 = vmatprep.subr.bf16.mxu0 %v5840
    %5966 = vmatpush2.bf16.msra.mxu0 %v5839
    %5967 = vmatprep.mubr.bf16.mxu0 %v5081
    %5968 = vmatmul.mubr.bf16.gmra.mxu0 %v5080
    %v5969 = vpop.f32.mrf.mxu0
    %v5970 = vadd.f32 %v5568, %v5969
    %v5971 = vpop.f32.mrf.mxu0
    %v5972 = vadd.f32 %v5570, %v5971
    %v5973 = vpop.f32.mrf.mxu0
    %v5974 = vpop.f32.mrf.mxu0
    %5975 = vdwg.mxu0
    %5976 = vmatprep.subr.bf16.mxu0 %v5838
    %5977 = vmatpush1.bf16.msra.mxu0 %v5837
    %5978 = vmatprep.subr.bf16.mxu0 %v5834
    %5979 = vmatpush1.bf16.msra.mxu0 %v5833
    %5980 = vmatprep.subr.bf16.mxu0 %v5830
    %5981 = vmatpush1.bf16.msra.mxu0 %v5829
    %5982 = vmatprep.subr.bf16.mxu0 %v5826
    %5983 = vmatpush1.bf16.msra.mxu0 %v5825
    %5984 = vmatprep.subr.bf16.mxu0 %v5822
    %5985 = vmatpush1.bf16.msra.mxu0 %v5821
    %5986 = vmatprep.subr.bf16.mxu0 %v5818
    %5987 = vmatpush1.bf16.msra.mxu0 %v5817
    %5988 = vmatprep.subr.bf16.mxu0 %v5814
    %5989 = vmatpush1.bf16.msra.mxu0 %v5813
    %5990 = vmatprep.subr.bf16.mxu0 %v5810
    %5991 = vmatpush1.bf16.msra.mxu0 %v5809
    %5992 = vmatprep.subr.bf16.mxu0 %v5870
    %5993 = vmatpush2.bf16.msra.mxu0 %v5869
    %5994 = vmatprep.subr.bf16.mxu0 %v5866
    %5995 = vmatpush2.bf16.msra.mxu0 %v5865
    %5996 = vmatprep.subr.bf16.mxu0 %v5862
    %5997 = vmatpush2.bf16.msra.mxu0 %v5861
    %5998 = vmatprep.subr.bf16.mxu0 %v5858
    %5999 = vmatpush2.bf16.msra.mxu0 %v5857
    %6000 = vmatprep.subr.bf16.mxu0 %v5854
    %6001 = vmatpush2.bf16.msra.mxu0 %v5853
    %6002 = vmatprep.subr.bf16.mxu0 %v5850
    %6003 = vmatpush2.bf16.msra.mxu0 %v5849
    %6004 = vmatprep.subr.bf16.mxu0 %v5846
    %6005 = vmatpush2.bf16.msra.mxu0 %v5845
    %6006 = vmatprep.subr.bf16.mxu0 %v5842
    %6007 = vmatpush2.bf16.msra.mxu0 %v5841
    %6008 = vmatprep.mubr.bf16.mxu0 %v5081
    %6009 = vmatmul.mubr.bf16.gmra.mxu0 %v5080
    %v6010 = vpop.f32.mrf.mxu0
    %v6011 = vadd.f32 %v5609, %v6010
    %v6012 = vpop.f32.mrf.mxu0
    %v6013 = vadd.f32 %v5611, %v6012
    %v6014 = vpop.f32.mrf.mxu0
    %v6015 = vpop.f32.mrf.mxu0
    %6016 = vdwg.mxu0
    %v6017 = vpack.c.bf16 %v5074, %v5074
    %v6018 = vpack.c.bf16 %v5076, %v5076
    %s6019 = scalar_lea.vmem [#allocation17], 1024
    %v6020 = vld [vmem:[%s6019] sm:$0xff]
    %v6021 = vld [vmem:[%s6019 + $0x8] sm:$0xff]
    %v6022 = vld [vmem:[%s6019 + $0x10] sm:$0xff]
    %v6023 = vld [vmem:[%s6019 + $0x18] sm:$0xff]
    %v6024 = vld [vmem:[%s6019 + $0x20] sm:$0xff]
    %v6025 = vld [vmem:[%s6019 + $0x28] sm:$0xff]
    %v6026 = vld [vmem:[%s6019 + $0x30] sm:$0xff]
    %v6027 = vld [vmem:[%s6019 + $0x38] sm:$0xff]
    %v6028 = vld [vmem:[%s6019 + $0x40] sm:$0xff]
    %v6029 = vld [vmem:[%s6019 + $0x48] sm:$0xff]
    %v6030 = vld [vmem:[%s6019 + $0x50] sm:$0xff]
    %v6031 = vld [vmem:[%s6019 + $0x58] sm:$0xff]
    %v6032 = vld [vmem:[%s6019 + $0x60] sm:$0xff]
    %v6033 = vld [vmem:[%s6019 + $0x68] sm:$0xff]
    %v6034 = vld [vmem:[%s6019 + $0x70] sm:$0xff]
    %v6035 = vld [vmem:[%s6019 + $0x78] sm:$0xff]
    %v6036 = vld [vmem:[%s6019 + $0x80] sm:$0xff]
    %v6037 = vld [vmem:[%s6019 + $0x88] sm:$0xff]
    %v6038 = vld [vmem:[%s6019 + $0x90] sm:$0xff]
    %v6039 = vld [vmem:[%s6019 + $0x98] sm:$0xff]
    %v6040 = vld [vmem:[%s6019 + $0xa0] sm:$0xff]
    %v6041 = vld [vmem:[%s6019 + $0xa8] sm:$0xff]
    %v6042 = vld [vmem:[%s6019 + $0xb0] sm:$0xff]
    %v6043 = vld [vmem:[%s6019 + $0xb8] sm:$0xff]
    %v6044 = vld [vmem:[%s6019 + $0xc0] sm:$0xff]
    %v6045 = vld [vmem:[%s6019 + $0xc8] sm:$0xff]
    %v6046 = vld [vmem:[%s6019 + $0xd0] sm:$0xff]
    %v6047 = vld [vmem:[%s6019 + $0xd8] sm:$0xff]
    %v6048 = vld [vmem:[%s6019 + $0xe0] sm:$0xff]
    %v6049 = vld [vmem:[%s6019 + $0xe8] sm:$0xff]
    %v6050 = vld [vmem:[%s6019 + $0xf0] sm:$0xff]
    %v6051 = vld [vmem:[%s6019 + $0xf8] sm:$0xff]
    %v6052 = vld [vmem:[%s6019 + $0x100] sm:$0xff]
    %v6053 = vld [vmem:[%s6019 + $0x108] sm:$0xff]
    %v6054 = vld [vmem:[%s6019 + $0x110] sm:$0xff]
    %v6055 = vld [vmem:[%s6019 + $0x118] sm:$0xff]
    %v6056 = vld [vmem:[%s6019 + $0x120] sm:$0xff]
    %v6057 = vld [vmem:[%s6019 + $0x128] sm:$0xff]
    %v6058 = vld [vmem:[%s6019 + $0x130] sm:$0xff]
    %v6059 = vld [vmem:[%s6019 + $0x138] sm:$0xff]
    %v6060 = vld [vmem:[%s6019 + $0x140] sm:$0xff]
    %v6061 = vld [vmem:[%s6019 + $0x148] sm:$0xff]
    %v6062 = vld [vmem:[%s6019 + $0x150] sm:$0xff]
    %v6063 = vld [vmem:[%s6019 + $0x158] sm:$0xff]
    %v6064 = vld [vmem:[%s6019 + $0x160] sm:$0xff]
    %v6065 = vld [vmem:[%s6019 + $0x168] sm:$0xff]
    %v6066 = vld [vmem:[%s6019 + $0x170] sm:$0xff]
    %v6067 = vld [vmem:[%s6019 + $0x178] sm:$0xff]
    %v6068 = vld [vmem:[%s6019 + $0x180] sm:$0xff]
    %v6069 = vld [vmem:[%s6019 + $0x188] sm:$0xff]
    %v6070 = vld [vmem:[%s6019 + $0x190] sm:$0xff]
    %v6071 = vld [vmem:[%s6019 + $0x198] sm:$0xff]
    %v6072 = vld [vmem:[%s6019 + $0x1a0] sm:$0xff]
    %v6073 = vld [vmem:[%s6019 + $0x1a8] sm:$0xff]
    %v6074 = vld [vmem:[%s6019 + $0x1b0] sm:$0xff]
    %v6075 = vld [vmem:[%s6019 + $0x1b8] sm:$0xff]
    %v6076 = vld [vmem:[%s6019 + $0x1c0] sm:$0xff]
    %v6077 = vld [vmem:[%s6019 + $0x1c8] sm:$0xff]
    %v6078 = vld [vmem:[%s6019 + $0x1d0] sm:$0xff]
    %v6079 = vld [vmem:[%s6019 + $0x1d8] sm:$0xff]
    %v6080 = vld [vmem:[%s6019 + $0x1e0] sm:$0xff]
    %v6081 = vld [vmem:[%s6019 + $0x1e8] sm:$0xff]
    %v6082 = vld [vmem:[%s6019 + $0x1f0] sm:$0xff]
    %v6083 = vld [vmem:[%s6019 + $0x1f8] sm:$0xff]
    %v6148 = vunpack.c.l.b16 %v6020
    %v6149 = vunpack.c.h.b16 %v6020
    %v6150 = vunpack.c.l.b16 %v6021
    %v6151 = vunpack.c.h.b16 %v6021
    %v6152 = vunpack.c.l.b16 %v6022
    %v6153 = vunpack.c.h.b16 %v6022
    %v6154 = vunpack.c.l.b16 %v6023
    %v6155 = vunpack.c.h.b16 %v6023
    %v6156 = vunpack.c.l.b16 %v6024
    %v6157 = vunpack.c.h.b16 %v6024
    %v6158 = vunpack.c.l.b16 %v6025
    %v6159 = vunpack.c.h.b16 %v6025
    %v6160 = vunpack.c.l.b16 %v6026
    %v6161 = vunpack.c.h.b16 %v6026
    %v6162 = vunpack.c.l.b16 %v6027
    %v6163 = vunpack.c.h.b16 %v6027
    %v6164 = vunpack.c.l.b16 %v6028
    %v6165 = vunpack.c.h.b16 %v6028
    %v6166 = vunpack.c.l.b16 %v6029
    %v6167 = vunpack.c.h.b16 %v6029
    %v6168 = vunpack.c.l.b16 %v6030
    %v6169 = vunpack.c.h.b16 %v6030
    %v6170 = vunpack.c.l.b16 %v6031
    %v6171 = vunpack.c.h.b16 %v6031
    %v6172 = vunpack.c.l.b16 %v6032
    %v6173 = vunpack.c.h.b16 %v6032
    %v6174 = vunpack.c.l.b16 %v6033
    %v6175 = vunpack.c.h.b16 %v6033
    %v6176 = vunpack.c.l.b16 %v6034
    %v6177 = vunpack.c.h.b16 %v6034
    %v6178 = vunpack.c.l.b16 %v6035
    %v6179 = vunpack.c.h.b16 %v6035
    %v6180 = vunpack.c.l.b16 %v6036
    %v6181 = vunpack.c.h.b16 %v6036
    %v6182 = vunpack.c.l.b16 %v6037
    %v6183 = vunpack.c.h.b16 %v6037
    %v6184 = vunpack.c.l.b16 %v6038
    %v6185 = vunpack.c.h.b16 %v6038
    %v6186 = vunpack.c.l.b16 %v6039
    %v6187 = vunpack.c.h.b16 %v6039
    %v6188 = vunpack.c.l.b16 %v6040
    %v6189 = vunpack.c.h.b16 %v6040
    %v6190 = vunpack.c.l.b16 %v6041
    %v6191 = vunpack.c.h.b16 %v6041
    %v6192 = vunpack.c.l.b16 %v6042
    %v6193 = vunpack.c.h.b16 %v6042
    %v6194 = vunpack.c.l.b16 %v6043
    %v6195 = vunpack.c.h.b16 %v6043
    %v6196 = vunpack.c.l.b16 %v6044
    %v6197 = vunpack.c.h.b16 %v6044
    %v6198 = vunpack.c.l.b16 %v6045
    %v6199 = vunpack.c.h.b16 %v6045
    %v6200 = vunpack.c.l.b16 %v6046
    %v6201 = vunpack.c.h.b16 %v6046
    %v6202 = vunpack.c.l.b16 %v6047
    %v6203 = vunpack.c.h.b16 %v6047
    %v6204 = vunpack.c.l.b16 %v6048
    %v6205 = vunpack.c.h.b16 %v6048
    %v6206 = vunpack.c.l.b16 %v6049
    %v6207 = vunpack.c.h.b16 %v6049
    %v6208 = vunpack.c.l.b16 %v6050
    %v6209 = vunpack.c.h.b16 %v6050
    %v6210 = vunpack.c.l.b16 %v6051
    %v6211 = vunpack.c.h.b16 %v6051
    %v6212 = vunpack.c.l.b16 %v6052
    %v6213 = vunpack.c.h.b16 %v6052
    %v6214 = vunpack.c.l.b16 %v6053
    %v6215 = vunpack.c.h.b16 %v6053
    %v6216 = vunpack.c.l.b16 %v6054
    %v6217 = vunpack.c.h.b16 %v6054
    %v6218 = vunpack.c.l.b16 %v6055
    %v6219 = vunpack.c.h.b16 %v6055
    %v6220 = vunpack.c.l.b16 %v6056
    %v6221 = vunpack.c.h.b16 %v6056
    %v6222 = vunpack.c.l.b16 %v6057
    %v6223 = vunpack.c.h.b16 %v6057
    %v6224 = vunpack.c.l.b16 %v6058
    %v6225 = vunpack.c.h.b16 %v6058
    %v6226 = vunpack.c.l.b16 %v6059
    %v6227 = vunpack.c.h.b16 %v6059
    %v6228 = vunpack.c.l.b16 %v6060
    %v6229 = vunpack.c.h.b16 %v6060
    %v6230 = vunpack.c.l.b16 %v6061
    %v6231 = vunpack.c.h.b16 %v6061
    %v6232 = vunpack.c.l.b16 %v6062
    %v6233 = vunpack.c.h.b16 %v6062
    %v6234 = vunpack.c.l.b16 %v6063
    %v6235 = vunpack.c.h.b16 %v6063
    %v6236 = vunpack.c.l.b16 %v6064
    %v6237 = vunpack.c.h.b16 %v6064
    %v6238 = vunpack.c.l.b16 %v6065
    %v6239 = vunpack.c.h.b16 %v6065
    %v6240 = vunpack.c.l.b16 %v6066
    %v6241 = vunpack.c.h.b16 %v6066
    %v6242 = vunpack.c.l.b16 %v6067
    %v6243 = vunpack.c.h.b16 %v6067
    %v6244 = vunpack.c.l.b16 %v6068
    %v6245 = vunpack.c.h.b16 %v6068
    %v6246 = vunpack.c.l.b16 %v6069
    %v6247 = vunpack.c.h.b16 %v6069
    %v6248 = vunpack.c.l.b16 %v6070
    %v6249 = vunpack.c.h.b16 %v6070
    %v6250 = vunpack.c.l.b16 %v6071
    %v6251 = vunpack.c.h.b16 %v6071
    %v6252 = vunpack.c.l.b16 %v6072
    %v6253 = vunpack.c.h.b16 %v6072
    %v6254 = vunpack.c.l.b16 %v6073
    %v6255 = vunpack.c.h.b16 %v6073
    %v6256 = vunpack.c.l.b16 %v6074
    %v6257 = vunpack.c.h.b16 %v6074
    %v6258 = vunpack.c.l.b16 %v6075
    %v6259 = vunpack.c.h.b16 %v6075
    %v6260 = vunpack.c.l.b16 %v6076
    %v6261 = vunpack.c.h.b16 %v6076
    %v6262 = vunpack.c.l.b16 %v6077
    %v6263 = vunpack.c.h.b16 %v6077
    %v6264 = vunpack.c.l.b16 %v6078
    %v6265 = vunpack.c.h.b16 %v6078
    %v6266 = vunpack.c.l.b16 %v6079
    %v6267 = vunpack.c.h.b16 %v6079
    %v6268 = vunpack.c.l.b16 %v6080
    %v6269 = vunpack.c.h.b16 %v6080
    %v6270 = vunpack.c.l.b16 %v6081
    %v6271 = vunpack.c.h.b16 %v6081
    %v6272 = vunpack.c.l.b16 %v6082
    %v6273 = vunpack.c.h.b16 %v6082
    %v6274 = vunpack.c.l.b16 %v6083
    %v6275 = vunpack.c.h.b16 %v6083
    %v6276 = vpack.c.b16 %v6152, %v6148
    %v6277 = vpack.c.b16 %v6153, %v6149
    %v6278 = vpack.c.b16 %v6154, %v6150
    %v6279 = vpack.c.b16 %v6155, %v6151
    %v6280 = vpack.c.b16 %v6160, %v6156
    %v6281 = vpack.c.b16 %v6161, %v6157
    %v6282 = vpack.c.b16 %v6162, %v6158
    %v6283 = vpack.c.b16 %v6163, %v6159
    %v6284 = vpack.c.b16 %v6168, %v6164
    %v6285 = vpack.c.b16 %v6169, %v6165
    %v6286 = vpack.c.b16 %v6170, %v6166
    %v6287 = vpack.c.b16 %v6171, %v6167
    %v6288 = vpack.c.b16 %v6176, %v6172
    %v6289 = vpack.c.b16 %v6177, %v6173
    %v6290 = vpack.c.b16 %v6178, %v6174
    %v6291 = vpack.c.b16 %v6179, %v6175
    %v6292 = vpack.c.b16 %v6184, %v6180
    %v6293 = vpack.c.b16 %v6185, %v6181
    %v6294 = vpack.c.b16 %v6186, %v6182
    %v6295 = vpack.c.b16 %v6187, %v6183
    %v6296 = vpack.c.b16 %v6192, %v6188
    %v6297 = vpack.c.b16 %v6193, %v6189
    %v6298 = vpack.c.b16 %v6194, %v6190
    %v6299 = vpack.c.b16 %v6195, %v6191
    %v6300 = vpack.c.b16 %v6200, %v6196
    %v6301 = vpack.c.b16 %v6201, %v6197
    %v6302 = vpack.c.b16 %v6202, %v6198
    %v6303 = vpack.c.b16 %v6203, %v6199
    %v6304 = vpack.c.b16 %v6208, %v6204
    %v6305 = vpack.c.b16 %v6209, %v6205
    %v6306 = vpack.c.b16 %v6210, %v6206
    %v6307 = vpack.c.b16 %v6211, %v6207
    %v6308 = vpack.c.b16 %v6216, %v6212
    %v6309 = vpack.c.b16 %v6217, %v6213
    %v6310 = vpack.c.b16 %v6218, %v6214
    %v6311 = vpack.c.b16 %v6219, %v6215
    %v6312 = vpack.c.b16 %v6224, %v6220
    %v6313 = vpack.c.b16 %v6225, %v6221
    %v6314 = vpack.c.b16 %v6226, %v6222
    %v6315 = vpack.c.b16 %v6227, %v6223
    %v6316 = vpack.c.b16 %v6232, %v6228
    %v6317 = vpack.c.b16 %v6233, %v6229
    %v6318 = vpack.c.b16 %v6234, %v6230
    %v6319 = vpack.c.b16 %v6235, %v6231
    %v6320 = vpack.c.b16 %v6240, %v6236
    %v6321 = vpack.c.b16 %v6241, %v6237
    %v6322 = vpack.c.b16 %v6242, %v6238
    %v6323 = vpack.c.b16 %v6243, %v6239
    %v6324 = vpack.c.b16 %v6248, %v6244
    %v6325 = vpack.c.b16 %v6249, %v6245
    %v6326 = vpack.c.b16 %v6250, %v6246
    %v6327 = vpack.c.b16 %v6251, %v6247
    %v6328 = vpack.c.b16 %v6256, %v6252
    %v6329 = vpack.c.b16 %v6257, %v6253
    %v6330 = vpack.c.b16 %v6258, %v6254
    %v6331 = vpack.c.b16 %v6259, %v6255
    %v6332 = vpack.c.b16 %v6264, %v6260
    %v6333 = vpack.c.b16 %v6265, %v6261
    %v6334 = vpack.c.b16 %v6266, %v6262
    %v6335 = vpack.c.b16 %v6267, %v6263
    %v6336 = vpack.c.b16 %v6272, %v6268
    %v6337 = vpack.c.b16 %v6273, %v6269
    %v6338 = vpack.c.b16 %v6274, %v6270
    %v6339 = vpack.c.b16 %v6275, %v6271
    %6404 = vmatprep.subr.bf16.mxu0 %v6305
    %6405 = vmatpush1.bf16.msra.mxu0 %v6304
    %6406 = vmatprep.subr.bf16.mxu0 %v6301
    %6407 = vmatpush1.bf16.msra.mxu0 %v6300
    %6408 = vmatprep.subr.bf16.mxu0 %v6297
    %6409 = vmatpush1.bf16.msra.mxu0 %v6296
    %6410 = vmatprep.subr.bf16.mxu0 %v6293
    %6411 = vmatpush1.bf16.msra.mxu0 %v6292
    %6412 = vmatprep.subr.bf16.mxu0 %v6289
    %6413 = vmatpush1.bf16.msra.mxu0 %v6288
    %6414 = vmatprep.subr.bf16.mxu0 %v6285
    %6415 = vmatpush1.bf16.msra.mxu0 %v6284
    %6416 = vmatprep.subr.bf16.mxu0 %v6281
    %6417 = vmatpush1.bf16.msra.mxu0 %v6280
    %6418 = vmatprep.subr.bf16.mxu0 %v6277
    %6419 = vmatpush1.bf16.msra.mxu0 %v6276
    %6420 = vmatprep.subr.bf16.mxu0 %v6337
    %6421 = vmatpush2.bf16.msra.mxu0 %v6336
    %6422 = vmatprep.subr.bf16.mxu0 %v6333
    %6423 = vmatpush2.bf16.msra.mxu0 %v6332
    %6424 = vmatprep.subr.bf16.mxu0 %v6329
    %6425 = vmatpush2.bf16.msra.mxu0 %v6328
    %6426 = vmatprep.subr.bf16.mxu0 %v6325
    %6427 = vmatpush2.bf16.msra.mxu0 %v6324
    %6428 = vmatprep.subr.bf16.mxu0 %v6321
    %6429 = vmatpush2.bf16.msra.mxu0 %v6320
    %6430 = vmatprep.subr.bf16.mxu0 %v6317
    %6431 = vmatpush2.bf16.msra.mxu0 %v6316
    %6432 = vmatprep.subr.bf16.mxu0 %v6313
    %6433 = vmatpush2.bf16.msra.mxu0 %v6312
    %6434 = vmatprep.subr.bf16.mxu0 %v6309
    %6435 = vmatpush2.bf16.msra.mxu0 %v6308
    %6436 = vmatprep.mubr.bf16.mxu0 %v6018
    %6437 = vmatmul.mubr.bf16.gmra.mxu0 %v6017
    %v6438 = vpop.f32.mrf.mxu0
    %v6439 = vadd.f32 0.0, %v6438
    %v6440 = vpop.f32.mrf.mxu0
    %v6441 = vadd.f32 0.0, %v6440
    %v6442 = vpop.f32.mrf.mxu0
    %v6443 = vpop.f32.mrf.mxu0
    %6444 = vdwg.mxu0
    %6445 = vmatprep.subr.bf16.mxu0 %v6307
    %6446 = vmatpush1.bf16.msra.mxu0 %v6306
    %6447 = vmatprep.subr.bf16.mxu0 %v6303
    %6448 = vmatpush1.bf16.msra.mxu0 %v6302
    %6449 = vmatprep.subr.bf16.mxu0 %v6299
    %6450 = vmatpush1.bf16.msra.mxu0 %v6298
    %6451 = vmatprep.subr.bf16.mxu0 %v6295
    %6452 = vmatpush1.bf16.msra.mxu0 %v6294
    %6453 = vmatprep.subr.bf16.mxu0 %v6291
    %6454 = vmatpush1.bf16.msra.mxu0 %v6290
    %6455 = vmatprep.subr.bf16.mxu0 %v6287
    %6456 = vmatpush1.bf16.msra.mxu0 %v6286
    %6457 = vmatprep.subr.bf16.mxu0 %v6283
    %6458 = vmatpush1.bf16.msra.mxu0 %v6282
    %6459 = vmatprep.subr.bf16.mxu0 %v6279
    %6460 = vmatpush1.bf16.msra.mxu0 %v6278
    %6461 = vmatprep.subr.bf16.mxu0 %v6339
    %6462 = vmatpush2.bf16.msra.mxu0 %v6338
    %6463 = vmatprep.subr.bf16.mxu0 %v6335
    %6464 = vmatpush2.bf16.msra.mxu0 %v6334
    %6465 = vmatprep.subr.bf16.mxu0 %v6331
    %6466 = vmatpush2.bf16.msra.mxu0 %v6330
    %6467 = vmatprep.subr.bf16.mxu0 %v6327
    %6468 = vmatpush2.bf16.msra.mxu0 %v6326
    %6469 = vmatprep.subr.bf16.mxu0 %v6323
    %6470 = vmatpush2.bf16.msra.mxu0 %v6322
    %6471 = vmatprep.subr.bf16.mxu0 %v6319
    %6472 = vmatpush2.bf16.msra.mxu0 %v6318
    %6473 = vmatprep.subr.bf16.mxu0 %v6315
    %6474 = vmatpush2.bf16.msra.mxu0 %v6314
    %6475 = vmatprep.subr.bf16.mxu0 %v6311
    %6476 = vmatpush2.bf16.msra.mxu0 %v6310
    %6477 = vmatprep.mubr.bf16.mxu0 %v6018
    %6478 = vmatmul.mubr.bf16.gmra.mxu0 %v6017
    %v6479 = vpop.f32.mrf.mxu0
    %v6480 = vadd.f32 0.0, %v6479
    %v6481 = vpop.f32.mrf.mxu0
    %v6482 = vadd.f32 0.0, %v6481
    %v6483 = vpop.f32.mrf.mxu0
    %v6484 = vpop.f32.mrf.mxu0
    %6485 = vdwg.mxu0
    %v6486 = vadd.f32 %v5970, %v6439
    %v6487 = vadd.f32 %v5972, %v6441
    %v6488 = vadd.f32 %v6011, %v6480
    %v6489 = vadd.f32 %v6013, %v6482
    %v6490 = vsel %vm3959, %v6486, 0.0
    %v6491 = vrot.slane %v6490, 4
    %v6492 = vadd.f32 %v6490, %v6491
    %v6493 = vrot.slane %v6492, 2
    %v6494 = vadd.f32 %v6492, %v6493
    %v6495 = vrot.slane %v6494, 1
    %v6496 = vadd.f32 %v6494, %v6495
    %v6497 = vsel %vm3959, %v6487, 0.0
    %v6498 = vrot.slane %v6497, 4
    %v6499 = vadd.f32 %v6497, %v6498
    %v6500 = vrot.slane %v6499, 2
    %v6501 = vadd.f32 %v6499, %v6500
    %v6502 = vrot.slane %v6501, 1
    %v6503 = vadd.f32 %v6501, %v6502
    %v6504 = vsel %vm3959, %v6488, 0.0
    %v6505 = vrot.slane %v6504, 4
    %v6506 = vadd.f32 %v6504, %v6505
    %v6507 = vrot.slane %v6506, 2
    %v6508 = vadd.f32 %v6506, %v6507
    %v6509 = vrot.slane %v6508, 1
    %v6510 = vadd.f32 %v6508, %v6509
    %v6511 = vsel %vm3959, %v6489, 0.0
    %v6512 = vrot.slane %v6511, 4
    %v6513 = vadd.f32 %v6511, %v6512
    %v6514 = vrot.slane %v6513, 2
    %v6515 = vadd.f32 %v6513, %v6514
    %v6516 = vrot.slane %v6515, 1
    %v6517 = vadd.f32 %v6515, %v6516
    %v6518 = vmul.f32 %v6496, 0.25
    %v6519 = vmul.f32 %v6503, 0.25
    %v6520 = vmul.f32 %v6510, 0.25
    %v6521 = vmul.f32 %v6517, 0.25
    %v6522 = vmul.f32 %v6486, %v6486
    %v6523 = vmul.f32 %v6487, %v6487
    %v6524 = vmul.f32 %v6488, %v6488
    %v6525 = vmul.f32 %v6489, %v6489
    %v6526 = vsel %vm3959, %v6522, 0.0
    %v6527 = vrot.slane %v6526, 4
    %v6528 = vadd.f32 %v6526, %v6527
    %v6529 = vrot.slane %v6528, 2
    %v6530 = vadd.f32 %v6528, %v6529
    %v6531 = vrot.slane %v6530, 1
    %v6532 = vadd.f32 %v6530, %v6531
    %v6533 = vsel %vm3959, %v6523, 0.0
    %v6534 = vrot.slane %v6533, 4
    %v6535 = vadd.f32 %v6533, %v6534
    %v6536 = vrot.slane %v6535, 2
    %v6537 = vadd.f32 %v6535, %v6536
    %v6538 = vrot.slane %v6537, 1
    %v6539 = vadd.f32 %v6537, %v6538
    %v6540 = vsel %vm3959, %v6524, 0.0
    %v6541 = vrot.slane %v6540, 4
    %v6542 = vadd.f32 %v6540, %v6541
    %v6543 = vrot.slane %v6542, 2
    %v6544 = vadd.f32 %v6542, %v6543
    %v6545 = vrot.slane %v6544, 1
    %v6546 = vadd.f32 %v6544, %v6545
    %v6547 = vsel %vm3959, %v6525, 0.0
    %v6548 = vrot.slane %v6547, 4
    %v6549 = vadd.f32 %v6547, %v6548
    %v6550 = vrot.slane %v6549, 2
    %v6551 = vadd.f32 %v6549, %v6550
    %v6552 = vrot.slane %v6551, 1
    %v6553 = vadd.f32 %v6551, %v6552
    %v6554 = vmul.f32 %v6532, 0.25
    %v6555 = vmul.f32 %v6539, 0.25
    %v6556 = vmul.f32 %v6546, 0.25
    %v6557 = vmul.f32 %v6553, 0.25
    %v6558 = vmul.f32 %v6518, %v6518
    %v6559 = vmul.f32 %v6519, %v6519
    %v6560 = vmul.f32 %v6520, %v6520
    %v6561 = vmul.f32 %v6521, %v6521
    %v6562 = vsub.f32 %v6554, %v6558
    %v6563 = vsub.f32 %v6555, %v6559
    %v6564 = vsub.f32 %v6556, %v6560
    %v6565 = vsub.f32 %v6557, %v6561
    %v6566 = vmax.f32 %v6562, 0.0
    %v6567 = vmax.f32 %v6563, 0.0
    %v6568 = vmax.f32 %v6564, 0.0
    %v6569 = vmax.f32 %v6565, 0.0
    %v6570 = vld [vmem:[%s59] sm:$0xf]
    %v6571 = vadd.f32 %v6566, 1e-05
    %v6572 = vadd.f32 %v6567, 1e-05
    %v6573 = vadd.f32 %v6568, 1e-05
    %v6574 = vadd.f32 %v6569, 1e-05
    %v6575 = vrsqrt.pop %v6571
    %v6576 = vrsqrt.pop %v6572
    %v6577 = vrsqrt.pop %v6573
    %v6578 = vrsqrt.pop %v6574
    %v6583 = vcombine.low %v6575, %v6576
    %v6584 = vcombine.low %v6577, %v6578
    %v6586 = vunpack.c.l.s4 1966171168
    %v6587 = vunpack.c.0.s8 %v6586
    %v6588 = vlaneseq
    %v6589 = vshrl.u32 %v6588, 7
    %v6590 = vsub.s32 %v6587, %v6589
    %v6591 = vrot.slane %v6583, %v6590
    %v6593 = vunpack.c.l.s4 1966171168
    %v6594 = vunpack.c.0.s8 %v6593
    %v6595 = vlaneseq
    %v6596 = vshrl.u32 %v6595, 7
    %v6597 = vsub.s32 %v6594, %v6596
    %v6598 = vrot.slane %v6584, %v6597
    %v6599 = vcombine.low %v6591, %v6598
    %v6601 = vunpack.c.l.s4 1966171168
    %v6602 = vunpack.c.0.s8 %v6601
    %v6603 = vlaneseq
    %v6604 = vshrl.u32 %v6603, 7
    %v6605 = vsub.s32 %v6602, %v6604
    %v6606 = vrot.slane %v6599, %v6605
    %v6608 = vmul.f32 %v6570, %v6606
    %v6609 = vld [vmem:[%s61] sm:$0xf]
    %v6611 = vlaneseq
    %v6612 = vshrl.u32 %v6611, 7
    %v6613 = vsub.s32 0, %v6612
    %v6614 = vrot.slane %v6608, %v6613
    %v6615 = vlaneseq
    %v6616 = vshrl.u32 %v6615, 7
    %v6617 = vsub.s32 1, %v6616
    %v6618 = vrot.slane %v6608, %v6617
    %v6619 = vlaneseq
    %v6620 = vshrl.u32 %v6619, 7
    %v6621 = vsub.s32 2, %v6620
    %v6622 = vrot.slane %v6608, %v6621
    %v6623 = vlaneseq
    %v6624 = vshrl.u32 %v6623, 7
    %v6625 = vsub.s32 3, %v6624
    %v6626 = vrot.slane %v6608, %v6625
    %v6631 = vmul.f32 %v6518, %v6614
    %v6632 = vmul.f32 %v6519, %v6618
    %v6633 = vmul.f32 %v6520, %v6622
    %v6634 = vmul.f32 %v6521, %v6626
    %v6639 = vcombine.low %v6631, %v6632
    %v6640 = vcombine.low %v6633, %v6634
    %v6642 = vunpack.c.l.s4 1966171168
    %v6643 = vunpack.c.0.s8 %v6642
    %v6644 = vlaneseq
    %v6645 = vshrl.u32 %v6644, 7
    %v6646 = vsub.s32 %v6643, %v6645
    %v6647 = vrot.slane %v6639, %v6646
    %v6649 = vunpack.c.l.s4 1966171168
    %v6650 = vunpack.c.0.s8 %v6649
    %v6651 = vlaneseq
    %v6652 = vshrl.u32 %v6651, 7
    %v6653 = vsub.s32 %v6650, %v6652
    %v6654 = vrot.slane %v6640, %v6653
    %v6655 = vcombine.low %v6647, %v6654
    %v6657 = vunpack.c.l.s4 1966171168
    %v6658 = vunpack.c.0.s8 %v6657
    %v6659 = vlaneseq
    %v6660 = vshrl.u32 %v6659, 7
    %v6661 = vsub.s32 %v6658, %v6660
    %v6662 = vrot.slane %v6655, %v6661
    %v6664 = vsub.f32 %v6609, %v6662
    %v6665 = vmul.f32 %v6486, %v6614
    %v6666 = vmul.f32 %v6487, %v6618
    %v6667 = vmul.f32 %v6488, %v6622
    %v6668 = vmul.f32 %v6489, %v6626
    %v6670 = vlaneseq
    %v6671 = vshrl.u32 %v6670, 7
    %v6672 = vsub.s32 0, %v6671
    %v6673 = vrot.slane %v6664, %v6672
    %v6674 = vlaneseq
    %v6675 = vshrl.u32 %v6674, 7
    %v6676 = vsub.s32 1, %v6675
    %v6677 = vrot.slane %v6664, %v6676
    %v6678 = vlaneseq
    %v6679 = vshrl.u32 %v6678, 7
    %v6680 = vsub.s32 2, %v6679
    %v6681 = vrot.slane %v6664, %v6680
    %v6682 = vlaneseq
    %v6683 = vshrl.u32 %v6682, 7
    %v6684 = vsub.s32 3, %v6683
    %v6685 = vrot.slane %v6664, %v6684
    %v6690 = vadd.f32 %v6665, %v6673
    %v6691 = vadd.f32 %v6666, %v6677
    %v6692 = vadd.f32 %v6667, %v6681
    %v6693 = vadd.f32 %v6668, %v6685
    %v6694 = vmax.f32 %v6690, 0.0
    %v6695 = vmax.f32 %v6691, 0.0
    %v6696 = vmax.f32 %v6692, 0.0
    %v6697 = vmax.f32 %v6693, 0.0
    %v6698 = vld [vmem:[#allocation20] sm:$0xff]
    %v6699 = vld [vmem:[#allocation20 + $0x8] sm:$0xff]
    %v6700 = vld [vmem:[#allocation20 + $0x10] sm:$0xff]
    %v6701 = vld [vmem:[#allocation20 + $0x18] sm:$0xff]
    %v6702 = vld [vmem:[#allocation20 + $0x20] sm:$0xff]
    %v6703 = vld [vmem:[#allocation20 + $0x28] sm:$0xff]
    %v6704 = vld [vmem:[#allocation20 + $0x30] sm:$0xff]
    %v6705 = vld [vmem:[#allocation20 + $0x38] sm:$0xff]
    %v6706 = vld [vmem:[#allocation20 + $0x40] sm:$0xff]
    %v6707 = vld [vmem:[#allocation20 + $0x48] sm:$0xff]
    %v6708 = vld [vmem:[#allocation20 + $0x50] sm:$0xff]
    %v6709 = vld [vmem:[#allocation20 + $0x58] sm:$0xff]
    %v6710 = vld [vmem:[#allocation20 + $0x60] sm:$0xff]
    %v6711 = vld [vmem:[#allocation20 + $0x68] sm:$0xff]
    %v6712 = vld [vmem:[#allocation20 + $0x70] sm:$0xff]
    %v6713 = vld [vmem:[#allocation20 + $0x78] sm:$0xff]
    %v6714 = vld [vmem:[#allocation20 + $0x80] sm:$0xff]
    %v6715 = vld [vmem:[#allocation20 + $0x88] sm:$0xff]
    %v6716 = vld [vmem:[#allocation20 + $0x90] sm:$0xff]
    %v6717 = vld [vmem:[#allocation20 + $0x98] sm:$0xff]
    %v6718 = vld [vmem:[#allocation20 + $0xa0] sm:$0xff]
    %v6719 = vld [vmem:[#allocation20 + $0xa8] sm:$0xff]
    %v6720 = vld [vmem:[#allocation20 + $0xb0] sm:$0xff]
    %v6721 = vld [vmem:[#allocation20 + $0xb8] sm:$0xff]
    %v6722 = vld [vmem:[#allocation20 + $0xc0] sm:$0xff]
    %v6723 = vld [vmem:[#allocation20 + $0xc8] sm:$0xff]
    %v6724 = vld [vmem:[#allocation20 + $0xd0] sm:$0xff]
    %v6725 = vld [vmem:[#allocation20 + $0xd8] sm:$0xff]
    %v6726 = vld [vmem:[#allocation20 + $0xe0] sm:$0xff]
    %v6727 = vld [vmem:[#allocation20 + $0xe8] sm:$0xff]
    %v6728 = vld [vmem:[#allocation20 + $0xf0] sm:$0xff]
    %v6729 = vld [vmem:[#allocation20 + $0xf8] sm:$0xff]
    %v6730 = vld [vmem:[#allocation20 + $0x100] sm:$0xff]
    %v6731 = vld [vmem:[#allocation20 + $0x108] sm:$0xff]
    %v6732 = vld [vmem:[#allocation20 + $0x110] sm:$0xff]
    %v6733 = vld [vmem:[#allocation20 + $0x118] sm:$0xff]
    %v6734 = vld [vmem:[#allocation20 + $0x120] sm:$0xff]
    %v6735 = vld [vmem:[#allocation20 + $0x128] sm:$0xff]
    %v6736 = vld [vmem:[#allocation20 + $0x130] sm:$0xff]
    %v6737 = vld [vmem:[#allocation20 + $0x138] sm:$0xff]
    %v6738 = vld [vmem:[#allocation20 + $0x140] sm:$0xff]
    %v6739 = vld [vmem:[#allocation20 + $0x148] sm:$0xff]
    %v6740 = vld [vmem:[#allocation20 + $0x150] sm:$0xff]
    %v6741 = vld [vmem:[#allocation20 + $0x158] sm:$0xff]
    %v6742 = vld [vmem:[#allocation20 + $0x160] sm:$0xff]
    %v6743 = vld [vmem:[#allocation20 + $0x168] sm:$0xff]
    %v6744 = vld [vmem:[#allocation20 + $0x170] sm:$0xff]
    %v6745 = vld [vmem:[#allocation20 + $0x178] sm:$0xff]
    %v6746 = vld [vmem:[#allocation20 + $0x180] sm:$0xff]
    %v6747 = vld [vmem:[#allocation20 + $0x188] sm:$0xff]
    %v6748 = vld [vmem:[#allocation20 + $0x190] sm:$0xff]
    %v6749 = vld [vmem:[#allocation20 + $0x198] sm:$0xff]
    %v6750 = vld [vmem:[#allocation20 + $0x1a0] sm:$0xff]
    %v6751 = vld [vmem:[#allocation20 + $0x1a8] sm:$0xff]
    %v6752 = vld [vmem:[#allocation20 + $0x1b0] sm:$0xff]
    %v6753 = vld [vmem:[#allocation20 + $0x1b8] sm:$0xff]
    %v6754 = vld [vmem:[#allocation20 + $0x1c0] sm:$0xff]
    %v6755 = vld [vmem:[#allocation20 + $0x1c8] sm:$0xff]
    %v6756 = vld [vmem:[#allocation20 + $0x1d0] sm:$0xff]
    %v6757 = vld [vmem:[#allocation20 + $0x1d8] sm:$0xff]
    %v6758 = vld [vmem:[#allocation20 + $0x1e0] sm:$0xff]
    %v6759 = vld [vmem:[#allocation20 + $0x1e8] sm:$0xff]
    %v6760 = vld [vmem:[#allocation20 + $0x1f0] sm:$0xff]
    %v6761 = vld [vmem:[#allocation20 + $0x1f8] sm:$0xff]
    %v6826 = vunpack.c.l.b16 %v6698
    %v6827 = vunpack.c.h.b16 %v6698
    %v6828 = vunpack.c.l.b16 %v6699
    %v6829 = vunpack.c.h.b16 %v6699
    %v6830 = vunpack.c.l.b16 %v6700
    %v6831 = vunpack.c.h.b16 %v6700
    %v6832 = vunpack.c.l.b16 %v6701
    %v6833 = vunpack.c.h.b16 %v6701
    %v6834 = vunpack.c.l.b16 %v6702
    %v6835 = vunpack.c.h.b16 %v6702
    %v6836 = vunpack.c.l.b16 %v6703
    %v6837 = vunpack.c.h.b16 %v6703
    %v6838 = vunpack.c.l.b16 %v6704
    %v6839 = vunpack.c.h.b16 %v6704
    %v6840 = vunpack.c.l.b16 %v6705
    %v6841 = vunpack.c.h.b16 %v6705
    %v6842 = vunpack.c.l.b16 %v6706
    %v6843 = vunpack.c.h.b16 %v6706
    %v6844 = vunpack.c.l.b16 %v6707
    %v6845 = vunpack.c.h.b16 %v6707
    %v6846 = vunpack.c.l.b16 %v6708
    %v6847 = vunpack.c.h.b16 %v6708
    %v6848 = vunpack.c.l.b16 %v6709
    %v6849 = vunpack.c.h.b16 %v6709
    %v6850 = vunpack.c.l.b16 %v6710
    %v6851 = vunpack.c.h.b16 %v6710
    %v6852 = vunpack.c.l.b16 %v6711
    %v6853 = vunpack.c.h.b16 %v6711
    %v6854 = vunpack.c.l.b16 %v6712
    %v6855 = vunpack.c.h.b16 %v6712
    %v6856 = vunpack.c.l.b16 %v6713
    %v6857 = vunpack.c.h.b16 %v6713
    %v6858 = vunpack.c.l.b16 %v6714
    %v6859 = vunpack.c.h.b16 %v6714
    %v6860 = vunpack.c.l.b16 %v6715
    %v6861 = vunpack.c.h.b16 %v6715
    %v6862 = vunpack.c.l.b16 %v6716
    %v6863 = vunpack.c.h.b16 %v6716
    %v6864 = vunpack.c.l.b16 %v6717
    %v6865 = vunpack.c.h.b16 %v6717
    %v6866 = vunpack.c.l.b16 %v6718
    %v6867 = vunpack.c.h.b16 %v6718
    %v6868 = vunpack.c.l.b16 %v6719
    %v6869 = vunpack.c.h.b16 %v6719
    %v6870 = vunpack.c.l.b16 %v6720
    %v6871 = vunpack.c.h.b16 %v6720
    %v6872 = vunpack.c.l.b16 %v6721
    %v6873 = vunpack.c.h.b16 %v6721
    %v6874 = vunpack.c.l.b16 %v6722
    %v6875 = vunpack.c.h.b16 %v6722
    %v6876 = vunpack.c.l.b16 %v6723
    %v6877 = vunpack.c.h.b16 %v6723
    %v6878 = vunpack.c.l.b16 %v6724
    %v6879 = vunpack.c.h.b16 %v6724
    %v6880 = vunpack.c.l.b16 %v6725
    %v6881 = vunpack.c.h.b16 %v6725
    %v6882 = vunpack.c.l.b16 %v6726
    %v6883 = vunpack.c.h.b16 %v6726
    %v6884 = vunpack.c.l.b16 %v6727
    %v6885 = vunpack.c.h.b16 %v6727
    %v6886 = vunpack.c.l.b16 %v6728
    %v6887 = vunpack.c.h.b16 %v6728
    %v6888 = vunpack.c.l.b16 %v6729
    %v6889 = vunpack.c.h.b16 %v6729
    %v6890 = vunpack.c.l.b16 %v6730
    %v6891 = vunpack.c.h.b16 %v6730
    %v6892 = vunpack.c.l.b16 %v6731
    %v6893 = vunpack.c.h.b16 %v6731
    %v6894 = vunpack.c.l.b16 %v6732
    %v6895 = vunpack.c.h.b16 %v6732
    %v6896 = vunpack.c.l.b16 %v6733
    %v6897 = vunpack.c.h.b16 %v6733
    %v6898 = vunpack.c.l.b16 %v6734
    %v6899 = vunpack.c.h.b16 %v6734
    %v6900 = vunpack.c.l.b16 %v6735
    %v6901 = vunpack.c.h.b16 %v6735
    %v6902 = vunpack.c.l.b16 %v6736
    %v6903 = vunpack.c.h.b16 %v6736
    %v6904 = vunpack.c.l.b16 %v6737
    %v6905 = vunpack.c.h.b16 %v6737
    %v6906 = vunpack.c.l.b16 %v6738
    %v6907 = vunpack.c.h.b16 %v6738
    %v6908 = vunpack.c.l.b16 %v6739
    %v6909 = vunpack.c.h.b16 %v6739
    %v6910 = vunpack.c.l.b16 %v6740
    %v6911 = vunpack.c.h.b16 %v6740
    %v6912 = vunpack.c.l.b16 %v6741
    %v6913 = vunpack.c.h.b16 %v6741
    %v6914 = vunpack.c.l.b16 %v6742
    %v6915 = vunpack.c.h.b16 %v6742
    %v6916 = vunpack.c.l.b16 %v6743
    %v6917 = vunpack.c.h.b16 %v6743
    %v6918 = vunpack.c.l.b16 %v6744
    %v6919 = vunpack.c.h.b16 %v6744
    %v6920 = vunpack.c.l.b16 %v6745
    %v6921 = vunpack.c.h.b16 %v6745
    %v6922 = vunpack.c.l.b16 %v6746
    %v6923 = vunpack.c.h.b16 %v6746
    %v6924 = vunpack.c.l.b16 %v6747
    %v6925 = vunpack.c.h.b16 %v6747
    %v6926 = vunpack.c.l.b16 %v6748
    %v6927 = vunpack.c.h.b16 %v6748
    %v6928 = vunpack.c.l.b16 %v6749
    %v6929 = vunpack.c.h.b16 %v6749
    %v6930 = vunpack.c.l.b16 %v6750
    %v6931 = vunpack.c.h.b16 %v6750
    %v6932 = vunpack.c.l.b16 %v6751
    %v6933 = vunpack.c.h.b16 %v6751
    %v6934 = vunpack.c.l.b16 %v6752
    %v6935 = vunpack.c.h.b16 %v6752
    %v6936 = vunpack.c.l.b16 %v6753
    %v6937 = vunpack.c.h.b16 %v6753
    %v6938 = vunpack.c.l.b16 %v6754
    %v6939 = vunpack.c.h.b16 %v6754
    %v6940 = vunpack.c.l.b16 %v6755
    %v6941 = vunpack.c.h.b16 %v6755
    %v6942 = vunpack.c.l.b16 %v6756
    %v6943 = vunpack.c.h.b16 %v6756
    %v6944 = vunpack.c.l.b16 %v6757
    %v6945 = vunpack.c.h.b16 %v6757
    %v6946 = vunpack.c.l.b16 %v6758
    %v6947 = vunpack.c.h.b16 %v6758
    %v6948 = vunpack.c.l.b16 %v6759
    %v6949 = vunpack.c.h.b16 %v6759
    %v6950 = vunpack.c.l.b16 %v6760
    %v6951 = vunpack.c.h.b16 %v6760
    %v6952 = vunpack.c.l.b16 %v6761
    %v6953 = vunpack.c.h.b16 %v6761
    %v6954 = vpack.c.b16 %v6830, %v6826
    %v6955 = vpack.c.b16 %v6831, %v6827
    %v6956 = vpack.c.b16 %v6832, %v6828
    %v6957 = vpack.c.b16 %v6833, %v6829
    %v6958 = vpack.c.b16 %v6838, %v6834
    %v6959 = vpack.c.b16 %v6839, %v6835
    %v6960 = vpack.c.b16 %v6840, %v6836
    %v6961 = vpack.c.b16 %v6841, %v6837
    %v6962 = vpack.c.b16 %v6846, %v6842
    %v6963 = vpack.c.b16 %v6847, %v6843
    %v6964 = vpack.c.b16 %v6848, %v6844
    %v6965 = vpack.c.b16 %v6849, %v6845
    %v6966 = vpack.c.b16 %v6854, %v6850
    %v6967 = vpack.c.b16 %v6855, %v6851
    %v6968 = vpack.c.b16 %v6856, %v6852
    %v6969 = vpack.c.b16 %v6857, %v6853
    %v6970 = vpack.c.b16 %v6862, %v6858
    %v6971 = vpack.c.b16 %v6863, %v6859
    %v6972 = vpack.c.b16 %v6864, %v6860
    %v6973 = vpack.c.b16 %v6865, %v6861
    %v6974 = vpack.c.b16 %v6870, %v6866
    %v6975 = vpack.c.b16 %v6871, %v6867
    %v6976 = vpack.c.b16 %v6872, %v6868
    %v6977 = vpack.c.b16 %v6873, %v6869
    %v6978 = vpack.c.b16 %v6878, %v6874
    %v6979 = vpack.c.b16 %v6879, %v6875
    %v6980 = vpack.c.b16 %v6880, %v6876
    %v6981 = vpack.c.b16 %v6881, %v6877
    %v6982 = vpack.c.b16 %v6886, %v6882
    %v6983 = vpack.c.b16 %v6887, %v6883
    %v6984 = vpack.c.b16 %v6888, %v6884
    %v6985 = vpack.c.b16 %v6889, %v6885
    %v6986 = vpack.c.b16 %v6894, %v6890
    %v6987 = vpack.c.b16 %v6895, %v6891
    %v6988 = vpack.c.b16 %v6896, %v6892
    %v6989 = vpack.c.b16 %v6897, %v6893
    %v6990 = vpack.c.b16 %v6902, %v6898
    %v6991 = vpack.c.b16 %v6903, %v6899
    %v6992 = vpack.c.b16 %v6904, %v6900
    %v6993 = vpack.c.b16 %v6905, %v6901
    %v6994 = vpack.c.b16 %v6910, %v6906
    %v6995 = vpack.c.b16 %v6911, %v6907
    %v6996 = vpack.c.b16 %v6912, %v6908
    %v6997 = vpack.c.b16 %v6913, %v6909
    %v6998 = vpack.c.b16 %v6918, %v6914
    %v6999 = vpack.c.b16 %v6919, %v6915
    %v7000 = vpack.c.b16 %v6920, %v6916
    %v7001 = vpack.c.b16 %v6921, %v6917
    %v7002 = vpack.c.b16 %v6926, %v6922
    %v7003 = vpack.c.b16 %v6927, %v6923
    %v7004 = vpack.c.b16 %v6928, %v6924
    %v7005 = vpack.c.b16 %v6929, %v6925
    %v7006 = vpack.c.b16 %v6934, %v6930
    %v7007 = vpack.c.b16 %v6935, %v6931
    %v7008 = vpack.c.b16 %v6936, %v6932
    %v7009 = vpack.c.b16 %v6937, %v6933
    %v7010 = vpack.c.b16 %v6942, %v6938
    %v7011 = vpack.c.b16 %v6943, %v6939
    %v7012 = vpack.c.b16 %v6944, %v6940
    %v7013 = vpack.c.b16 %v6945, %v6941
    %v7014 = vpack.c.b16 %v6950, %v6946
    %v7015 = vpack.c.b16 %v6951, %v6947
    %v7016 = vpack.c.b16 %v6952, %v6948
    %v7017 = vpack.c.b16 %v6953, %v6949
    %7082 = vmatprep.subr.bf16.mxu0 %v6983
    %7083 = vmatpush1.bf16.msra.mxu0 %v6982
    %7084 = vmatprep.subr.bf16.mxu0 %v6979
    %7085 = vmatpush1.bf16.msra.mxu0 %v6978
    %7086 = vmatprep.subr.bf16.mxu0 %v6975
    %7087 = vmatpush1.bf16.msra.mxu0 %v6974
    %7088 = vmatprep.subr.bf16.mxu0 %v6971
    %7089 = vmatpush1.bf16.msra.mxu0 %v6970
    %7090 = vmatprep.subr.bf16.mxu0 %v6967
    %7091 = vmatpush1.bf16.msra.mxu0 %v6966
    %7092 = vmatprep.subr.bf16.mxu0 %v6963
    %7093 = vmatpush1.bf16.msra.mxu0 %v6962
    %7094 = vmatprep.subr.bf16.mxu0 %v6959
    %7095 = vmatpush1.bf16.msra.mxu0 %v6958
    %7096 = vmatprep.subr.bf16.mxu0 %v6955
    %7097 = vmatpush1.bf16.msra.mxu0 %v6954
    %7098 = vmatprep.subr.bf16.mxu0 %v7015
    %7099 = vmatpush2.bf16.msra.mxu0 %v7014
    %7100 = vmatprep.subr.bf16.mxu0 %v7011
    %7101 = vmatpush2.bf16.msra.mxu0 %v7010
    %7102 = vmatprep.subr.bf16.mxu0 %v7007
    %7103 = vmatpush2.bf16.msra.mxu0 %v7006
    %7104 = vmatprep.subr.bf16.mxu0 %v7003
    %7105 = vmatpush2.bf16.msra.mxu0 %v7002
    %7106 = vmatprep.subr.bf16.mxu0 %v6999
    %7107 = vmatpush2.bf16.msra.mxu0 %v6998
    %7108 = vmatprep.subr.bf16.mxu0 %v6995
    %7109 = vmatpush2.bf16.msra.mxu0 %v6994
    %7110 = vmatprep.subr.bf16.mxu0 %v6991
    %7111 = vmatpush2.bf16.msra.mxu0 %v6990
    %7112 = vmatprep.subr.bf16.mxu0 %v6987
    %7113 = vmatpush2.bf16.msra.mxu0 %v6986
    %7114 = vmatprep.mubr.bf16.mxu0 %v5147
    %7115 = vmatmul.mubr.bf16.gmra.mxu0 %v5146
    %v7116 = vpop.f32.mrf.mxu0
    %v7117 = vadd.f32 0.0, %v7116
    %v7118 = vpop.f32.mrf.mxu0
    %v7119 = vadd.f32 0.0, %v7118
    %v7120 = vpop.f32.mrf.mxu0
    %v7121 = vpop.f32.mrf.mxu0
    %7122 = vdwg.mxu0
    %7123 = vmatprep.subr.bf16.mxu0 %v6985
    %7124 = vmatpush1.bf16.msra.mxu0 %v6984
    %7125 = vmatprep.subr.bf16.mxu0 %v6981
    %7126 = vmatpush1.bf16.msra.mxu0 %v6980
    %7127 = vmatprep.subr.bf16.mxu0 %v6977
    %7128 = vmatpush1.bf16.msra.mxu0 %v6976
    %7129 = vmatprep.subr.bf16.mxu0 %v6973
    %7130 = vmatpush1.bf16.msra.mxu0 %v6972
    %7131 = vmatprep.subr.bf16.mxu0 %v6969
    %7132 = vmatpush1.bf16.msra.mxu0 %v6968
    %7133 = vmatprep.subr.bf16.mxu0 %v6965
    %7134 = vmatpush1.bf16.msra.mxu0 %v6964
    %7135 = vmatprep.subr.bf16.mxu0 %v6961
    %7136 = vmatpush1.bf16.msra.mxu0 %v6960
    %7137 = vmatprep.subr.bf16.mxu0 %v6957
    %7138 = vmatpush1.bf16.msra.mxu0 %v6956
    %7139 = vmatprep.subr.bf16.mxu0 %v7017
    %7140 = vmatpush2.bf16.msra.mxu0 %v7016
    %7141 = vmatprep.subr.bf16.mxu0 %v7013
    %7142 = vmatpush2.bf16.msra.mxu0 %v7012
    %7143 = vmatprep.subr.bf16.mxu0 %v7009
    %7144 = vmatpush2.bf16.msra.mxu0 %v7008
    %7145 = vmatprep.subr.bf16.mxu0 %v7005
    %7146 = vmatpush2.bf16.msra.mxu0 %v7004
    %7147 = vmatprep.subr.bf16.mxu0 %v7001
    %7148 = vmatpush2.bf16.msra.mxu0 %v7000
    %7149 = vmatprep.subr.bf16.mxu0 %v6997
    %7150 = vmatpush2.bf16.msra.mxu0 %v6996
    %7151 = vmatprep.subr.bf16.mxu0 %v6993
    %7152 = vmatpush2.bf16.msra.mxu0 %v6992
    %7153 = vmatprep.subr.bf16.mxu0 %v6989
    %7154 = vmatpush2.bf16.msra.mxu0 %v6988
    %7155 = vmatprep.mubr.bf16.mxu0 %v5147
    %7156 = vmatmul.mubr.bf16.gmra.mxu0 %v5146
    %v7157 = vpop.f32.mrf.mxu0
    %v7158 = vadd.f32 0.0, %v7157
    %v7159 = vpop.f32.mrf.mxu0
    %v7160 = vadd.f32 0.0, %v7159
    %v7161 = vpop.f32.mrf.mxu0
    %v7162 = vpop.f32.mrf.mxu0
    %7163 = vdwg.mxu0
    %v7164 = vsel %vm3959, %v7117, 0.0
    %v7165 = vrot.slane %v7164, 4
    %v7166 = vadd.f32 %v7164, %v7165
    %v7167 = vrot.slane %v7166, 2
    %v7168 = vadd.f32 %v7166, %v7167
    %v7169 = vrot.slane %v7168, 1
    %v7170 = vadd.f32 %v7168, %v7169
    %v7171 = vsel %vm3959, %v7119, 0.0
    %v7172 = vrot.slane %v7171, 4
    %v7173 = vadd.f32 %v7171, %v7172
    %v7174 = vrot.slane %v7173, 2
    %v7175 = vadd.f32 %v7173, %v7174
    %v7176 = vrot.slane %v7175, 1
    %v7177 = vadd.f32 %v7175, %v7176
    %v7178 = vsel %vm3959, %v7158, 0.0
    %v7179 = vrot.slane %v7178, 4
    %v7180 = vadd.f32 %v7178, %v7179
    %v7181 = vrot.slane %v7180, 2
    %v7182 = vadd.f32 %v7180, %v7181
    %v7183 = vrot.slane %v7182, 1
    %v7184 = vadd.f32 %v7182, %v7183
    %v7185 = vsel %vm3959, %v7160, 0.0
    %v7186 = vrot.slane %v7185, 4
    %v7187 = vadd.f32 %v7185, %v7186
    %v7188 = vrot.slane %v7187, 2
    %v7189 = vadd.f32 %v7187, %v7188
    %v7190 = vrot.slane %v7189, 1
    %v7191 = vadd.f32 %v7189, %v7190
    %v7192 = vmul.f32 %v7170, 0.25
    %v7193 = vmul.f32 %v7177, 0.25
    %v7194 = vmul.f32 %v7184, 0.25
    %v7195 = vmul.f32 %v7191, 0.25
    %v7196 = vmul.f32 %v7117, %v7117
    %v7197 = vmul.f32 %v7119, %v7119
    %v7198 = vmul.f32 %v7158, %v7158
    %v7199 = vmul.f32 %v7160, %v7160
    %v7200 = vsel %vm3959, %v7196, 0.0
    %v7201 = vrot.slane %v7200, 4
    %v7202 = vadd.f32 %v7200, %v7201
    %v7203 = vrot.slane %v7202, 2
    %v7204 = vadd.f32 %v7202, %v7203
    %v7205 = vrot.slane %v7204, 1
    %v7206 = vadd.f32 %v7204, %v7205
    %v7207 = vsel %vm3959, %v7197, 0.0
    %v7208 = vrot.slane %v7207, 4
    %v7209 = vadd.f32 %v7207, %v7208
    %v7210 = vrot.slane %v7209, 2
    %v7211 = vadd.f32 %v7209, %v7210
    %v7212 = vrot.slane %v7211, 1
    %v7213 = vadd.f32 %v7211, %v7212
    %v7214 = vsel %vm3959, %v7198, 0.0
    %v7215 = vrot.slane %v7214, 4
    %v7216 = vadd.f32 %v7214, %v7215
    %v7217 = vrot.slane %v7216, 2
    %v7218 = vadd.f32 %v7216, %v7217
    %v7219 = vrot.slane %v7218, 1
    %v7220 = vadd.f32 %v7218, %v7219
    %v7221 = vsel %vm3959, %v7199, 0.0
    %v7222 = vrot.slane %v7221, 4
    %v7223 = vadd.f32 %v7221, %v7222
    %v7224 = vrot.slane %v7223, 2
    %v7225 = vadd.f32 %v7223, %v7224
    %v7226 = vrot.slane %v7225, 1
    %v7227 = vadd.f32 %v7225, %v7226
    %v7228 = vmul.f32 %v7206, 0.25
    %v7229 = vmul.f32 %v7213, 0.25
    %v7230 = vmul.f32 %v7220, 0.25
    %v7231 = vmul.f32 %v7227, 0.25
    %v7232 = vmul.f32 %v7192, %v7192
    %v7233 = vmul.f32 %v7193, %v7193
    %v7234 = vmul.f32 %v7194, %v7194
    %v7235 = vmul.f32 %v7195, %v7195
    %v7236 = vsub.f32 %v7228, %v7232
    %v7237 = vsub.f32 %v7229, %v7233
    %v7238 = vsub.f32 %v7230, %v7234
    %v7239 = vsub.f32 %v7231, %v7235
    %v7240 = vmax.f32 %v7236, 0.0
    %v7241 = vmax.f32 %v7237, 0.0
    %v7242 = vmax.f32 %v7238, 0.0
    %v7243 = vmax.f32 %v7239, 0.0
    %v7244 = vld [vmem:[%s71] sm:$0xf]
    %v7245 = vadd.f32 %v7240, 1e-05
    %v7246 = vadd.f32 %v7241, 1e-05
    %v7247 = vadd.f32 %v7242, 1e-05
    %v7248 = vadd.f32 %v7243, 1e-05
    %v7249 = vrsqrt.pop %v7245
    %v7250 = vrsqrt.pop %v7246
    %v7251 = vrsqrt.pop %v7247
    %v7252 = vrsqrt.pop %v7248
    %v7257 = vcombine.low %v7249, %v7250
    %v7258 = vcombine.low %v7251, %v7252
    %v7260 = vunpack.c.l.s4 1966171168
    %v7261 = vunpack.c.0.s8 %v7260
    %v7262 = vlaneseq
    %v7263 = vshrl.u32 %v7262, 7
    %v7264 = vsub.s32 %v7261, %v7263
    %v7265 = vrot.slane %v7257, %v7264
    %v7267 = vunpack.c.l.s4 1966171168
    %v7268 = vunpack.c.0.s8 %v7267
    %v7269 = vlaneseq
    %v7270 = vshrl.u32 %v7269, 7
    %v7271 = vsub.s32 %v7268, %v7270
    %v7272 = vrot.slane %v7258, %v7271
    %v7273 = vcombine.low %v7265, %v7272
    %v7275 = vunpack.c.l.s4 1966171168
    %v7276 = vunpack.c.0.s8 %v7275
    %v7277 = vlaneseq
    %v7278 = vshrl.u32 %v7277, 7
    %v7279 = vsub.s32 %v7276, %v7278
    %v7280 = vrot.slane %v7273, %v7279
    %v7282 = vmul.f32 %v7244, %v7280
    %v7283 = vld [vmem:[%s73] sm:$0xf]
    %v7285 = vlaneseq
    %v7286 = vshrl.u32 %v7285, 7
    %v7287 = vsub.s32 0, %v7286
    %v7288 = vrot.slane %v7282, %v7287
    %v7289 = vlaneseq
    %v7290 = vshrl.u32 %v7289, 7
    %v7291 = vsub.s32 1, %v7290
    %v7292 = vrot.slane %v7282, %v7291
    %v7293 = vlaneseq
    %v7294 = vshrl.u32 %v7293, 7
    %v7295 = vsub.s32 2, %v7294
    %v7296 = vrot.slane %v7282, %v7295
    %v7297 = vlaneseq
    %v7298 = vshrl.u32 %v7297, 7
    %v7299 = vsub.s32 3, %v7298
    %v7300 = vrot.slane %v7282, %v7299
    %v7305 = vmul.f32 %v7192, %v7288
    %v7306 = vmul.f32 %v7193, %v7292
    %v7307 = vmul.f32 %v7194, %v7296
    %v7308 = vmul.f32 %v7195, %v7300
    %v7313 = vcombine.low %v7305, %v7306
    %v7314 = vcombine.low %v7307, %v7308
    %v7316 = vunpack.c.l.s4 1966171168
    %v7317 = vunpack.c.0.s8 %v7316
    %v7318 = vlaneseq
    %v7319 = vshrl.u32 %v7318, 7
    %v7320 = vsub.s32 %v7317, %v7319
    %v7321 = vrot.slane %v7313, %v7320
    %v7323 = vunpack.c.l.s4 1966171168
    %v7324 = vunpack.c.0.s8 %v7323
    %v7325 = vlaneseq
    %v7326 = vshrl.u32 %v7325, 7
    %v7327 = vsub.s32 %v7324, %v7326
    %v7328 = vrot.slane %v7314, %v7327
    %v7329 = vcombine.low %v7321, %v7328
    %v7331 = vunpack.c.l.s4 1966171168
    %v7332 = vunpack.c.0.s8 %v7331
    %v7333 = vlaneseq
    %v7334 = vshrl.u32 %v7333, 7
    %v7335 = vsub.s32 %v7332, %v7334
    %v7336 = vrot.slane %v7329, %v7335
    %v7338 = vsub.f32 %v7283, %v7336
    %v7339 = vmul.f32 %v7117, %v7288
    %v7340 = vmul.f32 %v7119, %v7292
    %v7341 = vmul.f32 %v7158, %v7296
    %v7342 = vmul.f32 %v7160, %v7300
    %v7344 = vlaneseq
    %v7345 = vshrl.u32 %v7344, 7
    %v7346 = vsub.s32 0, %v7345
    %v7347 = vrot.slane %v7338, %v7346
    %v7348 = vlaneseq
    %v7349 = vshrl.u32 %v7348, 7
    %v7350 = vsub.s32 1, %v7349
    %v7351 = vrot.slane %v7338, %v7350
    %v7352 = vlaneseq
    %v7353 = vshrl.u32 %v7352, 7
    %v7354 = vsub.s32 2, %v7353
    %v7355 = vrot.slane %v7338, %v7354
    %v7356 = vlaneseq
    %v7357 = vshrl.u32 %v7356, 7
    %v7358 = vsub.s32 3, %v7357
    %v7359 = vrot.slane %v7338, %v7358
    %v7364 = vadd.f32 %v7339, %v7347
    %v7365 = vadd.f32 %v7340, %v7351
    %v7366 = vadd.f32 %v7341, %v7355
    %v7367 = vadd.f32 %v7342, %v7359
    %v7368 = vpack.c.bf16 %v6694, %v6694
    %v7369 = vpack.c.bf16 %v6695, %v6695
    %v7370 = vpack.c.bf16 %v6696, %v6696
    %v7371 = vpack.c.bf16 %v6697, %v6697
    %vm7372 = vcmp.lt.s32.totalorder %v586, 2
    %vm7373 = vmand %vm4926, %vm7372
    %vm7374 = vcmp.ge.s32.totalorder %v586, 2
    %vm7375 = vmand %vm4929, %vm7374
    %vm7376 = vmand %vm7375, %vm3946
    %vm7377 = vmor %vm7373, %vm7376
    %vm7378 = vmand %vm7377, %vm886
    %v7379 = vsel %vm7378, 1.0, 0.0
    %v7380 = vpack.c.bf16 %v7379, %v7379
    %vm7381 = vcmask 31744
    %v7383 = vsel %vm7381, %v7380, 0
    %vm7385 = vcmask 1041408
    %v7387 = vsel %vm7385, %v7368, 0
    %v7390 = vsel %vm7385, %v7369, 0
    %v7393 = vsel %vm7385, %v7370, 0
    %v7396 = vsel %vm7385, %v7371, 0
    %7398 = vmatprep.subr.bf16.mxu0 0
    %7399 = vmatpush1.bf16.msra.mxu0 0
    %7400 = vmatprep.subr.bf16.mxu0 0
    %7401 = vmatpush1.bf16.msra.mxu0 0
    %7402 = vmatprep.subr.bf16.mxu0 0
    %7403 = vmatpush1.bf16.msra.mxu0 0
    %7404 = vmatprep.subr.bf16.mxu0 0
    %7405 = vmatpush1.bf16.msra.mxu0 0
    %7406 = vmatprep.subr.bf16.mxu0 0
    %7407 = vmatpush1.bf16.msra.mxu0 0
    %7408 = vmatprep.subr.bf16.mxu0 0
    %7409 = vmatpush1.bf16.msra.mxu0 0
    %7410 = vmatprep.subr.bf16.mxu0 0
    %7411 = vmatpush1.bf16.msra.mxu0 0
    %7412 = vmatprep.subr.bf16.mxu0 %v7390
    %7413 = vmatpush1.bf16.msra.mxu0 %v7387
    %7414 = vmatprep.subr.bf16.mxu0 0
    %7415 = vmatpush2.bf16.msra.mxu0 0
    %7416 = vmatprep.subr.bf16.mxu0 0
    %7417 = vmatpush2.bf16.msra.mxu0 0
    %7418 = vmatprep.subr.bf16.mxu0 0
    %7419 = vmatpush2.bf16.msra.mxu0 0
    %7420 = vmatprep.subr.bf16.mxu0 0
    %7421 = vmatpush2.bf16.msra.mxu0 0
    %7422 = vmatprep.subr.bf16.mxu0 0
    %7423 = vmatpush2.bf16.msra.mxu0 0
    %7424 = vmatprep.subr.bf16.mxu0 0
    %7425 = vmatpush2.bf16.msra.mxu0 0
    %7426 = vmatprep.subr.bf16.mxu0 0
    %7427 = vmatpush2.bf16.msra.mxu0 0
    %7428 = vmatprep.subr.bf16.mxu0 0
    %7429 = vmatpush2.bf16.msra.mxu0 0
    %7430 = vmatprep.mubr.bf16.mxu0 0
    %7431 = vmatmul.mubr.bf16.gmra.mxu0 %v7383
    %v7432 = vpop.f32.mrf.mxu0
    %v7433 = vadd.f32 0.0, %v7432
    %v7434 = vpop.f32.mrf.mxu0
    %v7435 = vadd.f32 0.0, %v7434
    %v7436 = vpop.f32.mrf.mxu0
    %v7437 = vpop.f32.mrf.mxu0
    %7438 = vdwg.mxu0
    %7439 = vmatprep.subr.bf16.mxu0 0
    %7440 = vmatpush1.bf16.msra.mxu0 0
    %7441 = vmatprep.subr.bf16.mxu0 0
    %7442 = vmatpush1.bf16.msra.mxu0 0
    %7443 = vmatprep.subr.bf16.mxu0 0
    %7444 = vmatpush1.bf16.msra.mxu0 0
    %7445 = vmatprep.subr.bf16.mxu0 0
    %7446 = vmatpush1.bf16.msra.mxu0 0
    %7447 = vmatprep.subr.bf16.mxu0 0
    %7448 = vmatpush1.bf16.msra.mxu0 0
    %7449 = vmatprep.subr.bf16.mxu0 0
    %7450 = vmatpush1.bf16.msra.mxu0 0
    %7451 = vmatprep.subr.bf16.mxu0 0
    %7452 = vmatpush1.bf16.msra.mxu0 0
    %7453 = vmatprep.subr.bf16.mxu0 %v7396
    %7454 = vmatpush1.bf16.msra.mxu0 %v7393
    %7455 = vmatprep.subr.bf16.mxu0 0
    %7456 = vmatpush2.bf16.msra.mxu0 0
    %7457 = vmatprep.subr.bf16.mxu0 0
    %7458 = vmatpush2.bf16.msra.mxu0 0
    %7459 = vmatprep.subr.bf16.mxu0 0
    %7460 = vmatpush2.bf16.msra.mxu0 0
    %7461 = vmatprep.subr.bf16.mxu0 0
    %7462 = vmatpush2.bf16.msra.mxu0 0
    %7463 = vmatprep.subr.bf16.mxu0 0
    %7464 = vmatpush2.bf16.msra.mxu0 0
    %7465 = vmatprep.subr.bf16.mxu0 0
    %7466 = vmatpush2.bf16.msra.mxu0 0
    %7467 = vmatprep.subr.bf16.mxu0 0
    %7468 = vmatpush2.bf16.msra.mxu0 0
    %7469 = vmatprep.subr.bf16.mxu0 0
    %7470 = vmatpush2.bf16.msra.mxu0 0
    %7471 = vmatprep.mubr.bf16.mxu0 0
    %7472 = vmatmul.mubr.bf16.gmra.mxu0 %v7383
    %v7473 = vpop.f32.mrf.mxu0
    %v7474 = vadd.f32 0.0, %v7473
    %v7475 = vpop.f32.mrf.mxu0
    %v7476 = vadd.f32 0.0, %v7475
    %v7477 = vpop.f32.mrf.mxu0
    %v7478 = vpop.f32.mrf.mxu0
    %7479 = vdwg.mxu0
    %vm7480 = vmand %vm7377, %vm956
    %v7481 = vsel %vm7480, 1.0, 0.0
    %v7482 = vpack.c.bf16 %v7481, %v7481
    %v7484 = vsel %vm7381, %v7482, 0
    %7486 = vmatprep.subr.bf16.mxu0 0
    %7487 = vmatpush1.bf16.msra.mxu0 0
    %7488 = vmatprep.subr.bf16.mxu0 0
    %7489 = vmatpush1.bf16.msra.mxu0 0
    %7490 = vmatprep.subr.bf16.mxu0 0
    %7491 = vmatpush1.bf16.msra.mxu0 0
    %7492 = vmatprep.subr.bf16.mxu0 0
    %7493 = vmatpush1.bf16.msra.mxu0 0
    %7494 = vmatprep.subr.bf16.mxu0 0
    %7495 = vmatpush1.bf16.msra.mxu0 0
    %7496 = vmatprep.subr.bf16.mxu0 0
    %7497 = vmatpush1.bf16.msra.mxu0 0
    %7498 = vmatprep.subr.bf16.mxu0 0
    %7499 = vmatpush1.bf16.msra.mxu0 0
    %7500 = vmatprep.subr.bf16.mxu0 %v7390
    %7501 = vmatpush1.bf16.msra.mxu0 %v7387
    %7502 = vmatprep.subr.bf16.mxu0 0
    %7503 = vmatpush2.bf16.msra.mxu0 0
    %7504 = vmatprep.subr.bf16.mxu0 0
    %7505 = vmatpush2.bf16.msra.mxu0 0
    %7506 = vmatprep.subr.bf16.mxu0 0
    %7507 = vmatpush2.bf16.msra.mxu0 0
    %7508 = vmatprep.subr.bf16.mxu0 0
    %7509 = vmatpush2.bf16.msra.mxu0 0
    %7510 = vmatprep.subr.bf16.mxu0 0
    %7511 = vmatpush2.bf16.msra.mxu0 0
    %7512 = vmatprep.subr.bf16.mxu0 0
    %7513 = vmatpush2.bf16.msra.mxu0 0
    %7514 = vmatprep.subr.bf16.mxu0 0
    %7515 = vmatpush2.bf16.msra.mxu0 0
    %7516 = vmatprep.subr.bf16.mxu0 0
    %7517 = vmatpush2.bf16.msra.mxu0 0
    %7518 = vmatprep.mubr.bf16.mxu0 0
    %7519 = vmatmul.mubr.bf16.gmra.mxu0 %v7484
    %v7520 = vpop.f32.mrf.mxu0
    %v7521 = vadd.f32 0.0, %v7520
    %v7522 = vpop.f32.mrf.mxu0
    %v7523 = vadd.f32 0.0, %v7522
    %v7524 = vpop.f32.mrf.mxu0
    %v7525 = vpop.f32.mrf.mxu0
    %7526 = vdwg.mxu0
    %7527 = vmatprep.subr.bf16.mxu0 0
    %7528 = vmatpush1.bf16.msra.mxu0 0
    %7529 = vmatprep.subr.bf16.mxu0 0
    %7530 = vmatpush1.bf16.msra.mxu0 0
    %7531 = vmatprep.subr.bf16.mxu0 0
    %7532 = vmatpush1.bf16.msra.mxu0 0
    %7533 = vmatprep.subr.bf16.mxu0 0
    %7534 = vmatpush1.bf16.msra.mxu0 0
    %7535 = vmatprep.subr.bf16.mxu0 0
    %7536 = vmatpush1.bf16.msra.mxu0 0
    %7537 = vmatprep.subr.bf16.mxu0 0
    %7538 = vmatpush1.bf16.msra.mxu0 0
    %7539 = vmatprep.subr.bf16.mxu0 0
    %7540 = vmatpush1.bf16.msra.mxu0 0
    %7541 = vmatprep.subr.bf16.mxu0 %v7396
    %7542 = vmatpush1.bf16.msra.mxu0 %v7393
    %7543 = vmatprep.subr.bf16.mxu0 0
    %7544 = vmatpush2.bf16.msra.mxu0 0
    %7545 = vmatprep.subr.bf16.mxu0 0
    %7546 = vmatpush2.bf16.msra.mxu0 0
    %7547 = vmatprep.subr.bf16.mxu0 0
    %7548 = vmatpush2.bf16.msra.mxu0 0
    %7549 = vmatprep.subr.bf16.mxu0 0
    %7550 = vmatpush2.bf16.msra.mxu0 0
    %7551 = vmatprep.subr.bf16.mxu0 0
    %7552 = vmatpush2.bf16.msra.mxu0 0
    %7553 = vmatprep.subr.bf16.mxu0 0
    %7554 = vmatpush2.bf16.msra.mxu0 0
    %7555 = vmatprep.subr.bf16.mxu0 0
    %7556 = vmatpush2.bf16.msra.mxu0 0
    %7557 = vmatprep.subr.bf16.mxu0 0
    %7558 = vmatpush2.bf16.msra.mxu0 0
    %7559 = vmatprep.mubr.bf16.mxu0 0
    %7560 = vmatmul.mubr.bf16.gmra.mxu0 %v7484
    %v7561 = vpop.f32.mrf.mxu0
    %v7562 = vadd.f32 0.0, %v7561
    %v7563 = vpop.f32.mrf.mxu0
    %v7564 = vadd.f32 0.0, %v7563
    %v7565 = vpop.f32.mrf.mxu0
    %v7566 = vpop.f32.mrf.mxu0
    %7567 = vdwg.mxu0
    %vm7568 = vmand %vm7377, %vm1029
    %v7569 = vsel %vm7568, 1.0, 0.0
    %v7570 = vpack.c.bf16 %v7569, %v7569
    %v7572 = vsel %vm7381, %v7570, 0
    %7574 = vmatprep.subr.bf16.mxu0 0
    %7575 = vmatpush1.bf16.msra.mxu0 0
    %7576 = vmatprep.subr.bf16.mxu0 0
    %7577 = vmatpush1.bf16.msra.mxu0 0
    %7578 = vmatprep.subr.bf16.mxu0 0
    %7579 = vmatpush1.bf16.msra.mxu0 0
    %7580 = vmatprep.subr.bf16.mxu0 0
    %7581 = vmatpush1.bf16.msra.mxu0 0
    %7582 = vmatprep.subr.bf16.mxu0 0
    %7583 = vmatpush1.bf16.msra.mxu0 0
    %7584 = vmatprep.subr.bf16.mxu0 0
    %7585 = vmatpush1.bf16.msra.mxu0 0
    %7586 = vmatprep.subr.bf16.mxu0 0
    %7587 = vmatpush1.bf16.msra.mxu0 0
    %7588 = vmatprep.subr.bf16.mxu0 %v7390
    %7589 = vmatpush1.bf16.msra.mxu0 %v7387
    %7590 = vmatprep.subr.bf16.mxu0 0
    %7591 = vmatpush2.bf16.msra.mxu0 0
    %7592 = vmatprep.subr.bf16.mxu0 0
    %7593 = vmatpush2.bf16.msra.mxu0 0
    %7594 = vmatprep.subr.bf16.mxu0 0
    %7595 = vmatpush2.bf16.msra.mxu0 0
    %7596 = vmatprep.subr.bf16.mxu0 0
    %7597 = vmatpush2.bf16.msra.mxu0 0
    %7598 = vmatprep.subr.bf16.mxu0 0
    %7599 = vmatpush2.bf16.msra.mxu0 0
    %7600 = vmatprep.subr.bf16.mxu0 0
    %7601 = vmatpush2.bf16.msra.mxu0 0
    %7602 = vmatprep.subr.bf16.mxu0 0
    %7603 = vmatpush2.bf16.msra.mxu0 0
    %7604 = vmatprep.subr.bf16.mxu0 0
    %7605 = vmatpush2.bf16.msra.mxu0 0
    %7606 = vmatprep.mubr.bf16.mxu0 0
    %7607 = vmatmul.mubr.bf16.gmra.mxu0 %v7572
    %v7608 = vpop.f32.mrf.mxu0
    %v7609 = vadd.f32 0.0, %v7608
    %v7610 = vpop.f32.mrf.mxu0
    %v7611 = vadd.f32 0.0, %v7610
    %v7612 = vpop.f32.mrf.mxu0
    %v7613 = vpop.f32.mrf.mxu0
    %7614 = vdwg.mxu0
    %7615 = vmatprep.subr.bf16.mxu0 0
    %7616 = vmatpush1.bf16.msra.mxu0 0
    %7617 = vmatprep.subr.bf16.mxu0 0
    %7618 = vmatpush1.bf16.msra.mxu0 0
    %7619 = vmatprep.subr.bf16.mxu0 0
    %7620 = vmatpush1.bf16.msra.mxu0 0
    %7621 = vmatprep.subr.bf16.mxu0 0
    %7622 = vmatpush1.bf16.msra.mxu0 0
    %7623 = vmatprep.subr.bf16.mxu0 0
    %7624 = vmatpush1.bf16.msra.mxu0 0
    %7625 = vmatprep.subr.bf16.mxu0 0
    %7626 = vmatpush1.bf16.msra.mxu0 0
    %7627 = vmatprep.subr.bf16.mxu0 0
    %7628 = vmatpush1.bf16.msra.mxu0 0
    %7629 = vmatprep.subr.bf16.mxu0 %v7396
    %7630 = vmatpush1.bf16.msra.mxu0 %v7393
    %7631 = vmatprep.subr.bf16.mxu0 0
    %7632 = vmatpush2.bf16.msra.mxu0 0
    %7633 = vmatprep.subr.bf16.mxu0 0
    %7634 = vmatpush2.bf16.msra.mxu0 0
    %7635 = vmatprep.subr.bf16.mxu0 0
    %7636 = vmatpush2.bf16.msra.mxu0 0
    %7637 = vmatprep.subr.bf16.mxu0 0
    %7638 = vmatpush2.bf16.msra.mxu0 0
    %7639 = vmatprep.subr.bf16.mxu0 0
    %7640 = vmatpush2.bf16.msra.mxu0 0
    %7641 = vmatprep.subr.bf16.mxu0 0
    %7642 = vmatpush2.bf16.msra.mxu0 0
    %7643 = vmatprep.subr.bf16.mxu0 0
    %7644 = vmatpush2.bf16.msra.mxu0 0
    %7645 = vmatprep.subr.bf16.mxu0 0
    %7646 = vmatpush2.bf16.msra.mxu0 0
    %7647 = vmatprep.mubr.bf16.mxu0 0
    %7648 = vmatmul.mubr.bf16.gmra.mxu0 %v7572
    %v7649 = vpop.f32.mrf.mxu0
    %v7650 = vadd.f32 0.0, %v7649
    %v7651 = vpop.f32.mrf.mxu0
    %v7652 = vadd.f32 0.0, %v7651
    %v7653 = vpop.f32.mrf.mxu0
    %v7654 = vpop.f32.mrf.mxu0
    %7655 = vdwg.mxu0
    %v7656 = vpack.c.bf16 %v7433, %v7433
    %v7657 = vpack.c.bf16 %v7435, %v7435
    %v7658 = vpack.c.bf16 %v7474, %v7474
    %v7659 = vpack.c.bf16 %v7476, %v7476
    %v7660 = vld [vmem:[#allocation19] sm:$0xff]
    %v7661 = vld [vmem:[#allocation19 + $0x8] sm:$0xff]
    %v7662 = vld [vmem:[#allocation19 + $0x10] sm:$0xff]
    %v7663 = vld [vmem:[#allocation19 + $0x18] sm:$0xff]
    %v7664 = vld [vmem:[#allocation19 + $0x20] sm:$0xff]
    %v7665 = vld [vmem:[#allocation19 + $0x28] sm:$0xff]
    %v7666 = vld [vmem:[#allocation19 + $0x30] sm:$0xff]
    %v7667 = vld [vmem:[#allocation19 + $0x38] sm:$0xff]
    %v7668 = vld [vmem:[#allocation19 + $0x40] sm:$0xff]
    %v7669 = vld [vmem:[#allocation19 + $0x48] sm:$0xff]
    %v7670 = vld [vmem:[#allocation19 + $0x50] sm:$0xff]
    %v7671 = vld [vmem:[#allocation19 + $0x58] sm:$0xff]
    %v7672 = vld [vmem:[#allocation19 + $0x60] sm:$0xff]
    %v7673 = vld [vmem:[#allocation19 + $0x68] sm:$0xff]
    %v7674 = vld [vmem:[#allocation19 + $0x70] sm:$0xff]
    %v7675 = vld [vmem:[#allocation19 + $0x78] sm:$0xff]
    %v7676 = vld [vmem:[#allocation19 + $0x80] sm:$0xff]
    %v7677 = vld [vmem:[#allocation19 + $0x88] sm:$0xff]
    %v7678 = vld [vmem:[#allocation19 + $0x90] sm:$0xff]
    %v7679 = vld [vmem:[#allocation19 + $0x98] sm:$0xff]
    %v7680 = vld [vmem:[#allocation19 + $0xa0] sm:$0xff]
    %v7681 = vld [vmem:[#allocation19 + $0xa8] sm:$0xff]
    %v7682 = vld [vmem:[#allocation19 + $0xb0] sm:$0xff]
    %v7683 = vld [vmem:[#allocation19 + $0xb8] sm:$0xff]
    %v7684 = vld [vmem:[#allocation19 + $0xc0] sm:$0xff]
    %v7685 = vld [vmem:[#allocation19 + $0xc8] sm:$0xff]
    %v7686 = vld [vmem:[#allocation19 + $0xd0] sm:$0xff]
    %v7687 = vld [vmem:[#allocation19 + $0xd8] sm:$0xff]
    %v7688 = vld [vmem:[#allocation19 + $0xe0] sm:$0xff]
    %v7689 = vld [vmem:[#allocation19 + $0xe8] sm:$0xff]
    %v7690 = vld [vmem:[#allocation19 + $0xf0] sm:$0xff]
    %v7691 = vld [vmem:[#allocation19 + $0xf8] sm:$0xff]
    %v7692 = vld [vmem:[#allocation19 + $0x100] sm:$0xff]
    %v7693 = vld [vmem:[#allocation19 + $0x108] sm:$0xff]
    %v7694 = vld [vmem:[#allocation19 + $0x110] sm:$0xff]
    %v7695 = vld [vmem:[#allocation19 + $0x118] sm:$0xff]
    %v7696 = vld [vmem:[#allocation19 + $0x120] sm:$0xff]
    %v7697 = vld [vmem:[#allocation19 + $0x128] sm:$0xff]
    %v7698 = vld [vmem:[#allocation19 + $0x130] sm:$0xff]
    %v7699 = vld [vmem:[#allocation19 + $0x138] sm:$0xff]
    %v7700 = vld [vmem:[#allocation19 + $0x140] sm:$0xff]
    %v7701 = vld [vmem:[#allocation19 + $0x148] sm:$0xff]
    %v7702 = vld [vmem:[#allocation19 + $0x150] sm:$0xff]
    %v7703 = vld [vmem:[#allocation19 + $0x158] sm:$0xff]
    %v7704 = vld [vmem:[#allocation19 + $0x160] sm:$0xff]
    %v7705 = vld [vmem:[#allocation19 + $0x168] sm:$0xff]
    %v7706 = vld [vmem:[#allocation19 + $0x170] sm:$0xff]
    %v7707 = vld [vmem:[#allocation19 + $0x178] sm:$0xff]
    %v7708 = vld [vmem:[#allocation19 + $0x180] sm:$0xff]
    %v7709 = vld [vmem:[#allocation19 + $0x188] sm:$0xff]
    %v7710 = vld [vmem:[#allocation19 + $0x190] sm:$0xff]
    %v7711 = vld [vmem:[#allocation19 + $0x198] sm:$0xff]
    %v7712 = vld [vmem:[#allocation19 + $0x1a0] sm:$0xff]
    %v7713 = vld [vmem:[#allocation19 + $0x1a8] sm:$0xff]
    %v7714 = vld [vmem:[#allocation19 + $0x1b0] sm:$0xff]
    %v7715 = vld [vmem:[#allocation19 + $0x1b8] sm:$0xff]
    %v7716 = vld [vmem:[#allocation19 + $0x1c0] sm:$0xff]
    %v7717 = vld [vmem:[#allocation19 + $0x1c8] sm:$0xff]
    %v7718 = vld [vmem:[#allocation19 + $0x1d0] sm:$0xff]
    %v7719 = vld [vmem:[#allocation19 + $0x1d8] sm:$0xff]
    %v7720 = vld [vmem:[#allocation19 + $0x1e0] sm:$0xff]
    %v7721 = vld [vmem:[#allocation19 + $0x1e8] sm:$0xff]
    %v7722 = vld [vmem:[#allocation19 + $0x1f0] sm:$0xff]
    %v7723 = vld [vmem:[#allocation19 + $0x1f8] sm:$0xff]
    %v7724 = vld [vmem:[#allocation19 + $0x200] sm:$0xff]
    %v7725 = vld [vmem:[#allocation19 + $0x208] sm:$0xff]
    %v7726 = vld [vmem:[#allocation19 + $0x210] sm:$0xff]
    %v7727 = vld [vmem:[#allocation19 + $0x218] sm:$0xff]
    %v7728 = vld [vmem:[#allocation19 + $0x220] sm:$0xff]
    %v7729 = vld [vmem:[#allocation19 + $0x228] sm:$0xff]
    %v7730 = vld [vmem:[#allocation19 + $0x230] sm:$0xff]
    %v7731 = vld [vmem:[#allocation19 + $0x238] sm:$0xff]
    %v7732 = vld [vmem:[#allocation19 + $0x240] sm:$0xff]
    %v7733 = vld [vmem:[#allocation19 + $0x248] sm:$0xff]
    %v7734 = vld [vmem:[#allocation19 + $0x250] sm:$0xff]
    %v7735 = vld [vmem:[#allocation19 + $0x258] sm:$0xff]
    %v7736 = vld [vmem:[#allocation19 + $0x260] sm:$0xff]
    %v7737 = vld [vmem:[#allocation19 + $0x268] sm:$0xff]
    %v7738 = vld [vmem:[#allocation19 + $0x270] sm:$0xff]
    %v7739 = vld [vmem:[#allocation19 + $0x278] sm:$0xff]
    %v7740 = vld [vmem:[#allocation19 + $0x280] sm:$0xff]
    %v7741 = vld [vmem:[#allocation19 + $0x288] sm:$0xff]
    %v7742 = vld [vmem:[#allocation19 + $0x290] sm:$0xff]
    %v7743 = vld [vmem:[#allocation19 + $0x298] sm:$0xff]
    %v7744 = vld [vmem:[#allocation19 + $0x2a0] sm:$0xff]
    %v7745 = vld [vmem:[#allocation19 + $0x2a8] sm:$0xff]
    %v7746 = vld [vmem:[#allocation19 + $0x2b0] sm:$0xff]
    %v7747 = vld [vmem:[#allocation19 + $0x2b8] sm:$0xff]
    %v7748 = vld [vmem:[#allocation19 + $0x2c0] sm:$0xff]
    %v7749 = vld [vmem:[#allocation19 + $0x2c8] sm:$0xff]
    %v7750 = vld [vmem:[#allocation19 + $0x2d0] sm:$0xff]
    %v7751 = vld [vmem:[#allocation19 + $0x2d8] sm:$0xff]
    %v7752 = vld [vmem:[#allocation19 + $0x2e0] sm:$0xff]
    %v7753 = vld [vmem:[#allocation19 + $0x2e8] sm:$0xff]
    %v7754 = vld [vmem:[#allocation19 + $0x2f0] sm:$0xff]
    %v7755 = vld [vmem:[#allocation19 + $0x2f8] sm:$0xff]
    %v7756 = vld [vmem:[#allocation19 + $0x300] sm:$0xff]
    %v7757 = vld [vmem:[#allocation19 + $0x308] sm:$0xff]
    %v7758 = vld [vmem:[#allocation19 + $0x310] sm:$0xff]
    %v7759 = vld [vmem:[#allocation19 + $0x318] sm:$0xff]
    %v7760 = vld [vmem:[#allocation19 + $0x320] sm:$0xff]
    %v7761 = vld [vmem:[#allocation19 + $0x328] sm:$0xff]
    %v7762 = vld [vmem:[#allocation19 + $0x330] sm:$0xff]
    %v7763 = vld [vmem:[#allocation19 + $0x338] sm:$0xff]
    %v7764 = vld [vmem:[#allocation19 + $0x340] sm:$0xff]
    %v7765 = vld [vmem:[#allocation19 + $0x348] sm:$0xff]
    %v7766 = vld [vmem:[#allocation19 + $0x350] sm:$0xff]
    %v7767 = vld [vmem:[#allocation19 + $0x358] sm:$0xff]
    %v7768 = vld [vmem:[#allocation19 + $0x360] sm:$0xff]
    %v7769 = vld [vmem:[#allocation19 + $0x368] sm:$0xff]
    %v7770 = vld [vmem:[#allocation19 + $0x370] sm:$0xff]
    %v7771 = vld [vmem:[#allocation19 + $0x378] sm:$0xff]
    %v7772 = vld [vmem:[#allocation19 + $0x380] sm:$0xff]
    %v7773 = vld [vmem:[#allocation19 + $0x388] sm:$0xff]
    %v7774 = vld [vmem:[#allocation19 + $0x390] sm:$0xff]
    %v7775 = vld [vmem:[#allocation19 + $0x398] sm:$0xff]
    %v7776 = vld [vmem:[#allocation19 + $0x3a0] sm:$0xff]
    %v7777 = vld [vmem:[#allocation19 + $0x3a8] sm:$0xff]
    %v7778 = vld [vmem:[#allocation19 + $0x3b0] sm:$0xff]
    %v7779 = vld [vmem:[#allocation19 + $0x3b8] sm:$0xff]
    %v7780 = vld [vmem:[#allocation19 + $0x3c0] sm:$0xff]
    %v7781 = vld [vmem:[#allocation19 + $0x3c8] sm:$0xff]
    %v7782 = vld [vmem:[#allocation19 + $0x3d0] sm:$0xff]
    %v7783 = vld [vmem:[#allocation19 + $0x3d8] sm:$0xff]
    %v7784 = vld [vmem:[#allocation19 + $0x3e0] sm:$0xff]
    %v7785 = vld [vmem:[#allocation19 + $0x3e8] sm:$0xff]
    %v7786 = vld [vmem:[#allocation19 + $0x3f0] sm:$0xff]
    %v7787 = vld [vmem:[#allocation19 + $0x3f8] sm:$0xff]
    %v7788 = vpack.c.bf16 %v7521, %v7521
    %v7789 = vpack.c.bf16 %v7523, %v7523
    %v7790 = vpack.c.bf16 %v7562, %v7562
    %v7791 = vpack.c.bf16 %v7564, %v7564
    %s7792 = scalar_lea.vmem [#allocation19], 1024
    %v7793 = vld [vmem:[%s7792] sm:$0xff]
    %v7794 = vld [vmem:[%s7792 + $0x8] sm:$0xff]
    %v7795 = vld [vmem:[%s7792 + $0x10] sm:$0xff]
    %v7796 = vld [vmem:[%s7792 + $0x18] sm:$0xff]
    %v7797 = vld [vmem:[%s7792 + $0x20] sm:$0xff]
    %v7798 = vld [vmem:[%s7792 + $0x28] sm:$0xff]
    %v7799 = vld [vmem:[%s7792 + $0x30] sm:$0xff]
    %v7800 = vld [vmem:[%s7792 + $0x38] sm:$0xff]
    %v7801 = vld [vmem:[%s7792 + $0x40] sm:$0xff]
    %v7802 = vld [vmem:[%s7792 + $0x48] sm:$0xff]
    %v7803 = vld [vmem:[%s7792 + $0x50] sm:$0xff]
    %v7804 = vld [vmem:[%s7792 + $0x58] sm:$0xff]
    %v7805 = vld [vmem:[%s7792 + $0x60] sm:$0xff]
    %v7806 = vld [vmem:[%s7792 + $0x68] sm:$0xff]
    %v7807 = vld [vmem:[%s7792 + $0x70] sm:$0xff]
    %v7808 = vld [vmem:[%s7792 + $0x78] sm:$0xff]
    %v7809 = vld [vmem:[%s7792 + $0x80] sm:$0xff]
    %v7810 = vld [vmem:[%s7792 + $0x88] sm:$0xff]
    %v7811 = vld [vmem:[%s7792 + $0x90] sm:$0xff]
    %v7812 = vld [vmem:[%s7792 + $0x98] sm:$0xff]
    %v7813 = vld [vmem:[%s7792 + $0xa0] sm:$0xff]
    %v7814 = vld [vmem:[%s7792 + $0xa8] sm:$0xff]
    %v7815 = vld [vmem:[%s7792 + $0xb0] sm:$0xff]
    %v7816 = vld [vmem:[%s7792 + $0xb8] sm:$0xff]
    %v7817 = vld [vmem:[%s7792 + $0xc0] sm:$0xff]
    %v7818 = vld [vmem:[%s7792 + $0xc8] sm:$0xff]
    %v7819 = vld [vmem:[%s7792 + $0xd0] sm:$0xff]
    %v7820 = vld [vmem:[%s7792 + $0xd8] sm:$0xff]
    %v7821 = vld [vmem:[%s7792 + $0xe0] sm:$0xff]
    %v7822 = vld [vmem:[%s7792 + $0xe8] sm:$0xff]
    %v7823 = vld [vmem:[%s7792 + $0xf0] sm:$0xff]
    %v7824 = vld [vmem:[%s7792 + $0xf8] sm:$0xff]
    %v7825 = vld [vmem:[%s7792 + $0x100] sm:$0xff]
    %v7826 = vld [vmem:[%s7792 + $0x108] sm:$0xff]
    %v7827 = vld [vmem:[%s7792 + $0x110] sm:$0xff]
    %v7828 = vld [vmem:[%s7792 + $0x118] sm:$0xff]
    %v7829 = vld [vmem:[%s7792 + $0x120] sm:$0xff]
    %v7830 = vld [vmem:[%s7792 + $0x128] sm:$0xff]
    %v7831 = vld [vmem:[%s7792 + $0x130] sm:$0xff]
    %v7832 = vld [vmem:[%s7792 + $0x138] sm:$0xff]
    %v7833 = vld [vmem:[%s7792 + $0x140] sm:$0xff]
    %v7834 = vld [vmem:[%s7792 + $0x148] sm:$0xff]
    %v7835 = vld [vmem:[%s7792 + $0x150] sm:$0xff]
    %v7836 = vld [vmem:[%s7792 + $0x158] sm:$0xff]
    %v7837 = vld [vmem:[%s7792 + $0x160] sm:$0xff]
    %v7838 = vld [vmem:[%s7792 + $0x168] sm:$0xff]
    %v7839 = vld [vmem:[%s7792 + $0x170] sm:$0xff]
    %v7840 = vld [vmem:[%s7792 + $0x178] sm:$0xff]
    %v7841 = vld [vmem:[%s7792 + $0x180] sm:$0xff]
    %v7842 = vld [vmem:[%s7792 + $0x188] sm:$0xff]
    %v7843 = vld [vmem:[%s7792 + $0x190] sm:$0xff]
    %v7844 = vld [vmem:[%s7792 + $0x198] sm:$0xff]
    %v7845 = vld [vmem:[%s7792 + $0x1a0] sm:$0xff]
    %v7846 = vld [vmem:[%s7792 + $0x1a8] sm:$0xff]
    %v7847 = vld [vmem:[%s7792 + $0x1b0] sm:$0xff]
    %v7848 = vld [vmem:[%s7792 + $0x1b8] sm:$0xff]
    %v7849 = vld [vmem:[%s7792 + $0x1c0] sm:$0xff]
    %v7850 = vld [vmem:[%s7792 + $0x1c8] sm:$0xff]
    %v7851 = vld [vmem:[%s7792 + $0x1d0] sm:$0xff]
    %v7852 = vld [vmem:[%s7792 + $0x1d8] sm:$0xff]
    %v7853 = vld [vmem:[%s7792 + $0x1e0] sm:$0xff]
    %v7854 = vld [vmem:[%s7792 + $0x1e8] sm:$0xff]
    %v7855 = vld [vmem:[%s7792 + $0x1f0] sm:$0xff]
    %v7856 = vld [vmem:[%s7792 + $0x1f8] sm:$0xff]
    %v7857 = vld [vmem:[%s7792 + $0x200] sm:$0xff]
    %v7858 = vld [vmem:[%s7792 + $0x208] sm:$0xff]
    %v7859 = vld [vmem:[%s7792 + $0x210] sm:$0xff]
    %v7860 = vld [vmem:[%s7792 + $0x218] sm:$0xff]
    %v7861 = vld [vmem:[%s7792 + $0x220] sm:$0xff]
    %v7862 = vld [vmem:[%s7792 + $0x228] sm:$0xff]
    %v7863 = vld [vmem:[%s7792 + $0x230] sm:$0xff]
    %v7864 = vld [vmem:[%s7792 + $0x238] sm:$0xff]
    %v7865 = vld [vmem:[%s7792 + $0x240] sm:$0xff]
    %v7866 = vld [vmem:[%s7792 + $0x248] sm:$0xff]
    %v7867 = vld [vmem:[%s7792 + $0x250] sm:$0xff]
    %v7868 = vld [vmem:[%s7792 + $0x258] sm:$0xff]
    %v7869 = vld [vmem:[%s7792 + $0x260] sm:$0xff]
    %v7870 = vld [vmem:[%s7792 + $0x268] sm:$0xff]
    %v7871 = vld [vmem:[%s7792 + $0x270] sm:$0xff]
    %v7872 = vld [vmem:[%s7792 + $0x278] sm:$0xff]
    %v7873 = vld [vmem:[%s7792 + $0x280] sm:$0xff]
    %v7874 = vld [vmem:[%s7792 + $0x288] sm:$0xff]
    %v7875 = vld [vmem:[%s7792 + $0x290] sm:$0xff]
    %v7876 = vld [vmem:[%s7792 + $0x298] sm:$0xff]
    %v7877 = vld [vmem:[%s7792 + $0x2a0] sm:$0xff]
    %v7878 = vld [vmem:[%s7792 + $0x2a8] sm:$0xff]
    %v7879 = vld [vmem:[%s7792 + $0x2b0] sm:$0xff]
    %v7880 = vld [vmem:[%s7792 + $0x2b8] sm:$0xff]
    %v7881 = vld [vmem:[%s7792 + $0x2c0] sm:$0xff]
    %v7882 = vld [vmem:[%s7792 + $0x2c8] sm:$0xff]
    %v7883 = vld [vmem:[%s7792 + $0x2d0] sm:$0xff]
    %v7884 = vld [vmem:[%s7792 + $0x2d8] sm:$0xff]
    %v7885 = vld [vmem:[%s7792 + $0x2e0] sm:$0xff]
    %v7886 = vld [vmem:[%s7792 + $0x2e8] sm:$0xff]
    %v7887 = vld [vmem:[%s7792 + $0x2f0] sm:$0xff]
    %v7888 = vld [vmem:[%s7792 + $0x2f8] sm:$0xff]
    %v7889 = vld [vmem:[%s7792 + $0x300] sm:$0xff]
    %v7890 = vld [vmem:[%s7792 + $0x308] sm:$0xff]
    %v7891 = vld [vmem:[%s7792 + $0x310] sm:$0xff]
    %v7892 = vld [vmem:[%s7792 + $0x318] sm:$0xff]
    %v7893 = vld [vmem:[%s7792 + $0x320] sm:$0xff]
    %v7894 = vld [vmem:[%s7792 + $0x328] sm:$0xff]
    %v7895 = vld [vmem:[%s7792 + $0x330] sm:$0xff]
    %v7896 = vld [vmem:[%s7792 + $0x338] sm:$0xff]
    %v7897 = vld [vmem:[%s7792 + $0x340] sm:$0xff]
    %v7898 = vld [vmem:[%s7792 + $0x348] sm:$0xff]
    %v7899 = vld [vmem:[%s7792 + $0x350] sm:$0xff]
    %v7900 = vld [vmem:[%s7792 + $0x358] sm:$0xff]
    %v7901 = vld [vmem:[%s7792 + $0x360] sm:$0xff]
    %v7902 = vld [vmem:[%s7792 + $0x368] sm:$0xff]
    %v7903 = vld [vmem:[%s7792 + $0x370] sm:$0xff]
    %v7904 = vld [vmem:[%s7792 + $0x378] sm:$0xff]
    %v7905 = vld [vmem:[%s7792 + $0x380] sm:$0xff]
    %v7906 = vld [vmem:[%s7792 + $0x388] sm:$0xff]
    %v7907 = vld [vmem:[%s7792 + $0x390] sm:$0xff]
    %v7908 = vld [vmem:[%s7792 + $0x398] sm:$0xff]
    %v7909 = vld [vmem:[%s7792 + $0x3a0] sm:$0xff]
    %v7910 = vld [vmem:[%s7792 + $0x3a8] sm:$0xff]
    %v7911 = vld [vmem:[%s7792 + $0x3b0] sm:$0xff]
    %v7912 = vld [vmem:[%s7792 + $0x3b8] sm:$0xff]
    %v7913 = vld [vmem:[%s7792 + $0x3c0] sm:$0xff]
    %v7914 = vld [vmem:[%s7792 + $0x3c8] sm:$0xff]
    %v7915 = vld [vmem:[%s7792 + $0x3d0] sm:$0xff]
    %v7916 = vld [vmem:[%s7792 + $0x3d8] sm:$0xff]
    %v7917 = vld [vmem:[%s7792 + $0x3e0] sm:$0xff]
    %v7918 = vld [vmem:[%s7792 + $0x3e8] sm:$0xff]
    %v7919 = vld [vmem:[%s7792 + $0x3f0] sm:$0xff]
    %v7920 = vld [vmem:[%s7792 + $0x3f8] sm:$0xff]
    %v8049 = vunpack.c.l.b16 %v7793
    %v8050 = vunpack.c.h.b16 %v7793
    %v8051 = vunpack.c.l.b16 %v7794
    %v8052 = vunpack.c.h.b16 %v7794
    %v8053 = vunpack.c.l.b16 %v7795
    %v8054 = vunpack.c.h.b16 %v7795
    %v8055 = vunpack.c.l.b16 %v7796
    %v8056 = vunpack.c.h.b16 %v7796
    %v8057 = vunpack.c.l.b16 %v7797
    %v8058 = vunpack.c.h.b16 %v7797
    %v8059 = vunpack.c.l.b16 %v7798
    %v8060 = vunpack.c.h.b16 %v7798
    %v8061 = vunpack.c.l.b16 %v7799
    %v8062 = vunpack.c.h.b16 %v7799
    %v8063 = vunpack.c.l.b16 %v7800
    %v8064 = vunpack.c.h.b16 %v7800
    %v8065 = vunpack.c.l.b16 %v7801
    %v8066 = vunpack.c.h.b16 %v7801
    %v8067 = vunpack.c.l.b16 %v7802
    %v8068 = vunpack.c.h.b16 %v7802
    %v8069 = vunpack.c.l.b16 %v7803
    %v8070 = vunpack.c.h.b16 %v7803
    %v8071 = vunpack.c.l.b16 %v7804
    %v8072 = vunpack.c.h.b16 %v7804
    %v8073 = vunpack.c.l.b16 %v7805
    %v8074 = vunpack.c.h.b16 %v7805
    %v8075 = vunpack.c.l.b16 %v7806
    %v8076 = vunpack.c.h.b16 %v7806
    %v8077 = vunpack.c.l.b16 %v7807
    %v8078 = vunpack.c.h.b16 %v7807
    %v8079 = vunpack.c.l.b16 %v7808
    %v8080 = vunpack.c.h.b16 %v7808
    %v8081 = vunpack.c.l.b16 %v7809
    %v8082 = vunpack.c.h.b16 %v7809
    %v8083 = vunpack.c.l.b16 %v7810
    %v8084 = vunpack.c.h.b16 %v7810
    %v8085 = vunpack.c.l.b16 %v7811
    %v8086 = vunpack.c.h.b16 %v7811
    %v8087 = vunpack.c.l.b16 %v7812
    %v8088 = vunpack.c.h.b16 %v7812
    %v8089 = vunpack.c.l.b16 %v7813
    %v8090 = vunpack.c.h.b16 %v7813
    %v8091 = vunpack.c.l.b16 %v7814
    %v8092 = vunpack.c.h.b16 %v7814
    %v8093 = vunpack.c.l.b16 %v7815
    %v8094 = vunpack.c.h.b16 %v7815
    %v8095 = vunpack.c.l.b16 %v7816
    %v8096 = vunpack.c.h.b16 %v7816
    %v8097 = vunpack.c.l.b16 %v7817
    %v8098 = vunpack.c.h.b16 %v7817
    %v8099 = vunpack.c.l.b16 %v7818
    %v8100 = vunpack.c.h.b16 %v7818
    %v8101 = vunpack.c.l.b16 %v7819
    %v8102 = vunpack.c.h.b16 %v7819
    %v8103 = vunpack.c.l.b16 %v7820
    %v8104 = vunpack.c.h.b16 %v7820
    %v8105 = vunpack.c.l.b16 %v7821
    %v8106 = vunpack.c.h.b16 %v7821
    %v8107 = vunpack.c.l.b16 %v7822
    %v8108 = vunpack.c.h.b16 %v7822
    %v8109 = vunpack.c.l.b16 %v7823
    %v8110 = vunpack.c.h.b16 %v7823
    %v8111 = vunpack.c.l.b16 %v7824
    %v8112 = vunpack.c.h.b16 %v7824
    %v8113 = vunpack.c.l.b16 %v7825
    %v8114 = vunpack.c.h.b16 %v7825
    %v8115 = vunpack.c.l.b16 %v7826
    %v8116 = vunpack.c.h.b16 %v7826
    %v8117 = vunpack.c.l.b16 %v7827
    %v8118 = vunpack.c.h.b16 %v7827
    %v8119 = vunpack.c.l.b16 %v7828
    %v8120 = vunpack.c.h.b16 %v7828
    %v8121 = vunpack.c.l.b16 %v7829
    %v8122 = vunpack.c.h.b16 %v7829
    %v8123 = vunpack.c.l.b16 %v7830
    %v8124 = vunpack.c.h.b16 %v7830
    %v8125 = vunpack.c.l.b16 %v7831
    %v8126 = vunpack.c.h.b16 %v7831
    %v8127 = vunpack.c.l.b16 %v7832
    %v8128 = vunpack.c.h.b16 %v7832
    %v8129 = vunpack.c.l.b16 %v7833
    %v8130 = vunpack.c.h.b16 %v7833
    %v8131 = vunpack.c.l.b16 %v7834
    %v8132 = vunpack.c.h.b16 %v7834
    %v8133 = vunpack.c.l.b16 %v7835
    %v8134 = vunpack.c.h.b16 %v7835
    %v8135 = vunpack.c.l.b16 %v7836
    %v8136 = vunpack.c.h.b16 %v7836
    %v8137 = vunpack.c.l.b16 %v7837
    %v8138 = vunpack.c.h.b16 %v7837
    %v8139 = vunpack.c.l.b16 %v7838
    %v8140 = vunpack.c.h.b16 %v7838
    %v8141 = vunpack.c.l.b16 %v7839
    %v8142 = vunpack.c.h.b16 %v7839
    %v8143 = vunpack.c.l.b16 %v7840
    %v8144 = vunpack.c.h.b16 %v7840
    %v8145 = vunpack.c.l.b16 %v7841
    %v8146 = vunpack.c.h.b16 %v7841
    %v8147 = vunpack.c.l.b16 %v7842
    %v8148 = vunpack.c.h.b16 %v7842
    %v8149 = vunpack.c.l.b16 %v7843
    %v8150 = vunpack.c.h.b16 %v7843
    %v8151 = vunpack.c.l.b16 %v7844
    %v8152 = vunpack.c.h.b16 %v7844
    %v8153 = vunpack.c.l.b16 %v7845
    %v8154 = vunpack.c.h.b16 %v7845
    %v8155 = vunpack.c.l.b16 %v7846
    %v8156 = vunpack.c.h.b16 %v7846
    %v8157 = vunpack.c.l.b16 %v7847
    %v8158 = vunpack.c.h.b16 %v7847
    %v8159 = vunpack.c.l.b16 %v7848
    %v8160 = vunpack.c.h.b16 %v7848
    %v8161 = vunpack.c.l.b16 %v7849
    %v8162 = vunpack.c.h.b16 %v7849
    %v8163 = vunpack.c.l.b16 %v7850
    %v8164 = vunpack.c.h.b16 %v7850
    %v8165 = vunpack.c.l.b16 %v7851
    %v8166 = vunpack.c.h.b16 %v7851
    %v8167 = vunpack.c.l.b16 %v7852
    %v8168 = vunpack.c.h.b16 %v7852
    %v8169 = vunpack.c.l.b16 %v7853
    %v8170 = vunpack.c.h.b16 %v7853
    %v8171 = vunpack.c.l.b16 %v7854
    %v8172 = vunpack.c.h.b16 %v7854
    %v8173 = vunpack.c.l.b16 %v7855
    %v8174 = vunpack.c.h.b16 %v7855
    %v8175 = vunpack.c.l.b16 %v7856
    %v8176 = vunpack.c.h.b16 %v7856
    %v8177 = vunpack.c.l.b16 %v7857
    %v8178 = vunpack.c.h.b16 %v7857
    %v8179 = vunpack.c.l.b16 %v7858
    %v8180 = vunpack.c.h.b16 %v7858
    %v8181 = vunpack.c.l.b16 %v7859
    %v8182 = vunpack.c.h.b16 %v7859
    %v8183 = vunpack.c.l.b16 %v7860
    %v8184 = vunpack.c.h.b16 %v7860
    %v8185 = vunpack.c.l.b16 %v7861
    %v8186 = vunpack.c.h.b16 %v7861
    %v8187 = vunpack.c.l.b16 %v7862
    %v8188 = vunpack.c.h.b16 %v7862
    %v8189 = vunpack.c.l.b16 %v7863
    %v8190 = vunpack.c.h.b16 %v7863
    %v8191 = vunpack.c.l.b16 %v7864
    %v8192 = vunpack.c.h.b16 %v7864
    %v8193 = vunpack.c.l.b16 %v7865
    %v8194 = vunpack.c.h.b16 %v7865
    %v8195 = vunpack.c.l.b16 %v7866
    %v8196 = vunpack.c.h.b16 %v7866
    %v8197 = vunpack.c.l.b16 %v7867
    %v8198 = vunpack.c.h.b16 %v7867
    %v8199 = vunpack.c.l.b16 %v7868
    %v8200 = vunpack.c.h.b16 %v7868
    %v8201 = vunpack.c.l.b16 %v7869
    %v8202 = vunpack.c.h.b16 %v7869
    %v8203 = vunpack.c.l.b16 %v7870
    %v8204 = vunpack.c.h.b16 %v7870
    %v8205 = vunpack.c.l.b16 %v7871
    %v8206 = vunpack.c.h.b16 %v7871
    %v8207 = vunpack.c.l.b16 %v7872
    %v8208 = vunpack.c.h.b16 %v7872
    %v8209 = vunpack.c.l.b16 %v7873
    %v8210 = vunpack.c.h.b16 %v7873
    %v8211 = vunpack.c.l.b16 %v7874
    %v8212 = vunpack.c.h.b16 %v7874
    %v8213 = vunpack.c.l.b16 %v7875
    %v8214 = vunpack.c.h.b16 %v7875
    %v8215 = vunpack.c.l.b16 %v7876
    %v8216 = vunpack.c.h.b16 %v7876
    %v8217 = vunpack.c.l.b16 %v7877
    %v8218 = vunpack.c.h.b16 %v7877
    %v8219 = vunpack.c.l.b16 %v7878
    %v8220 = vunpack.c.h.b16 %v7878
    %v8221 = vunpack.c.l.b16 %v7879
    %v8222 = vunpack.c.h.b16 %v7879
    %v8223 = vunpack.c.l.b16 %v7880
    %v8224 = vunpack.c.h.b16 %v7880
    %v8225 = vunpack.c.l.b16 %v7881
    %v8226 = vunpack.c.h.b16 %v7881
    %v8227 = vunpack.c.l.b16 %v7882
    %v8228 = vunpack.c.h.b16 %v7882
    %v8229 = vunpack.c.l.b16 %v7883
    %v8230 = vunpack.c.h.b16 %v7883
    %v8231 = vunpack.c.l.b16 %v7884
    %v8232 = vunpack.c.h.b16 %v7884
    %v8233 = vunpack.c.l.b16 %v7885
    %v8234 = vunpack.c.h.b16 %v7885
    %v8235 = vunpack.c.l.b16 %v7886
    %v8236 = vunpack.c.h.b16 %v7886
    %v8237 = vunpack.c.l.b16 %v7887
    %v8238 = vunpack.c.h.b16 %v7887
    %v8239 = vunpack.c.l.b16 %v7888
    %v8240 = vunpack.c.h.b16 %v7888
    %v8241 = vunpack.c.l.b16 %v7889
    %v8242 = vunpack.c.h.b16 %v7889
    %v8243 = vunpack.c.l.b16 %v7890
    %v8244 = vunpack.c.h.b16 %v7890
    %v8245 = vunpack.c.l.b16 %v7891
    %v8246 = vunpack.c.h.b16 %v7891
    %v8247 = vunpack.c.l.b16 %v7892
    %v8248 = vunpack.c.h.b16 %v7892
    %v8249 = vunpack.c.l.b16 %v7893
    %v8250 = vunpack.c.h.b16 %v7893
    %v8251 = vunpack.c.l.b16 %v7894
    %v8252 = vunpack.c.h.b16 %v7894
    %v8253 = vunpack.c.l.b16 %v7895
    %v8254 = vunpack.c.h.b16 %v7895
    %v8255 = vunpack.c.l.b16 %v7896
    %v8256 = vunpack.c.h.b16 %v7896
    %v8257 = vunpack.c.l.b16 %v7897
    %v8258 = vunpack.c.h.b16 %v7897
    %v8259 = vunpack.c.l.b16 %v7898
    %v8260 = vunpack.c.h.b16 %v7898
    %v8261 = vunpack.c.l.b16 %v7899
    %v8262 = vunpack.c.h.b16 %v7899
    %v8263 = vunpack.c.l.b16 %v7900
    %v8264 = vunpack.c.h.b16 %v7900
    %v8265 = vunpack.c.l.b16 %v7901
    %v8266 = vunpack.c.h.b16 %v7901
    %v8267 = vunpack.c.l.b16 %v7902
    %v8268 = vunpack.c.h.b16 %v7902
    %v8269 = vunpack.c.l.b16 %v7903
    %v8270 = vunpack.c.h.b16 %v7903
    %v8271 = vunpack.c.l.b16 %v7904
    %v8272 = vunpack.c.h.b16 %v7904
    %v8273 = vunpack.c.l.b16 %v7905
    %v8274 = vunpack.c.h.b16 %v7905
    %v8275 = vunpack.c.l.b16 %v7906
    %v8276 = vunpack.c.h.b16 %v7906
    %v8277 = vunpack.c.l.b16 %v7907
    %v8278 = vunpack.c.h.b16 %v7907
    %v8279 = vunpack.c.l.b16 %v7908
    %v8280 = vunpack.c.h.b16 %v7908
    %v8281 = vunpack.c.l.b16 %v7909
    %v8282 = vunpack.c.h.b16 %v7909
    %v8283 = vunpack.c.l.b16 %v7910
    %v8284 = vunpack.c.h.b16 %v7910
    %v8285 = vunpack.c.l.b16 %v7911
    %v8286 = vunpack.c.h.b16 %v7911
    %v8287 = vunpack.c.l.b16 %v7912
    %v8288 = vunpack.c.h.b16 %v7912
    %v8289 = vunpack.c.l.b16 %v7913
    %v8290 = vunpack.c.h.b16 %v7913
    %v8291 = vunpack.c.l.b16 %v7914
    %v8292 = vunpack.c.h.b16 %v7914
    %v8293 = vunpack.c.l.b16 %v7915
    %v8294 = vunpack.c.h.b16 %v7915
    %v8295 = vunpack.c.l.b16 %v7916
    %v8296 = vunpack.c.h.b16 %v7916
    %v8297 = vunpack.c.l.b16 %v7917
    %v8298 = vunpack.c.h.b16 %v7917
    %v8299 = vunpack.c.l.b16 %v7918
    %v8300 = vunpack.c.h.b16 %v7918
    %v8301 = vunpack.c.l.b16 %v7919
    %v8302 = vunpack.c.h.b16 %v7919
    %v8303 = vunpack.c.l.b16 %v7920
    %v8304 = vunpack.c.h.b16 %v7920
    %v8305 = vpack.c.b16 %v8053, %v8049
    %v8306 = vpack.c.b16 %v8054, %v8050
    %v8307 = vpack.c.b16 %v8055, %v8051
    %v8308 = vpack.c.b16 %v8056, %v8052
    %v8309 = vpack.c.b16 %v8061, %v8057
    %v8310 = vpack.c.b16 %v8062, %v8058
    %v8311 = vpack.c.b16 %v8063, %v8059
    %v8312 = vpack.c.b16 %v8064, %v8060
    %v8313 = vpack.c.b16 %v8069, %v8065
    %v8314 = vpack.c.b16 %v8070, %v8066
    %v8315 = vpack.c.b16 %v8071, %v8067
    %v8316 = vpack.c.b16 %v8072, %v8068
    %v8317 = vpack.c.b16 %v8077, %v8073
    %v8318 = vpack.c.b16 %v8078, %v8074
    %v8319 = vpack.c.b16 %v8079, %v8075
    %v8320 = vpack.c.b16 %v8080, %v8076
    %v8321 = vpack.c.b16 %v8085, %v8081
    %v8322 = vpack.c.b16 %v8086, %v8082
    %v8323 = vpack.c.b16 %v8087, %v8083
    %v8324 = vpack.c.b16 %v8088, %v8084
    %v8325 = vpack.c.b16 %v8093, %v8089
    %v8326 = vpack.c.b16 %v8094, %v8090
    %v8327 = vpack.c.b16 %v8095, %v8091
    %v8328 = vpack.c.b16 %v8096, %v8092
    %v8329 = vpack.c.b16 %v8101, %v8097
    %v8330 = vpack.c.b16 %v8102, %v8098
    %v8331 = vpack.c.b16 %v8103, %v8099
    %v8332 = vpack.c.b16 %v8104, %v8100
    %v8333 = vpack.c.b16 %v8109, %v8105
    %v8334 = vpack.c.b16 %v8110, %v8106
    %v8335 = vpack.c.b16 %v8111, %v8107
    %v8336 = vpack.c.b16 %v8112, %v8108
    %v8337 = vpack.c.b16 %v8117, %v8113
    %v8338 = vpack.c.b16 %v8118, %v8114
    %v8339 = vpack.c.b16 %v8119, %v8115
    %v8340 = vpack.c.b16 %v8120, %v8116
    %v8341 = vpack.c.b16 %v8125, %v8121
    %v8342 = vpack.c.b16 %v8126, %v8122
    %v8343 = vpack.c.b16 %v8127, %v8123
    %v8344 = vpack.c.b16 %v8128, %v8124
    %v8345 = vpack.c.b16 %v8133, %v8129
    %v8346 = vpack.c.b16 %v8134, %v8130
    %v8347 = vpack.c.b16 %v8135, %v8131
    %v8348 = vpack.c.b16 %v8136, %v8132
    %v8349 = vpack.c.b16 %v8141, %v8137
    %v8350 = vpack.c.b16 %v8142, %v8138
    %v8351 = vpack.c.b16 %v8143, %v8139
    %v8352 = vpack.c.b16 %v8144, %v8140
    %v8353 = vpack.c.b16 %v8149, %v8145
    %v8354 = vpack.c.b16 %v8150, %v8146
    %v8355 = vpack.c.b16 %v8151, %v8147
    %v8356 = vpack.c.b16 %v8152, %v8148
    %v8357 = vpack.c.b16 %v8157, %v8153
    %v8358 = vpack.c.b16 %v8158, %v8154
    %v8359 = vpack.c.b16 %v8159, %v8155
    %v8360 = vpack.c.b16 %v8160, %v8156
    %v8361 = vpack.c.b16 %v8165, %v8161
    %v8362 = vpack.c.b16 %v8166, %v8162
    %v8363 = vpack.c.b16 %v8167, %v8163
    %v8364 = vpack.c.b16 %v8168, %v8164
    %v8365 = vpack.c.b16 %v8173, %v8169
    %v8366 = vpack.c.b16 %v8174, %v8170
    %v8367 = vpack.c.b16 %v8175, %v8171
    %v8368 = vpack.c.b16 %v8176, %v8172
    %v8369 = vpack.c.b16 %v8181, %v8177
    %v8370 = vpack.c.b16 %v8182, %v8178
    %v8371 = vpack.c.b16 %v8183, %v8179
    %v8372 = vpack.c.b16 %v8184, %v8180
    %v8373 = vpack.c.b16 %v8189, %v8185
    %v8374 = vpack.c.b16 %v8190, %v8186
    %v8375 = vpack.c.b16 %v8191, %v8187
    %v8376 = vpack.c.b16 %v8192, %v8188
    %v8377 = vpack.c.b16 %v8197, %v8193
    %v8378 = vpack.c.b16 %v8198, %v8194
    %v8379 = vpack.c.b16 %v8199, %v8195
    %v8380 = vpack.c.b16 %v8200, %v8196
    %v8381 = vpack.c.b16 %v8205, %v8201
    %v8382 = vpack.c.b16 %v8206, %v8202
    %v8383 = vpack.c.b16 %v8207, %v8203
    %v8384 = vpack.c.b16 %v8208, %v8204
    %v8385 = vpack.c.b16 %v8213, %v8209
    %v8386 = vpack.c.b16 %v8214, %v8210
    %v8387 = vpack.c.b16 %v8215, %v8211
    %v8388 = vpack.c.b16 %v8216, %v8212
    %v8389 = vpack.c.b16 %v8221, %v8217
    %v8390 = vpack.c.b16 %v8222, %v8218
    %v8391 = vpack.c.b16 %v8223, %v8219
    %v8392 = vpack.c.b16 %v8224, %v8220
    %v8393 = vpack.c.b16 %v8229, %v8225
    %v8394 = vpack.c.b16 %v8230, %v8226
    %v8395 = vpack.c.b16 %v8231, %v8227
    %v8396 = vpack.c.b16 %v8232, %v8228
    %v8397 = vpack.c.b16 %v8237, %v8233
    %v8398 = vpack.c.b16 %v8238, %v8234
    %v8399 = vpack.c.b16 %v8239, %v8235
    %v8400 = vpack.c.b16 %v8240, %v8236
    %v8401 = vpack.c.b16 %v8245, %v8241
    %v8402 = vpack.c.b16 %v8246, %v8242
    %v8403 = vpack.c.b16 %v8247, %v8243
    %v8404 = vpack.c.b16 %v8248, %v8244
    %v8405 = vpack.c.b16 %v8253, %v8249
    %v8406 = vpack.c.b16 %v8254, %v8250
    %v8407 = vpack.c.b16 %v8255, %v8251
    %v8408 = vpack.c.b16 %v8256, %v8252
    %v8409 = vpack.c.b16 %v8261, %v8257
    %v8410 = vpack.c.b16 %v8262, %v8258
    %v8411 = vpack.c.b16 %v8263, %v8259
    %v8412 = vpack.c.b16 %v8264, %v8260
    %v8413 = vpack.c.b16 %v8269, %v8265
    %v8414 = vpack.c.b16 %v8270, %v8266
    %v8415 = vpack.c.b16 %v8271, %v8267
    %v8416 = vpack.c.b16 %v8272, %v8268
    %v8417 = vpack.c.b16 %v8277, %v8273
    %v8418 = vpack.c.b16 %v8278, %v8274
    %v8419 = vpack.c.b16 %v8279, %v8275
    %v8420 = vpack.c.b16 %v8280, %v8276
    %v8421 = vpack.c.b16 %v8285, %v8281
    %v8422 = vpack.c.b16 %v8286, %v8282
    %v8423 = vpack.c.b16 %v8287, %v8283
    %v8424 = vpack.c.b16 %v8288, %v8284
    %v8425 = vpack.c.b16 %v8293, %v8289
    %v8426 = vpack.c.b16 %v8294, %v8290
    %v8427 = vpack.c.b16 %v8295, %v8291
    %v8428 = vpack.c.b16 %v8296, %v8292
    %v8429 = vpack.c.b16 %v8301, %v8297
    %v8430 = vpack.c.b16 %v8302, %v8298
    %v8431 = vpack.c.b16 %v8303, %v8299
    %v8432 = vpack.c.b16 %v8304, %v8300
    %8561 = vmatprep.subr.bf16.mxu0 %v8334
    %8562 = vmatpush1.bf16.msra.mxu0 %v8333
    %8563 = vmatprep.subr.bf16.mxu0 %v8330
    %8564 = vmatpush1.bf16.msra.mxu0 %v8329
    %8565 = vmatprep.subr.bf16.mxu0 %v8326
    %8566 = vmatpush1.bf16.msra.mxu0 %v8325
    %8567 = vmatprep.subr.bf16.mxu0 %v8322
    %8568 = vmatpush1.bf16.msra.mxu0 %v8321
    %8569 = vmatprep.subr.bf16.mxu0 %v8318
    %8570 = vmatpush1.bf16.msra.mxu0 %v8317
    %8571 = vmatprep.subr.bf16.mxu0 %v8314
    %8572 = vmatpush1.bf16.msra.mxu0 %v8313
    %8573 = vmatprep.subr.bf16.mxu0 %v8310
    %8574 = vmatpush1.bf16.msra.mxu0 %v8309
    %8575 = vmatprep.subr.bf16.mxu0 %v8306
    %8576 = vmatpush1.bf16.msra.mxu0 %v8305
    %8577 = vmatprep.subr.bf16.mxu0 %v8366
    %8578 = vmatpush2.bf16.msra.mxu0 %v8365
    %8579 = vmatprep.subr.bf16.mxu0 %v8362
    %8580 = vmatpush2.bf16.msra.mxu0 %v8361
    %8581 = vmatprep.subr.bf16.mxu0 %v8358
    %8582 = vmatpush2.bf16.msra.mxu0 %v8357
    %8583 = vmatprep.subr.bf16.mxu0 %v8354
    %8584 = vmatpush2.bf16.msra.mxu0 %v8353
    %8585 = vmatprep.subr.bf16.mxu0 %v8350
    %8586 = vmatpush2.bf16.msra.mxu0 %v8349
    %8587 = vmatprep.subr.bf16.mxu0 %v8346
    %8588 = vmatpush2.bf16.msra.mxu0 %v8345
    %8589 = vmatprep.subr.bf16.mxu0 %v8342
    %8590 = vmatpush2.bf16.msra.mxu0 %v8341
    %8591 = vmatprep.subr.bf16.mxu0 %v8338
    %8592 = vmatpush2.bf16.msra.mxu0 %v8337
    %8593 = vmatprep.mubr.bf16.mxu0 %v7789
    %8594 = vmatmul.mubr.bf16.gmra.mxu0 %v7788
    %v8595 = vpop.f32.mrf.mxu0
    %v8596 = vadd.f32 0.0, %v8595
    %v8597 = vpop.f32.mrf.mxu0
    %v8598 = vadd.f32 0.0, %v8597
    %v8599 = vpop.f32.mrf.mxu0
    %v8600 = vpop.f32.mrf.mxu0
    %8601 = vdwg.mxu0
    %8602 = vmatprep.subr.bf16.mxu0 %v8398
    %8603 = vmatpush1.bf16.msra.mxu0 %v8397
    %8604 = vmatprep.subr.bf16.mxu0 %v8394
    %8605 = vmatpush1.bf16.msra.mxu0 %v8393
    %8606 = vmatprep.subr.bf16.mxu0 %v8390
    %8607 = vmatpush1.bf16.msra.mxu0 %v8389
    %8608 = vmatprep.subr.bf16.mxu0 %v8386
    %8609 = vmatpush1.bf16.msra.mxu0 %v8385
    %8610 = vmatprep.subr.bf16.mxu0 %v8382
    %8611 = vmatpush1.bf16.msra.mxu0 %v8381
    %8612 = vmatprep.subr.bf16.mxu0 %v8378
    %8613 = vmatpush1.bf16.msra.mxu0 %v8377
    %8614 = vmatprep.subr.bf16.mxu0 %v8374
    %8615 = vmatpush1.bf16.msra.mxu0 %v8373
    %8616 = vmatprep.subr.bf16.mxu0 %v8370
    %8617 = vmatpush1.bf16.msra.mxu0 %v8369
    %8618 = vmatprep.subr.bf16.mxu0 %v8430
    %8619 = vmatpush2.bf16.msra.mxu0 %v8429
    %8620 = vmatprep.subr.bf16.mxu0 %v8426
    %8621 = vmatpush2.bf16.msra.mxu0 %v8425
    %8622 = vmatprep.subr.bf16.mxu0 %v8422
    %8623 = vmatpush2.bf16.msra.mxu0 %v8421
    %8624 = vmatprep.subr.bf16.mxu0 %v8418
    %8625 = vmatpush2.bf16.msra.mxu0 %v8417
    %8626 = vmatprep.subr.bf16.mxu0 %v8414
    %8627 = vmatpush2.bf16.msra.mxu0 %v8413
    %8628 = vmatprep.subr.bf16.mxu0 %v8410
    %8629 = vmatpush2.bf16.msra.mxu0 %v8409
    %8630 = vmatprep.subr.bf16.mxu0 %v8406
    %8631 = vmatpush2.bf16.msra.mxu0 %v8405
    %8632 = vmatprep.subr.bf16.mxu0 %v8402
    %8633 = vmatpush2.bf16.msra.mxu0 %v8401
    %8634 = vmatprep.mubr.bf16.mxu0 %v7791
    %8635 = vmatmul.mubr.bf16.gmra.mxu0 %v7790
    %v8636 = vpop.f32.mrf.mxu0
    %v8637 = vadd.f32 %v8596, %v8636
    %v8638 = vpop.f32.mrf.mxu0
    %v8639 = vadd.f32 %v8598, %v8638
    %v8640 = vpop.f32.mrf.mxu0
    %v8641 = vpop.f32.mrf.mxu0
    %8642 = vdwg.mxu0
    %8643 = vmatprep.subr.bf16.mxu0 %v8336
    %8644 = vmatpush1.bf16.msra.mxu0 %v8335
    %8645 = vmatprep.subr.bf16.mxu0 %v8332
    %8646 = vmatpush1.bf16.msra.mxu0 %v8331
    %8647 = vmatprep.subr.bf16.mxu0 %v8328
    %8648 = vmatpush1.bf16.msra.mxu0 %v8327
    %8649 = vmatprep.subr.bf16.mxu0 %v8324
    %8650 = vmatpush1.bf16.msra.mxu0 %v8323
    %8651 = vmatprep.subr.bf16.mxu0 %v8320
    %8652 = vmatpush1.bf16.msra.mxu0 %v8319
    %8653 = vmatprep.subr.bf16.mxu0 %v8316
    %8654 = vmatpush1.bf16.msra.mxu0 %v8315
    %8655 = vmatprep.subr.bf16.mxu0 %v8312
    %8656 = vmatpush1.bf16.msra.mxu0 %v8311
    %8657 = vmatprep.subr.bf16.mxu0 %v8308
    %8658 = vmatpush1.bf16.msra.mxu0 %v8307
    %8659 = vmatprep.subr.bf16.mxu0 %v8368
    %8660 = vmatpush2.bf16.msra.mxu0 %v8367
    %8661 = vmatprep.subr.bf16.mxu0 %v8364
    %8662 = vmatpush2.bf16.msra.mxu0 %v8363
    %8663 = vmatprep.subr.bf16.mxu0 %v8360
    %8664 = vmatpush2.bf16.msra.mxu0 %v8359
    %8665 = vmatprep.subr.bf16.mxu0 %v8356
    %8666 = vmatpush2.bf16.msra.mxu0 %v8355
    %8667 = vmatprep.subr.bf16.mxu0 %v8352
    %8668 = vmatpush2.bf16.msra.mxu0 %v8351
    %8669 = vmatprep.subr.bf16.mxu0 %v8348
    %8670 = vmatpush2.bf16.msra.mxu0 %v8347
    %8671 = vmatprep.subr.bf16.mxu0 %v8344
    %8672 = vmatpush2.bf16.msra.mxu0 %v8343
    %8673 = vmatprep.subr.bf16.mxu0 %v8340
    %8674 = vmatpush2.bf16.msra.mxu0 %v8339
    %8675 = vmatprep.mubr.bf16.mxu0 %v7789
    %8676 = vmatmul.mubr.bf16.gmra.mxu0 %v7788
    %v8677 = vpop.f32.mrf.mxu0
    %v8678 = vadd.f32 0.0, %v8677
    %v8679 = vpop.f32.mrf.mxu0
    %v8680 = vadd.f32 0.0, %v8679
    %v8681 = vpop.f32.mrf.mxu0
    %v8682 = vpop.f32.mrf.mxu0
    %8683 = vdwg.mxu0
    %8684 = vmatprep.subr.bf16.mxu0 %v8400
    %8685 = vmatpush1.bf16.msra.mxu0 %v8399
    %8686 = vmatprep.subr.bf16.mxu0 %v8396
    %8687 = vmatpush1.bf16.msra.mxu0 %v8395
    %8688 = vmatprep.subr.bf16.mxu0 %v8392
    %8689 = vmatpush1.bf16.msra.mxu0 %v8391
    %8690 = vmatprep.subr.bf16.mxu0 %v8388
    %8691 = vmatpush1.bf16.msra.mxu0 %v8387
    %8692 = vmatprep.subr.bf16.mxu0 %v8384
    %8693 = vmatpush1.bf16.msra.mxu0 %v8383
    %8694 = vmatprep.subr.bf16.mxu0 %v8380
    %8695 = vmatpush1.bf16.msra.mxu0 %v8379
    %8696 = vmatprep.subr.bf16.mxu0 %v8376
    %8697 = vmatpush1.bf16.msra.mxu0 %v8375
    %8698 = vmatprep.subr.bf16.mxu0 %v8372
    %8699 = vmatpush1.bf16.msra.mxu0 %v8371
    %8700 = vmatprep.subr.bf16.mxu0 %v8432
    %8701 = vmatpush2.bf16.msra.mxu0 %v8431
    %8702 = vmatprep.subr.bf16.mxu0 %v8428
    %8703 = vmatpush2.bf16.msra.mxu0 %v8427
    %8704 = vmatprep.subr.bf16.mxu0 %v8424
    %8705 = vmatpush2.bf16.msra.mxu0 %v8423
    %8706 = vmatprep.subr.bf16.mxu0 %v8420
    %8707 = vmatpush2.bf16.msra.mxu0 %v8419
    %8708 = vmatprep.subr.bf16.mxu0 %v8416
    %8709 = vmatpush2.bf16.msra.mxu0 %v8415
    %8710 = vmatprep.subr.bf16.mxu0 %v8412
    %8711 = vmatpush2.bf16.msra.mxu0 %v8411
    %8712 = vmatprep.subr.bf16.mxu0 %v8408
    %8713 = vmatpush2.bf16.msra.mxu0 %v8407
    %8714 = vmatprep.subr.bf16.mxu0 %v8404
    %8715 = vmatpush2.bf16.msra.mxu0 %v8403
    %8716 = vmatprep.mubr.bf16.mxu0 %v7791
    %8717 = vmatmul.mubr.bf16.gmra.mxu0 %v7790
    %v8718 = vpop.f32.mrf.mxu0
    %v8719 = vadd.f32 %v8678, %v8718
    %v8720 = vpop.f32.mrf.mxu0
    %v8721 = vadd.f32 %v8680, %v8720
    %v8722 = vpop.f32.mrf.mxu0
    %v8723 = vpop.f32.mrf.mxu0
    %8724 = vdwg.mxu0
    %v8853 = vunpack.c.l.b16 %v7660
    %v8854 = vunpack.c.h.b16 %v7660
    %v8855 = vunpack.c.l.b16 %v7661
    %v8856 = vunpack.c.h.b16 %v7661
    %v8857 = vunpack.c.l.b16 %v7662
    %v8858 = vunpack.c.h.b16 %v7662
    %v8859 = vunpack.c.l.b16 %v7663
    %v8860 = vunpack.c.h.b16 %v7663
    %v8861 = vunpack.c.l.b16 %v7664
    %v8862 = vunpack.c.h.b16 %v7664
    %v8863 = vunpack.c.l.b16 %v7665
    %v8864 = vunpack.c.h.b16 %v7665
    %v8865 = vunpack.c.l.b16 %v7666
    %v8866 = vunpack.c.h.b16 %v7666
    %v8867 = vunpack.c.l.b16 %v7667
    %v8868 = vunpack.c.h.b16 %v7667
    %v8869 = vunpack.c.l.b16 %v7668
    %v8870 = vunpack.c.h.b16 %v7668
    %v8871 = vunpack.c.l.b16 %v7669
    %v8872 = vunpack.c.h.b16 %v7669
    %v8873 = vunpack.c.l.b16 %v7670
    %v8874 = vunpack.c.h.b16 %v7670
    %v8875 = vunpack.c.l.b16 %v7671
    %v8876 = vunpack.c.h.b16 %v7671
    %v8877 = vunpack.c.l.b16 %v7672
    %v8878 = vunpack.c.h.b16 %v7672
    %v8879 = vunpack.c.l.b16 %v7673
    %v8880 = vunpack.c.h.b16 %v7673
    %v8881 = vunpack.c.l.b16 %v7674
    %v8882 = vunpack.c.h.b16 %v7674
    %v8883 = vunpack.c.l.b16 %v7675
    %v8884 = vunpack.c.h.b16 %v7675
    %v8885 = vunpack.c.l.b16 %v7676
    %v8886 = vunpack.c.h.b16 %v7676
    %v8887 = vunpack.c.l.b16 %v7677
    %v8888 = vunpack.c.h.b16 %v7677
    %v8889 = vunpack.c.l.b16 %v7678
    %v8890 = vunpack.c.h.b16 %v7678
    %v8891 = vunpack.c.l.b16 %v7679
    %v8892 = vunpack.c.h.b16 %v7679
    %v8893 = vunpack.c.l.b16 %v7680
    %v8894 = vunpack.c.h.b16 %v7680
    %v8895 = vunpack.c.l.b16 %v7681
    %v8896 = vunpack.c.h.b16 %v7681
    %v8897 = vunpack.c.l.b16 %v7682
    %v8898 = vunpack.c.h.b16 %v7682
    %v8899 = vunpack.c.l.b16 %v7683
    %v8900 = vunpack.c.h.b16 %v7683
    %v8901 = vunpack.c.l.b16 %v7684
    %v8902 = vunpack.c.h.b16 %v7684
    %v8903 = vunpack.c.l.b16 %v7685
    %v8904 = vunpack.c.h.b16 %v7685
    %v8905 = vunpack.c.l.b16 %v7686
    %v8906 = vunpack.c.h.b16 %v7686
    %v8907 = vunpack.c.l.b16 %v7687
    %v8908 = vunpack.c.h.b16 %v7687
    %v8909 = vunpack.c.l.b16 %v7688
    %v8910 = vunpack.c.h.b16 %v7688
    %v8911 = vunpack.c.l.b16 %v7689
    %v8912 = vunpack.c.h.b16 %v7689
    %v8913 = vunpack.c.l.b16 %v7690
    %v8914 = vunpack.c.h.b16 %v7690
    %v8915 = vunpack.c.l.b16 %v7691
    %v8916 = vunpack.c.h.b16 %v7691
    %v8917 = vunpack.c.l.b16 %v7692
    %v8918 = vunpack.c.h.b16 %v7692
    %v8919 = vunpack.c.l.b16 %v7693
    %v8920 = vunpack.c.h.b16 %v7693
    %v8921 = vunpack.c.l.b16 %v7694
    %v8922 = vunpack.c.h.b16 %v7694
    %v8923 = vunpack.c.l.b16 %v7695
    %v8924 = vunpack.c.h.b16 %v7695
    %v8925 = vunpack.c.l.b16 %v7696
    %v8926 = vunpack.c.h.b16 %v7696
    %v8927 = vunpack.c.l.b16 %v7697
    %v8928 = vunpack.c.h.b16 %v7697
    %v8929 = vunpack.c.l.b16 %v7698
    %v8930 = vunpack.c.h.b16 %v7698
    %v8931 = vunpack.c.l.b16 %v7699
    %v8932 = vunpack.c.h.b16 %v7699
    %v8933 = vunpack.c.l.b16 %v7700
    %v8934 = vunpack.c.h.b16 %v7700
    %v8935 = vunpack.c.l.b16 %v7701
    %v8936 = vunpack.c.h.b16 %v7701
    %v8937 = vunpack.c.l.b16 %v7702
    %v8938 = vunpack.c.h.b16 %v7702
    %v8939 = vunpack.c.l.b16 %v7703
    %v8940 = vunpack.c.h.b16 %v7703
    %v8941 = vunpack.c.l.b16 %v7704
    %v8942 = vunpack.c.h.b16 %v7704
    %v8943 = vunpack.c.l.b16 %v7705
    %v8944 = vunpack.c.h.b16 %v7705
    %v8945 = vunpack.c.l.b16 %v7706
    %v8946 = vunpack.c.h.b16 %v7706
    %v8947 = vunpack.c.l.b16 %v7707
    %v8948 = vunpack.c.h.b16 %v7707
    %v8949 = vunpack.c.l.b16 %v7708
    %v8950 = vunpack.c.h.b16 %v7708
    %v8951 = vunpack.c.l.b16 %v7709
    %v8952 = vunpack.c.h.b16 %v7709
    %v8953 = vunpack.c.l.b16 %v7710
    %v8954 = vunpack.c.h.b16 %v7710
    %v8955 = vunpack.c.l.b16 %v7711
    %v8956 = vunpack.c.h.b16 %v7711
    %v8957 = vunpack.c.l.b16 %v7712
    %v8958 = vunpack.c.h.b16 %v7712
    %v8959 = vunpack.c.l.b16 %v7713
    %v8960 = vunpack.c.h.b16 %v7713
    %v8961 = vunpack.c.l.b16 %v7714
    %v8962 = vunpack.c.h.b16 %v7714
    %v8963 = vunpack.c.l.b16 %v7715
    %v8964 = vunpack.c.h.b16 %v7715
    %v8965 = vunpack.c.l.b16 %v7716
    %v8966 = vunpack.c.h.b16 %v7716
    %v8967 = vunpack.c.l.b16 %v7717
    %v8968 = vunpack.c.h.b16 %v7717
    %v8969 = vunpack.c.l.b16 %v7718
    %v8970 = vunpack.c.h.b16 %v7718
    %v8971 = vunpack.c.l.b16 %v7719
    %v8972 = vunpack.c.h.b16 %v7719
    %v8973 = vunpack.c.l.b16 %v7720
    %v8974 = vunpack.c.h.b16 %v7720
    %v8975 = vunpack.c.l.b16 %v7721
    %v8976 = vunpack.c.h.b16 %v7721
    %v8977 = vunpack.c.l.b16 %v7722
    %v8978 = vunpack.c.h.b16 %v7722
    %v8979 = vunpack.c.l.b16 %v7723
    %v8980 = vunpack.c.h.b16 %v7723
    %v8981 = vunpack.c.l.b16 %v7724
    %v8982 = vunpack.c.h.b16 %v7724
    %v8983 = vunpack.c.l.b16 %v7725
    %v8984 = vunpack.c.h.b16 %v7725
    %v8985 = vunpack.c.l.b16 %v7726
    %v8986 = vunpack.c.h.b16 %v7726
    %v8987 = vunpack.c.l.b16 %v7727
    %v8988 = vunpack.c.h.b16 %v7727
    %v8989 = vunpack.c.l.b16 %v7728
    %v8990 = vunpack.c.h.b16 %v7728
    %v8991 = vunpack.c.l.b16 %v7729
    %v8992 = vunpack.c.h.b16 %v7729
    %v8993 = vunpack.c.l.b16 %v7730
    %v8994 = vunpack.c.h.b16 %v7730
    %v8995 = vunpack.c.l.b16 %v7731
    %v8996 = vunpack.c.h.b16 %v7731
    %v8997 = vunpack.c.l.b16 %v7732
    %v8998 = vunpack.c.h.b16 %v7732
    %v8999 = vunpack.c.l.b16 %v7733
    %v9000 = vunpack.c.h.b16 %v7733
    %v9001 = vunpack.c.l.b16 %v7734
    %v9002 = vunpack.c.h.b16 %v7734
    %v9003 = vunpack.c.l.b16 %v7735
    %v9004 = vunpack.c.h.b16 %v7735
    %v9005 = vunpack.c.l.b16 %v7736
    %v9006 = vunpack.c.h.b16 %v7736
    %v9007 = vunpack.c.l.b16 %v7737
    %v9008 = vunpack.c.h.b16 %v7737
    %v9009 = vunpack.c.l.b16 %v7738
    %v9010 = vunpack.c.h.b16 %v7738
    %v9011 = vunpack.c.l.b16 %v7739
    %v9012 = vunpack.c.h.b16 %v7739
    %v9013 = vunpack.c.l.b16 %v7740
    %v9014 = vunpack.c.h.b16 %v7740
    %v9015 = vunpack.c.l.b16 %v7741
    %v9016 = vunpack.c.h.b16 %v7741
    %v9017 = vunpack.c.l.b16 %v7742
    %v9018 = vunpack.c.h.b16 %v7742
    %v9019 = vunpack.c.l.b16 %v7743
    %v9020 = vunpack.c.h.b16 %v7743
    %v9021 = vunpack.c.l.b16 %v7744
    %v9022 = vunpack.c.h.b16 %v7744
    %v9023 = vunpack.c.l.b16 %v7745
    %v9024 = vunpack.c.h.b16 %v7745
    %v9025 = vunpack.c.l.b16 %v7746
    %v9026 = vunpack.c.h.b16 %v7746
    %v9027 = vunpack.c.l.b16 %v7747
    %v9028 = vunpack.c.h.b16 %v7747
    %v9029 = vunpack.c.l.b16 %v7748
    %v9030 = vunpack.c.h.b16 %v7748
    %v9031 = vunpack.c.l.b16 %v7749
    %v9032 = vunpack.c.h.b16 %v7749
    %v9033 = vunpack.c.l.b16 %v7750
    %v9034 = vunpack.c.h.b16 %v7750
    %v9035 = vunpack.c.l.b16 %v7751
    %v9036 = vunpack.c.h.b16 %v7751
    %v9037 = vunpack.c.l.b16 %v7752
    %v9038 = vunpack.c.h.b16 %v7752
    %v9039 = vunpack.c.l.b16 %v7753
    %v9040 = vunpack.c.h.b16 %v7753
    %v9041 = vunpack.c.l.b16 %v7754
    %v9042 = vunpack.c.h.b16 %v7754
    %v9043 = vunpack.c.l.b16 %v7755
    %v9044 = vunpack.c.h.b16 %v7755
    %v9045 = vunpack.c.l.b16 %v7756
    %v9046 = vunpack.c.h.b16 %v7756
    %v9047 = vunpack.c.l.b16 %v7757
    %v9048 = vunpack.c.h.b16 %v7757
    %v9049 = vunpack.c.l.b16 %v7758
    %v9050 = vunpack.c.h.b16 %v7758
    %v9051 = vunpack.c.l.b16 %v7759
    %v9052 = vunpack.c.h.b16 %v7759
    %v9053 = vunpack.c.l.b16 %v7760
    %v9054 = vunpack.c.h.b16 %v7760
    %v9055 = vunpack.c.l.b16 %v7761
    %v9056 = vunpack.c.h.b16 %v7761
    %v9057 = vunpack.c.l.b16 %v7762
    %v9058 = vunpack.c.h.b16 %v7762
    %v9059 = vunpack.c.l.b16 %v7763
    %v9060 = vunpack.c.h.b16 %v7763
    %v9061 = vunpack.c.l.b16 %v7764
    %v9062 = vunpack.c.h.b16 %v7764
    %v9063 = vunpack.c.l.b16 %v7765
    %v9064 = vunpack.c.h.b16 %v7765
    %v9065 = vunpack.c.l.b16 %v7766
    %v9066 = vunpack.c.h.b16 %v7766
    %v9067 = vunpack.c.l.b16 %v7767
    %v9068 = vunpack.c.h.b16 %v7767
    %v9069 = vunpack.c.l.b16 %v7768
    %v9070 = vunpack.c.h.b16 %v7768
    %v9071 = vunpack.c.l.b16 %v7769
    %v9072 = vunpack.c.h.b16 %v7769
    %v9073 = vunpack.c.l.b16 %v7770
    %v9074 = vunpack.c.h.b16 %v7770
    %v9075 = vunpack.c.l.b16 %v7771
    %v9076 = vunpack.c.h.b16 %v7771
    %v9077 = vunpack.c.l.b16 %v7772
    %v9078 = vunpack.c.h.b16 %v7772
    %v9079 = vunpack.c.l.b16 %v7773
    %v9080 = vunpack.c.h.b16 %v7773
    %v9081 = vunpack.c.l.b16 %v7774
    %v9082 = vunpack.c.h.b16 %v7774
    %v9083 = vunpack.c.l.b16 %v7775
    %v9084 = vunpack.c.h.b16 %v7775
    %v9085 = vunpack.c.l.b16 %v7776
    %v9086 = vunpack.c.h.b16 %v7776
    %v9087 = vunpack.c.l.b16 %v7777
    %v9088 = vunpack.c.h.b16 %v7777
    %v9089 = vunpack.c.l.b16 %v7778
    %v9090 = vunpack.c.h.b16 %v7778
    %v9091 = vunpack.c.l.b16 %v7779
    %v9092 = vunpack.c.h.b16 %v7779
    %v9093 = vunpack.c.l.b16 %v7780
    %v9094 = vunpack.c.h.b16 %v7780
    %v9095 = vunpack.c.l.b16 %v7781
    %v9096 = vunpack.c.h.b16 %v7781
    %v9097 = vunpack.c.l.b16 %v7782
    %v9098 = vunpack.c.h.b16 %v7782
    %v9099 = vunpack.c.l.b16 %v7783
    %v9100 = vunpack.c.h.b16 %v7783
    %v9101 = vunpack.c.l.b16 %v7784
    %v9102 = vunpack.c.h.b16 %v7784
    %v9103 = vunpack.c.l.b16 %v7785
    %v9104 = vunpack.c.h.b16 %v7785
    %v9105 = vunpack.c.l.b16 %v7786
    %v9106 = vunpack.c.h.b16 %v7786
    %v9107 = vunpack.c.l.b16 %v7787
    %v9108 = vunpack.c.h.b16 %v7787
    %v9109 = vpack.c.b16 %v8857, %v8853
    %v9110 = vpack.c.b16 %v8858, %v8854
    %v9111 = vpack.c.b16 %v8859, %v8855
    %v9112 = vpack.c.b16 %v8860, %v8856
    %v9113 = vpack.c.b16 %v8865, %v8861
    %v9114 = vpack.c.b16 %v8866, %v8862
    %v9115 = vpack.c.b16 %v8867, %v8863
    %v9116 = vpack.c.b16 %v8868, %v8864
    %v9117 = vpack.c.b16 %v8873, %v8869
    %v9118 = vpack.c.b16 %v8874, %v8870
    %v9119 = vpack.c.b16 %v8875, %v8871
    %v9120 = vpack.c.b16 %v8876, %v8872
    %v9121 = vpack.c.b16 %v8881, %v8877
    %v9122 = vpack.c.b16 %v8882, %v8878
    %v9123 = vpack.c.b16 %v8883, %v8879
    %v9124 = vpack.c.b16 %v8884, %v8880
    %v9125 = vpack.c.b16 %v8889, %v8885
    %v9126 = vpack.c.b16 %v8890, %v8886
    %v9127 = vpack.c.b16 %v8891, %v8887
    %v9128 = vpack.c.b16 %v8892, %v8888
    %v9129 = vpack.c.b16 %v8897, %v8893
    %v9130 = vpack.c.b16 %v8898, %v8894
    %v9131 = vpack.c.b16 %v8899, %v8895
    %v9132 = vpack.c.b16 %v8900, %v8896
    %v9133 = vpack.c.b16 %v8905, %v8901
    %v9134 = vpack.c.b16 %v8906, %v8902
    %v9135 = vpack.c.b16 %v8907, %v8903
    %v9136 = vpack.c.b16 %v8908, %v8904
    %v9137 = vpack.c.b16 %v8913, %v8909
    %v9138 = vpack.c.b16 %v8914, %v8910
    %v9139 = vpack.c.b16 %v8915, %v8911
    %v9140 = vpack.c.b16 %v8916, %v8912
    %v9141 = vpack.c.b16 %v8921, %v8917
    %v9142 = vpack.c.b16 %v8922, %v8918
    %v9143 = vpack.c.b16 %v8923, %v8919
    %v9144 = vpack.c.b16 %v8924, %v8920
    %v9145 = vpack.c.b16 %v8929, %v8925
    %v9146 = vpack.c.b16 %v8930, %v8926
    %v9147 = vpack.c.b16 %v8931, %v8927
    %v9148 = vpack.c.b16 %v8932, %v8928
    %v9149 = vpack.c.b16 %v8937, %v8933
    %v9150 = vpack.c.b16 %v8938, %v8934
    %v9151 = vpack.c.b16 %v8939, %v8935
    %v9152 = vpack.c.b16 %v8940, %v8936
    %v9153 = vpack.c.b16 %v8945, %v8941
    %v9154 = vpack.c.b16 %v8946, %v8942
    %v9155 = vpack.c.b16 %v8947, %v8943
    %v9156 = vpack.c.b16 %v8948, %v8944
    %v9157 = vpack.c.b16 %v8953, %v8949
    %v9158 = vpack.c.b16 %v8954, %v8950
    %v9159 = vpack.c.b16 %v8955, %v8951
    %v9160 = vpack.c.b16 %v8956, %v8952
    %v9161 = vpack.c.b16 %v8961, %v8957
    %v9162 = vpack.c.b16 %v8962, %v8958
    %v9163 = vpack.c.b16 %v8963, %v8959
    %v9164 = vpack.c.b16 %v8964, %v8960
    %v9165 = vpack.c.b16 %v8969, %v8965
    %v9166 = vpack.c.b16 %v8970, %v8966
    %v9167 = vpack.c.b16 %v8971, %v8967
    %v9168 = vpack.c.b16 %v8972, %v8968
    %v9169 = vpack.c.b16 %v8977, %v8973
    %v9170 = vpack.c.b16 %v8978, %v8974
    %v9171 = vpack.c.b16 %v8979, %v8975
    %v9172 = vpack.c.b16 %v8980, %v8976
    %v9173 = vpack.c.b16 %v8985, %v8981
    %v9174 = vpack.c.b16 %v8986, %v8982
    %v9175 = vpack.c.b16 %v8987, %v8983
    %v9176 = vpack.c.b16 %v8988, %v8984
    %v9177 = vpack.c.b16 %v8993, %v8989
    %v9178 = vpack.c.b16 %v8994, %v8990
    %v9179 = vpack.c.b16 %v8995, %v8991
    %v9180 = vpack.c.b16 %v8996, %v8992
    %v9181 = vpack.c.b16 %v9001, %v8997
    %v9182 = vpack.c.b16 %v9002, %v8998
    %v9183 = vpack.c.b16 %v9003, %v8999
    %v9184 = vpack.c.b16 %v9004, %v9000
    %v9185 = vpack.c.b16 %v9009, %v9005
    %v9186 = vpack.c.b16 %v9010, %v9006
    %v9187 = vpack.c.b16 %v9011, %v9007
    %v9188 = vpack.c.b16 %v9012, %v9008
    %v9189 = vpack.c.b16 %v9017, %v9013
    %v9190 = vpack.c.b16 %v9018, %v9014
    %v9191 = vpack.c.b16 %v9019, %v9015
    %v9192 = vpack.c.b16 %v9020, %v9016
    %v9193 = vpack.c.b16 %v9025, %v9021
    %v9194 = vpack.c.b16 %v9026, %v9022
    %v9195 = vpack.c.b16 %v9027, %v9023
    %v9196 = vpack.c.b16 %v9028, %v9024
    %v9197 = vpack.c.b16 %v9033, %v9029
    %v9198 = vpack.c.b16 %v9034, %v9030
    %v9199 = vpack.c.b16 %v9035, %v9031
    %v9200 = vpack.c.b16 %v9036, %v9032
    %v9201 = vpack.c.b16 %v9041, %v9037
    %v9202 = vpack.c.b16 %v9042, %v9038
    %v9203 = vpack.c.b16 %v9043, %v9039
    %v9204 = vpack.c.b16 %v9044, %v9040
    %v9205 = vpack.c.b16 %v9049, %v9045
    %v9206 = vpack.c.b16 %v9050, %v9046
    %v9207 = vpack.c.b16 %v9051, %v9047
    %v9208 = vpack.c.b16 %v9052, %v9048
    %v9209 = vpack.c.b16 %v9057, %v9053
    %v9210 = vpack.c.b16 %v9058, %v9054
    %v9211 = vpack.c.b16 %v9059, %v9055
    %v9212 = vpack.c.b16 %v9060, %v9056
    %v9213 = vpack.c.b16 %v9065, %v9061
    %v9214 = vpack.c.b16 %v9066, %v9062
    %v9215 = vpack.c.b16 %v9067, %v9063
    %v9216 = vpack.c.b16 %v9068, %v9064
    %v9217 = vpack.c.b16 %v9073, %v9069
    %v9218 = vpack.c.b16 %v9074, %v9070
    %v9219 = vpack.c.b16 %v9075, %v9071
    %v9220 = vpack.c.b16 %v9076, %v9072
    %v9221 = vpack.c.b16 %v9081, %v9077
    %v9222 = vpack.c.b16 %v9082, %v9078
    %v9223 = vpack.c.b16 %v9083, %v9079
    %v9224 = vpack.c.b16 %v9084, %v9080
    %v9225 = vpack.c.b16 %v9089, %v9085
    %v9226 = vpack.c.b16 %v9090, %v9086
    %v9227 = vpack.c.b16 %v9091, %v9087
    %v9228 = vpack.c.b16 %v9092, %v9088
    %v9229 = vpack.c.b16 %v9097, %v9093
    %v9230 = vpack.c.b16 %v9098, %v9094
    %v9231 = vpack.c.b16 %v9099, %v9095
    %v9232 = vpack.c.b16 %v9100, %v9096
    %v9233 = vpack.c.b16 %v9105, %v9101
    %v9234 = vpack.c.b16 %v9106, %v9102
    %v9235 = vpack.c.b16 %v9107, %v9103
    %v9236 = vpack.c.b16 %v9108, %v9104
    %9365 = vmatprep.subr.bf16.mxu0 %v9138
    %9366 = vmatpush1.bf16.msra.mxu0 %v9137
    %9367 = vmatprep.subr.bf16.mxu0 %v9134
    %9368 = vmatpush1.bf16.msra.mxu0 %v9133
    %9369 = vmatprep.subr.bf16.mxu0 %v9130
    %9370 = vmatpush1.bf16.msra.mxu0 %v9129
    %9371 = vmatprep.subr.bf16.mxu0 %v9126
    %9372 = vmatpush1.bf16.msra.mxu0 %v9125
    %9373 = vmatprep.subr.bf16.mxu0 %v9122
    %9374 = vmatpush1.bf16.msra.mxu0 %v9121
    %9375 = vmatprep.subr.bf16.mxu0 %v9118
    %9376 = vmatpush1.bf16.msra.mxu0 %v9117
    %9377 = vmatprep.subr.bf16.mxu0 %v9114
    %9378 = vmatpush1.bf16.msra.mxu0 %v9113
    %9379 = vmatprep.subr.bf16.mxu0 %v9110
    %9380 = vmatpush1.bf16.msra.mxu0 %v9109
    %9381 = vmatprep.subr.bf16.mxu0 %v9170
    %9382 = vmatpush2.bf16.msra.mxu0 %v9169
    %9383 = vmatprep.subr.bf16.mxu0 %v9166
    %9384 = vmatpush2.bf16.msra.mxu0 %v9165
    %9385 = vmatprep.subr.bf16.mxu0 %v9162
    %9386 = vmatpush2.bf16.msra.mxu0 %v9161
    %9387 = vmatprep.subr.bf16.mxu0 %v9158
    %9388 = vmatpush2.bf16.msra.mxu0 %v9157
    %9389 = vmatprep.subr.bf16.mxu0 %v9154
    %9390 = vmatpush2.bf16.msra.mxu0 %v9153
    %9391 = vmatprep.subr.bf16.mxu0 %v9150
    %9392 = vmatpush2.bf16.msra.mxu0 %v9149
    %9393 = vmatprep.subr.bf16.mxu0 %v9146
    %9394 = vmatpush2.bf16.msra.mxu0 %v9145
    %9395 = vmatprep.subr.bf16.mxu0 %v9142
    %9396 = vmatpush2.bf16.msra.mxu0 %v9141
    %9397 = vmatprep.mubr.bf16.mxu0 %v7657
    %9398 = vmatmul.mubr.bf16.gmra.mxu0 %v7656
    %v9399 = vpop.f32.mrf.mxu0
    %v9400 = vadd.f32 %v8637, %v9399
    %v9401 = vpop.f32.mrf.mxu0
    %v9402 = vadd.f32 %v8639, %v9401
    %v9403 = vpop.f32.mrf.mxu0
    %v9404 = vpop.f32.mrf.mxu0
    %9405 = vdwg.mxu0
    %9406 = vmatprep.subr.bf16.mxu0 %v9202
    %9407 = vmatpush1.bf16.msra.mxu0 %v9201
    %9408 = vmatprep.subr.bf16.mxu0 %v9198
    %9409 = vmatpush1.bf16.msra.mxu0 %v9197
    %9410 = vmatprep.subr.bf16.mxu0 %v9194
    %9411 = vmatpush1.bf16.msra.mxu0 %v9193
    %9412 = vmatprep.subr.bf16.mxu0 %v9190
    %9413 = vmatpush1.bf16.msra.mxu0 %v9189
    %9414 = vmatprep.subr.bf16.mxu0 %v9186
    %9415 = vmatpush1.bf16.msra.mxu0 %v9185
    %9416 = vmatprep.subr.bf16.mxu0 %v9182
    %9417 = vmatpush1.bf16.msra.mxu0 %v9181
    %9418 = vmatprep.subr.bf16.mxu0 %v9178
    %9419 = vmatpush1.bf16.msra.mxu0 %v9177
    %9420 = vmatprep.subr.bf16.mxu0 %v9174
    %9421 = vmatpush1.bf16.msra.mxu0 %v9173
    %9422 = vmatprep.subr.bf16.mxu0 %v9234
    %9423 = vmatpush2.bf16.msra.mxu0 %v9233
    %9424 = vmatprep.subr.bf16.mxu0 %v9230
    %9425 = vmatpush2.bf16.msra.mxu0 %v9229
    %9426 = vmatprep.subr.bf16.mxu0 %v9226
    %9427 = vmatpush2.bf16.msra.mxu0 %v9225
    %9428 = vmatprep.subr.bf16.mxu0 %v9222
    %9429 = vmatpush2.bf16.msra.mxu0 %v9221
    %9430 = vmatprep.subr.bf16.mxu0 %v9218
    %9431 = vmatpush2.bf16.msra.mxu0 %v9217
    %9432 = vmatprep.subr.bf16.mxu0 %v9214
    %9433 = vmatpush2.bf16.msra.mxu0 %v9213
    %9434 = vmatprep.subr.bf16.mxu0 %v9210
    %9435 = vmatpush2.bf16.msra.mxu0 %v9209
    %9436 = vmatprep.subr.bf16.mxu0 %v9206
    %9437 = vmatpush2.bf16.msra.mxu0 %v9205
    %9438 = vmatprep.mubr.bf16.mxu0 %v7659
    %9439 = vmatmul.mubr.bf16.gmra.mxu0 %v7658
    %v9440 = vpop.f32.mrf.mxu0
    %v9441 = vadd.f32 %v9400, %v9440
    %v9442 = vpop.f32.mrf.mxu0
    %v9443 = vadd.f32 %v9402, %v9442
    %v9444 = vpop.f32.mrf.mxu0
    %v9445 = vpop.f32.mrf.mxu0
    %9446 = vdwg.mxu0
    %9447 = vmatprep.subr.bf16.mxu0 %v9140
    %9448 = vmatpush1.bf16.msra.mxu0 %v9139
    %9449 = vmatprep.subr.bf16.mxu0 %v9136
    %9450 = vmatpush1.bf16.msra.mxu0 %v9135
    %9451 = vmatprep.subr.bf16.mxu0 %v9132
    %9452 = vmatpush1.bf16.msra.mxu0 %v9131
    %9453 = vmatprep.subr.bf16.mxu0 %v9128
    %9454 = vmatpush1.bf16.msra.mxu0 %v9127
    %9455 = vmatprep.subr.bf16.mxu0 %v9124
    %9456 = vmatpush1.bf16.msra.mxu0 %v9123
    %9457 = vmatprep.subr.bf16.mxu0 %v9120
    %9458 = vmatpush1.bf16.msra.mxu0 %v9119
    %9459 = vmatprep.subr.bf16.mxu0 %v9116
    %9460 = vmatpush1.bf16.msra.mxu0 %v9115
    %9461 = vmatprep.subr.bf16.mxu0 %v9112
    %9462 = vmatpush1.bf16.msra.mxu0 %v9111
    %9463 = vmatprep.subr.bf16.mxu0 %v9172
    %9464 = vmatpush2.bf16.msra.mxu0 %v9171
    %9465 = vmatprep.subr.bf16.mxu0 %v9168
    %9466 = vmatpush2.bf16.msra.mxu0 %v9167
    %9467 = vmatprep.subr.bf16.mxu0 %v9164
    %9468 = vmatpush2.bf16.msra.mxu0 %v9163
    %9469 = vmatprep.subr.bf16.mxu0 %v9160
    %9470 = vmatpush2.bf16.msra.mxu0 %v9159
    %9471 = vmatprep.subr.bf16.mxu0 %v9156
    %9472 = vmatpush2.bf16.msra.mxu0 %v9155
    %9473 = vmatprep.subr.bf16.mxu0 %v9152
    %9474 = vmatpush2.bf16.msra.mxu0 %v9151
    %9475 = vmatprep.subr.bf16.mxu0 %v9148
    %9476 = vmatpush2.bf16.msra.mxu0 %v9147
    %9477 = vmatprep.subr.bf16.mxu0 %v9144
    %9478 = vmatpush2.bf16.msra.mxu0 %v9143
    %9479 = vmatprep.mubr.bf16.mxu0 %v7657
    %9480 = vmatmul.mubr.bf16.gmra.mxu0 %v7656
    %v9481 = vpop.f32.mrf.mxu0
    %v9482 = vadd.f32 %v8719, %v9481
    %v9483 = vpop.f32.mrf.mxu0
    %v9484 = vadd.f32 %v8721, %v9483
    %v9485 = vpop.f32.mrf.mxu0
    %v9486 = vpop.f32.mrf.mxu0
    %9487 = vdwg.mxu0
    %9488 = vmatprep.subr.bf16.mxu0 %v9204
    %9489 = vmatpush1.bf16.msra.mxu0 %v9203
    %9490 = vmatprep.subr.bf16.mxu0 %v9200
    %9491 = vmatpush1.bf16.msra.mxu0 %v9199
    %9492 = vmatprep.subr.bf16.mxu0 %v9196
    %9493 = vmatpush1.bf16.msra.mxu0 %v9195
    %9494 = vmatprep.subr.bf16.mxu0 %v9192
    %9495 = vmatpush1.bf16.msra.mxu0 %v9191
    %9496 = vmatprep.subr.bf16.mxu0 %v9188
    %9497 = vmatpush1.bf16.msra.mxu0 %v9187
    %9498 = vmatprep.subr.bf16.mxu0 %v9184
    %9499 = vmatpush1.bf16.msra.mxu0 %v9183
    %9500 = vmatprep.subr.bf16.mxu0 %v9180
    %9501 = vmatpush1.bf16.msra.mxu0 %v9179
    %9502 = vmatprep.subr.bf16.mxu0 %v9176
    %9503 = vmatpush1.bf16.msra.mxu0 %v9175
    %9504 = vmatprep.subr.bf16.mxu0 %v9236
    %9505 = vmatpush2.bf16.msra.mxu0 %v9235
    %9506 = vmatprep.subr.bf16.mxu0 %v9232
    %9507 = vmatpush2.bf16.msra.mxu0 %v9231
    %9508 = vmatprep.subr.bf16.mxu0 %v9228
    %9509 = vmatpush2.bf16.msra.mxu0 %v9227
    %9510 = vmatprep.subr.bf16.mxu0 %v9224
    %9511 = vmatpush2.bf16.msra.mxu0 %v9223
    %9512 = vmatprep.subr.bf16.mxu0 %v9220
    %9513 = vmatpush2.bf16.msra.mxu0 %v9219
    %9514 = vmatprep.subr.bf16.mxu0 %v9216
    %9515 = vmatpush2.bf16.msra.mxu0 %v9215
    %9516 = vmatprep.subr.bf16.mxu0 %v9212
    %9517 = vmatpush2.bf16.msra.mxu0 %v9211
    %9518 = vmatprep.subr.bf16.mxu0 %v9208
    %9519 = vmatpush2.bf16.msra.mxu0 %v9207
    %9520 = vmatprep.mubr.bf16.mxu0 %v7659
    %9521 = vmatmul.mubr.bf16.gmra.mxu0 %v7658
    %v9522 = vpop.f32.mrf.mxu0
    %v9523 = vadd.f32 %v9482, %v9522
    %v9524 = vpop.f32.mrf.mxu0
    %v9525 = vadd.f32 %v9484, %v9524
    %v9526 = vpop.f32.mrf.mxu0
    %v9527 = vpop.f32.mrf.mxu0
    %9528 = vdwg.mxu0
    %v9529 = vpack.c.bf16 %v7609, %v7609
    %v9530 = vpack.c.bf16 %v7611, %v7611
    %v9531 = vpack.c.bf16 %v7650, %v7650
    %v9532 = vpack.c.bf16 %v7652, %v7652
    %s9533 = scalar_lea.vmem [#allocation19], 2048
    %v9534 = vld [vmem:[%s9533] sm:$0xff]
    %v9535 = vld [vmem:[%s9533 + $0x8] sm:$0xff]
    %v9536 = vld [vmem:[%s9533 + $0x10] sm:$0xff]
    %v9537 = vld [vmem:[%s9533 + $0x18] sm:$0xff]
    %v9538 = vld [vmem:[%s9533 + $0x20] sm:$0xff]
    %v9539 = vld [vmem:[%s9533 + $0x28] sm:$0xff]
    %v9540 = vld [vmem:[%s9533 + $0x30] sm:$0xff]
    %v9541 = vld [vmem:[%s9533 + $0x38] sm:$0xff]
    %v9542 = vld [vmem:[%s9533 + $0x40] sm:$0xff]
    %v9543 = vld [vmem:[%s9533 + $0x48] sm:$0xff]
    %v9544 = vld [vmem:[%s9533 + $0x50] sm:$0xff]
    %v9545 = vld [vmem:[%s9533 + $0x58] sm:$0xff]
    %v9546 = vld [vmem:[%s9533 + $0x60] sm:$0xff]
    %v9547 = vld [vmem:[%s9533 + $0x68] sm:$0xff]
    %v9548 = vld [vmem:[%s9533 + $0x70] sm:$0xff]
    %v9549 = vld [vmem:[%s9533 + $0x78] sm:$0xff]
    %v9550 = vld [vmem:[%s9533 + $0x80] sm:$0xff]
    %v9551 = vld [vmem:[%s9533 + $0x88] sm:$0xff]
    %v9552 = vld [vmem:[%s9533 + $0x90] sm:$0xff]
    %v9553 = vld [vmem:[%s9533 + $0x98] sm:$0xff]
    %v9554 = vld [vmem:[%s9533 + $0xa0] sm:$0xff]
    %v9555 = vld [vmem:[%s9533 + $0xa8] sm:$0xff]
    %v9556 = vld [vmem:[%s9533 + $0xb0] sm:$0xff]
    %v9557 = vld [vmem:[%s9533 + $0xb8] sm:$0xff]
    %v9558 = vld [vmem:[%s9533 + $0xc0] sm:$0xff]
    %v9559 = vld [vmem:[%s9533 + $0xc8] sm:$0xff]
    %v9560 = vld [vmem:[%s9533 + $0xd0] sm:$0xff]
    %v9561 = vld [vmem:[%s9533 + $0xd8] sm:$0xff]
    %v9562 = vld [vmem:[%s9533 + $0xe0] sm:$0xff]
    %v9563 = vld [vmem:[%s9533 + $0xe8] sm:$0xff]
    %v9564 = vld [vmem:[%s9533 + $0xf0] sm:$0xff]
    %v9565 = vld [vmem:[%s9533 + $0xf8] sm:$0xff]
    %v9566 = vld [vmem:[%s9533 + $0x100] sm:$0xff]
    %v9567 = vld [vmem:[%s9533 + $0x108] sm:$0xff]
    %v9568 = vld [vmem:[%s9533 + $0x110] sm:$0xff]
    %v9569 = vld [vmem:[%s9533 + $0x118] sm:$0xff]
    %v9570 = vld [vmem:[%s9533 + $0x120] sm:$0xff]
    %v9571 = vld [vmem:[%s9533 + $0x128] sm:$0xff]
    %v9572 = vld [vmem:[%s9533 + $0x130] sm:$0xff]
    %v9573 = vld [vmem:[%s9533 + $0x138] sm:$0xff]
    %v9574 = vld [vmem:[%s9533 + $0x140] sm:$0xff]
    %v9575 = vld [vmem:[%s9533 + $0x148] sm:$0xff]
    %v9576 = vld [vmem:[%s9533 + $0x150] sm:$0xff]
    %v9577 = vld [vmem:[%s9533 + $0x158] sm:$0xff]
    %v9578 = vld [vmem:[%s9533 + $0x160] sm:$0xff]
    %v9579 = vld [vmem:[%s9533 + $0x168] sm:$0xff]
    %v9580 = vld [vmem:[%s9533 + $0x170] sm:$0xff]
    %v9581 = vld [vmem:[%s9533 + $0x178] sm:$0xff]
    %v9582 = vld [vmem:[%s9533 + $0x180] sm:$0xff]
    %v9583 = vld [vmem:[%s9533 + $0x188] sm:$0xff]
    %v9584 = vld [vmem:[%s9533 + $0x190] sm:$0xff]
    %v9585 = vld [vmem:[%s9533 + $0x198] sm:$0xff]
    %v9586 = vld [vmem:[%s9533 + $0x1a0] sm:$0xff]
    %v9587 = vld [vmem:[%s9533 + $0x1a8] sm:$0xff]
    %v9588 = vld [vmem:[%s9533 + $0x1b0] sm:$0xff]
    %v9589 = vld [vmem:[%s9533 + $0x1b8] sm:$0xff]
    %v9590 = vld [vmem:[%s9533 + $0x1c0] sm:$0xff]
    %v9591 = vld [vmem:[%s9533 + $0x1c8] sm:$0xff]
    %v9592 = vld [vmem:[%s9533 + $0x1d0] sm:$0xff]
    %v9593 = vld [vmem:[%s9533 + $0x1d8] sm:$0xff]
    %v9594 = vld [vmem:[%s9533 + $0x1e0] sm:$0xff]
    %v9595 = vld [vmem:[%s9533 + $0x1e8] sm:$0xff]
    %v9596 = vld [vmem:[%s9533 + $0x1f0] sm:$0xff]
    %v9597 = vld [vmem:[%s9533 + $0x1f8] sm:$0xff]
    %v9598 = vld [vmem:[%s9533 + $0x200] sm:$0xff]
    %v9599 = vld [vmem:[%s9533 + $0x208] sm:$0xff]
    %v9600 = vld [vmem:[%s9533 + $0x210] sm:$0xff]
    %v9601 = vld [vmem:[%s9533 + $0x218] sm:$0xff]
    %v9602 = vld [vmem:[%s9533 + $0x220] sm:$0xff]
    %v9603 = vld [vmem:[%s9533 + $0x228] sm:$0xff]
    %v9604 = vld [vmem:[%s9533 + $0x230] sm:$0xff]
    %v9605 = vld [vmem:[%s9533 + $0x238] sm:$0xff]
    %v9606 = vld [vmem:[%s9533 + $0x240] sm:$0xff]
    %v9607 = vld [vmem:[%s9533 + $0x248] sm:$0xff]
    %v9608 = vld [vmem:[%s9533 + $0x250] sm:$0xff]
    %v9609 = vld [vmem:[%s9533 + $0x258] sm:$0xff]
    %v9610 = vld [vmem:[%s9533 + $0x260] sm:$0xff]
    %v9611 = vld [vmem:[%s9533 + $0x268] sm:$0xff]
    %v9612 = vld [vmem:[%s9533 + $0x270] sm:$0xff]
    %v9613 = vld [vmem:[%s9533 + $0x278] sm:$0xff]
    %v9614 = vld [vmem:[%s9533 + $0x280] sm:$0xff]
    %v9615 = vld [vmem:[%s9533 + $0x288] sm:$0xff]
    %v9616 = vld [vmem:[%s9533 + $0x290] sm:$0xff]
    %v9617 = vld [vmem:[%s9533 + $0x298] sm:$0xff]
    %v9618 = vld [vmem:[%s9533 + $0x2a0] sm:$0xff]
    %v9619 = vld [vmem:[%s9533 + $0x2a8] sm:$0xff]
    %v9620 = vld [vmem:[%s9533 + $0x2b0] sm:$0xff]
    %v9621 = vld [vmem:[%s9533 + $0x2b8] sm:$0xff]
    %v9622 = vld [vmem:[%s9533 + $0x2c0] sm:$0xff]
    %v9623 = vld [vmem:[%s9533 + $0x2c8] sm:$0xff]
    %v9624 = vld [vmem:[%s9533 + $0x2d0] sm:$0xff]
    %v9625 = vld [vmem:[%s9533 + $0x2d8] sm:$0xff]
    %v9626 = vld [vmem:[%s9533 + $0x2e0] sm:$0xff]
    %v9627 = vld [vmem:[%s9533 + $0x2e8] sm:$0xff]
    %v9628 = vld [vmem:[%s9533 + $0x2f0] sm:$0xff]
    %v9629 = vld [vmem:[%s9533 + $0x2f8] sm:$0xff]
    %v9630 = vld [vmem:[%s9533 + $0x300] sm:$0xff]
    %v9631 = vld [vmem:[%s9533 + $0x308] sm:$0xff]
    %v9632 = vld [vmem:[%s9533 + $0x310] sm:$0xff]
    %v9633 = vld [vmem:[%s9533 + $0x318] sm:$0xff]
    %v9634 = vld [vmem:[%s9533 + $0x320] sm:$0xff]
    %v9635 = vld [vmem:[%s9533 + $0x328] sm:$0xff]
    %v9636 = vld [vmem:[%s9533 + $0x330] sm:$0xff]
    %v9637 = vld [vmem:[%s9533 + $0x338] sm:$0xff]
    %v9638 = vld [vmem:[%s9533 + $0x340] sm:$0xff]
    %v9639 = vld [vmem:[%s9533 + $0x348] sm:$0xff]
    %v9640 = vld [vmem:[%s9533 + $0x350] sm:$0xff]
    %v9641 = vld [vmem:[%s9533 + $0x358] sm:$0xff]
    %v9642 = vld [vmem:[%s9533 + $0x360] sm:$0xff]
    %v9643 = vld [vmem:[%s9533 + $0x368] sm:$0xff]
    %v9644 = vld [vmem:[%s9533 + $0x370] sm:$0xff]
    %v9645 = vld [vmem:[%s9533 + $0x378] sm:$0xff]
    %v9646 = vld [vmem:[%s9533 + $0x380] sm:$0xff]
    %v9647 = vld [vmem:[%s9533 + $0x388] sm:$0xff]
    %v9648 = vld [vmem:[%s9533 + $0x390] sm:$0xff]
    %v9649 = vld [vmem:[%s9533 + $0x398] sm:$0xff]
    %v9650 = vld [vmem:[%s9533 + $0x3a0] sm:$0xff]
    %v9651 = vld [vmem:[%s9533 + $0x3a8] sm:$0xff]
    %v9652 = vld [vmem:[%s9533 + $0x3b0] sm:$0xff]
    %v9653 = vld [vmem:[%s9533 + $0x3b8] sm:$0xff]
    %v9654 = vld [vmem:[%s9533 + $0x3c0] sm:$0xff]
    %v9655 = vld [vmem:[%s9533 + $0x3c8] sm:$0xff]
    %v9656 = vld [vmem:[%s9533 + $0x3d0] sm:$0xff]
    %v9657 = vld [vmem:[%s9533 + $0x3d8] sm:$0xff]
    %v9658 = vld [vmem:[%s9533 + $0x3e0] sm:$0xff]
    %v9659 = vld [vmem:[%s9533 + $0x3e8] sm:$0xff]
    %v9660 = vld [vmem:[%s9533 + $0x3f0] sm:$0xff]
    %v9661 = vld [vmem:[%s9533 + $0x3f8] sm:$0xff]
    %v9790 = vunpack.c.l.b16 %v9534
    %v9791 = vunpack.c.h.b16 %v9534
    %v9792 = vunpack.c.l.b16 %v9535
    %v9793 = vunpack.c.h.b16 %v9535
    %v9794 = vunpack.c.l.b16 %v9536
    %v9795 = vunpack.c.h.b16 %v9536
    %v9796 = vunpack.c.l.b16 %v9537
    %v9797 = vunpack.c.h.b16 %v9537
    %v9798 = vunpack.c.l.b16 %v9538
    %v9799 = vunpack.c.h.b16 %v9538
    %v9800 = vunpack.c.l.b16 %v9539
    %v9801 = vunpack.c.h.b16 %v9539
    %v9802 = vunpack.c.l.b16 %v9540
    %v9803 = vunpack.c.h.b16 %v9540
    %v9804 = vunpack.c.l.b16 %v9541
    %v9805 = vunpack.c.h.b16 %v9541
    %v9806 = vunpack.c.l.b16 %v9542
    %v9807 = vunpack.c.h.b16 %v9542
    %v9808 = vunpack.c.l.b16 %v9543
    %v9809 = vunpack.c.h.b16 %v9543
    %v9810 = vunpack.c.l.b16 %v9544
    %v9811 = vunpack.c.h.b16 %v9544
    %v9812 = vunpack.c.l.b16 %v9545
    %v9813 = vunpack.c.h.b16 %v9545
    %v9814 = vunpack.c.l.b16 %v9546
    %v9815 = vunpack.c.h.b16 %v9546
    %v9816 = vunpack.c.l.b16 %v9547
    %v9817 = vunpack.c.h.b16 %v9547
    %v9818 = vunpack.c.l.b16 %v9548
    %v9819 = vunpack.c.h.b16 %v9548
    %v9820 = vunpack.c.l.b16 %v9549
    %v9821 = vunpack.c.h.b16 %v9549
    %v9822 = vunpack.c.l.b16 %v9550
    %v9823 = vunpack.c.h.b16 %v9550
    %v9824 = vunpack.c.l.b16 %v9551
    %v9825 = vunpack.c.h.b16 %v9551
    %v9826 = vunpack.c.l.b16 %v9552
    %v9827 = vunpack.c.h.b16 %v9552
    %v9828 = vunpack.c.l.b16 %v9553
    %v9829 = vunpack.c.h.b16 %v9553
    %v9830 = vunpack.c.l.b16 %v9554
    %v9831 = vunpack.c.h.b16 %v9554
    %v9832 = vunpack.c.l.b16 %v9555
    %v9833 = vunpack.c.h.b16 %v9555
    %v9834 = vunpack.c.l.b16 %v9556
    %v9835 = vunpack.c.h.b16 %v9556
    %v9836 = vunpack.c.l.b16 %v9557
    %v9837 = vunpack.c.h.b16 %v9557
    %v9838 = vunpack.c.l.b16 %v9558
    %v9839 = vunpack.c.h.b16 %v9558
    %v9840 = vunpack.c.l.b16 %v9559
    %v9841 = vunpack.c.h.b16 %v9559
    %v9842 = vunpack.c.l.b16 %v9560
    %v9843 = vunpack.c.h.b16 %v9560
    %v9844 = vunpack.c.l.b16 %v9561
    %v9845 = vunpack.c.h.b16 %v9561
    %v9846 = vunpack.c.l.b16 %v9562
    %v9847 = vunpack.c.h.b16 %v9562
    %v9848 = vunpack.c.l.b16 %v9563
    %v9849 = vunpack.c.h.b16 %v9563
    %v9850 = vunpack.c.l.b16 %v9564
    %v9851 = vunpack.c.h.b16 %v9564
    %v9852 = vunpack.c.l.b16 %v9565
    %v9853 = vunpack.c.h.b16 %v9565
    %v9854 = vunpack.c.l.b16 %v9566
    %v9855 = vunpack.c.h.b16 %v9566
    %v9856 = vunpack.c.l.b16 %v9567
    %v9857 = vunpack.c.h.b16 %v9567
    %v9858 = vunpack.c.l.b16 %v9568
    %v9859 = vunpack.c.h.b16 %v9568
    %v9860 = vunpack.c.l.b16 %v9569
    %v9861 = vunpack.c.h.b16 %v9569
    %v9862 = vunpack.c.l.b16 %v9570
    %v9863 = vunpack.c.h.b16 %v9570
    %v9864 = vunpack.c.l.b16 %v9571
    %v9865 = vunpack.c.h.b16 %v9571
    %v9866 = vunpack.c.l.b16 %v9572
    %v9867 = vunpack.c.h.b16 %v9572
    %v9868 = vunpack.c.l.b16 %v9573
    %v9869 = vunpack.c.h.b16 %v9573
    %v9870 = vunpack.c.l.b16 %v9574
    %v9871 = vunpack.c.h.b16 %v9574
    %v9872 = vunpack.c.l.b16 %v9575
    %v9873 = vunpack.c.h.b16 %v9575
    %v9874 = vunpack.c.l.b16 %v9576
    %v9875 = vunpack.c.h.b16 %v9576
    %v9876 = vunpack.c.l.b16 %v9577
    %v9877 = vunpack.c.h.b16 %v9577
    %v9878 = vunpack.c.l.b16 %v9578
    %v9879 = vunpack.c.h.b16 %v9578
    %v9880 = vunpack.c.l.b16 %v9579
    %v9881 = vunpack.c.h.b16 %v9579
    %v9882 = vunpack.c.l.b16 %v9580
    %v9883 = vunpack.c.h.b16 %v9580
    %v9884 = vunpack.c.l.b16 %v9581
    %v9885 = vunpack.c.h.b16 %v9581
    %v9886 = vunpack.c.l.b16 %v9582
    %v9887 = vunpack.c.h.b16 %v9582
    %v9888 = vunpack.c.l.b16 %v9583
    %v9889 = vunpack.c.h.b16 %v9583
    %v9890 = vunpack.c.l.b16 %v9584
    %v9891 = vunpack.c.h.b16 %v9584
    %v9892 = vunpack.c.l.b16 %v9585
    %v9893 = vunpack.c.h.b16 %v9585
    %v9894 = vunpack.c.l.b16 %v9586
    %v9895 = vunpack.c.h.b16 %v9586
    %v9896 = vunpack.c.l.b16 %v9587
    %v9897 = vunpack.c.h.b16 %v9587
    %v9898 = vunpack.c.l.b16 %v9588
    %v9899 = vunpack.c.h.b16 %v9588
    %v9900 = vunpack.c.l.b16 %v9589
    %v9901 = vunpack.c.h.b16 %v9589
    %v9902 = vunpack.c.l.b16 %v9590
    %v9903 = vunpack.c.h.b16 %v9590
    %v9904 = vunpack.c.l.b16 %v9591
    %v9905 = vunpack.c.h.b16 %v9591
    %v9906 = vunpack.c.l.b16 %v9592
    %v9907 = vunpack.c.h.b16 %v9592
    %v9908 = vunpack.c.l.b16 %v9593
    %v9909 = vunpack.c.h.b16 %v9593
    %v9910 = vunpack.c.l.b16 %v9594
    %v9911 = vunpack.c.h.b16 %v9594
    %v9912 = vunpack.c.l.b16 %v9595
    %v9913 = vunpack.c.h.b16 %v9595
    %v9914 = vunpack.c.l.b16 %v9596
    %v9915 = vunpack.c.h.b16 %v9596
    %v9916 = vunpack.c.l.b16 %v9597
    %v9917 = vunpack.c.h.b16 %v9597
    %v9918 = vunpack.c.l.b16 %v9598
    %v9919 = vunpack.c.h.b16 %v9598
    %v9920 = vunpack.c.l.b16 %v9599
    %v9921 = vunpack.c.h.b16 %v9599
    %v9922 = vunpack.c.l.b16 %v9600
    %v9923 = vunpack.c.h.b16 %v9600
    %v9924 = vunpack.c.l.b16 %v9601
    %v9925 = vunpack.c.h.b16 %v9601
    %v9926 = vunpack.c.l.b16 %v9602
    %v9927 = vunpack.c.h.b16 %v9602
    %v9928 = vunpack.c.l.b16 %v9603
    %v9929 = vunpack.c.h.b16 %v9603
    %v9930 = vunpack.c.l.b16 %v9604
    %v9931 = vunpack.c.h.b16 %v9604
    %v9932 = vunpack.c.l.b16 %v9605
    %v9933 = vunpack.c.h.b16 %v9605
    %v9934 = vunpack.c.l.b16 %v9606
    %v9935 = vunpack.c.h.b16 %v9606
    %v9936 = vunpack.c.l.b16 %v9607
    %v9937 = vunpack.c.h.b16 %v9607
    %v9938 = vunpack.c.l.b16 %v9608
    %v9939 = vunpack.c.h.b16 %v9608
    %v9940 = vunpack.c.l.b16 %v9609
    %v9941 = vunpack.c.h.b16 %v9609
    %v9942 = vunpack.c.l.b16 %v9610
    %v9943 = vunpack.c.h.b16 %v9610
    %v9944 = vunpack.c.l.b16 %v9611
    %v9945 = vunpack.c.h.b16 %v9611
    %v9946 = vunpack.c.l.b16 %v9612
    %v9947 = vunpack.c.h.b16 %v9612
    %v9948 = vunpack.c.l.b16 %v9613
    %v9949 = vunpack.c.h.b16 %v9613
    %v9950 = vunpack.c.l.b16 %v9614
    %v9951 = vunpack.c.h.b16 %v9614
    %v9952 = vunpack.c.l.b16 %v9615
    %v9953 = vunpack.c.h.b16 %v9615
    %v9954 = vunpack.c.l.b16 %v9616
    %v9955 = vunpack.c.h.b16 %v9616
    %v9956 = vunpack.c.l.b16 %v9617
    %v9957 = vunpack.c.h.b16 %v9617
    %v9958 = vunpack.c.l.b16 %v9618
    %v9959 = vunpack.c.h.b16 %v9618
    %v9960 = vunpack.c.l.b16 %v9619
    %v9961 = vunpack.c.h.b16 %v9619
    %v9962 = vunpack.c.l.b16 %v9620
    %v9963 = vunpack.c.h.b16 %v9620
    %v9964 = vunpack.c.l.b16 %v9621
    %v9965 = vunpack.c.h.b16 %v9621
    %v9966 = vunpack.c.l.b16 %v9622
    %v9967 = vunpack.c.h.b16 %v9622
    %v9968 = vunpack.c.l.b16 %v9623
    %v9969 = vunpack.c.h.b16 %v9623
    %v9970 = vunpack.c.l.b16 %v9624
    %v9971 = vunpack.c.h.b16 %v9624
    %v9972 = vunpack.c.l.b16 %v9625
    %v9973 = vunpack.c.h.b16 %v9625
    %v9974 = vunpack.c.l.b16 %v9626
    %v9975 = vunpack.c.h.b16 %v9626
    %v9976 = vunpack.c.l.b16 %v9627
    %v9977 = vunpack.c.h.b16 %v9627
    %v9978 = vunpack.c.l.b16 %v9628
    %v9979 = vunpack.c.h.b16 %v9628
    %v9980 = vunpack.c.l.b16 %v9629
    %v9981 = vunpack.c.h.b16 %v9629
    %v9982 = vunpack.c.l.b16 %v9630
    %v9983 = vunpack.c.h.b16 %v9630
    %v9984 = vunpack.c.l.b16 %v9631
    %v9985 = vunpack.c.h.b16 %v9631
    %v9986 = vunpack.c.l.b16 %v9632
    %v9987 = vunpack.c.h.b16 %v9632
    %v9988 = vunpack.c.l.b16 %v9633
    %v9989 = vunpack.c.h.b16 %v9633
    %v9990 = vunpack.c.l.b16 %v9634
    %v9991 = vunpack.c.h.b16 %v9634
    %v9992 = vunpack.c.l.b16 %v9635
    %v9993 = vunpack.c.h.b16 %v9635
    %v9994 = vunpack.c.l.b16 %v9636
    %v9995 = vunpack.c.h.b16 %v9636
    %v9996 = vunpack.c.l.b16 %v9637
    %v9997 = vunpack.c.h.b16 %v9637
    %v9998 = vunpack.c.l.b16 %v9638
    %v9999 = vunpack.c.h.b16 %v9638
    %v10000 = vunpack.c.l.b16 %v9639
    %v10001 = vunpack.c.h.b16 %v9639
    %v10002 = vunpack.c.l.b16 %v9640
    %v10003 = vunpack.c.h.b16 %v9640
    %v10004 = vunpack.c.l.b16 %v9641
    %v10005 = vunpack.c.h.b16 %v9641
    %v10006 = vunpack.c.l.b16 %v9642
    %v10007 = vunpack.c.h.b16 %v9642
    %v10008 = vunpack.c.l.b16 %v9643
    %v10009 = vunpack.c.h.b16 %v9643
    %v10010 = vunpack.c.l.b16 %v9644
    %v10011 = vunpack.c.h.b16 %v9644
    %v10012 = vunpack.c.l.b16 %v9645
    %v10013 = vunpack.c.h.b16 %v9645
    %v10014 = vunpack.c.l.b16 %v9646
    %v10015 = vunpack.c.h.b16 %v9646
    %v10016 = vunpack.c.l.b16 %v9647
    %v10017 = vunpack.c.h.b16 %v9647
    %v10018 = vunpack.c.l.b16 %v9648
    %v10019 = vunpack.c.h.b16 %v9648
    %v10020 = vunpack.c.l.b16 %v9649
    %v10021 = vunpack.c.h.b16 %v9649
    %v10022 = vunpack.c.l.b16 %v9650
    %v10023 = vunpack.c.h.b16 %v9650
    %v10024 = vunpack.c.l.b16 %v9651
    %v10025 = vunpack.c.h.b16 %v9651
    %v10026 = vunpack.c.l.b16 %v9652
    %v10027 = vunpack.c.h.b16 %v9652
    %v10028 = vunpack.c.l.b16 %v9653
    %v10029 = vunpack.c.h.b16 %v9653
    %v10030 = vunpack.c.l.b16 %v9654
    %v10031 = vunpack.c.h.b16 %v9654
    %v10032 = vunpack.c.l.b16 %v9655
    %v10033 = vunpack.c.h.b16 %v9655
    %v10034 = vunpack.c.l.b16 %v9656
    %v10035 = vunpack.c.h.b16 %v9656
    %v10036 = vunpack.c.l.b16 %v9657
    %v10037 = vunpack.c.h.b16 %v9657
    %v10038 = vunpack.c.l.b16 %v9658
    %v10039 = vunpack.c.h.b16 %v9658
    %v10040 = vunpack.c.l.b16 %v9659
    %v10041 = vunpack.c.h.b16 %v9659
    %v10042 = vunpack.c.l.b16 %v9660
    %v10043 = vunpack.c.h.b16 %v9660
    %v10044 = vunpack.c.l.b16 %v9661
    %v10045 = vunpack.c.h.b16 %v9661
    %v10046 = vpack.c.b16 %v9794, %v9790
    %v10047 = vpack.c.b16 %v9795, %v9791
    %v10048 = vpack.c.b16 %v9796, %v9792
    %v10049 = vpack.c.b16 %v9797, %v9793
    %v10050 = vpack.c.b16 %v9802, %v9798
    %v10051 = vpack.c.b16 %v9803, %v9799
    %v10052 = vpack.c.b16 %v9804, %v9800
    %v10053 = vpack.c.b16 %v9805, %v9801
    %v10054 = vpack.c.b16 %v9810, %v9806
    %v10055 = vpack.c.b16 %v9811, %v9807
    %v10056 = vpack.c.b16 %v9812, %v9808
    %v10057 = vpack.c.b16 %v9813, %v9809
    %v10058 = vpack.c.b16 %v9818, %v9814
    %v10059 = vpack.c.b16 %v9819, %v9815
    %v10060 = vpack.c.b16 %v9820, %v9816
    %v10061 = vpack.c.b16 %v9821, %v9817
    %v10062 = vpack.c.b16 %v9826, %v9822
    %v10063 = vpack.c.b16 %v9827, %v9823
    %v10064 = vpack.c.b16 %v9828, %v9824
    %v10065 = vpack.c.b16 %v9829, %v9825
    %v10066 = vpack.c.b16 %v9834, %v9830
    %v10067 = vpack.c.b16 %v9835, %v9831
    %v10068 = vpack.c.b16 %v9836, %v9832
    %v10069 = vpack.c.b16 %v9837, %v9833
    %v10070 = vpack.c.b16 %v9842, %v9838
    %v10071 = vpack.c.b16 %v9843, %v9839
    %v10072 = vpack.c.b16 %v9844, %v9840
    %v10073 = vpack.c.b16 %v9845, %v9841
    %v10074 = vpack.c.b16 %v9850, %v9846
    %v10075 = vpack.c.b16 %v9851, %v9847
    %v10076 = vpack.c.b16 %v9852, %v9848
    %v10077 = vpack.c.b16 %v9853, %v9849
    %v10078 = vpack.c.b16 %v9858, %v9854
    %v10079 = vpack.c.b16 %v9859, %v9855
    %v10080 = vpack.c.b16 %v9860, %v9856
    %v10081 = vpack.c.b16 %v9861, %v9857
    %v10082 = vpack.c.b16 %v9866, %v9862
    %v10083 = vpack.c.b16 %v9867, %v9863
    %v10084 = vpack.c.b16 %v9868, %v9864
    %v10085 = vpack.c.b16 %v9869, %v9865
    %v10086 = vpack.c.b16 %v9874, %v9870
    %v10087 = vpack.c.b16 %v9875, %v9871
    %v10088 = vpack.c.b16 %v9876, %v9872
    %v10089 = vpack.c.b16 %v9877, %v9873
    %v10090 = vpack.c.b16 %v9882, %v9878
    %v10091 = vpack.c.b16 %v9883, %v9879
    %v10092 = vpack.c.b16 %v9884, %v9880
    %v10093 = vpack.c.b16 %v9885, %v9881
    %v10094 = vpack.c.b16 %v9890, %v9886
    %v10095 = vpack.c.b16 %v9891, %v9887
    %v10096 = vpack.c.b16 %v9892, %v9888
    %v10097 = vpack.c.b16 %v9893, %v9889
    %v10098 = vpack.c.b16 %v9898, %v9894
    %v10099 = vpack.c.b16 %v9899, %v9895
    %v10100 = vpack.c.b16 %v9900, %v9896
    %v10101 = vpack.c.b16 %v9901, %v9897
    %v10102 = vpack.c.b16 %v9906, %v9902
    %v10103 = vpack.c.b16 %v9907, %v9903
    %v10104 = vpack.c.b16 %v9908, %v9904
    %v10105 = vpack.c.b16 %v9909, %v9905
    %v10106 = vpack.c.b16 %v9914, %v9910
    %v10107 = vpack.c.b16 %v9915, %v9911
    %v10108 = vpack.c.b16 %v9916, %v9912
    %v10109 = vpack.c.b16 %v9917, %v9913
    %v10110 = vpack.c.b16 %v9922, %v9918
    %v10111 = vpack.c.b16 %v9923, %v9919
    %v10112 = vpack.c.b16 %v9924, %v9920
    %v10113 = vpack.c.b16 %v9925, %v9921
    %v10114 = vpack.c.b16 %v9930, %v9926
    %v10115 = vpack.c.b16 %v9931, %v9927
    %v10116 = vpack.c.b16 %v9932, %v9928
    %v10117 = vpack.c.b16 %v9933, %v9929
    %v10118 = vpack.c.b16 %v9938, %v9934
    %v10119 = vpack.c.b16 %v9939, %v9935
    %v10120 = vpack.c.b16 %v9940, %v9936
    %v10121 = vpack.c.b16 %v9941, %v9937
    %v10122 = vpack.c.b16 %v9946, %v9942
    %v10123 = vpack.c.b16 %v9947, %v9943
    %v10124 = vpack.c.b16 %v9948, %v9944
    %v10125 = vpack.c.b16 %v9949, %v9945
    %v10126 = vpack.c.b16 %v9954, %v9950
    %v10127 = vpack.c.b16 %v9955, %v9951
    %v10128 = vpack.c.b16 %v9956, %v9952
    %v10129 = vpack.c.b16 %v9957, %v9953
    %v10130 = vpack.c.b16 %v9962, %v9958
    %v10131 = vpack.c.b16 %v9963, %v9959
    %v10132 = vpack.c.b16 %v9964, %v9960
    %v10133 = vpack.c.b16 %v9965, %v9961
    %v10134 = vpack.c.b16 %v9970, %v9966
    %v10135 = vpack.c.b16 %v9971, %v9967
    %v10136 = vpack.c.b16 %v9972, %v9968
    %v10137 = vpack.c.b16 %v9973, %v9969
    %v10138 = vpack.c.b16 %v9978, %v9974
    %v10139 = vpack.c.b16 %v9979, %v9975
    %v10140 = vpack.c.b16 %v9980, %v9976
    %v10141 = vpack.c.b16 %v9981, %v9977
    %v10142 = vpack.c.b16 %v9986, %v9982
    %v10143 = vpack.c.b16 %v9987, %v9983
    %v10144 = vpack.c.b16 %v9988, %v9984
    %v10145 = vpack.c.b16 %v9989, %v9985
    %v10146 = vpack.c.b16 %v9994, %v9990
    %v10147 = vpack.c.b16 %v9995, %v9991
    %v10148 = vpack.c.b16 %v9996, %v9992
    %v10149 = vpack.c.b16 %v9997, %v9993
    %v10150 = vpack.c.b16 %v10002, %v9998
    %v10151 = vpack.c.b16 %v10003, %v9999
    %v10152 = vpack.c.b16 %v10004, %v10000
    %v10153 = vpack.c.b16 %v10005, %v10001
    %v10154 = vpack.c.b16 %v10010, %v10006
    %v10155 = vpack.c.b16 %v10011, %v10007
    %v10156 = vpack.c.b16 %v10012, %v10008
    %v10157 = vpack.c.b16 %v10013, %v10009
    %v10158 = vpack.c.b16 %v10018, %v10014
    %v10159 = vpack.c.b16 %v10019, %v10015
    %v10160 = vpack.c.b16 %v10020, %v10016
    %v10161 = vpack.c.b16 %v10021, %v10017
    %v10162 = vpack.c.b16 %v10026, %v10022
    %v10163 = vpack.c.b16 %v10027, %v10023
    %v10164 = vpack.c.b16 %v10028, %v10024
    %v10165 = vpack.c.b16 %v10029, %v10025
    %v10166 = vpack.c.b16 %v10034, %v10030
    %v10167 = vpack.c.b16 %v10035, %v10031
    %v10168 = vpack.c.b16 %v10036, %v10032
    %v10169 = vpack.c.b16 %v10037, %v10033
    %v10170 = vpack.c.b16 %v10042, %v10038
    %v10171 = vpack.c.b16 %v10043, %v10039
    %v10172 = vpack.c.b16 %v10044, %v10040
    %v10173 = vpack.c.b16 %v10045, %v10041
    %10302 = vmatprep.subr.bf16.mxu0 %v10075
    %10303 = vmatpush1.bf16.msra.mxu0 %v10074
    %10304 = vmatprep.subr.bf16.mxu0 %v10071
    %10305 = vmatpush1.bf16.msra.mxu0 %v10070
    %10306 = vmatprep.subr.bf16.mxu0 %v10067
    %10307 = vmatpush1.bf16.msra.mxu0 %v10066
    %10308 = vmatprep.subr.bf16.mxu0 %v10063
    %10309 = vmatpush1.bf16.msra.mxu0 %v10062
    %10310 = vmatprep.subr.bf16.mxu0 %v10059
    %10311 = vmatpush1.bf16.msra.mxu0 %v10058
    %10312 = vmatprep.subr.bf16.mxu0 %v10055
    %10313 = vmatpush1.bf16.msra.mxu0 %v10054
    %10314 = vmatprep.subr.bf16.mxu0 %v10051
    %10315 = vmatpush1.bf16.msra.mxu0 %v10050
    %10316 = vmatprep.subr.bf16.mxu0 %v10047
    %10317 = vmatpush1.bf16.msra.mxu0 %v10046
    %10318 = vmatprep.subr.bf16.mxu0 %v10107
    %10319 = vmatpush2.bf16.msra.mxu0 %v10106
    %10320 = vmatprep.subr.bf16.mxu0 %v10103
    %10321 = vmatpush2.bf16.msra.mxu0 %v10102
    %10322 = vmatprep.subr.bf16.mxu0 %v10099
    %10323 = vmatpush2.bf16.msra.mxu0 %v10098
    %10324 = vmatprep.subr.bf16.mxu0 %v10095
    %10325 = vmatpush2.bf16.msra.mxu0 %v10094
    %10326 = vmatprep.subr.bf16.mxu0 %v10091
    %10327 = vmatpush2.bf16.msra.mxu0 %v10090
    %10328 = vmatprep.subr.bf16.mxu0 %v10087
    %10329 = vmatpush2.bf16.msra.mxu0 %v10086
    %10330 = vmatprep.subr.bf16.mxu0 %v10083
    %10331 = vmatpush2.bf16.msra.mxu0 %v10082
    %10332 = vmatprep.subr.bf16.mxu0 %v10079
    %10333 = vmatpush2.bf16.msra.mxu0 %v10078
    %10334 = vmatprep.mubr.bf16.mxu0 %v9530
    %10335 = vmatmul.mubr.bf16.gmra.mxu0 %v9529
    %v10336 = vpop.f32.mrf.mxu0
    %v10337 = vadd.f32 0.0, %v10336
    %v10338 = vpop.f32.mrf.mxu0
    %v10339 = vadd.f32 0.0, %v10338
    %v10340 = vpop.f32.mrf.mxu0
    %v10341 = vpop.f32.mrf.mxu0
    %10342 = vdwg.mxu0
    %10343 = vmatprep.subr.bf16.mxu0 %v10139
    %10344 = vmatpush1.bf16.msra.mxu0 %v10138
    %10345 = vmatprep.subr.bf16.mxu0 %v10135
    %10346 = vmatpush1.bf16.msra.mxu0 %v10134
    %10347 = vmatprep.subr.bf16.mxu0 %v10131
    %10348 = vmatpush1.bf16.msra.mxu0 %v10130
    %10349 = vmatprep.subr.bf16.mxu0 %v10127
    %10350 = vmatpush1.bf16.msra.mxu0 %v10126
    %10351 = vmatprep.subr.bf16.mxu0 %v10123
    %10352 = vmatpush1.bf16.msra.mxu0 %v10122
    %10353 = vmatprep.subr.bf16.mxu0 %v10119
    %10354 = vmatpush1.bf16.msra.mxu0 %v10118
    %10355 = vmatprep.subr.bf16.mxu0 %v10115
    %10356 = vmatpush1.bf16.msra.mxu0 %v10114
    %10357 = vmatprep.subr.bf16.mxu0 %v10111
    %10358 = vmatpush1.bf16.msra.mxu0 %v10110
    %10359 = vmatprep.subr.bf16.mxu0 %v10171
    %10360 = vmatpush2.bf16.msra.mxu0 %v10170
    %10361 = vmatprep.subr.bf16.mxu0 %v10167
    %10362 = vmatpush2.bf16.msra.mxu0 %v10166
    %10363 = vmatprep.subr.bf16.mxu0 %v10163
    %10364 = vmatpush2.bf16.msra.mxu0 %v10162
    %10365 = vmatprep.subr.bf16.mxu0 %v10159
    %10366 = vmatpush2.bf16.msra.mxu0 %v10158
    %10367 = vmatprep.subr.bf16.mxu0 %v10155
    %10368 = vmatpush2.bf16.msra.mxu0 %v10154
    %10369 = vmatprep.subr.bf16.mxu0 %v10151
    %10370 = vmatpush2.bf16.msra.mxu0 %v10150
    %10371 = vmatprep.subr.bf16.mxu0 %v10147
    %10372 = vmatpush2.bf16.msra.mxu0 %v10146
    %10373 = vmatprep.subr.bf16.mxu0 %v10143
    %10374 = vmatpush2.bf16.msra.mxu0 %v10142
    %10375 = vmatprep.mubr.bf16.mxu0 %v9532
    %10376 = vmatmul.mubr.bf16.gmra.mxu0 %v9531
    %v10377 = vpop.f32.mrf.mxu0
    %v10378 = vadd.f32 %v10337, %v10377
    %v10379 = vpop.f32.mrf.mxu0
    %v10380 = vadd.f32 %v10339, %v10379
    %v10381 = vpop.f32.mrf.mxu0
    %v10382 = vpop.f32.mrf.mxu0
    %10383 = vdwg.mxu0
    %10384 = vmatprep.subr.bf16.mxu0 %v10077
    %10385 = vmatpush1.bf16.msra.mxu0 %v10076
    %10386 = vmatprep.subr.bf16.mxu0 %v10073
    %10387 = vmatpush1.bf16.msra.mxu0 %v10072
    %10388 = vmatprep.subr.bf16.mxu0 %v10069
    %10389 = vmatpush1.bf16.msra.mxu0 %v10068
    %10390 = vmatprep.subr.bf16.mxu0 %v10065
    %10391 = vmatpush1.bf16.msra.mxu0 %v10064
    %10392 = vmatprep.subr.bf16.mxu0 %v10061
    %10393 = vmatpush1.bf16.msra.mxu0 %v10060
    %10394 = vmatprep.subr.bf16.mxu0 %v10057
    %10395 = vmatpush1.bf16.msra.mxu0 %v10056
    %10396 = vmatprep.subr.bf16.mxu0 %v10053
    %10397 = vmatpush1.bf16.msra.mxu0 %v10052
    %10398 = vmatprep.subr.bf16.mxu0 %v10049
    %10399 = vmatpush1.bf16.msra.mxu0 %v10048
    %10400 = vmatprep.subr.bf16.mxu0 %v10109
    %10401 = vmatpush2.bf16.msra.mxu0 %v10108
    %10402 = vmatprep.subr.bf16.mxu0 %v10105
    %10403 = vmatpush2.bf16.msra.mxu0 %v10104
    %10404 = vmatprep.subr.bf16.mxu0 %v10101
    %10405 = vmatpush2.bf16.msra.mxu0 %v10100
    %10406 = vmatprep.subr.bf16.mxu0 %v10097
    %10407 = vmatpush2.bf16.msra.mxu0 %v10096
    %10408 = vmatprep.subr.bf16.mxu0 %v10093
    %10409 = vmatpush2.bf16.msra.mxu0 %v10092
    %10410 = vmatprep.subr.bf16.mxu0 %v10089
    %10411 = vmatpush2.bf16.msra.mxu0 %v10088
    %10412 = vmatprep.subr.bf16.mxu0 %v10085
    %10413 = vmatpush2.bf16.msra.mxu0 %v10084
    %10414 = vmatprep.subr.bf16.mxu0 %v10081
    %10415 = vmatpush2.bf16.msra.mxu0 %v10080
    %10416 = vmatprep.mubr.bf16.mxu0 %v9530
    %10417 = vmatmul.mubr.bf16.gmra.mxu0 %v9529
    %v10418 = vpop.f32.mrf.mxu0
    %v10419 = vadd.f32 0.0, %v10418
    %v10420 = vpop.f32.mrf.mxu0
    %v10421 = vadd.f32 0.0, %v10420
    %v10422 = vpop.f32.mrf.mxu0
    %v10423 = vpop.f32.mrf.mxu0
    %10424 = vdwg.mxu0
    %10425 = vmatprep.subr.bf16.mxu0 %v10141
    %10426 = vmatpush1.bf16.msra.mxu0 %v10140
    %10427 = vmatprep.subr.bf16.mxu0 %v10137
    %10428 = vmatpush1.bf16.msra.mxu0 %v10136
    %10429 = vmatprep.subr.bf16.mxu0 %v10133
    %10430 = vmatpush1.bf16.msra.mxu0 %v10132
    %10431 = vmatprep.subr.bf16.mxu0 %v10129
    %10432 = vmatpush1.bf16.msra.mxu0 %v10128
    %10433 = vmatprep.subr.bf16.mxu0 %v10125
    %10434 = vmatpush1.bf16.msra.mxu0 %v10124
    %10435 = vmatprep.subr.bf16.mxu0 %v10121
    %10436 = vmatpush1.bf16.msra.mxu0 %v10120
    %10437 = vmatprep.subr.bf16.mxu0 %v10117
    %10438 = vmatpush1.bf16.msra.mxu0 %v10116
    %10439 = vmatprep.subr.bf16.mxu0 %v10113
    %10440 = vmatpush1.bf16.msra.mxu0 %v10112
    %10441 = vmatprep.subr.bf16.mxu0 %v10173
    %10442 = vmatpush2.bf16.msra.mxu0 %v10172
    %10443 = vmatprep.subr.bf16.mxu0 %v10169
    %10444 = vmatpush2.bf16.msra.mxu0 %v10168
    %10445 = vmatprep.subr.bf16.mxu0 %v10165
    %10446 = vmatpush2.bf16.msra.mxu0 %v10164
    %10447 = vmatprep.subr.bf16.mxu0 %v10161
    %10448 = vmatpush2.bf16.msra.mxu0 %v10160
    %10449 = vmatprep.subr.bf16.mxu0 %v10157
    %10450 = vmatpush2.bf16.msra.mxu0 %v10156
    %10451 = vmatprep.subr.bf16.mxu0 %v10153
    %10452 = vmatpush2.bf16.msra.mxu0 %v10152
    %10453 = vmatprep.subr.bf16.mxu0 %v10149
    %10454 = vmatpush2.bf16.msra.mxu0 %v10148
    %10455 = vmatprep.subr.bf16.mxu0 %v10145
    %10456 = vmatpush2.bf16.msra.mxu0 %v10144
    %10457 = vmatprep.mubr.bf16.mxu0 %v9532
    %10458 = vmatmul.mubr.bf16.gmra.mxu0 %v9531
    %v10459 = vpop.f32.mrf.mxu0
    %v10460 = vadd.f32 %v10419, %v10459
    %v10461 = vpop.f32.mrf.mxu0
    %v10462 = vadd.f32 %v10421, %v10461
    %v10463 = vpop.f32.mrf.mxu0
    %v10464 = vpop.f32.mrf.mxu0
    %10465 = vdwg.mxu0
    %v10466 = vadd.f32 %v9441, %v10378
    %v10467 = vadd.f32 %v9443, %v10380
    %v10468 = vadd.f32 %v9523, %v10460
    %v10469 = vadd.f32 %v9525, %v10462
    %v10470 = vsel %vm3959, %v10466, 0.0
    %v10471 = vrot.slane %v10470, 4
    %v10472 = vadd.f32 %v10470, %v10471
    %v10473 = vrot.slane %v10472, 2
    %v10474 = vadd.f32 %v10472, %v10473
    %v10475 = vrot.slane %v10474, 1
    %v10476 = vadd.f32 %v10474, %v10475
    %v10477 = vsel %vm3959, %v10467, 0.0
    %v10478 = vrot.slane %v10477, 4
    %v10479 = vadd.f32 %v10477, %v10478
    %v10480 = vrot.slane %v10479, 2
    %v10481 = vadd.f32 %v10479, %v10480
    %v10482 = vrot.slane %v10481, 1
    %v10483 = vadd.f32 %v10481, %v10482
    %v10484 = vsel %vm3959, %v10468, 0.0
    %v10485 = vrot.slane %v10484, 4
    %v10486 = vadd.f32 %v10484, %v10485
    %v10487 = vrot.slane %v10486, 2
    %v10488 = vadd.f32 %v10486, %v10487
    %v10489 = vrot.slane %v10488, 1
    %v10490 = vadd.f32 %v10488, %v10489
    %v10491 = vsel %vm3959, %v10469, 0.0
    %v10492 = vrot.slane %v10491, 4
    %v10493 = vadd.f32 %v10491, %v10492
    %v10494 = vrot.slane %v10493, 2
    %v10495 = vadd.f32 %v10493, %v10494
    %v10496 = vrot.slane %v10495, 1
    %v10497 = vadd.f32 %v10495, %v10496
    %v10498 = vmul.f32 %v10476, 0.25
    %v10499 = vmul.f32 %v10483, 0.25
    %v10500 = vmul.f32 %v10490, 0.25
    %v10501 = vmul.f32 %v10497, 0.25
    %v10502 = vmul.f32 %v10466, %v10466
    %v10503 = vmul.f32 %v10467, %v10467
    %v10504 = vmul.f32 %v10468, %v10468
    %v10505 = vmul.f32 %v10469, %v10469
    %v10506 = vsel %vm3959, %v10502, 0.0
    %v10507 = vrot.slane %v10506, 4
    %v10508 = vadd.f32 %v10506, %v10507
    %v10509 = vrot.slane %v10508, 2
    %v10510 = vadd.f32 %v10508, %v10509
    %v10511 = vrot.slane %v10510, 1
    %v10512 = vadd.f32 %v10510, %v10511
    %v10513 = vsel %vm3959, %v10503, 0.0
    %v10514 = vrot.slane %v10513, 4
    %v10515 = vadd.f32 %v10513, %v10514
    %v10516 = vrot.slane %v10515, 2
    %v10517 = vadd.f32 %v10515, %v10516
    %v10518 = vrot.slane %v10517, 1
    %v10519 = vadd.f32 %v10517, %v10518
    %v10520 = vsel %vm3959, %v10504, 0.0
    %v10521 = vrot.slane %v10520, 4
    %v10522 = vadd.f32 %v10520, %v10521
    %v10523 = vrot.slane %v10522, 2
    %v10524 = vadd.f32 %v10522, %v10523
    %v10525 = vrot.slane %v10524, 1
    %v10526 = vadd.f32 %v10524, %v10525
    %v10527 = vsel %vm3959, %v10505, 0.0
    %v10528 = vrot.slane %v10527, 4
    %v10529 = vadd.f32 %v10527, %v10528
    %v10530 = vrot.slane %v10529, 2
    %v10531 = vadd.f32 %v10529, %v10530
    %v10532 = vrot.slane %v10531, 1
    %v10533 = vadd.f32 %v10531, %v10532
    %v10534 = vmul.f32 %v10512, 0.25
    %v10535 = vmul.f32 %v10519, 0.25
    %v10536 = vmul.f32 %v10526, 0.25
    %v10537 = vmul.f32 %v10533, 0.25
    %v10538 = vmul.f32 %v10498, %v10498
    %v10539 = vmul.f32 %v10499, %v10499
    %v10540 = vmul.f32 %v10500, %v10500
    %v10541 = vmul.f32 %v10501, %v10501
    %v10542 = vsub.f32 %v10534, %v10538
    %v10543 = vsub.f32 %v10535, %v10539
    %v10544 = vsub.f32 %v10536, %v10540
    %v10545 = vsub.f32 %v10537, %v10541
    %v10546 = vmax.f32 %v10542, 0.0
    %v10547 = vmax.f32 %v10543, 0.0
    %v10548 = vmax.f32 %v10544, 0.0
    %v10549 = vmax.f32 %v10545, 0.0
    %v10550 = vld [vmem:[%s65] sm:$0xf]
    %v10551 = vadd.f32 %v10546, 1e-05
    %v10552 = vadd.f32 %v10547, 1e-05
    %v10553 = vadd.f32 %v10548, 1e-05
    %v10554 = vadd.f32 %v10549, 1e-05
    %v10555 = vrsqrt.pop %v10551
    %v10556 = vrsqrt.pop %v10552
    %v10557 = vrsqrt.pop %v10553
    %v10558 = vrsqrt.pop %v10554
    %v10563 = vcombine.low %v10555, %v10556
    %v10564 = vcombine.low %v10557, %v10558
    %v10566 = vunpack.c.l.s4 1966171168
    %v10567 = vunpack.c.0.s8 %v10566
    %v10568 = vlaneseq
    %v10569 = vshrl.u32 %v10568, 7
    %v10570 = vsub.s32 %v10567, %v10569
    %v10571 = vrot.slane %v10563, %v10570
    %v10573 = vunpack.c.l.s4 1966171168
    %v10574 = vunpack.c.0.s8 %v10573
    %v10575 = vlaneseq
    %v10576 = vshrl.u32 %v10575, 7
    %v10577 = vsub.s32 %v10574, %v10576
    %v10578 = vrot.slane %v10564, %v10577
    %v10579 = vcombine.low %v10571, %v10578
    %v10581 = vunpack.c.l.s4 1966171168
    %v10582 = vunpack.c.0.s8 %v10581
    %v10583 = vlaneseq
    %v10584 = vshrl.u32 %v10583, 7
    %v10585 = vsub.s32 %v10582, %v10584
    %v10586 = vrot.slane %v10579, %v10585
    %v10588 = vmul.f32 %v10550, %v10586
    %v10589 = vld [vmem:[%s67] sm:$0xf]
    %v10591 = vlaneseq
    %v10592 = vshrl.u32 %v10591, 7
    %v10593 = vsub.s32 0, %v10592
    %v10594 = vrot.slane %v10588, %v10593
    %v10595 = vlaneseq
    %v10596 = vshrl.u32 %v10595, 7
    %v10597 = vsub.s32 1, %v10596
    %v10598 = vrot.slane %v10588, %v10597
    %v10599 = vlaneseq
    %v10600 = vshrl.u32 %v10599, 7
    %v10601 = vsub.s32 2, %v10600
    %v10602 = vrot.slane %v10588, %v10601
    %v10603 = vlaneseq
    %v10604 = vshrl.u32 %v10603, 7
    %v10605 = vsub.s32 3, %v10604
    %v10606 = vrot.slane %v10588, %v10605
    %v10611 = vmul.f32 %v10498, %v10594
    %v10612 = vmul.f32 %v10499, %v10598
    %v10613 = vmul.f32 %v10500, %v10602
    %v10614 = vmul.f32 %v10501, %v10606
    %v10619 = vcombine.low %v10611, %v10612
    %v10620 = vcombine.low %v10613, %v10614
    %v10622 = vunpack.c.l.s4 1966171168
    %v10623 = vunpack.c.0.s8 %v10622
    %v10624 = vlaneseq
    %v10625 = vshrl.u32 %v10624, 7
    %v10626 = vsub.s32 %v10623, %v10625
    %v10627 = vrot.slane %v10619, %v10626
    %v10629 = vunpack.c.l.s4 1966171168
    %v10630 = vunpack.c.0.s8 %v10629
    %v10631 = vlaneseq
    %v10632 = vshrl.u32 %v10631, 7
    %v10633 = vsub.s32 %v10630, %v10632
    %v10634 = vrot.slane %v10620, %v10633
    %v10635 = vcombine.low %v10627, %v10634
    %v10637 = vunpack.c.l.s4 1966171168
    %v10638 = vunpack.c.0.s8 %v10637
    %v10639 = vlaneseq
    %v10640 = vshrl.u32 %v10639, 7
    %v10641 = vsub.s32 %v10638, %v10640
    %v10642 = vrot.slane %v10635, %v10641
    %v10644 = vsub.f32 %v10589, %v10642
    %v10645 = vmul.f32 %v10466, %v10594
    %v10646 = vmul.f32 %v10467, %v10598
    %v10647 = vmul.f32 %v10468, %v10602
    %v10648 = vmul.f32 %v10469, %v10606
    %v10650 = vlaneseq
    %v10651 = vshrl.u32 %v10650, 7
    %v10652 = vsub.s32 0, %v10651
    %v10653 = vrot.slane %v10644, %v10652
    %v10654 = vlaneseq
    %v10655 = vshrl.u32 %v10654, 7
    %v10656 = vsub.s32 1, %v10655
    %v10657 = vrot.slane %v10644, %v10656
    %v10658 = vlaneseq
    %v10659 = vshrl.u32 %v10658, 7
    %v10660 = vsub.s32 2, %v10659
    %v10661 = vrot.slane %v10644, %v10660
    %v10662 = vlaneseq
    %v10663 = vshrl.u32 %v10662, 7
    %v10664 = vsub.s32 3, %v10663
    %v10665 = vrot.slane %v10644, %v10664
    %v10670 = vadd.f32 %v10645, %v10653
    %v10671 = vadd.f32 %v10646, %v10657
    %v10672 = vadd.f32 %v10647, %v10661
    %v10673 = vadd.f32 %v10648, %v10665
    %v10674 = vadd.f32 %v10670, %v7364
    %v10675 = vadd.f32 %v10671, %v7365
    %v10676 = vadd.f32 %v10672, %v7366
    %v10677 = vadd.f32 %v10673, %v7367
    %v10678 = vmax.f32 %v10674, 0.0
    %v10679 = vmax.f32 %v10675, 0.0
    %v10680 = vmax.f32 %v10676, 0.0
    %v10681 = vmax.f32 %v10677, 0.0
    %vm10682 = vcmp.eq.s32.totalorder %v581, 0
    %vm10683 = vmand %vm10682, %vm599
    %vm10684 = vmand %vm10683, %vm7372
    %vm10685 = vcmp.eq.s32.totalorder %v581, 1
    %vm10686 = vmand %vm10685, %vm7374
    %vm10687 = vmand %vm10686, %vm3946
    %vm10688 = vmor %vm10684, %vm10687
    %v10689 = vsel %vm10688, 0.5, 0.0
    %v10691 = vsel %vm7381, %v10689, 0
    %v10694 = vsel %vm3959, %v10678, 0
    %v10697 = vsel %vm3959, %v10679, 0
    %v10700 = vsel %vm3959, %v10680, 0
    %v10703 = vsel %vm3959, %v10681, 0
    %10705 = vmatprep.subr.mxu0 0.0
    %10706 = vmatpush1.msra.mxu0 0.0
    %10707 = vmatprep.subr.mxu0 0.0
    %10708 = vmatpush1.msra.mxu0 0.0
    %10709 = vmatprep.subr.mxu0 0.0
    %10710 = vmatpush1.msra.mxu0 0.0
    %10711 = vmatprep.subr.mxu0 0.0
    %10712 = vmatpush1.msra.mxu0 0.0
    %10713 = vmatprep.subr.mxu0 0.0
    %10714 = vmatpush1.msra.mxu0 0.0
    %10715 = vmatprep.subr.mxu0 0.0
    %10716 = vmatpush1.msra.mxu0 0.0
    %10717 = vmatprep.subr.mxu0 0.0
    %10718 = vmatpush1.msra.mxu0 0.0
    %10719 = vmatprep.subr.mxu0 0.0
    %10720 = vmatpush1.msra.mxu0 0.0
    %10721 = vmatprep.subr.mxu0 0.0
    %10722 = vmatpush1.msra.mxu0 0.0
    %10723 = vmatprep.subr.mxu0 0.0
    %10724 = vmatpush1.msra.mxu0 0.0
    %10725 = vmatprep.subr.mxu0 0.0
    %10726 = vmatpush1.msra.mxu0 0.0
    %10727 = vmatprep.subr.mxu0 0.0
    %10728 = vmatpush1.msra.mxu0 0.0
    %10729 = vmatprep.subr.mxu0 0.0
    %10730 = vmatpush1.msra.mxu0 0.0
    %10731 = vmatprep.subr.mxu0 0.0
    %10732 = vmatpush1.msra.mxu0 0.0
    %10733 = vmatprep.subr.mxu0 0.0
    %10734 = vmatpush1.msra.mxu0 0.0
    %10735 = vmatprep.subr.mxu0 %v10697
    %10736 = vmatpush1.msra.mxu0 %v10694
    %10737 = vmatprep.subr.mxu0 0.0
    %10738 = vmatpush2.msra.mxu0 0.0
    %10739 = vmatprep.subr.mxu0 0.0
    %10740 = vmatpush2.msra.mxu0 0.0
    %10741 = vmatprep.subr.mxu0 0.0
    %10742 = vmatpush2.msra.mxu0 0.0
    %10743 = vmatprep.subr.mxu0 0.0
    %10744 = vmatpush2.msra.mxu0 0.0
    %10745 = vmatprep.subr.mxu0 0.0
    %10746 = vmatpush2.msra.mxu0 0.0
    %10747 = vmatprep.subr.mxu0 0.0
    %10748 = vmatpush2.msra.mxu0 0.0
    %10749 = vmatprep.subr.mxu0 0.0
    %10750 = vmatpush2.msra.mxu0 0.0
    %10751 = vmatprep.subr.mxu0 0.0
    %10752 = vmatpush2.msra.mxu0 0.0
    %10753 = vmatprep.subr.mxu0 0.0
    %10754 = vmatpush2.msra.mxu0 0.0
    %10755 = vmatprep.subr.mxu0 0.0
    %10756 = vmatpush2.msra.mxu0 0.0
    %10757 = vmatprep.subr.mxu0 0.0
    %10758 = vmatpush2.msra.mxu0 0.0
    %10759 = vmatprep.subr.mxu0 0.0
    %10760 = vmatpush2.msra.mxu0 0.0
    %10761 = vmatprep.subr.mxu0 0.0
    %10762 = vmatpush2.msra.mxu0 0.0
    %10763 = vmatprep.subr.mxu0 0.0
    %10764 = vmatpush2.msra.mxu0 0.0
    %10765 = vmatprep.subr.mxu0 0.0
    %10766 = vmatpush2.msra.mxu0 0.0
    %10767 = vmatprep.subr.mxu0 0.0
    %10768 = vmatpush2.msra.mxu0 0.0
    %10769 = vmatprep.mubr.f32.mxu0 0.0
    %10770 = vmatmul.mubr.f32.gmra.mxu0 %v10691
    %v10771 = vpop.f32.mrf.mxu0
    %v10772 = vadd.f32 0.0, %v10771
    %v10773 = vpop.f32.mrf.mxu0
    %v10774 = vadd.f32 0.0, %v10773
    %10775 = vdwg.mxu0
    %10776 = vmatprep.subr.mxu0 0.0
    %10777 = vmatpush1.msra.mxu0 0.0
    %10778 = vmatprep.subr.mxu0 0.0
    %10779 = vmatpush1.msra.mxu0 0.0
    %10780 = vmatprep.subr.mxu0 0.0
    %10781 = vmatpush1.msra.mxu0 0.0
    %10782 = vmatprep.subr.mxu0 0.0
    %10783 = vmatpush1.msra.mxu0 0.0
    %10784 = vmatprep.subr.mxu0 0.0
    %10785 = vmatpush1.msra.mxu0 0.0
    %10786 = vmatprep.subr.mxu0 0.0
    %10787 = vmatpush1.msra.mxu0 0.0
    %10788 = vmatprep.subr.mxu0 0.0
    %10789 = vmatpush1.msra.mxu0 0.0
    %10790 = vmatprep.subr.mxu0 0.0
    %10791 = vmatpush1.msra.mxu0 0.0
    %10792 = vmatprep.subr.mxu0 0.0
    %10793 = vmatpush1.msra.mxu0 0.0
    %10794 = vmatprep.subr.mxu0 0.0
    %10795 = vmatpush1.msra.mxu0 0.0
    %10796 = vmatprep.subr.mxu0 0.0
    %10797 = vmatpush1.msra.mxu0 0.0
    %10798 = vmatprep.subr.mxu0 0.0
    %10799 = vmatpush1.msra.mxu0 0.0
    %10800 = vmatprep.subr.mxu0 0.0
    %10801 = vmatpush1.msra.mxu0 0.0
    %10802 = vmatprep.subr.mxu0 0.0
    %10803 = vmatpush1.msra.mxu0 0.0
    %10804 = vmatprep.subr.mxu0 0.0
    %10805 = vmatpush1.msra.mxu0 0.0
    %10806 = vmatprep.subr.mxu0 %v10703
    %10807 = vmatpush1.msra.mxu0 %v10700
    %10808 = vmatprep.subr.mxu0 0.0
    %10809 = vmatpush2.msra.mxu0 0.0
    %10810 = vmatprep.subr.mxu0 0.0
    %10811 = vmatpush2.msra.mxu0 0.0
    %10812 = vmatprep.subr.mxu0 0.0
    %10813 = vmatpush2.msra.mxu0 0.0
    %10814 = vmatprep.subr.mxu0 0.0
    %10815 = vmatpush2.msra.mxu0 0.0
    %10816 = vmatprep.subr.mxu0 0.0
    %10817 = vmatpush2.msra.mxu0 0.0
    %10818 = vmatprep.subr.mxu0 0.0
    %10819 = vmatpush2.msra.mxu0 0.0
    %10820 = vmatprep.subr.mxu0 0.0
    %10821 = vmatpush2.msra.mxu0 0.0
    %10822 = vmatprep.subr.mxu0 0.0
    %10823 = vmatpush2.msra.mxu0 0.0
    %10824 = vmatprep.subr.mxu0 0.0
    %10825 = vmatpush2.msra.mxu0 0.0
    %10826 = vmatprep.subr.mxu0 0.0
    %10827 = vmatpush2.msra.mxu0 0.0
    %10828 = vmatprep.subr.mxu0 0.0
    %10829 = vmatpush2.msra.mxu0 0.0
    %10830 = vmatprep.subr.mxu0 0.0
    %10831 = vmatpush2.msra.mxu0 0.0
    %10832 = vmatprep.subr.mxu0 0.0
    %10833 = vmatpush2.msra.mxu0 0.0
    %10834 = vmatprep.subr.mxu0 0.0
    %10835 = vmatpush2.msra.mxu0 0.0
    %10836 = vmatprep.subr.mxu0 0.0
    %10837 = vmatpush2.msra.mxu0 0.0
    %10838 = vmatprep.subr.mxu0 0.0
    %10839 = vmatpush2.msra.mxu0 0.0
    %10840 = vmatprep.mubr.f32.mxu0 0.0
    %10841 = vmatmul.mubr.f32.gmra.mxu0 %v10691
    %v10842 = vpop.f32.mrf.mxu0
    %v10843 = vadd.f32 0.0, %v10842
    %v10844 = vpop.f32.mrf.mxu0
    %v10845 = vadd.f32 0.0, %v10844
    %10846 = vdwg.mxu0
    %v10847 = vld [vmem:[#allocation22] sm:$0xff]
    %v10848 = vld [vmem:[#allocation22 + $0x8] sm:$0xff]
    %v10849 = vld [vmem:[#allocation22 + $0x10] sm:$0xff]
    %v10850 = vld [vmem:[#allocation22 + $0x18] sm:$0xff]
    %v10851 = vld [vmem:[#allocation22 + $0x20] sm:$0xff]
    %v10852 = vld [vmem:[#allocation22 + $0x28] sm:$0xff]
    %v10853 = vld [vmem:[#allocation22 + $0x30] sm:$0xff]
    %v10854 = vld [vmem:[#allocation22 + $0x38] sm:$0xff]
    %v10855 = vld [vmem:[#allocation22 + $0x40] sm:$0xff]
    %v10856 = vld [vmem:[#allocation22 + $0x48] sm:$0xff]
    %v10857 = vld [vmem:[#allocation22 + $0x50] sm:$0xff]
    %v10858 = vld [vmem:[#allocation22 + $0x58] sm:$0xff]
    %v10859 = vld [vmem:[#allocation22 + $0x60] sm:$0xff]
    %v10860 = vld [vmem:[#allocation22 + $0x68] sm:$0xff]
    %v10861 = vld [vmem:[#allocation22 + $0x70] sm:$0xff]
    %v10862 = vld [vmem:[#allocation22 + $0x78] sm:$0xff]
    %v10863 = vld [vmem:[#allocation22 + $0x80] sm:$0xff]
    %v10864 = vld [vmem:[#allocation22 + $0x88] sm:$0xff]
    %v10865 = vld [vmem:[#allocation22 + $0x90] sm:$0xff]
    %v10866 = vld [vmem:[#allocation22 + $0x98] sm:$0xff]
    %v10867 = vld [vmem:[#allocation22 + $0xa0] sm:$0xff]
    %v10868 = vld [vmem:[#allocation22 + $0xa8] sm:$0xff]
    %v10869 = vld [vmem:[#allocation22 + $0xb0] sm:$0xff]
    %v10870 = vld [vmem:[#allocation22 + $0xb8] sm:$0xff]
    %v10871 = vld [vmem:[#allocation22 + $0xc0] sm:$0xff]
    %v10872 = vld [vmem:[#allocation22 + $0xc8] sm:$0xff]
    %v10873 = vld [vmem:[#allocation22 + $0xd0] sm:$0xff]
    %v10874 = vld [vmem:[#allocation22 + $0xd8] sm:$0xff]
    %v10875 = vld [vmem:[#allocation22 + $0xe0] sm:$0xff]
    %v10876 = vld [vmem:[#allocation22 + $0xe8] sm:$0xff]
    %v10877 = vld [vmem:[#allocation22 + $0xf0] sm:$0xff]
    %v10878 = vld [vmem:[#allocation22 + $0xf8] sm:$0xff]
    %v10879 = vld [vmem:[#allocation22 + $0x100] sm:$0xff]
    %v10880 = vld [vmem:[#allocation22 + $0x108] sm:$0xff]
    %v10881 = vld [vmem:[#allocation22 + $0x110] sm:$0xff]
    %v10882 = vld [vmem:[#allocation22 + $0x118] sm:$0xff]
    %v10883 = vld [vmem:[#allocation22 + $0x120] sm:$0xff]
    %v10884 = vld [vmem:[#allocation22 + $0x128] sm:$0xff]
    %v10885 = vld [vmem:[#allocation22 + $0x130] sm:$0xff]
    %v10886 = vld [vmem:[#allocation22 + $0x138] sm:$0xff]
    %v10887 = vld [vmem:[#allocation22 + $0x140] sm:$0xff]
    %v10888 = vld [vmem:[#allocation22 + $0x148] sm:$0xff]
    %v10889 = vld [vmem:[#allocation22 + $0x150] sm:$0xff]
    %v10890 = vld [vmem:[#allocation22 + $0x158] sm:$0xff]
    %v10891 = vld [vmem:[#allocation22 + $0x160] sm:$0xff]
    %v10892 = vld [vmem:[#allocation22 + $0x168] sm:$0xff]
    %v10893 = vld [vmem:[#allocation22 + $0x170] sm:$0xff]
    %v10894 = vld [vmem:[#allocation22 + $0x178] sm:$0xff]
    %v10895 = vld [vmem:[#allocation22 + $0x180] sm:$0xff]
    %v10896 = vld [vmem:[#allocation22 + $0x188] sm:$0xff]
    %v10897 = vld [vmem:[#allocation22 + $0x190] sm:$0xff]
    %v10898 = vld [vmem:[#allocation22 + $0x198] sm:$0xff]
    %v10899 = vld [vmem:[#allocation22 + $0x1a0] sm:$0xff]
    %v10900 = vld [vmem:[#allocation22 + $0x1a8] sm:$0xff]
    %v10901 = vld [vmem:[#allocation22 + $0x1b0] sm:$0xff]
    %v10902 = vld [vmem:[#allocation22 + $0x1b8] sm:$0xff]
    %v10903 = vld [vmem:[#allocation22 + $0x1c0] sm:$0xff]
    %v10904 = vld [vmem:[#allocation22 + $0x1c8] sm:$0xff]
    %v10905 = vld [vmem:[#allocation22 + $0x1d0] sm:$0xff]
    %v10906 = vld [vmem:[#allocation22 + $0x1d8] sm:$0xff]
    %v10907 = vld [vmem:[#allocation22 + $0x1e0] sm:$0xff]
    %v10908 = vld [vmem:[#allocation22 + $0x1e8] sm:$0xff]
    %v10909 = vld [vmem:[#allocation22 + $0x1f0] sm:$0xff]
    %v10910 = vld [vmem:[#allocation22 + $0x1f8] sm:$0xff]
    %v10911 = vld [vmem:[#allocation23] sm:$0x1]
    %v10913 = vlaneseq
    %v10914 = vshrl.u32 %v10913, 7
    %v10915 = vsub.s32 0, %v10914
    %v10916 = vrot.slane %v10911, %v10915
    %10918 = vmatprep.subr.mxu0 0.0
    %10919 = vmatpush1.msra.mxu0 %v10862
    %10920 = vmatprep.subr.mxu0 0.0
    %10921 = vmatpush1.msra.mxu0 %v10861
    %10922 = vmatprep.subr.mxu0 0.0
    %10923 = vmatpush1.msra.mxu0 %v10860
    %10924 = vmatprep.subr.mxu0 0.0
    %10925 = vmatpush1.msra.mxu0 %v10859
    %10926 = vmatprep.subr.mxu0 0.0
    %10927 = vmatpush1.msra.mxu0 %v10858
    %10928 = vmatprep.subr.mxu0 0.0
    %10929 = vmatpush1.msra.mxu0 %v10857
    %10930 = vmatprep.subr.mxu0 0.0
    %10931 = vmatpush1.msra.mxu0 %v10856
    %10932 = vmatprep.subr.mxu0 0.0
    %10933 = vmatpush1.msra.mxu0 %v10855
    %10934 = vmatprep.subr.mxu0 0.0
    %10935 = vmatpush1.msra.mxu0 %v10854
    %10936 = vmatprep.subr.mxu0 0.0
    %10937 = vmatpush1.msra.mxu0 %v10853
    %10938 = vmatprep.subr.mxu0 0.0
    %10939 = vmatpush1.msra.mxu0 %v10852
    %10940 = vmatprep.subr.mxu0 0.0
    %10941 = vmatpush1.msra.mxu0 %v10851
    %10942 = vmatprep.subr.mxu0 0.0
    %10943 = vmatpush1.msra.mxu0 %v10850
    %10944 = vmatprep.subr.mxu0 0.0
    %10945 = vmatpush1.msra.mxu0 %v10849
    %10946 = vmatprep.subr.mxu0 0.0
    %10947 = vmatpush1.msra.mxu0 %v10848
    %10948 = vmatprep.subr.mxu0 0.0
    %10949 = vmatpush1.msra.mxu0 %v10847
    %10950 = vmatprep.subr.mxu0 0.0
    %10951 = vmatpush2.msra.mxu0 %v10878
    %10952 = vmatprep.subr.mxu0 0.0
    %10953 = vmatpush2.msra.mxu0 %v10877
    %10954 = vmatprep.subr.mxu0 0.0
    %10955 = vmatpush2.msra.mxu0 %v10876
    %10956 = vmatprep.subr.mxu0 0.0
    %10957 = vmatpush2.msra.mxu0 %v10875
    %10958 = vmatprep.subr.mxu0 0.0
    %10959 = vmatpush2.msra.mxu0 %v10874
    %10960 = vmatprep.subr.mxu0 0.0
    %10961 = vmatpush2.msra.mxu0 %v10873
    %10962 = vmatprep.subr.mxu0 0.0
    %10963 = vmatpush2.msra.mxu0 %v10872
    %10964 = vmatprep.subr.mxu0 0.0
    %10965 = vmatpush2.msra.mxu0 %v10871
    %10966 = vmatprep.subr.mxu0 0.0
    %10967 = vmatpush2.msra.mxu0 %v10870
    %10968 = vmatprep.subr.mxu0 0.0
    %10969 = vmatpush2.msra.mxu0 %v10869
    %10970 = vmatprep.subr.mxu0 0.0
    %10971 = vmatpush2.msra.mxu0 %v10868
    %10972 = vmatprep.subr.mxu0 0.0
    %10973 = vmatpush2.msra.mxu0 %v10867
    %10974 = vmatprep.subr.mxu0 0.0
    %10975 = vmatpush2.msra.mxu0 %v10866
    %10976 = vmatprep.subr.mxu0 0.0
    %10977 = vmatpush2.msra.mxu0 %v10865
    %10978 = vmatprep.subr.mxu0 0.0
    %10979 = vmatpush2.msra.mxu0 %v10864
    %10980 = vmatprep.subr.mxu0 0.0
    %10981 = vmatpush2.msra.mxu0 %v10863
    %10982 = vmatprep.mubr.f32.mxu0 %v10774
    %10983 = vmatmul.mubr.f32.gmra.mxu0 %v10772
    %v10984 = vpop.f32.mrf.mxu0
    %v10985 = vadd.f32 %v10916, %v10984
    %v10986 = vpop.f32.mrf.mxu0
    %10987 = vdwg.mxu0
    %10988 = vmatprep.subr.mxu0 0.0
    %10989 = vmatpush1.msra.mxu0 %v10894
    %10990 = vmatprep.subr.mxu0 0.0
    %10991 = vmatpush1.msra.mxu0 %v10893
    %10992 = vmatprep.subr.mxu0 0.0
    %10993 = vmatpush1.msra.mxu0 %v10892
    %10994 = vmatprep.subr.mxu0 0.0
    %10995 = vmatpush1.msra.mxu0 %v10891
    %10996 = vmatprep.subr.mxu0 0.0
    %10997 = vmatpush1.msra.mxu0 %v10890
    %10998 = vmatprep.subr.mxu0 0.0
    %10999 = vmatpush1.msra.mxu0 %v10889
    %11000 = vmatprep.subr.mxu0 0.0
    %11001 = vmatpush1.msra.mxu0 %v10888
    %11002 = vmatprep.subr.mxu0 0.0
    %11003 = vmatpush1.msra.mxu0 %v10887
    %11004 = vmatprep.subr.mxu0 0.0
    %11005 = vmatpush1.msra.mxu0 %v10886
    %11006 = vmatprep.subr.mxu0 0.0
    %11007 = vmatpush1.msra.mxu0 %v10885
    %11008 = vmatprep.subr.mxu0 0.0
    %11009 = vmatpush1.msra.mxu0 %v10884
    %11010 = vmatprep.subr.mxu0 0.0
    %11011 = vmatpush1.msra.mxu0 %v10883
    %11012 = vmatprep.subr.mxu0 0.0
    %11013 = vmatpush1.msra.mxu0 %v10882
    %11014 = vmatprep.subr.mxu0 0.0
    %11015 = vmatpush1.msra.mxu0 %v10881
    %11016 = vmatprep.subr.mxu0 0.0
    %11017 = vmatpush1.msra.mxu0 %v10880
    %11018 = vmatprep.subr.mxu0 0.0
    %11019 = vmatpush1.msra.mxu0 %v10879
    %11020 = vmatprep.subr.mxu0 0.0
    %11021 = vmatpush2.msra.mxu0 %v10910
    %11022 = vmatprep.subr.mxu0 0.0
    %11023 = vmatpush2.msra.mxu0 %v10909
    %11024 = vmatprep.subr.mxu0 0.0
    %11025 = vmatpush2.msra.mxu0 %v10908
    %11026 = vmatprep.subr.mxu0 0.0
    %11027 = vmatpush2.msra.mxu0 %v10907
    %11028 = vmatprep.subr.mxu0 0.0
    %11029 = vmatpush2.msra.mxu0 %v10906
    %11030 = vmatprep.subr.mxu0 0.0
    %11031 = vmatpush2.msra.mxu0 %v10905
    %11032 = vmatprep.subr.mxu0 0.0
    %11033 = vmatpush2.msra.mxu0 %v10904
    %11034 = vmatprep.subr.mxu0 0.0
    %11035 = vmatpush2.msra.mxu0 %v10903
    %11036 = vmatprep.subr.mxu0 0.0
    %11037 = vmatpush2.msra.mxu0 %v10902
    %11038 = vmatprep.subr.mxu0 0.0
    %11039 = vmatpush2.msra.mxu0 %v10901
    %11040 = vmatprep.subr.mxu0 0.0
    %11041 = vmatpush2.msra.mxu0 %v10900
    %11042 = vmatprep.subr.mxu0 0.0
    %11043 = vmatpush2.msra.mxu0 %v10899
    %11044 = vmatprep.subr.mxu0 0.0
    %11045 = vmatpush2.msra.mxu0 %v10898
    %11046 = vmatprep.subr.mxu0 0.0
    %11047 = vmatpush2.msra.mxu0 %v10897
    %11048 = vmatprep.subr.mxu0 0.0
    %11049 = vmatpush2.msra.mxu0 %v10896
    %11050 = vmatprep.subr.mxu0 0.0
    %11051 = vmatpush2.msra.mxu0 %v10895
    %11052 = vmatprep.mubr.f32.mxu0 %v10845
    %11053 = vmatmul.mubr.f32.gmra.mxu0 %v10843
    %v11054 = vpop.f32.mrf.mxu0
    %v11055 = vadd.f32 %v10985, %v11054
    %v11056 = vpop.f32.mrf.mxu0
    %11057 = vdwg.mxu0
    %11058 = vst [vmem:[#allocation25] sm:$0x3] %v11055
    // Predicated region
    $region214: #{_lambda_.1} parent=1 // pred_check
      _
    $region215: #{_lambda_.1} parent=1 // pred_check_branch
      %11060 = sbr.rel (0) target = $region217
    $region216: #{_lambda_.1} parent=1 // pred_region
      %s11062 = ssub.s32 32, 32
      %11063 = vsyncadd [#allocation4], %s11062
      %s11065 = sshll.u32 [#allocation25], 4
      %s11066 = int_to_ptr.vmem [resolvable:$true] %s11065
      %11068 = dma.vmem_to_hbm [thread:$0]  %s11066, 32, %s79, [#allocation4]
    $region217: #{_lambda_.1} parent=1 // pred_fallthru
      _
    // Predicated region
    $region218: #{_lambda_.1} parent=1 // pred_check
      _
    $region219: #{_lambda_.1} parent=1 // pred_check_branch
      %11070 = sbr.rel (0) target = $region221
    $region220: #{_lambda_.1} parent=1 // pred_region
      %11071 = dma.done [#allocation4], 32
    $region221: #{_lambda_.1} parent=1 // pred_fallthru
      _
    %11072 = vsyncpa [#allocation3], 1
    %11073 = vsyncpa [#allocation6], 1
    %11074 = vsyncpa [#allocation9], 1
    %11075 = vsyncpa [#allocation12], 1
    %11076 = vsyncpa [#allocation15], 1
    %11077 = vsyncpa [#allocation18], 1
    %11078 = vsyncpa [#allocation21], 1
    %11079 = vsyncpa [#allocation24], 1
    %11080 = vsyncpa [#allocation4], 1

</llo_original>
